<compile_context>
chip_gen: v7x
topology: tpu7x:2x2x1
jax: 0.10.0
libtpu: 0.0.40
codegen_flags: <defaults>
</compile_context>

<pallas_src>
import functools

import jax
import jax.numpy as jnp
from jax.experimental import pallas as pl
from jax.experimental.pallas import tpu as pltpu

HALO = 6  # rows of context needed per side by 3 chained 5x5/s1/p2 max pools


def sppf_kernel(*args, has_halo):
    if has_halo:
        (x_ref, xt_ref, xb_ref, w1_ref, s1_ref, b1_ref,
         w2_ref, s2_ref, b2_ref, o_ref, pad_ref, acc_ref) = args
    else:
        (x_ref, w1_ref, s1_ref, b1_ref,
         w2_ref, s2_ref, b2_ref, o_ref, pad_ref, acc_ref) = args
        xt_ref = xb_ref = None

    _, TH, W, c1 = x_ref.shape
    c_ = w1_ref.shape[1]
    c2 = w2_ref.shape[2]
    dt = x_ref.dtype
    # dtype-min plays the role of -inf padding; safe only because SiLU(x) is
    # bounded below by ~-0.2785 so padding can never be selected by the max.
    neg = jnp.finfo(dt).min
    ext = TH + 2 * HALO  # halo-extended row count

    def silu(t):  # t is f32; single EUP op: sigmoid(x) = 0.5*(1 + tanh(x/2))
        return t * (0.5 * (jnp.tanh(0.5 * t) + 1.0))

    def cv1(xblk):  # (R, W, c1) -> (R, W, c_) in dt, f32 accumulate + BN + SiLU
        R = xblk.shape[0]
        t = jnp.dot(xblk.reshape(R * W, c1), w1_ref[...],
                    preferred_element_type=jnp.float32)
        t = silu(t * s1_ref[...] + b1_ref[...])
        return t.astype(dt).reshape(R, W, c_)

    # Side columns [0,2) and [W+2,W+4) of the pool scratch are the clipped
    # W-border padding shared by all three pools.
    pad_ref[:, 0:2, :] = jnp.full((ext, 2, c_), neg, dt)
    pad_ref[:, W + 2:W + 4, :] = jnp.full((ext, 2, c_), neg, dt)

    if has_halo:
        i = pl.program_id(1)
        nh = pl.num_programs(1)
        g = xt_ref.shape[1]  # halo source stripe height (>= HALO)
        # One fused cv1 matmul over the halo-extended rows (M = (TH+12)*W).
        x_ext = jnp.concatenate(
            [xt_ref[0][g - HALO:g], x_ref[0], xb_ref[0][0:HALO]], axis=0)
        t_ext = cv1(x_ext)                       # (ext, W, c_)
        t_main = t_ext[HALO:HALO + TH]           # central rows (kept as value)
        pad_ref[:, 2:W + 2, :] = t_ext

        # Halo rows that fall outside the image behave like MaxPool2d padding.
        # NOTE: these must stay per-iteration (not "init once at pid==0") —
        # under megacore sharding each core only sees a subset of grid points.
        @pl.when(i == 0)
        def _():
            pad_ref[0:HALO, 2:W + 2, :] = jnp.full((HALO, W, c_), neg, dt)

        @pl.when(i == nh - 1)
        def _():
            pad_ref[HALO + TH:ext, 2:W + 2, :] = jnp.full((HALO, W, c_), neg, dt)
    else:
        # Single tile covers the whole image: no halo inputs were DMA'd at all.
        t_main = cv1(x_ref[0])                   # (TH, W, c_)
        pad_ref[0:HALO, 2:W + 2, :] = jnp.full((HALO, W, c_), neg, dt)
        pad_ref[HALO + TH:ext, 2:W + 2, :] = jnp.full((HALO, W, c_), neg, dt)
        pad_ref[HALO:HALO + TH, 2:W + 2, :] = t_main

    def pool(rows_out, staged=None):
        """Separable 5x5/s1/p2 max pool of the rows_out+4 rows in pad_ref."""
        rows_in = rows_out + 4
        if staged is not None:
            pad_ref[0:rows_in, 2:W + 2, :] = staged
        # W direction: clipped via the dtype-min side columns (5 shifted reads).
        mw = pad_ref[0:rows_in, 0:W, :]
        for d in range(1, 5):
            mw = jnp.maximum(mw, pad_ref[0:rows_in, d:d + W, :])
        # H direction: "valid" mode over the halo-extended rows.
        mh = mw[0:rows_out]
        for d in range(1, 5):
            mh = jnp.maximum(mh, mw[d:d + rows_out])
        return mh

    def cv2_slab(a, k):  # (TH, W, c_) @ slab k of w2 -> (TH*W, c2) f32
        return jnp.dot(a.reshape(TH * W, c_), w2_ref[k],
                       preferred_element_type=jnp.float32)

    # Accumulate cv2 slab-by-slab into the persistent f32 scratch; each matmul
    # is issued as soon as its pool output exists so the MXU overlaps the VPU
    # work of the next pool.
    acc_ref[...] = cv2_slab(t_main, 0)
    y1e = pool(TH + 8)                        # y1 on extended rows [2, TH+10)
    acc_ref[...] += cv2_slab(y1e[4:TH + 4], 1)
    y2e = pool(TH + 4, staged=y1e)            # y2 on extended rows [4, TH+8)
    acc_ref[...] += cv2_slab(y2e[2:TH + 2], 2)
    y3 = pool(TH, staged=y2e)                 # y3 on the central TH rows
    acc_ref[...] += cv2_slab(y3, 3)

    u = silu(acc_ref[...] * s2_ref[...] + b2_ref[...])
    o_ref[0] = u.astype(o_ref.dtype).reshape(TH, W, c2)


def _halo_stripe(tile_h):
    """Smallest divisor of tile_h that is >= HALO (the halo DMA stripe height)."""
    return min(d for d in range(HALO, tile_h + 1) if tile_h % d == 0)


def _vmem_estimate(tile_h, nh, W, c1, c_, c2, itemsize):
    """Rough per-core VMEM footprint (double-buffered I/O, single-buf weights)."""
    ext = tile_h + 2 * HALO
    g = _halo_stripe(tile_h) if nh > 1 else 0
    b = 2 * tile_h * W * c1 * itemsize               # x block (x2 pipeline)
    b += 4 * g * W * c1 * itemsize                   # two halo stripes (x2)
    b += 2 * tile_h * W * c2 * itemsize              # output block (x2)
    b += (c1 * c_ + 4 * c_ * c2) * itemsize + 2 * (c_ + c2) * 4   # weights
    b += ext * (W + 4) * c_ * itemsize               # pool scratch
    b += tile_h * W * c2 * 4                         # f32 cv2 accumulator
    b += ext * W * (c1 * itemsize + 4 * c_)          # cv1 concat + f32 temp
    b += 2 * ext * W * c_ * itemsize                 # pool value temporaries
    return b


def _auto_tile_h(N, H, W, c1, c_, c2, itemsize, target=32,
                 budget_bytes=36 * 1024 * 1024):
    divs = [d for d in range(HALO, H + 1) if H % d == 0]
    if not divs:
        return H                                      # tiny H: single tile
    splittable = any(d <= H // 2 for d in divs)
    for th in sorted(divs, reverse=True):
        if th > target:
            continue
        nh = H // th
        # For batch-1 inputs keep at least 2 grid points (v7x has 2 TCs).
        if N == 1 and nh < 2 and splittable:
            continue
        if _vmem_estimate(th, nh, W, c1, c_, c2, itemsize) > budget_bytes:
            continue
        return th
    return min(divs)


def sppf_forward_nhwc(x, w1, s1, b1, w2, s2, b2, *, tile_h=None,
                      vmem_limit_bytes=48 * 1024 * 1024,
                      single_buffer_weights=True):
    """SPPF forward on an NHWC input (preferred entry point, zero layout copies)."""
    N, H, W, c1 = x.shape
    c_ = w1.shape[1]
    c2 = w2.shape[1]
    assert w1.shape == (c1, c_), w1.shape
    assert w2.shape == (4 * c_, c2), w2.shape

    dt = x.dtype
    if tile_h is None:
        tile_h = _auto_tile_h(N, H, W, c1, c_, c2, jnp.dtype(dt).itemsize,
                              budget_bytes=int(vmem_limit_bytes * 0.75))
    assert H % tile_h == 0, (H, tile_h)
    nh = H // tile_h
    has_halo = nh > 1
    if has_halo:
        assert tile_h >= HALO, (tile_h, HALO)
        g = _halo_stripe(tile_h)        # stripe height for the halo DMAs
        r = tile_h // g                 # stripe blocks per tile
        n_hblk = H // g

    w1c = jnp.asarray(w1, dt)
    w2c = jnp.asarray(w2, dt).reshape(4, c_, c2)      # four (c_, c2) slabs
    s1f = jnp.asarray(s1, jnp.float32).reshape(1, c_)
    b1f = jnp.asarray(b1, jnp.float32).reshape(1, c_)
    s2f = jnp.asarray(s2, jnp.float32).reshape(1, c2)
    b2f = jnp.asarray(b2, jnp.float32).reshape(1, c2)

    kernel = functools.partial(sppf_kernel, has_halo=has_halo)

    def build(single_buffer):
        def const_spec(shape):
            idx = lambda n, i, _s=shape: (0,) * len(_s)
            if single_buffer:
                return pl.BlockSpec(shape, idx, pipeline_mode=pl.Buffered(1))
            return pl.BlockSpec(shape, idx)

        in_specs = [pl.BlockSpec((1, tile_h, W, c1), lambda n, i: (n, i, 0, 0))]
        if has_halo:
            in_specs += [
                # stripe supplying the 6 rows just above the tile (clamped)
                pl.BlockSpec((1, g, W, c1),
                             lambda n, i: (n, jnp.maximum(i * r - 1, 0), 0, 0)),
                # stripe supplying the 6 rows just below the tile (clamped)
                pl.BlockSpec((1, g, W, c1),
                             lambda n, i: (n, jnp.minimum((i + 1) * r,
                                                          n_hblk - 1), 0, 0)),
            ]
        in_specs += [
            const_spec((c1, c_)), const_spec((1, c_)), const_spec((1, c_)),
            const_spec((4, c_, c2)), const_spec((1, c2)), const_spec((1, c2)),
        ]

        grid_spec = pltpu.PrefetchScalarGridSpec(
            num_scalar_prefetch=0,
            grid=(N, nh),
            in_specs=in_specs,
            out_specs=pl.BlockSpec((1, tile_h, W, c2), lambda n, i: (n, i, 0, 0)),
            scratch_shapes=[
                pltpu.VMEM((tile_h + 2 * HALO, W + 4, c_), dt),   # pool scratch
                pltpu.VMEM((tile_h * W, c2), jnp.float32),        # cv2 acc
            ])
        return pl.pallas_call(
            kernel,
            out_shape=jax.ShapeDtypeStruct((N, H, W, c2), dt),
            grid_spec=grid_spec,
            compiler_params=pltpu.CompilerParams(
                dimension_semantics=("parallel", "parallel"),
                vmem_limit_bytes=vmem_limit_bytes),
        )

    operands = ((x, x, x) if has_halo else (x,)) + (w1c, s1f, b1f, w2c, s2f, b2f)
    try:
        return build(single_buffer_weights)(*operands)
    except Exception:
        if not single_buffer_weights:
            raise
        # Compatibility fallback: if this JAX build rejects single-buffered
        # (pl.Buffered(1)) constant-operand specs, retry with default
        # double-buffering.  Any genuine kernel error re-raises below.
        return build(False)(*operands)


def sppf_forward(x_nchw, w1, s1, b1, w2, s2, b2, *, tile_h=None, **kw):
    """NCHW drop-in matching the PyTorch module layout.

    The two transposes below are full HBM round trips; keep the surrounding
    model NHWC and call sppf_forward_nhwc directly to avoid them.
    """
    x = jnp.transpose(x_nchw, (0, 2, 3, 1))
    out = sppf_forward_nhwc(x, w1, s1, b1, w2, s2, b2, tile_h=tile_h, **kw)
    return jnp.transpose(out, (0, 3, 1, 2))


def _fold_bn(gamma, beta, mean, var, eps=1e-3):
    scale = gamma / jnp.sqrt(var + eps)
    return scale, beta - mean * scale


def _silu_ref(t):
    return t * jax.nn.sigmoid(t)


def _maxpool5_ref(t):
    return jax.lax.reduce_window(
        t, -jnp.inf, jax.lax.max,
        window_dimensions=(1, 5, 5, 1), window_strides=(1, 1, 1, 1),
        padding=((0, 0), (2, 2), (2, 2), (0, 0)))


def _reference_nchw(x_nchw, w1, s1, b1, w2, s2, b2):
    """Pure-JAX f32 reference of the same math (correctness check)."""
    x = jnp.transpose(x_nchw, (0, 2, 3, 1)).astype(jnp.float32)
    t = _silu_ref(jnp.einsum('nhwc,cd->nhwd', x, w1.astype(jnp.float32))
                  * s1 + b1)
    y1 = _maxpool5_ref(t)
    y2 = _maxpool5_ref(y1)
    y3 = _maxpool5_ref(y2)
    cat = jnp.concatenate([t, y1, y2, y3], axis=-1)
    u = _silu_ref(jnp.einsum('nhwc,cd->nhwd', cat, w2.astype(jnp.float32))
                  * s2 + b2)
    return jnp.transpose(u, (0, 3, 1, 2))


if __name__ == "__main__":
    # SPPF(c1=4, c2=8): N=2, H=W=16, c_ = c1 // 2 = 2
    N, c1, H, W = 2, 4, 16, 16
    c2 = 8
    c_ = c1 // 2

    key = jax.random.PRNGKey(0)
    ks = jax.random.split(key, 11)

    x = jax.random.normal(ks[0], (N, c1, H, W), jnp.float32)

    # cv1: conv weight (c_, c1, 1, 1) -> matmul weight (c1, c_); BN folded.
    w1 = jax.random.normal(ks[1], (c1, c_), jnp.float32) * 0.5
    g1 = 1.0 + 0.1 * jax.random.normal(ks[2], (c_,), jnp.float32)
    be1 = 0.1 * jax.random.normal(ks[3], (c_,), jnp.float32)
    m1 = 0.1 * jax.random.normal(ks[4], (c_,), jnp.float32)
    v1 = jnp.abs(jax.random.normal(ks[5], (c_,), jnp.float32)) + 0.5
    s1, b1 = _fold_bn(g1, be1, m1, v1)

    # cv2: conv weight (c2, 4*c_, 1, 1) -> matmul weight (4*c_, c2); BN folded.
    w2 = jax.random.normal(ks[6], (4 * c_, c2), jnp.float32) * 0.5
    g2 = 1.0 + 0.1 * jax.random.normal(ks[7], (c2,), jnp.float32)
    be2 = 0.1 * jax.random.normal(ks[8], (c2,), jnp.float32)
    m2 = 0.1 * jax.random.normal(ks[9], (c2,), jnp.float32)
    v2 = jnp.abs(jax.random.normal(ks[10], (c2,), jnp.float32)) + 0.5
    s2, b2 = _fold_bn(g2, be2, m2, v2)

    ref = _reference_nchw(x, w1, s1, b1, w2, s2, b2)
    ref_nhwc = jnp.transpose(ref, (0, 2, 3, 1))

    # f32 path, NCHW drop-in, tile_h=8 -> grid (2, 2): exercises the H-tiling
    # with narrow (8-row) halo stripes.
    out = jax.block_until_ready(
        sppf_forward(x, w1, s1, b1, w2, s2, b2, tile_h=8))
    assert out.shape == (N, c2, H, W), out.shape
    err_f32 = float(jnp.max(jnp.abs(out - ref)))
    assert err_f32 < 2e-3, err_f32

    # bf16 path (recommended on v6e/v7x), NHWC-native entry point, auto tile
    # (tile_h=16 -> single tile per image, halo inputs dropped entirely).
    x_nhwc_bf16 = jnp.transpose(x, (0, 2, 3, 1)).astype(jnp.bfloat16)
    out_bf16 = jax.block_until_ready(
        sppf_forward_nhwc(x_nhwc_bf16, w1, s1, b1, w2, s2, b2))
    assert out_bf16.shape == (N, H, W, c2), out_bf16.shape
    err_bf16 = float(jnp.max(jnp.abs(out_bf16.astype(jnp.float32) - ref_nhwc)))
    assert err_bf16 < 0.4, err_bf16

    print("KERNEL_OK")
</pallas_src>

<mosaic_0001>
module attributes {stable_mosaic.version = 11 : i64} {
  func.func @sppf_kernel(%arg0: i32, %arg1: i32, %arg2: memref<1x8x16x4xf32, #tpu.memory_space<vmem>>, %arg3: memref<1x8x16x4xf32, #tpu.memory_space<vmem>>, %arg4: memref<1x8x16x4xf32, #tpu.memory_space<vmem>>, %arg5: memref<4x2xf32, #tpu.memory_space<vmem>>, %arg6: memref<1x2xf32, #tpu.memory_space<vmem>>, %arg7: memref<1x2xf32, #tpu.memory_space<vmem>>, %arg8: memref<4x2x8xf32, #tpu.memory_space<vmem>>, %arg9: memref<1x8xf32, #tpu.memory_space<vmem>>, %arg10: memref<1x8xf32, #tpu.memory_space<vmem>>, %arg11: memref<1x8x16x8xf32, #tpu.memory_space<vmem>>, %arg12: memref<20x20x2xf32, #tpu.memory_space<vmem>>, %arg13: memref<128x8xf32, #tpu.memory_space<vmem>>) attributes {dimension_semantics = [#tpu.dimension_semantics<parallel>, #tpu.dimension_semantics<parallel>], iteration_bounds = array<i64: 2, 2>, scalar_prefetch = 0 : i64, scratch_operands = 2 : i64, tpu.core_type = #tpu.core_type<tc>, window_params = [{transform_indices = @transform_0, window_bounds = array<i64: 1, 8, 16, 4>}, {transform_indices = @transform_1, window_bounds = array<i64: 1, 8, 16, 4>}, {transform_indices = @transform_2, window_bounds = array<i64: 1, 8, 16, 4>}, {pipeline_mode = #tpu.pipeline_mode<synchronous>, transform_indices = @transform_3, window_bounds = array<i64: 4, 2>}, {pipeline_mode = #tpu.pipeline_mode<synchronous>, transform_indices = @transform_4, window_bounds = array<i64: 1, 2>}, {pipeline_mode = #tpu.pipeline_mode<synchronous>, transform_indices = @transform_5, window_bounds = array<i64: 1, 2>}, {pipeline_mode = #tpu.pipeline_mode<synchronous>, transform_indices = @transform_6, window_bounds = array<i64: 4, 2, 8>}, {pipeline_mode = #tpu.pipeline_mode<synchronous>, transform_indices = @transform_7, window_bounds = array<i64: 1, 8>}, {pipeline_mode = #tpu.pipeline_mode<synchronous>, transform_indices = @transform_8, window_bounds = array<i64: 1, 8>}, {transform_indices = @transform_9, window_bounds = array<i64: 1, 8, 16, 8>}]} {
    %cst = arith.constant -3.40282347E+38 : f32
    %0 = vector.broadcast %cst : f32 to vector<20x2x2xf32>
    %c0 = arith.constant 0 : index
    %c0_0 = arith.constant 0 : index
    %c0_1 = arith.constant 0 : index
    %1 = vector.load %arg12[%c0, %c0_0, %c0_1] : memref<20x20x2xf32, #tpu.memory_space<vmem>>, vector<20x2x2xf32>
    tpu.vector_store %arg12[%c0, %c0_0, %c0_1], %0 {strides = array<i32>} : memref<20x20x2xf32, #tpu.memory_space<vmem>>, vector<20x2x2xf32>,
    %cst_2 = arith.constant -3.40282347E+38 : f32
    %2 = vector.broadcast %cst_2 : f32 to vector<20x2x2xf32>
    %c0_3 = arith.constant 0 : index
    %c18 = arith.constant 18 : index
    %c0_4 = arith.constant 0 : index
    %3 = vector.load %arg12[%c0_3, %c18, %c0_4] : memref<20x20x2xf32, #tpu.memory_space<vmem>>, vector<20x2x2xf32>
    tpu.vector_store %arg12[%c0_3, %c18, %c0_4], %2 {strides = array<i32>} : memref<20x20x2xf32, #tpu.memory_space<vmem>>, vector<20x2x2xf32>,
    %c0_5 = arith.constant 0 : index
    %c0_6 = arith.constant 0 : index
    %c0_7 = arith.constant 0 : index
    %c0_8 = arith.constant 0 : index
    %4 = vector.load %arg3[%c0_5, %c0_6, %c0_7, %c0_8] : memref<1x8x16x4xf32, #tpu.memory_space<vmem>>, vector<1x8x16x4xf32>
    %5 = vector.shape_cast %4 : vector<1x8x16x4xf32> to vector<8x16x4xf32>
    %6 = vector.extract_strided_slice %5 {offsets = [2, 0, 0], sizes = [6, 16, 4], strides = [1, 1, 1]} : vector<8x16x4xf32> to vector<6x16x4xf32>
    %c0_9 = arith.constant 0 : index
    %c0_10 = arith.constant 0 : index
    %c0_11 = arith.constant 0 : index
    %c0_12 = arith.constant 0 : index
    %7 = vector.load %arg2[%c0_9, %c0_10, %c0_11, %c0_12] : memref<1x8x16x4xf32, #tpu.memory_space<vmem>>, vector<1x8x16x4xf32>
    %8 = vector.shape_cast %7 : vector<1x8x16x4xf32> to vector<8x16x4xf32>
    %c0_13 = arith.constant 0 : index
    %c0_14 = arith.constant 0 : index
    %c0_15 = arith.constant 0 : index
    %c0_16 = arith.constant 0 : index
    %9 = vector.load %arg4[%c0_13, %c0_14, %c0_15, %c0_16] : memref<1x8x16x4xf32, #tpu.memory_space<vmem>>, vector<1x8x16x4xf32>
    %10 = vector.shape_cast %9 : vector<1x8x16x4xf32> to vector<8x16x4xf32>
    %11 = vector.extract_strided_slice %10 {offsets = [0, 0, 0], sizes = [6, 16, 4], strides = [1, 1, 1]} : vector<8x16x4xf32> to vector<6x16x4xf32>
    %12 = tpu.concatenate %6, %8, %11 in 0 : vector<6x16x4xf32>, vector<8x16x4xf32>, vector<6x16x4xf32> -> vector<20x16x4xf32>
    %13 = vector.shape_cast %12 : vector<20x16x4xf32> to vector<320x4xf32>
    %c0_17 = arith.constant 0 : index
    %c0_18 = arith.constant 0 : index
    %14 = vector.load %arg5[%c0_17, %c0_18] : memref<4x2xf32, #tpu.memory_space<vmem>>, vector<4x2xf32>
    %cst_19 = arith.constant dense<0.000000e+00> : vector<320x2xf32>
    %15 = tpu.matmul %13, %14, %cst_19 {dimension_numbers = #tpu.dot_dimension_numbers<[1], [0], [0], [1], [0, 0, 1, 1], [], []>} : vector<320x4xf32>, vector<4x2xf32>, vector<320x2xf32> -> vector<320x2xf32>
    %c0_20 = arith.constant 0 : index
    %c0_21 = arith.constant 0 : index
    %16 = vector.load %arg6[%c0_20, %c0_21] : memref<1x2xf32, #tpu.memory_space<vmem>>, vector<1x2xf32>
    %17 = vector.broadcast %16 : vector<1x2xf32> to vector<320x2xf32>
    %18 = arith.mulf %15, %17 : vector<320x2xf32>
    %c0_22 = arith.constant 0 : index
    %c0_23 = arith.constant 0 : index
    %19 = vector.load %arg7[%c0_22, %c0_23] : memref<1x2xf32, #tpu.memory_space<vmem>>, vector<1x2xf32>
    %20 = vector.broadcast %19 : vector<1x2xf32> to vector<320x2xf32>
    %21 = arith.addf %18, %20 : vector<320x2xf32>
    %cst_24 = arith.constant 5.000000e-01 : f32
    %22 = vector.broadcast %cst_24 : f32 to vector<320x2xf32>
    %23 = arith.mulf %22, %21 : vector<320x2xf32>
    %24 = math.tanh %23 : vector<320x2xf32>
    %cst_25 = arith.constant 1.000000e+00 : f32
    %25 = vector.broadcast %cst_25 : f32 to vector<320x2xf32>
    %26 = arith.addf %24, %25 : vector<320x2xf32>
    %cst_26 = arith.constant 5.000000e-01 : f32
    %27 = vector.broadcast %cst_26 : f32 to vector<320x2xf32>
    %28 = arith.mulf %27, %26 : vector<320x2xf32>
    %29 = arith.mulf %21, %28 : vector<320x2xf32>
    %30 = vector.shape_cast %29 : vector<320x2xf32> to vector<20x16x2xf32>
    %31 = vector.extract_strided_slice %30 {offsets = [6, 0, 0], sizes = [8, 16, 2], strides = [1, 1, 1]} : vector<20x16x2xf32> to vector<8x16x2xf32>
    %c0_27 = arith.constant 0 : index
    %c2 = arith.constant 2 : index
    %c0_28 = arith.constant 0 : index
    %32 = vector.load %arg12[%c0_27, %c2, %c0_28] : memref<20x20x2xf32, #tpu.memory_space<vmem>>, vector<20x16x2xf32>
    tpu.vector_store %arg12[%c0_27, %c2, %c0_28], %30 {strides = array<i32>} : memref<20x20x2xf32, #tpu.memory_space<vmem>>, vector<20x16x2xf32>,
    %c0_i32 = arith.constant 0 : i32
    %33 = arith.cmpi eq, %arg1, %c0_i32 : i32
    %34 = arith.extui %33 : i1 to i32
    %c0_i32_29 = arith.constant 0 : i32
    %35 = arith.cmpi ne, %34, %c0_i32_29 : i32
    scf.if %35 {
      %cst_122 = arith.constant -3.40282347E+38 : f32
      %142 = vector.broadcast %cst_122 : f32 to vector<6x16x2xf32>
      %c0_123 = arith.constant 0 : index
      %c2_124 = arith.constant 2 : index
      %c0_125 = arith.constant 0 : index
      %143 = vector.load %arg12[%c0_123, %c2_124, %c0_125] : memref<20x20x2xf32, #tpu.memory_space<vmem>>, vector<6x16x2xf32>
      tpu.vector_store %arg12[%c0_123, %c2_124, %c0_125], %142 {strides = array<i32>} : memref<20x20x2xf32, #tpu.memory_space<vmem>>, vector<6x16x2xf32>,
    } else {
    }
    %c1_i32 = arith.constant 1 : i32
    %36 = arith.cmpi eq, %arg1, %c1_i32 : i32
    %37 = arith.extui %36 : i1 to i32
    %c0_i32_30 = arith.constant 0 : i32
    %38 = arith.cmpi ne, %37, %c0_i32_30 : i32
    scf.if %38 {
      %cst_122 = arith.constant -3.40282347E+38 : f32
      %142 = vector.broadcast %cst_122 : f32 to vector<6x16x2xf32>
      %c14 = arith.constant 14 : index
      %c2_123 = arith.constant 2 : index
      %c0_124 = arith.constant 0 : index
      %143 = vector.load %arg12[%c14, %c2_123, %c0_124] : memref<20x20x2xf32, #tpu.memory_space<vmem>>, vector<6x16x2xf32>
      tpu.vector_store %arg12[%c14, %c2_123, %c0_124], %142 {strides = array<i32>} : memref<20x20x2xf32, #tpu.memory_space<vmem>>, vector<6x16x2xf32>,
    } else {
    }
    %39 = vector.shape_cast %31 : vector<8x16x2xf32> to vector<128x2xf32>
    %c0_31 = arith.constant 0 : index
    %c0_32 = arith.constant 0 : index
    %c0_33 = arith.constant 0 : index
    %40 = vector.load %arg8[%c0_31, %c0_32, %c0_33] : memref<4x2x8xf32, #tpu.memory_space<vmem>>, vector<1x2x8xf32>
    %41 = vector.shape_cast %40 : vector<1x2x8xf32> to vector<2x8xf32>
    %cst_34 = arith.constant dense<0.000000e+00> : vector<128x8xf32>
    %42 = tpu.matmul %39, %41, %cst_34 {dimension_numbers = #tpu.dot_dimension_numbers<[1], [0], [0], [1], [0, 0, 1, 1], [], []>} : vector<128x2xf32>, vector<2x8xf32>, vector<128x8xf32> -> vector<128x8xf32>
    %c0_35 = arith.constant 0 : index
    %c0_36 = arith.constant 0 : index
    %43 = vector.load %arg13[%c0_35, %c0_36] : memref<128x8xf32, #tpu.memory_space<vmem>>, vector<128x8xf32>
    tpu.vector_store %arg13[%c0_35, %c0_36], %42 {strides = array<i32>} : memref<128x8xf32, #tpu.memory_space<vmem>>, vector<128x8xf32>,
    %c0_37 = arith.constant 0 : index
    %c0_38 = arith.constant 0 : index
    %c0_39 = arith.constant 0 : index
    %44 = vector.load %arg12[%c0_37, %c0_38, %c0_39] : memref<20x20x2xf32, #tpu.memory_space<vmem>>, vector<20x16x2xf32>
    %c0_40 = arith.constant 0 : index
    %c1 = arith.constant 1 : index
    %c0_41 = arith.constant 0 : index
    %45 = vector.load %arg12[%c0_40, %c1, %c0_41] : memref<20x20x2xf32, #tpu.memory_space<vmem>>, vector<20x16x2xf32>
    %46 = arith.maximumf %44, %45 : vector<20x16x2xf32>
    %c0_42 = arith.constant 0 : index
    %c2_43 = arith.constant 2 : index
    %c0_44 = arith.constant 0 : index
    %47 = vector.load %arg12[%c0_42, %c2_43, %c0_44] : memref<20x20x2xf32, #tpu.memory_space<vmem>>, vector<20x16x2xf32>
    %48 = arith.maximumf %46, %47 : vector<20x16x2xf32>
    %c0_45 = arith.constant 0 : index
    %c3 = arith.constant 3 : index
    %c0_46 = arith.constant 0 : index
    %49 = vector.load %arg12[%c0_45, %c3, %c0_46] : memref<20x20x2xf32, #tpu.memory_space<vmem>>, vector<20x16x2xf32>
    %50 = arith.maximumf %48, %49 : vector<20x16x2xf32>
    %c0_47 = arith.constant 0 : index
    %c4 = arith.constant 4 : index
    %c0_48 = arith.constant 0 : index
    %51 = vector.load %arg12[%c0_47, %c4, %c0_48] : memref<20x20x2xf32, #tpu.memory_space<vmem>>, vector<20x16x2xf32>
    %52 = arith.maximumf %50, %51 : vector<20x16x2xf32>
    %53 = vector.extract_strided_slice %52 {offsets = [0, 0, 0], sizes = [16, 16, 2], strides = [1, 1, 1]} : vector<20x16x2xf32> to vector<16x16x2xf32>
    %54 = vector.extract_strided_slice %52 {offsets = [1, 0, 0], sizes = [16, 16, 2], strides = [1, 1, 1]} : vector<20x16x2xf32> to vector<16x16x2xf32>
    %55 = arith.maximumf %53, %54 : vector<16x16x2xf32>
    %56 = vector.extract_strided_slice %52 {offsets = [2, 0, 0], sizes = [16, 16, 2], strides = [1, 1, 1]} : vector<20x16x2xf32> to vector<16x16x2xf32>
    %57 = arith.maximumf %55, %56 : vector<16x16x2xf32>
    %58 = vector.extract_strided_slice %52 {offsets = [3, 0, 0], sizes = [16, 16, 2], strides = [1, 1, 1]} : vector<20x16x2xf32> to vector<16x16x2xf32>
    %59 = arith.maximumf %57, %58 : vector<16x16x2xf32>
    %60 = vector.extract_strided_slice %52 {offsets = [4, 0, 0], sizes = [16, 16, 2], strides = [1, 1, 1]} : vector<20x16x2xf32> to vector<16x16x2xf32>
    %61 = arith.maximumf %59, %60 : vector<16x16x2xf32>
    %c0_49 = arith.constant 0 : index
    %c0_50 = arith.constant 0 : index
    %62 = vector.load %arg13[%c0_49, %c0_50] : memref<128x8xf32, #tpu.memory_space<vmem>>, vector<128x8xf32>
    %63 = vector.extract_strided_slice %61 {offsets = [4, 0, 0], sizes = [8, 16, 2], strides = [1, 1, 1]} : vector<16x16x2xf32> to vector<8x16x2xf32>
    %64 = vector.shape_cast %63 : vector<8x16x2xf32> to vector<128x2xf32>
    %c1_51 = arith.constant 1 : index
    %c0_52 = arith.constant 0 : index
    %c0_53 = arith.constant 0 : index
    %65 = vector.load %arg8[%c1_51, %c0_52, %c0_53] : memref<4x2x8xf32, #tpu.memory_space<vmem>>, vector<1x2x8xf32>
    %66 = vector.shape_cast %65 : vector<1x2x8xf32> to vector<2x8xf32>
    %cst_54 = arith.constant dense<0.000000e+00> : vector<128x8xf32>
    %67 = tpu.matmul %64, %66, %cst_54 {dimension_numbers = #tpu.dot_dimension_numbers<[1], [0], [0], [1], [0, 0, 1, 1], [], []>} : vector<128x2xf32>, vector<2x8xf32>, vector<128x8xf32> -> vector<128x8xf32>
    %68 = arith.addf %62, %67 : vector<128x8xf32>
    %c0_55 = arith.constant 0 : index
    %c0_56 = arith.constant 0 : index
    %69 = vector.load %arg13[%c0_55, %c0_56] : memref<128x8xf32, #tpu.memory_space<vmem>>, vector<128x8xf32>
    tpu.vector_store %arg13[%c0_55, %c0_56], %68 {strides = array<i32>} : memref<128x8xf32, #tpu.memory_space<vmem>>, vector<128x8xf32>,
    %c0_57 = arith.constant 0 : index
    %c2_58 = arith.constant 2 : index
    %c0_59 = arith.constant 0 : index
    %70 = vector.load %arg12[%c0_57, %c2_58, %c0_59] : memref<20x20x2xf32, #tpu.memory_space<vmem>>, vector<16x16x2xf32>
    tpu.vector_store %arg12[%c0_57, %c2_58, %c0_59], %61 {strides = array<i32>} : memref<20x20x2xf32, #tpu.memory_space<vmem>>, vector<16x16x2xf32>,
    %c0_60 = arith.constant 0 : index
    %c0_61 = arith.constant 0 : index
    %c0_62 = arith.constant 0 : index
    %71 = vector.load %arg12[%c0_60, %c0_61, %c0_62] : memref<20x20x2xf32, #tpu.memory_space<vmem>>, vector<16x16x2xf32>
    %c0_63 = arith.constant 0 : index
    %c1_64 = arith.constant 1 : index
    %c0_65 = arith.constant 0 : index
    %72 = vector.load %arg12[%c0_63, %c1_64, %c0_65] : memref<20x20x2xf32, #tpu.memory_space<vmem>>, vector<16x16x2xf32>
    %73 = arith.maximumf %71, %72 : vector<16x16x2xf32>
    %c0_66 = arith.constant 0 : index
    %c2_67 = arith.constant 2 : index
    %c0_68 = arith.constant 0 : index
    %74 = vector.load %arg12[%c0_66, %c2_67, %c0_68] : memref<20x20x2xf32, #tpu.memory_space<vmem>>, vector<16x16x2xf32>
    %75 = arith.maximumf %73, %74 : vector<16x16x2xf32>
    %c0_69 = arith.constant 0 : index
    %c3_70 = arith.constant 3 : index
    %c0_71 = arith.constant 0 : index
    %76 = vector.load %arg12[%c0_69, %c3_70, %c0_71] : memref<20x20x2xf32, #tpu.memory_space<vmem>>, vector<16x16x2xf32>
    %77 = arith.maximumf %75, %76 : vector<16x16x2xf32>
    %c0_72 = arith.constant 0 : index
    %c4_73 = arith.constant 4 : index
    %c0_74 = arith.constant 0 : index
    %78 = vector.load %arg12[%c0_72, %c4_73, %c0_74] : memref<20x20x2xf32, #tpu.memory_space<vmem>>, vector<16x16x2xf32>
    %79 = arith.maximumf %77, %78 : vector<16x16x2xf32>
    %80 = vector.extract_strided_slice %79 {offsets = [0, 0, 0], sizes = [12, 16, 2], strides = [1, 1, 1]} : vector<16x16x2xf32> to vector<12x16x2xf32>
    %81 = vector.extract_strided_slice %79 {offsets = [1, 0, 0], sizes = [12, 16, 2], strides = [1, 1, 1]} : vector<16x16x2xf32> to vector<12x16x2xf32>
    %82 = arith.maximumf %80, %81 : vector<12x16x2xf32>
    %83 = vector.extract_strided_slice %79 {offsets = [2, 0, 0], sizes = [12, 16, 2], strides = [1, 1, 1]} : vector<16x16x2xf32> to vector<12x16x2xf32>
    %84 = arith.maximumf %82, %83 : vector<12x16x2xf32>
    %85 = vector.extract_strided_slice %79 {offsets = [3, 0, 0], sizes = [12, 16, 2], strides = [1, 1, 1]} : vector<16x16x2xf32> to vector<12x16x2xf32>
    %86 = arith.maximumf %84, %85 : vector<12x16x2xf32>
    %87 = vector.extract_strided_slice %79 {offsets = [4, 0, 0], sizes = [12, 16, 2], strides = [1, 1, 1]} : vector<16x16x2xf32> to vector<12x16x2xf32>
    %88 = arith.maximumf %86, %87 : vector<12x16x2xf32>
    %c0_75 = arith.constant 0 : index
    %c0_76 = arith.constant 0 : index
    %89 = vector.load %arg13[%c0_75, %c0_76] : memref<128x8xf32, #tpu.memory_space<vmem>>, vector<128x8xf32>
    %90 = vector.extract_strided_slice %88 {offsets = [2, 0, 0], sizes = [8, 16, 2], strides = [1, 1, 1]} : vector<12x16x2xf32> to vector<8x16x2xf32>
    %91 = vector.shape_cast %90 : vector<8x16x2xf32> to vector<128x2xf32>
    %c2_77 = arith.constant 2 : index
    %c0_78 = arith.constant 0 : index
    %c0_79 = arith.constant 0 : index
    %92 = vector.load %arg8[%c2_77, %c0_78, %c0_79] : memref<4x2x8xf32, #tpu.memory_space<vmem>>, vector<1x2x8xf32>
    %93 = vector.shape_cast %92 : vector<1x2x8xf32> to vector<2x8xf32>
    %cst_80 = arith.constant dense<0.000000e+00> : vector<128x8xf32>
    %94 = tpu.matmul %91, %93, %cst_80 {dimension_numbers = #tpu.dot_dimension_numbers<[1], [0], [0], [1], [0, 0, 1, 1], [], []>} : vector<128x2xf32>, vector<2x8xf32>, vector<128x8xf32> -> vector<128x8xf32>
    %95 = arith.addf %89, %94 : vector<128x8xf32>
    %c0_81 = arith.constant 0 : index
    %c0_82 = arith.constant 0 : index
    %96 = vector.load %arg13[%c0_81, %c0_82] : memref<128x8xf32, #tpu.memory_space<vmem>>, vector<128x8xf32>
    tpu.vector_store %arg13[%c0_81, %c0_82], %95 {strides = array<i32>} : memref<128x8xf32, #tpu.memory_space<vmem>>, vector<128x8xf32>,
    %c0_83 = arith.constant 0 : index
    %c2_84 = arith.constant 2 : index
    %c0_85 = arith.constant 0 : index
    %97 = vector.load %arg12[%c0_83, %c2_84, %c0_85] : memref<20x20x2xf32, #tpu.memory_space<vmem>>, vector<12x16x2xf32>
    tpu.vector_store %arg12[%c0_83, %c2_84, %c0_85], %88 {strides = array<i32>} : memref<20x20x2xf32, #tpu.memory_space<vmem>>, vector<12x16x2xf32>,
    %c0_86 = arith.constant 0 : index
    %c0_87 = arith.constant 0 : index
    %c0_88 = arith.constant 0 : index
    %98 = vector.load %arg12[%c0_86, %c0_87, %c0_88] : memref<20x20x2xf32, #tpu.memory_space<vmem>>, vector<12x16x2xf32>
    %c0_89 = arith.constant 0 : index
    %c1_90 = arith.constant 1 : index
    %c0_91 = arith.constant 0 : index
    %99 = vector.load %arg12[%c0_89, %c1_90, %c0_91] : memref<20x20x2xf32, #tpu.memory_space<vmem>>, vector<12x16x2xf32>
    %100 = arith.maximumf %98, %99 : vector<12x16x2xf32>
    %c0_92 = arith.constant 0 : index
    %c2_93 = arith.constant 2 : index
    %c0_94 = arith.constant 0 : index
    %101 = vector.load %arg12[%c0_92, %c2_93, %c0_94] : memref<20x20x2xf32, #tpu.memory_space<vmem>>, vector<12x16x2xf32>
    %102 = arith.maximumf %100, %101 : vector<12x16x2xf32>
    %c0_95 = arith.constant 0 : index
    %c3_96 = arith.constant 3 : index
    %c0_97 = arith.constant 0 : index
    %103 = vector.load %arg12[%c0_95, %c3_96, %c0_97] : memref<20x20x2xf32, #tpu.memory_space<vmem>>, vector<12x16x2xf32>
    %104 = arith.maximumf %102, %103 : vector<12x16x2xf32>
    %c0_98 = arith.constant 0 : index
    %c4_99 = arith.constant 4 : index
    %c0_100 = arith.constant 0 : index
    %105 = vector.load %arg12[%c0_98, %c4_99, %c0_100] : memref<20x20x2xf32, #tpu.memory_space<vmem>>, vector<12x16x2xf32>
    %106 = arith.maximumf %104, %105 : vector<12x16x2xf32>
    %107 = vector.extract_strided_slice %106 {offsets = [0, 0, 0], sizes = [8, 16, 2], strides = [1, 1, 1]} : vector<12x16x2xf32> to vector<8x16x2xf32>
    %108 = vector.extract_strided_slice %106 {offsets = [1, 0, 0], sizes = [8, 16, 2], strides = [1, 1, 1]} : vector<12x16x2xf32> to vector<8x16x2xf32>
    %109 = arith.maximumf %107, %108 : vector<8x16x2xf32>
    %110 = vector.extract_strided_slice %106 {offsets = [2, 0, 0], sizes = [8, 16, 2], strides = [1, 1, 1]} : vector<12x16x2xf32> to vector<8x16x2xf32>
    %111 = arith.maximumf %109, %110 : vector<8x16x2xf32>
    %112 = vector.extract_strided_slice %106 {offsets = [3, 0, 0], sizes = [8, 16, 2], strides = [1, 1, 1]} : vector<12x16x2xf32> to vector<8x16x2xf32>
    %113 = arith.maximumf %111, %112 : vector<8x16x2xf32>
    %114 = vector.extract_strided_slice %106 {offsets = [4, 0, 0], sizes = [8, 16, 2], strides = [1, 1, 1]} : vector<12x16x2xf32> to vector<8x16x2xf32>
    %115 = arith.maximumf %113, %114 : vector<8x16x2xf32>
    %c0_101 = arith.constant 0 : index
    %c0_102 = arith.constant 0 : index
    %116 = vector.load %arg13[%c0_101, %c0_102] : memref<128x8xf32, #tpu.memory_space<vmem>>, vector<128x8xf32>
    %117 = vector.shape_cast %115 : vector<8x16x2xf32> to vector<128x2xf32>
    %c3_103 = arith.constant 3 : index
    %c0_104 = arith.constant 0 : index
    %c0_105 = arith.constant 0 : index
    %118 = vector.load %arg8[%c3_103, %c0_104, %c0_105] : memref<4x2x8xf32, #tpu.memory_space<vmem>>, vector<1x2x8xf32>
    %119 = vector.shape_cast %118 : vector<1x2x8xf32> to vector<2x8xf32>
    %cst_106 = arith.constant dense<0.000000e+00> : vector<128x8xf32>
    %120 = tpu.matmul %117, %119, %cst_106 {dimension_numbers = #tpu.dot_dimension_numbers<[1], [0], [0], [1], [0, 0, 1, 1], [], []>} : vector<128x2xf32>, vector<2x8xf32>, vector<128x8xf32> -> vector<128x8xf32>
    %121 = arith.addf %116, %120 : vector<128x8xf32>
    %c0_107 = arith.constant 0 : index
    %c0_108 = arith.constant 0 : index
    %122 = vector.load %arg13[%c0_107, %c0_108] : memref<128x8xf32, #tpu.memory_space<vmem>>, vector<128x8xf32>
    tpu.vector_store %arg13[%c0_107, %c0_108], %121 {strides = array<i32>} : memref<128x8xf32, #tpu.memory_space<vmem>>, vector<128x8xf32>,
    %c0_109 = arith.constant 0 : index
    %c0_110 = arith.constant 0 : index
    %123 = vector.load %arg13[%c0_109, %c0_110] : memref<128x8xf32, #tpu.memory_space<vmem>>, vector<128x8xf32>
    %c0_111 = arith.constant 0 : index
    %c0_112 = arith.constant 0 : index
    %124 = vector.load %arg9[%c0_111, %c0_112] : memref<1x8xf32, #tpu.memory_space<vmem>>, vector<1x8xf32>
    %125 = vector.broadcast %124 : vector<1x8xf32> to vector<128x8xf32>
    %126 = arith.mulf %123, %125 : vector<128x8xf32>
    %c0_113 = arith.constant 0 : index
    %c0_114 = arith.constant 0 : index
    %127 = vector.load %arg10[%c0_113, %c0_114] : memref<1x8xf32, #tpu.memory_space<vmem>>, vector<1x8xf32>
    %128 = vector.broadcast %127 : vector<1x8xf32> to vector<128x8xf32>
    %129 = arith.addf %126, %128 : vector<128x8xf32>
    %cst_115 = arith.constant 5.000000e-01 : f32
    %130 = vector.broadcast %cst_115 : f32 to vector<128x8xf32>
    %131 = arith.mulf %130, %129 : vector<128x8xf32>
    %132 = math.tanh %131 : vector<128x8xf32>
    %cst_116 = arith.constant 1.000000e+00 : f32
    %133 = vector.broadcast %cst_116 : f32 to vector<128x8xf32>
    %134 = arith.addf %132, %133 : vector<128x8xf32>
    %cst_117 = arith.constant 5.000000e-01 : f32
    %135 = vector.broadcast %cst_117 : f32 to vector<128x8xf32>
    %136 = arith.mulf %135, %134 : vector<128x8xf32>
    %137 = arith.mulf %129, %136 : vector<128x8xf32>
    %138 = vector.shape_cast %137 : vector<128x8xf32> to vector<8x16x8xf32>
    %c0_118 = arith.constant 0 : index
    %c0_119 = arith.constant 0 : index
    %c0_120 = arith.constant 0 : index
    %c0_121 = arith.constant 0 : index
    %139 = vector.load %arg11[%c0_118, %c0_119, %c0_120, %c0_121] : memref<1x8x16x8xf32, #tpu.memory_space<vmem>>, vector<1x8x16x8xf32>
    %140 = vector.shape_cast %139 : vector<1x8x16x8xf32> to vector<8x16x8xf32>
    %141 = vector.shape_cast %138 : vector<8x16x8xf32> to vector<1x8x16x8xf32>
    tpu.vector_store %arg11[%c0_118, %c0_119, %c0_120, %c0_121], %141 {strides = array<i32>} : memref<1x8x16x8xf32, #tpu.memory_space<vmem>>, vector<1x8x16x8xf32>,
    return
  }
  func.func @transform_0(%arg0: i32, %arg1: i32) -> (i32, i32, i32, i32) {
    %c0_i32 = arith.constant 0 : i32
    %c0_i32_0 = arith.constant 0 : i32
    %c0_i32_1 = arith.constant 0 : i32
    return %arg0, %arg1, %c0_i32, %c0_i32_0 : i32, i32, i32, i32
  }
  func.func @transform_1(%arg0: i32, %arg1: i32) -> (i32, i32, i32, i32) {
    %c1_i32 = arith.constant 1 : i32
    %0 = arith.muli %arg1, %c1_i32 : i32
    %c1_i32_0 = arith.constant 1 : i32
    %1 = arith.subi %0, %c1_i32_0 : i32
    %c0_i32 = arith.constant 0 : i32
    %2 = arith.maxsi %1, %c0_i32 : i32
    %c0_i32_1 = arith.constant 0 : i32
    %c0_i32_2 = arith.constant 0 : i32
    %c0_i32_3 = arith.constant 0 : i32
    return %arg0, %2, %c0_i32_1, %c0_i32_2 : i32, i32, i32, i32
  }
  func.func @transform_2(%arg0: i32, %arg1: i32) -> (i32, i32, i32, i32) {
    %c1_i32 = arith.constant 1 : i32
    %0 = arith.addi %arg1, %c1_i32 : i32
    %c1_i32_0 = arith.constant 1 : i32
    %1 = arith.muli %0, %c1_i32_0 : i32
    %c1_i32_1 = arith.constant 1 : i32
    %2 = arith.minsi %1, %c1_i32_1 : i32
    %c0_i32 = arith.constant 0 : i32
    %c0_i32_2 = arith.constant 0 : i32
    %c0_i32_3 = arith.constant 0 : i32
    return %arg0, %2, %c0_i32, %c0_i32_2 : i32, i32, i32, i32
  }
  func.func @transform_3(%arg0: i32, %arg1: i32) -> (i32, i32) {
    %c0_i32 = arith.constant 0 : i32
    %c0_i32_0 = arith.constant 0 : i32
    %c0_i32_1 = arith.constant 0 : i32
    return %c0_i32, %c0_i32_0 : i32, i32
  }
  func.func @transform_4(%arg0: i32, %arg1: i32) -> (i32, i32) {
    %c0_i32 = arith.constant 0 : i32
    %c0_i32_0 = arith.constant 0 : i32
    %c0_i32_1 = arith.constant 0 : i32
    return %c0_i32, %c0_i32_0 : i32, i32
  }
  func.func @transform_5(%arg0: i32, %arg1: i32) -> (i32, i32) {
    %c0_i32 = arith.constant 0 : i32
    %c0_i32_0 = arith.constant 0 : i32
    %c0_i32_1 = arith.constant 0 : i32
    return %c0_i32, %c0_i32_0 : i32, i32
  }
  func.func @transform_6(%arg0: i32, %arg1: i32) -> (i32, i32, i32) {
    %c0_i32 = arith.constant 0 : i32
    %c0_i32_0 = arith.constant 0 : i32
    %c0_i32_1 = arith.constant 0 : i32
    %c0_i32_2 = arith.constant 0 : i32
    return %c0_i32, %c0_i32_0, %c0_i32_1 : i32, i32, i32
  }
  func.func @transform_7(%arg0: i32, %arg1: i32) -> (i32, i32) {
    %c0_i32 = arith.constant 0 : i32
    %c0_i32_0 = arith.constant 0 : i32
    %c0_i32_1 = arith.constant 0 : i32
    return %c0_i32, %c0_i32_0 : i32, i32
  }
  func.func @transform_8(%arg0: i32, %arg1: i32) -> (i32, i32) {
    %c0_i32 = arith.constant 0 : i32
    %c0_i32_0 = arith.constant 0 : i32
    %c0_i32_1 = arith.constant 0 : i32
    return %c0_i32, %c0_i32_0 : i32, i32
  }
  func.func @transform_9(%arg0: i32, %arg1: i32) -> (i32, i32, i32, i32) {
    %c0_i32 = arith.constant 0 : i32
    %c0_i32_0 = arith.constant 0 : i32
    %c0_i32_1 = arith.constant 0 : i32
    return %arg0, %arg1, %c0_i32, %c0_i32_0 : i32, i32, i32, i32
  }
}

module attributes {stable_mosaic.version = 11 : i64} {
  func.func @sppf_kernel(%arg0: i32, %arg1: i32, %arg2: memref<1x8x16x4xf32, #tpu.memory_space<vmem>>, %arg3: memref<1x8x16x4xf32, #tpu.memory_space<vmem>>, %arg4: memref<1x8x16x4xf32, #tpu.memory_space<vmem>>, %arg5: memref<4x2xf32, #tpu.memory_space<vmem>>, %arg6: memref<1x2xf32, #tpu.memory_space<vmem>>, %arg7: memref<1x2xf32, #tpu.memory_space<vmem>>, %arg8: memref<4x2x8xf32, #tpu.memory_space<vmem>>, %arg9: memref<1x8xf32, #tpu.memory_space<vmem>>, %arg10: memref<1x8xf32, #tpu.memory_space<vmem>>, %arg11: memref<1x8x16x8xf32, #tpu.memory_space<vmem>>, %arg12: memref<20x20x2xf32, #tpu.memory_space<vmem>>, %arg13: memref<128x8xf32, #tpu.memory_space<vmem>>) attributes {dimension_semantics = [#tpu.dimension_semantics<parallel>, #tpu.dimension_semantics<parallel>], iteration_bounds = array<i64: 2, 2>, scalar_prefetch = 0 : i64, scratch_operands = 2 : i64, tpu.core_type = #tpu.core_type<tc>, window_params = [{transform_indices = @transform_0, window_bounds = array<i64: 1, 8, 16, 4>}, {transform_indices = @transform_1, window_bounds = array<i64: 1, 8, 16, 4>}, {transform_indices = @transform_2, window_bounds = array<i64: 1, 8, 16, 4>}, {pipeline_mode = #tpu.pipeline_mode<synchronous>, transform_indices = @transform_3, window_bounds = array<i64: 4, 2>}, {pipeline_mode = #tpu.pipeline_mode<synchronous>, transform_indices = @transform_4, window_bounds = array<i64: 1, 2>}, {pipeline_mode = #tpu.pipeline_mode<synchronous>, transform_indices = @transform_5, window_bounds = array<i64: 1, 2>}, {pipeline_mode = #tpu.pipeline_mode<synchronous>, transform_indices = @transform_6, window_bounds = array<i64: 4, 2, 8>}, {pipeline_mode = #tpu.pipeline_mode<synchronous>, transform_indices = @transform_7, window_bounds = array<i64: 1, 8>}, {pipeline_mode = #tpu.pipeline_mode<synchronous>, transform_indices = @transform_8, window_bounds = array<i64: 1, 8>}, {transform_indices = @transform_9, window_bounds = array<i64: 1, 8, 16, 8>}]} {
    %cst = arith.constant -3.40282347E+38 : f32
    %0 = vector.broadcast %cst : f32 to vector<20x2x2xf32>
    %c0 = arith.constant 0 : index
    %c0_0 = arith.constant 0 : index
    %c0_1 = arith.constant 0 : index
    %1 = vector.load %arg12[%c0, %c0_0, %c0_1] : memref<20x20x2xf32, #tpu.memory_space<vmem>>, vector<20x2x2xf32>
    tpu.vector_store %arg12[%c0, %c0_0, %c0_1], %0 {strides = array<i32>} : memref<20x20x2xf32, #tpu.memory_space<vmem>>, vector<20x2x2xf32>,
    %cst_2 = arith.constant -3.40282347E+38 : f32
    %2 = vector.broadcast %cst_2 : f32 to vector<20x2x2xf32>
    %c0_3 = arith.constant 0 : index
    %c18 = arith.constant 18 : index
    %c0_4 = arith.constant 0 : index
    %3 = vector.load %arg12[%c0_3, %c18, %c0_4] : memref<20x20x2xf32, #tpu.memory_space<vmem>>, vector<20x2x2xf32>
    tpu.vector_store %arg12[%c0_3, %c18, %c0_4], %2 {strides = array<i32>} : memref<20x20x2xf32, #tpu.memory_space<vmem>>, vector<20x2x2xf32>,
    %c0_5 = arith.constant 0 : index
    %c0_6 = arith.constant 0 : index
    %c0_7 = arith.constant 0 : index
    %c0_8 = arith.constant 0 : index
    %4 = vector.load %arg3[%c0_5, %c0_6, %c0_7, %c0_8] : memref<1x8x16x4xf32, #tpu.memory_space<vmem>>, vector<1x8x16x4xf32>
    %5 = vector.shape_cast %4 : vector<1x8x16x4xf32> to vector<8x16x4xf32>
    %6 = vector.extract_strided_slice %5 {offsets = [2, 0, 0], sizes = [6, 16, 4], strides = [1, 1, 1]} : vector<8x16x4xf32> to vector<6x16x4xf32>
    %c0_9 = arith.constant 0 : index
    %c0_10 = arith.constant 0 : index
    %c0_11 = arith.constant 0 : index
    %c0_12 = arith.constant 0 : index
    %7 = vector.load %arg2[%c0_9, %c0_10, %c0_11, %c0_12] : memref<1x8x16x4xf32, #tpu.memory_space<vmem>>, vector<1x8x16x4xf32>
    %8 = vector.shape_cast %7 : vector<1x8x16x4xf32> to vector<8x16x4xf32>
    %c0_13 = arith.constant 0 : index
    %c0_14 = arith.constant 0 : index
    %c0_15 = arith.constant 0 : index
    %c0_16 = arith.constant 0 : index
    %9 = vector.load %arg4[%c0_13, %c0_14, %c0_15, %c0_16] : memref<1x8x16x4xf32, #tpu.memory_space<vmem>>, vector<1x8x16x4xf32>
    %10 = vector.shape_cast %9 : vector<1x8x16x4xf32> to vector<8x16x4xf32>
    %11 = vector.extract_strided_slice %10 {offsets = [0, 0, 0], sizes = [6, 16, 4], strides = [1, 1, 1]} : vector<8x16x4xf32> to vector<6x16x4xf32>
    %12 = tpu.concatenate %6, %8, %11 in 0 : vector<6x16x4xf32>, vector<8x16x4xf32>, vector<6x16x4xf32> -> vector<20x16x4xf32>
    %13 = vector.shape_cast %12 : vector<20x16x4xf32> to vector<320x4xf32>
    %c0_17 = arith.constant 0 : index
    %c0_18 = arith.constant 0 : index
    %14 = vector.load %arg5[%c0_17, %c0_18] : memref<4x2xf32, #tpu.memory_space<vmem>>, vector<4x2xf32>
    %cst_19 = arith.constant dense<0.000000e+00> : vector<320x2xf32>
    %15 = tpu.matmul %13, %14, %cst_19 {dimension_numbers = #tpu.dot_dimension_numbers<[1], [0], [0], [1], [0, 0, 1, 1], [], []>} : vector<320x4xf32>, vector<4x2xf32>, vector<320x2xf32> -> vector<320x2xf32>
    %c0_20 = arith.constant 0 : index
    %c0_21 = arith.constant 0 : index
    %16 = vector.load %arg6[%c0_20, %c0_21] : memref<1x2xf32, #tpu.memory_space<vmem>>, vector<1x2xf32>
    %17 = vector.broadcast %16 : vector<1x2xf32> to vector<320x2xf32>
    %18 = arith.mulf %15, %17 : vector<320x2xf32>
    %c0_22 = arith.constant 0 : index
    %c0_23 = arith.constant 0 : index
    %19 = vector.load %arg7[%c0_22, %c0_23] : memref<1x2xf32, #tpu.memory_space<vmem>>, vector<1x2xf32>
    %20 = vector.broadcast %19 : vector<1x2xf32> to vector<320x2xf32>
    %21 = arith.addf %18, %20 : vector<320x2xf32>
    %cst_24 = arith.constant 5.000000e-01 : f32
    %22 = vector.broadcast %cst_24 : f32 to vector<320x2xf32>
    %23 = arith.mulf %22, %21 : vector<320x2xf32>
    %24 = math.tanh %23 : vector<320x2xf32>
    %cst_25 = arith.constant 1.000000e+00 : f32
    %25 = vector.broadcast %cst_25 : f32 to vector<320x2xf32>
    %26 = arith.addf %24, %25 : vector<320x2xf32>
    %cst_26 = arith.constant 5.000000e-01 : f32
    %27 = vector.broadcast %cst_26 : f32 to vector<320x2xf32>
    %28 = arith.mulf %27, %26 : vector<320x2xf32>
    %29 = arith.mulf %21, %28 : vector<320x2xf32>
    %30 = vector.shape_cast %29 : vector<320x2xf32> to vector<20x16x2xf32>
    %31 = vector.extract_strided_slice %30 {offsets = [6, 0, 0], sizes = [8, 16, 2], strides = [1, 1, 1]} : vector<20x16x2xf32> to vector<8x16x2xf32>
    %c0_27 = arith.constant 0 : index
    %c2 = arith.constant 2 : index
    %c0_28 = arith.constant 0 : index
    %32 = vector.load %arg12[%c0_27, %c2, %c0_28] : memref<20x20x2xf32, #tpu.memory_space<vmem>>, vector<20x16x2xf32>
    tpu.vector_store %arg12[%c0_27, %c2, %c0_28], %30 {strides = array<i32>} : memref<20x20x2xf32, #tpu.memory_space<vmem>>, vector<20x16x2xf32>,
    %c0_i32 = arith.constant 0 : i32
    %33 = arith.cmpi eq, %arg1, %c0_i32 : i32
    %34 = arith.extui %33 : i1 to i32
    %c0_i32_29 = arith.constant 0 : i32
    %35 = arith.cmpi ne, %34, %c0_i32_29 : i32
    scf.if %35 {
      %cst_122 = arith.constant -3.40282347E+38 : f32
      %142 = vector.broadcast %cst_122 : f32 to vector<6x16x2xf32>
      %c0_123 = arith.constant 0 : index
      %c2_124 = arith.constant 2 : index
      %c0_125 = arith.constant 0 : index
      %143 = vector.load %arg12[%c0_123, %c2_124, %c0_125] : memref<20x20x2xf32, #tpu.memory_space<vmem>>, vector<6x16x2xf32>
      tpu.vector_store %arg12[%c0_123, %c2_124, %c0_125], %142 {strides = array<i32>} : memref<20x20x2xf32, #tpu.memory_space<vmem>>, vector<6x16x2xf32>,
    } else {
    }
    %c1_i32 = arith.constant 1 : i32
    %36 = arith.cmpi eq, %arg1, %c1_i32 : i32
    %37 = arith.extui %36 : i1 to i32
    %c0_i32_30 = arith.constant 0 : i32
    %38 = arith.cmpi ne, %37, %c0_i32_30 : i32
    scf.if %38 {
      %cst_122 = arith.constant -3.40282347E+38 : f32
      %142 = vector.broadcast %cst_122 : f32 to vector<6x16x2xf32>
      %c14 = arith.constant 14 : index
      %c2_123 = arith.constant 2 : index
      %c0_124 = arith.constant 0 : index
      %143 = vector.load %arg12[%c14, %c2_123, %c0_124] : memref<20x20x2xf32, #tpu.memory_space<vmem>>, vector<6x16x2xf32>
      tpu.vector_store %arg12[%c14, %c2_123, %c0_124], %142 {strides = array<i32>} : memref<20x20x2xf32, #tpu.memory_space<vmem>>, vector<6x16x2xf32>,
    } else {
    }
    %39 = vector.shape_cast %31 : vector<8x16x2xf32> to vector<128x2xf32>
    %c0_31 = arith.constant 0 : index
    %c0_32 = arith.constant 0 : index
    %c0_33 = arith.constant 0 : index
    %40 = vector.load %arg8[%c0_31, %c0_32, %c0_33] : memref<4x2x8xf32, #tpu.memory_space<vmem>>, vector<1x2x8xf32>
    %41 = vector.shape_cast %40 : vector<1x2x8xf32> to vector<2x8xf32>
    %cst_34 = arith.constant dense<0.000000e+00> : vector<128x8xf32>
    %42 = tpu.matmul %39, %41, %cst_34 {dimension_numbers = #tpu.dot_dimension_numbers<[1], [0], [0], [1], [0, 0, 1, 1], [], []>} : vector<128x2xf32>, vector<2x8xf32>, vector<128x8xf32> -> vector<128x8xf32>
    %c0_35 = arith.constant 0 : index
    %c0_36 = arith.constant 0 : index
    %43 = vector.load %arg13[%c0_35, %c0_36] : memref<128x8xf32, #tpu.memory_space<vmem>>, vector<128x8xf32>
    tpu.vector_store %arg13[%c0_35, %c0_36], %42 {strides = array<i32>} : memref<128x8xf32, #tpu.memory_space<vmem>>, vector<128x8xf32>,
    %c0_37 = arith.constant 0 : index
    %c0_38 = arith.constant 0 : index
    %c0_39 = arith.constant 0 : index
    %44 = vector.load %arg12[%c0_37, %c0_38, %c0_39] : memref<20x20x2xf32, #tpu.memory_space<vmem>>, vector<20x16x2xf32>
    %c0_40 = arith.constant 0 : index
    %c1 = arith.constant 1 : index
    %c0_41 = arith.constant 0 : index
    %45 = vector.load %arg12[%c0_40, %c1, %c0_41] : memref<20x20x2xf32, #tpu.memory_space<vmem>>, vector<20x16x2xf32>
    %46 = arith.maximumf %44, %45 : vector<20x16x2xf32>
    %c0_42 = arith.constant 0 : index
    %c2_43 = arith.constant 2 : index
    %c0_44 = arith.constant 0 : index
    %47 = vector.load %arg12[%c0_42, %c2_43, %c0_44] : memref<20x20x2xf32, #tpu.memory_space<vmem>>, vector<20x16x2xf32>
    %48 = arith.maximumf %46, %47 : vector<20x16x2xf32>
    %c0_45 = arith.constant 0 : index
    %c3 = arith.constant 3 : index
    %c0_46 = arith.constant 0 : index
    %49 = vector.load %arg12[%c0_45, %c3, %c0_46] : memref<20x20x2xf32, #tpu.memory_space<vmem>>, vector<20x16x2xf32>
    %50 = arith.maximumf %48, %49 : vector<20x16x2xf32>
    %c0_47 = arith.constant 0 : index
    %c4 = arith.constant 4 : index
    %c0_48 = arith.constant 0 : index
    %51 = vector.load %arg12[%c0_47, %c4, %c0_48] : memref<20x20x2xf32, #tpu.memory_space<vmem>>, vector<20x16x2xf32>
    %52 = arith.maximumf %50, %51 : vector<20x16x2xf32>
    %53 = vector.extract_strided_slice %52 {offsets = [0, 0, 0], sizes = [16, 16, 2], strides = [1, 1, 1]} : vector<20x16x2xf32> to vector<16x16x2xf32>
    %54 = vector.extract_strided_slice %52 {offsets = [1, 0, 0], sizes = [16, 16, 2], strides = [1, 1, 1]} : vector<20x16x2xf32> to vector<16x16x2xf32>
    %55 = arith.maximumf %53, %54 : vector<16x16x2xf32>
    %56 = vector.extract_strided_slice %52 {offsets = [2, 0, 0], sizes = [16, 16, 2], strides = [1, 1, 1]} : vector<20x16x2xf32> to vector<16x16x2xf32>
    %57 = arith.maximumf %55, %56 : vector<16x16x2xf32>
    %58 = vector.extract_strided_slice %52 {offsets = [3, 0, 0], sizes = [16, 16, 2], strides = [1, 1, 1]} : vector<20x16x2xf32> to vector<16x16x2xf32>
    %59 = arith.maximumf %57, %58 : vector<16x16x2xf32>
    %60 = vector.extract_strided_slice %52 {offsets = [4, 0, 0], sizes = [16, 16, 2], strides = [1, 1, 1]} : vector<20x16x2xf32> to vector<16x16x2xf32>
    %61 = arith.maximumf %59, %60 : vector<16x16x2xf32>
    %c0_49 = arith.constant 0 : index
    %c0_50 = arith.constant 0 : index
    %62 = vector.load %arg13[%c0_49, %c0_50] : memref<128x8xf32, #tpu.memory_space<vmem>>, vector<128x8xf32>
    %63 = vector.extract_strided_slice %61 {offsets = [4, 0, 0], sizes = [8, 16, 2], strides = [1, 1, 1]} : vector<16x16x2xf32> to vector<8x16x2xf32>
    %64 = vector.shape_cast %63 : vector<8x16x2xf32> to vector<128x2xf32>
    %c1_51 = arith.constant 1 : index
    %c0_52 = arith.constant 0 : index
    %c0_53 = arith.constant 0 : index
    %65 = vector.load %arg8[%c1_51, %c0_52, %c0_53] : memref<4x2x8xf32, #tpu.memory_space<vmem>>, vector<1x2x8xf32>
    %66 = vector.shape_cast %65 : vector<1x2x8xf32> to vector<2x8xf32>
    %cst_54 = arith.constant dense<0.000000e+00> : vector<128x8xf32>
    %67 = tpu.matmul %64, %66, %cst_54 {dimension_numbers = #tpu.dot_dimension_numbers<[1], [0], [0], [1], [0, 0, 1, 1], [], []>} : vector<128x2xf32>, vector<2x8xf32>, vector<128x8xf32> -> vector<128x8xf32>
    %68 = arith.addf %62, %67 : vector<128x8xf32>
    %c0_55 = arith.constant 0 : index
    %c0_56 = arith.constant 0 : index
    %69 = vector.load %arg13[%c0_55, %c0_56] : memref<128x8xf32, #tpu.memory_space<vmem>>, vector<128x8xf32>
    tpu.vector_store %arg13[%c0_55, %c0_56], %68 {strides = array<i32>} : memref<128x8xf32, #tpu.memory_space<vmem>>, vector<128x8xf32>,
    %c0_57 = arith.constant 0 : index
    %c2_58 = arith.constant 2 : index
    %c0_59 = arith.constant 0 : index
    %70 = vector.load %arg12[%c0_57, %c2_58, %c0_59] : memref<20x20x2xf32, #tpu.memory_space<vmem>>, vector<16x16x2xf32>
    tpu.vector_store %arg12[%c0_57, %c2_58, %c0_59], %61 {strides = array<i32>} : memref<20x20x2xf32, #tpu.memory_space<vmem>>, vector<16x16x2xf32>,
    %c0_60 = arith.constant 0 : index
    %c0_61 = arith.constant 0 : index
    %c0_62 = arith.constant 0 : index
    %71 = vector.load %arg12[%c0_60, %c0_61, %c0_62] : memref<20x20x2xf32, #tpu.memory_space<vmem>>, vector<16x16x2xf32>
    %c0_63 = arith.constant 0 : index
    %c1_64 = arith.constant 1 : index
    %c0_65 = arith.constant 0 : index
    %72 = vector.load %arg12[%c0_63, %c1_64, %c0_65] : memref<20x20x2xf32, #tpu.memory_space<vmem>>, vector<16x16x2xf32>
    %73 = arith.maximumf %71, %72 : vector<16x16x2xf32>
    %c0_66 = arith.constant 0 : index
    %c2_67 = arith.constant 2 : index
    %c0_68 = arith.constant 0 : index
    %74 = vector.load %arg12[%c0_66, %c2_67, %c0_68] : memref<20x20x2xf32, #tpu.memory_space<vmem>>, vector<16x16x2xf32>
    %75 = arith.maximumf %73, %74 : vector<16x16x2xf32>
    %c0_69 = arith.constant 0 : index
    %c3_70 = arith.constant 3 : index
    %c0_71 = arith.constant 0 : index
    %76 = vector.load %arg12[%c0_69, %c3_70, %c0_71] : memref<20x20x2xf32, #tpu.memory_space<vmem>>, vector<16x16x2xf32>
    %77 = arith.maximumf %75, %76 : vector<16x16x2xf32>
    %c0_72 = arith.constant 0 : index
    %c4_73 = arith.constant 4 : index
    %c0_74 = arith.constant 0 : index
    %78 = vector.load %arg12[%c0_72, %c4_73, %c0_74] : memref<20x20x2xf32, #tpu.memory_space<vmem>>, vector<16x16x2xf32>
    %79 = arith.maximumf %77, %78 : vector<16x16x2xf32>
    %80 = vector.extract_strided_slice %79 {offsets = [0, 0, 0], sizes = [12, 16, 2], strides = [1, 1, 1]} : vector<16x16x2xf32> to vector<12x16x2xf32>
    %81 = vector.extract_strided_slice %79 {offsets = [1, 0, 0], sizes = [12, 16, 2], strides = [1, 1, 1]} : vector<16x16x2xf32> to vector<12x16x2xf32>
    %82 = arith.maximumf %80, %81 : vector<12x16x2xf32>
    %83 = vector.extract_strided_slice %79 {offsets = [2, 0, 0], sizes = [12, 16, 2], strides = [1, 1, 1]} : vector<16x16x2xf32> to vector<12x16x2xf32>
    %84 = arith.maximumf %82, %83 : vector<12x16x2xf32>
    %85 = vector.extract_strided_slice %79 {offsets = [3, 0, 0], sizes = [12, 16, 2], strides = [1, 1, 1]} : vector<16x16x2xf32> to vector<12x16x2xf32>
    %86 = arith.maximumf %84, %85 : vector<12x16x2xf32>
    %87 = vector.extract_strided_slice %79 {offsets = [4, 0, 0], sizes = [12, 16, 2], strides = [1, 1, 1]} : vector<16x16x2xf32> to vector<12x16x2xf32>
    %88 = arith.maximumf %86, %87 : vector<12x16x2xf32>
    %c0_75 = arith.constant 0 : index
    %c0_76 = arith.constant 0 : index
    %89 = vector.load %arg13[%c0_75, %c0_76] : memref<128x8xf32, #tpu.memory_space<vmem>>, vector<128x8xf32>
    %90 = vector.extract_strided_slice %88 {offsets = [2, 0, 0], sizes = [8, 16, 2], strides = [1, 1, 1]} : vector<12x16x2xf32> to vector<8x16x2xf32>
    %91 = vector.shape_cast %90 : vector<8x16x2xf32> to vector<128x2xf32>
    %c2_77 = arith.constant 2 : index
    %c0_78 = arith.constant 0 : index
    %c0_79 = arith.constant 0 : index
    %92 = vector.load %arg8[%c2_77, %c0_78, %c0_79] : memref<4x2x8xf32, #tpu.memory_space<vmem>>, vector<1x2x8xf32>
    %93 = vector.shape_cast %92 : vector<1x2x8xf32> to vector<2x8xf32>
    %cst_80 = arith.constant dense<0.000000e+00> : vector<128x8xf32>
    %94 = tpu.matmul %91, %93, %cst_80 {dimension_numbers = #tpu.dot_dimension_numbers<[1], [0], [0], [1], [0, 0, 1, 1], [], []>} : vector<128x2xf32>, vector<2x8xf32>, vector<128x8xf32> -> vector<128x8xf32>
    %95 = arith.addf %89, %94 : vector<128x8xf32>
    %c0_81 = arith.constant 0 : index
    %c0_82 = arith.constant 0 : index
    %96 = vector.load %arg13[%c0_81, %c0_82] : memref<128x8xf32, #tpu.memory_space<vmem>>, vector<128x8xf32>
    tpu.vector_store %arg13[%c0_81, %c0_82], %95 {strides = array<i32>} : memref<128x8xf32, #tpu.memory_space<vmem>>, vector<128x8xf32>,
    %c0_83 = arith.constant 0 : index
    %c2_84 = arith.constant 2 : index
    %c0_85 = arith.constant 0 : index
    %97 = vector.load %arg12[%c0_83, %c2_84, %c0_85] : memref<20x20x2xf32, #tpu.memory_space<vmem>>, vector<12x16x2xf32>
    tpu.vector_store %arg12[%c0_83, %c2_84, %c0_85], %88 {strides = array<i32>} : memref<20x20x2xf32, #tpu.memory_space<vmem>>, vector<12x16x2xf32>,
    %c0_86 = arith.constant 0 : index
    %c0_87 = arith.constant 0 : index
    %c0_88 = arith.constant 0 : index
    %98 = vector.load %arg12[%c0_86, %c0_87, %c0_88] : memref<20x20x2xf32, #tpu.memory_space<vmem>>, vector<12x16x2xf32>
    %c0_89 = arith.constant 0 : index
    %c1_90 = arith.constant 1 : index
    %c0_91 = arith.constant 0 : index
    %99 = vector.load %arg12[%c0_89, %c1_90, %c0_91] : memref<20x20x2xf32, #tpu.memory_space<vmem>>, vector<12x16x2xf32>
    %100 = arith.maximumf %98, %99 : vector<12x16x2xf32>
    %c0_92 = arith.constant 0 : index
    %c2_93 = arith.constant 2 : index
    %c0_94 = arith.constant 0 : index
    %101 = vector.load %arg12[%c0_92, %c2_93, %c0_94] : memref<20x20x2xf32, #tpu.memory_space<vmem>>, vector<12x16x2xf32>
    %102 = arith.maximumf %100, %101 : vector<12x16x2xf32>
    %c0_95 = arith.constant 0 : index
    %c3_96 = arith.constant 3 : index
    %c0_97 = arith.constant 0 : index
    %103 = vector.load %arg12[%c0_95, %c3_96, %c0_97] : memref<20x20x2xf32, #tpu.memory_space<vmem>>, vector<12x16x2xf32>
    %104 = arith.maximumf %102, %103 : vector<12x16x2xf32>
    %c0_98 = arith.constant 0 : index
    %c4_99 = arith.constant 4 : index
    %c0_100 = arith.constant 0 : index
    %105 = vector.load %arg12[%c0_98, %c4_99, %c0_100] : memref<20x20x2xf32, #tpu.memory_space<vmem>>, vector<12x16x2xf32>
    %106 = arith.maximumf %104, %105 : vector<12x16x2xf32>
    %107 = vector.extract_strided_slice %106 {offsets = [0, 0, 0], sizes = [8, 16, 2], strides = [1, 1, 1]} : vector<12x16x2xf32> to vector<8x16x2xf32>
    %108 = vector.extract_strided_slice %106 {offsets = [1, 0, 0], sizes = [8, 16, 2], strides = [1, 1, 1]} : vector<12x16x2xf32> to vector<8x16x2xf32>
    %109 = arith.maximumf %107, %108 : vector<8x16x2xf32>
    %110 = vector.extract_strided_slice %106 {offsets = [2, 0, 0], sizes = [8, 16, 2], strides = [1, 1, 1]} : vector<12x16x2xf32> to vector<8x16x2xf32>
    %111 = arith.maximumf %109, %110 : vector<8x16x2xf32>
    %112 = vector.extract_strided_slice %106 {offsets = [3, 0, 0], sizes = [8, 16, 2], strides = [1, 1, 1]} : vector<12x16x2xf32> to vector<8x16x2xf32>
    %113 = arith.maximumf %111, %112 : vector<8x16x2xf32>
    %114 = vector.extract_strided_slice %106 {offsets = [4, 0, 0], sizes = [8, 16, 2], strides = [1, 1, 1]} : vector<12x16x2xf32> to vector<8x16x2xf32>
    %115 = arith.maximumf %113, %114 : vector<8x16x2xf32>
    %c0_101 = arith.constant 0 : index
    %c0_102 = arith.constant 0 : index
    %116 = vector.load %arg13[%c0_101, %c0_102] : memref<128x8xf32, #tpu.memory_space<vmem>>, vector<128x8xf32>
    %117 = vector.shape_cast %115 : vector<8x16x2xf32> to vector<128x2xf32>
    %c3_103 = arith.constant 3 : index
    %c0_104 = arith.constant 0 : index
    %c0_105 = arith.constant 0 : index
    %118 = vector.load %arg8[%c3_103, %c0_104, %c0_105] : memref<4x2x8xf32, #tpu.memory_space<vmem>>, vector<1x2x8xf32>
    %119 = vector.shape_cast %118 : vector<1x2x8xf32> to vector<2x8xf32>
    %cst_106 = arith.constant dense<0.000000e+00> : vector<128x8xf32>
    %120 = tpu.matmul %117, %119, %cst_106 {dimension_numbers = #tpu.dot_dimension_numbers<[1], [0], [0], [1], [0, 0, 1, 1], [], []>} : vector<128x2xf32>, vector<2x8xf32>, vector<128x8xf32> -> vector<128x8xf32>
    %121 = arith.addf %116, %120 : vector<128x8xf32>
    %c0_107 = arith.constant 0 : index
    %c0_108 = arith.constant 0 : index
    %122 = vector.load %arg13[%c0_107, %c0_108] : memref<128x8xf32, #tpu.memory_space<vmem>>, vector<128x8xf32>
    tpu.vector_store %arg13[%c0_107, %c0_108], %121 {strides = array<i32>} : memref<128x8xf32, #tpu.memory_space<vmem>>, vector<128x8xf32>,
    %c0_109 = arith.constant 0 : index
    %c0_110 = arith.constant 0 : index
    %123 = vector.load %arg13[%c0_109, %c0_110] : memref<128x8xf32, #tpu.memory_space<vmem>>, vector<128x8xf32>
    %c0_111 = arith.constant 0 : index
    %c0_112 = arith.constant 0 : index
    %124 = vector.load %arg9[%c0_111, %c0_112] : memref<1x8xf32, #tpu.memory_space<vmem>>, vector<1x8xf32>
    %125 = vector.broadcast %124 : vector<1x8xf32> to vector<128x8xf32>
    %126 = arith.mulf %123, %125 : vector<128x8xf32>
    %c0_113 = arith.constant 0 : index
    %c0_114 = arith.constant 0 : index
    %127 = vector.load %arg10[%c0_113, %c0_114] : memref<1x8xf32, #tpu.memory_space<vmem>>, vector<1x8xf32>
    %128 = vector.broadcast %127 : vector<1x8xf32> to vector<128x8xf32>
    %129 = arith.addf %126, %128 : vector<128x8xf32>
    %cst_115 = arith.constant 5.000000e-01 : f32
    %130 = vector.broadcast %cst_115 : f32 to vector<128x8xf32>
    %131 = arith.mulf %130, %129 : vector<128x8xf32>
    %132 = math.tanh %131 : vector<128x8xf32>
    %cst_116 = arith.constant 1.000000e+00 : f32
    %133 = vector.broadcast %cst_116 : f32 to vector<128x8xf32>
    %134 = arith.addf %132, %133 : vector<128x8xf32>
    %cst_117 = arith.constant 5.000000e-01 : f32
    %135 = vector.broadcast %cst_117 : f32 to vector<128x8xf32>
    %136 = arith.mulf %135, %134 : vector<128x8xf32>
    %137 = arith.mulf %129, %136 : vector<128x8xf32>
    %138 = vector.shape_cast %137 : vector<128x8xf32> to vector<8x16x8xf32>
    %c0_118 = arith.constant 0 : index
    %c0_119 = arith.constant 0 : index
    %c0_120 = arith.constant 0 : index
    %c0_121 = arith.constant 0 : index
    %139 = vector.load %arg11[%c0_118, %c0_119, %c0_120, %c0_121] : memref<1x8x16x8xf32, #tpu.memory_space<vmem>>, vector<1x8x16x8xf32>
    %140 = vector.shape_cast %139 : vector<1x8x16x8xf32> to vector<8x16x8xf32>
    %141 = vector.shape_cast %138 : vector<8x16x8xf32> to vector<1x8x16x8xf32>
    tpu.vector_store %arg11[%c0_118, %c0_119, %c0_120, %c0_121], %141 {strides = array<i32>} : memref<1x8x16x8xf32, #tpu.memory_space<vmem>>, vector<1x8x16x8xf32>,
    return
  }
  func.func @transform_0(%arg0: i32, %arg1: i32) -> (i32, i32, i32, i32) {
    %c0_i32 = arith.constant 0 : i32
    %c0_i32_0 = arith.constant 0 : i32
    %c0_i32_1 = arith.constant 0 : i32
    return %arg0, %arg1, %c0_i32, %c0_i32_0 : i32, i32, i32, i32
  }
  func.func @transform_1(%arg0: i32, %arg1: i32) -> (i32, i32, i32, i32) {
    %c1_i32 = arith.constant 1 : i32
    %0 = arith.muli %arg1, %c1_i32 : i32
    %c1_i32_0 = arith.constant 1 : i32
    %1 = arith.subi %0, %c1_i32_0 : i32
    %c0_i32 = arith.constant 0 : i32
    %2 = arith.maxsi %1, %c0_i32 : i32
    %c0_i32_1 = arith.constant 0 : i32
    %c0_i32_2 = arith.constant 0 : i32
    %c0_i32_3 = arith.constant 0 : i32
    return %arg0, %2, %c0_i32_1, %c0_i32_2 : i32, i32, i32, i32
  }
  func.func @transform_2(%arg0: i32, %arg1: i32) -> (i32, i32, i32, i32) {
    %c1_i32 = arith.constant 1 : i32
    %0 = arith.addi %arg1, %c1_i32 : i32
    %c1_i32_0 = arith.constant 1 : i32
    %1 = arith.muli %0, %c1_i32_0 : i32
    %c1_i32_1 = arith.constant 1 : i32
    %2 = arith.minsi %1, %c1_i32_1 : i32
    %c0_i32 = arith.constant 0 : i32
    %c0_i32_2 = arith.constant 0 : i32
    %c0_i32_3 = arith.constant 0 : i32
    return %arg0, %2, %c0_i32, %c0_i32_2 : i32, i32, i32, i32
  }
  func.func @transform_3(%arg0: i32, %arg1: i32) -> (i32, i32) {
    %c0_i32 = arith.constant 0 : i32
    %c0_i32_0 = arith.constant 0 : i32
    %c0_i32_1 = arith.constant 0 : i32
    return %c0_i32, %c0_i32_0 : i32, i32
  }
  func.func @transform_4(%arg0: i32, %arg1: i32) -> (i32, i32) {
    %c0_i32 = arith.constant 0 : i32
    %c0_i32_0 = arith.constant 0 : i32
    %c0_i32_1 = arith.constant 0 : i32
    return %c0_i32, %c0_i32_0 : i32, i32
  }
  func.func @transform_5(%arg0: i32, %arg1: i32) -> (i32, i32) {
    %c0_i32 = arith.constant 0 : i32
    %c0_i32_0 = arith.constant 0 : i32
    %c0_i32_1 = arith.constant 0 : i32
    return %c0_i32, %c0_i32_0 : i32, i32
  }
  func.func @transform_6(%arg0: i32, %arg1: i32) -> (i32, i32, i32) {
    %c0_i32 = arith.constant 0 : i32
    %c0_i32_0 = arith.constant 0 : i32
    %c0_i32_1 = arith.constant 0 : i32
    %c0_i32_2 = arith.constant 0 : i32
    return %c0_i32, %c0_i32_0, %c0_i32_1 : i32, i32, i32
  }
  func.func @transform_7(%arg0: i32, %arg1: i32) -> (i32, i32) {
    %c0_i32 = arith.constant 0 : i32
    %c0_i32_0 = arith.constant 0 : i32
    %c0_i32_1 = arith.constant 0 : i32
    return %c0_i32, %c0_i32_0 : i32, i32
  }
  func.func @transform_8(%arg0: i32, %arg1: i32) -> (i32, i32) {
    %c0_i32 = arith.constant 0 : i32
    %c0_i32_0 = arith.constant 0 : i32
    %c0_i32_1 = arith.constant 0 : i32
    return %c0_i32, %c0_i32_0 : i32, i32
  }
  func.func @transform_9(%arg0: i32, %arg1: i32) -> (i32, i32, i32, i32) {
    %c0_i32 = arith.constant 0 : i32
    %c0_i32_0 = arith.constant 0 : i32
    %c0_i32_1 = arith.constant 0 : i32
    return %arg0, %arg1, %c0_i32, %c0_i32_0 : i32, i32, i32, i32
  }
}

</mosaic_0001>

<llo_original>
// kernel: tpu_custom_call.1
$region0: #{tpu_custom_call.1}
  #allocation0 [shape = 'u32[]', space=smem, size = 0x4, offset = 0x4, fixed_abs, tag = 'smem constant byte address 0x4 - core index']
  #allocation1 [shape = 'u32[144,128]{1,0:T(1,128)}', space=vmem, size = 0x12000, scoped, tag = 'internal scratch']
  #allocation2 [shape = 'f32[20,20,2]{2,1,0:T(8,128)}', space=vmem, size = 0x3c000, scoped, tag = 'scratch operand']
  #allocation3 [shape = 'f32[128,8]{1,0:T(8,128)}', space=vmem, size = 0x10000, scoped, tag = 'scratch operand']
  %s0 = inlined_call_operand.vmem [shape: f32[2,16,16,4], index: 0, kind: input, shape index: {}]
  %s1 = inlined_call_operand.vmem [shape: f32[2,16,16,4], index: 1, kind: input, shape index: {}]
  %s2 = inlined_call_operand.vmem [shape: f32[2,16,16,4], index: 2, kind: input, shape index: {}]
  %s3 = inlined_call_operand.vmem [shape: f32[4,2], index: 3, kind: input, shape index: {}]
  %s4 = inlined_call_operand.vmem [shape: f32[1,2], index: 4, kind: input, shape index: {}]
  %s5 = inlined_call_operand.vmem [shape: f32[1,2], index: 5, kind: input, shape index: {}]
  %s6 = inlined_call_operand.vmem [shape: f32[4,2,8], index: 6, kind: input, shape index: {}]
  %s7 = inlined_call_operand.vmem [shape: f32[1,8], index: 7, kind: input, shape index: {}]
  %s8 = inlined_call_operand.vmem [shape: f32[1,8], index: 8, kind: input, shape index: {}]
  %s9 = inlined_call_operand.vmem [shape: f32[2,16,16,8], index: 9, kind: output, shape index: {}]
  %s10 = sld [smem:[#allocation0]]
  $region77: #{tpu_custom_call.1} parent=0
    _
  %s12 = ssub.s32 1, %s10
  %s13 = scalar_select 0, %s12, %s10
  loop: start=0, step=1, limit=6
  $region2: #{tpu_custom_call.1} parent=0 // loop_pre_header
    _
  $region3: #{tpu_custom_call.1} parent=0 // loop_header
    %s15 = sphi 0, %s19
    %p16 = scmp.ge.s32.totalorder %s15, 6
    %s22 = sphi 0, %s34
    %s23 = sphi 0, %s30
    %s24 = sphi 0, %s22
    %s25 = sphi 0, %s23
    %s26 = sphi 0, %s24
    %s27 = sphi 0, %s25
    %s39 = sphi 0, %s41
    %s42 = sphi 0, %s39
    %s43 = sphi 0, %s42
    %s59 = sphi 0, %s43
    %s73 = sphi 0, %s75
    %s76 = sphi 0, %s73
    %s77 = sphi 0, %s76
    %s93 = sphi 0, %s77
    %s107 = sphi 0, %s109
    %s110 = sphi 0, %s107
    %s111 = sphi 0, %s110
    %s127 = sphi 0, %s111
    %s131 = sphi 0, %s131
    %s133 = sphi 0, %s131
    %s134 = sphi 0, %s133
    %s148 = sphi 0, %s134
    %s152 = sphi 0, %s152
    %s154 = sphi 0, %s152
    %s155 = sphi 0, %s154
    %s169 = sphi 0, %s155
    %s173 = sphi 0, %s173
    %s175 = sphi 0, %s173
    %s176 = sphi 0, %s175
    %s190 = sphi 0, %s176
    %s194 = sphi 0, %s194
    %s196 = sphi 0, %s194
    %s197 = sphi 0, %s196
    %s211 = sphi 0, %s197
    %s215 = sphi 0, %s215
    %s217 = sphi 0, %s215
    %s218 = sphi 0, %s217
    %s232 = sphi 0, %s218
    %s236 = sphi 0, %s236
    %s238 = sphi 0, %s236
    %s239 = sphi 0, %s238
    %s253 = sphi 0, %s239
    %s261 = sphi 0, %s263
    %s264 = sphi 0, %s261
    %s265 = sphi 0, %s264
    %s281 = sphi 0, %s265
  $region4: #{tpu_custom_call.1} parent=0 // loop_header_branch
    %18 = sbr.rel (%p16) target = $region8
  $region5: #{tpu_custom_call.1} parent=0 // loop_body
    %s20 = ssub.s32 %s15, 1
    %s21 = ssub.s32 %s15, 2
    %s28 = sadd.s32 1, %s23
    %p29 = scmp.ge.s32.totalorder %s28, 2
    %s30 = scalar_select %p29, 0, %s28
    %s31 = sadd.s32 1, %s22
    %s32 = scalar_select %p29, %s31, %s22
    %p33 = scmp.ge.s32.totalorder %s32, 2
    %s34 = scalar_select %p33, 0, %s32
    %s35 = ssub.s32 %s22, %s34
    %s36 = ssub.s32 %s23, %s30
    %s37 = sor.u32 %s35, %s36
    %p38 = scmp.eq.s32.totalorder %s37, 0
    %s40 = sadd.s32 %s39, 1
    %s41 = scalar_select %p38, %s39, %s40
    %p44 = pneg %p38
    %p45 = scmp.eq.s32.totalorder %s15, 3
    %p46 = por %p44, %p45
    %p47 = scmp.ne.s32.totalorder %s39, %s42
    %p48 = scmp.eq.s32.totalorder %s15, 0
    %p49 = por %p47, %p48
    %p50 = scmp.ne.s32.totalorder %s39, %s42
    %p51 = scmp.eq.s32.totalorder %s20, 3
    %p52 = por %p50, %p51
    %p53 = scmp.ne.s32.totalorder %s42, %s43
    %p54 = scmp.eq.s32.totalorder %s20, 0
    %p55 = por %p53, %p54
    %p56 = scmp.ne.s32.totalorder %s42, %s43
    %p57 = scmp.eq.s32.totalorder %s21, 3
    %p58 = por %p56, %p57
    %p60 = scmp.ne.s32.totalorder %s43, %s59
    %p61 = scmp.eq.s32.totalorder %s21, 0
    %p62 = por %p60, %p61
    %s63 = ssub.s32 %s23, 1
    %p64 = scmp.gt.s32.totalorder %s63, 0
    %s65 = scalar_select %p64, %s63, 0
    %s66 = ssub.s32 %s30, 1
    %p67 = scmp.gt.s32.totalorder %s66, 0
    %s68 = scalar_select %p67, %s66, 0
    %s69 = ssub.s32 %s22, %s34
    %s70 = ssub.s32 %s65, %s68
    %s71 = sor.u32 %s69, %s70
    %p72 = scmp.eq.s32.totalorder %s71, 0
    %s74 = sadd.s32 %s73, 1
    %s75 = scalar_select %p72, %s73, %s74
    %p78 = pneg %p72
    %p79 = scmp.eq.s32.totalorder %s15, 3
    %p80 = por %p78, %p79
    %p81 = scmp.ne.s32.totalorder %s73, %s76
    %p82 = scmp.eq.s32.totalorder %s15, 0
    %p83 = por %p81, %p82
    %p84 = scmp.ne.s32.totalorder %s73, %s76
    %p85 = scmp.eq.s32.totalorder %s20, 3
    %p86 = por %p84, %p85
    %p87 = scmp.ne.s32.totalorder %s76, %s77
    %p88 = scmp.eq.s32.totalorder %s20, 0
    %p89 = por %p87, %p88
    %p90 = scmp.ne.s32.totalorder %s76, %s77
    %p91 = scmp.eq.s32.totalorder %s21, 3
    %p92 = por %p90, %p91
    %p94 = scmp.ne.s32.totalorder %s77, %s93
    %p95 = scmp.eq.s32.totalorder %s21, 0
    %p96 = por %p94, %p95
    %s97 = sadd.s32 %s23, 1
    %p98 = scmp.lt.s32.totalorder %s97, 1
    %s99 = scalar_select %p98, %s97, 1
    %s100 = sadd.s32 %s30, 1
    %p101 = scmp.lt.s32.totalorder %s100, 1
    %s102 = scalar_select %p101, %s100, 1
    %s103 = ssub.s32 %s22, %s34
    %s104 = ssub.s32 %s99, %s102
    %s105 = sor.u32 %s103, %s104
    %p106 = scmp.eq.s32.totalorder %s105, 0
    %s108 = sadd.s32 %s107, 1
    %s109 = scalar_select %p106, %s107, %s108
    %p112 = pneg %p106
    %p113 = scmp.eq.s32.totalorder %s15, 3
    %p114 = por %p112, %p113
    %p115 = scmp.ne.s32.totalorder %s107, %s110
    %p116 = scmp.eq.s32.totalorder %s15, 0
    %p117 = por %p115, %p116
    %p118 = scmp.ne.s32.totalorder %s107, %s110
    %p119 = scmp.eq.s32.totalorder %s20, 3
    %p120 = por %p118, %p119
    %p121 = scmp.ne.s32.totalorder %s110, %s111
    %p122 = scmp.eq.s32.totalorder %s20, 0
    %p123 = por %p121, %p122
    %p124 = scmp.ne.s32.totalorder %s110, %s111
    %p125 = scmp.eq.s32.totalorder %s21, 3
    %p126 = por %p124, %p125
    %p128 = scmp.ne.s32.totalorder %s111, %s127
    %p129 = scmp.eq.s32.totalorder %s21, 0
    %p130 = por %p128, %p129
    %s132 = sadd.s32 %s131, 1
    %p135 = scmp.eq.s32.totalorder %s15, 3
    %p136 = scmp.ne.s32.totalorder %s131, %s133
    %p137 = scmp.eq.s32.totalorder %s15, 0
    %p138 = por %p136, %p137
    %p139 = scmp.ne.s32.totalorder %s131, %s133
    %p140 = scmp.eq.s32.totalorder %s20, 3
    %p141 = por %p139, %p140
    %p142 = scmp.ne.s32.totalorder %s133, %s134
    %p143 = scmp.eq.s32.totalorder %s20, 0
    %p144 = por %p142, %p143
    %p145 = scmp.ne.s32.totalorder %s133, %s134
    %p146 = scmp.eq.s32.totalorder %s21, 3
    %p147 = por %p145, %p146
    %p149 = scmp.ne.s32.totalorder %s134, %s148
    %p150 = scmp.eq.s32.totalorder %s21, 0
    %p151 = por %p149, %p150
    %s153 = sadd.s32 %s152, 1
    %p156 = scmp.eq.s32.totalorder %s15, 3
    %p157 = scmp.ne.s32.totalorder %s152, %s154
    %p158 = scmp.eq.s32.totalorder %s15, 0
    %p159 = por %p157, %p158
    %p160 = scmp.ne.s32.totalorder %s152, %s154
    %p161 = scmp.eq.s32.totalorder %s20, 3
    %p162 = por %p160, %p161
    %p163 = scmp.ne.s32.totalorder %s154, %s155
    %p164 = scmp.eq.s32.totalorder %s20, 0
    %p165 = por %p163, %p164
    %p166 = scmp.ne.s32.totalorder %s154, %s155
    %p167 = scmp.eq.s32.totalorder %s21, 3
    %p168 = por %p166, %p167
    %p170 = scmp.ne.s32.totalorder %s155, %s169
    %p171 = scmp.eq.s32.totalorder %s21, 0
    %p172 = por %p170, %p171
    %s174 = sadd.s32 %s173, 1
    %p177 = scmp.eq.s32.totalorder %s15, 3
    %p178 = scmp.ne.s32.totalorder %s173, %s175
    %p179 = scmp.eq.s32.totalorder %s15, 0
    %p180 = por %p178, %p179
    %p181 = scmp.ne.s32.totalorder %s173, %s175
    %p182 = scmp.eq.s32.totalorder %s20, 3
    %p183 = por %p181, %p182
    %p184 = scmp.ne.s32.totalorder %s175, %s176
    %p185 = scmp.eq.s32.totalorder %s20, 0
    %p186 = por %p184, %p185
    %p187 = scmp.ne.s32.totalorder %s175, %s176
    %p188 = scmp.eq.s32.totalorder %s21, 3
    %p189 = por %p187, %p188
    %p191 = scmp.ne.s32.totalorder %s176, %s190
    %p192 = scmp.eq.s32.totalorder %s21, 0
    %p193 = por %p191, %p192
    %s195 = sadd.s32 %s194, 1
    %p198 = scmp.eq.s32.totalorder %s15, 3
    %p199 = scmp.ne.s32.totalorder %s194, %s196
    %p200 = scmp.eq.s32.totalorder %s15, 0
    %p201 = por %p199, %p200
    %p202 = scmp.ne.s32.totalorder %s194, %s196
    %p203 = scmp.eq.s32.totalorder %s20, 3
    %p204 = por %p202, %p203
    %p205 = scmp.ne.s32.totalorder %s196, %s197
    %p206 = scmp.eq.s32.totalorder %s20, 0
    %p207 = por %p205, %p206
    %p208 = scmp.ne.s32.totalorder %s196, %s197
    %p209 = scmp.eq.s32.totalorder %s21, 3
    %p210 = por %p208, %p209
    %p212 = scmp.ne.s32.totalorder %s197, %s211
    %p213 = scmp.eq.s32.totalorder %s21, 0
    %p214 = por %p212, %p213
    %s216 = sadd.s32 %s215, 1
    %p219 = scmp.eq.s32.totalorder %s15, 3
    %p220 = scmp.ne.s32.totalorder %s215, %s217
    %p221 = scmp.eq.s32.totalorder %s15, 0
    %p222 = por %p220, %p221
    %p223 = scmp.ne.s32.totalorder %s215, %s217
    %p224 = scmp.eq.s32.totalorder %s20, 3
    %p225 = por %p223, %p224
    %p226 = scmp.ne.s32.totalorder %s217, %s218
    %p227 = scmp.eq.s32.totalorder %s20, 0
    %p228 = por %p226, %p227
    %p229 = scmp.ne.s32.totalorder %s217, %s218
    %p230 = scmp.eq.s32.totalorder %s21, 3
    %p231 = por %p229, %p230
    %p233 = scmp.ne.s32.totalorder %s218, %s232
    %p234 = scmp.eq.s32.totalorder %s21, 0
    %p235 = por %p233, %p234
    %s237 = sadd.s32 %s236, 1
    %p240 = scmp.eq.s32.totalorder %s15, 3
    %p241 = scmp.ne.s32.totalorder %s236, %s238
    %p242 = scmp.eq.s32.totalorder %s15, 0
    %p243 = por %p241, %p242
    %p244 = scmp.ne.s32.totalorder %s236, %s238
    %p245 = scmp.eq.s32.totalorder %s20, 3
    %p246 = por %p244, %p245
    %p247 = scmp.ne.s32.totalorder %s238, %s239
    %p248 = scmp.eq.s32.totalorder %s20, 0
    %p249 = por %p247, %p248
    %p250 = scmp.ne.s32.totalorder %s238, %s239
    %p251 = scmp.eq.s32.totalorder %s21, 3
    %p252 = por %p250, %p251
    %p254 = scmp.ne.s32.totalorder %s239, %s253
    %p255 = scmp.eq.s32.totalorder %s21, 0
    %p256 = por %p254, %p255
    %s257 = ssub.s32 %s22, %s34
    %s258 = ssub.s32 %s23, %s30
    %s259 = sor.u32 %s257, %s258
    %p260 = scmp.eq.s32.totalorder %s259, 0
    %s262 = sadd.s32 %s261, 1
    %s263 = scalar_select %p260, %s261, %s262
    %p266 = pneg %p260
    %p267 = scmp.eq.s32.totalorder %s15, 3
    %p268 = por %p266, %p267
    %p269 = scmp.ne.s32.totalorder %s261, %s264
    %p270 = scmp.eq.s32.totalorder %s15, 0
    %p271 = por %p269, %p270
    %p272 = scmp.ne.s32.totalorder %s261, %s264
    %p273 = scmp.eq.s32.totalorder %s20, 3
    %p274 = por %p272, %p273
    %p275 = scmp.ne.s32.totalorder %s264, %s265
    %p276 = scmp.eq.s32.totalorder %s20, 0
    %p277 = por %p275, %p276
    %p278 = scmp.ne.s32.totalorder %s264, %s265
    %p279 = scmp.eq.s32.totalorder %s21, 3
    %p280 = por %p278, %p279
    %p282 = scmp.ne.s32.totalorder %s265, %s281
    %p283 = scmp.eq.s32.totalorder %s21, 0
    %p284 = por %p282, %p283
    %p285 = scmp.le.s32.totalorder 1, %s15
    %p286 = scmp.lt.s32.totalorder %s15, 5
    %p287 = pnand %p285, %p286
    %p288 = pneg %p287
    // Predicated region
    $region9: #{tpu_custom_call.1} parent=5 // pred_check
      _
    $region10: #{tpu_custom_call.1} parent=5 // pred_check_branch
      %290 = sbr.rel (%p287) target = $region12
    $region11: #{tpu_custom_call.1} parent=5 // pred_region
      %s291 = ssub.s32 %s15, 1
      // Predicated region
      $region13: #{tpu_custom_call.1} parent=11 // pred_check
        %p292 = pneg %p144
      $region14: #{tpu_custom_call.1} parent=11 // pred_check_branch
        %294 = sbr.rel (%p292) target = $region16
      $region15: #{tpu_custom_call.1} parent=11 // pred_region
        _
      $region16: #{tpu_custom_call.1} parent=11 // pred_fallthru
        _
      // Predicated region
      $region17: #{tpu_custom_call.1} parent=11 // pred_check
        %p295 = pneg %p165
      $region18: #{tpu_custom_call.1} parent=11 // pred_check_branch
        %297 = sbr.rel (%p295) target = $region20
      $region19: #{tpu_custom_call.1} parent=11 // pred_region
        _
      $region20: #{tpu_custom_call.1} parent=11 // pred_fallthru
        _
      // Predicated region
      $region21: #{tpu_custom_call.1} parent=11 // pred_check
        %p298 = pneg %p186
      $region22: #{tpu_custom_call.1} parent=11 // pred_check_branch
        %300 = sbr.rel (%p298) target = $region24
      $region23: #{tpu_custom_call.1} parent=11 // pred_region
        _
      $region24: #{tpu_custom_call.1} parent=11 // pred_fallthru
        _
      // Predicated region
      $region25: #{tpu_custom_call.1} parent=11 // pred_check
        %p301 = pneg %p207
      $region26: #{tpu_custom_call.1} parent=11 // pred_check_branch
        %303 = sbr.rel (%p301) target = $region28
      $region27: #{tpu_custom_call.1} parent=11 // pred_region
        _
      $region28: #{tpu_custom_call.1} parent=11 // pred_fallthru
        _
      // Predicated region
      $region29: #{tpu_custom_call.1} parent=11 // pred_check
        %p304 = pneg %p228
      $region30: #{tpu_custom_call.1} parent=11 // pred_check_branch
        %306 = sbr.rel (%p304) target = $region32
      $region31: #{tpu_custom_call.1} parent=11 // pred_region
        _
      $region32: #{tpu_custom_call.1} parent=11 // pred_fallthru
        _
      // Predicated region
      $region33: #{tpu_custom_call.1} parent=11 // pred_check
        %p307 = pneg %p249
      $region34: #{tpu_custom_call.1} parent=11 // pred_check_branch
        %309 = sbr.rel (%p307) target = $region36
      $region35: #{tpu_custom_call.1} parent=11 // pred_region
        _
      $region36: #{tpu_custom_call.1} parent=11 // pred_fallthru
        _
    $region12: #{tpu_custom_call.1} parent=5 // pred_fallthru
      _
    %p310 = scmp.lt.s32.totalorder %s15, 4
    // Predicated region
    $region37: #{tpu_custom_call.1} parent=5 // pred_check
      %p311 = pneg %p310
    $region38: #{tpu_custom_call.1} parent=5 // pred_check_branch
      %313 = sbr.rel (%p311) target = $region40
    $region39: #{tpu_custom_call.1} parent=5 // pred_region
      // Predicated region
      $region41: #{tpu_custom_call.1} parent=39 // pred_check
        %p314 = pneg %p49
      $region42: #{tpu_custom_call.1} parent=39 // pred_check_branch
        %316 = sbr.rel (%p314) target = $region44
      $region43: #{tpu_custom_call.1} parent=39 // pred_region
        %s317 = smul.u32 8, %s23
        %p318 = scmp.lt.s32.totalorder %s22, 1
        %s319 = scalar_select %p318, %s22, 1
        %p320 = scmp.lt.s32.totalorder %s317, 15
        %s321 = scalar_select %p320, %s317, 15
        %s322 = smul.addr %s321, 2
        %s323 = smul.addr %s319, 32
        %s324 = sadd.s32 %s322, %s323
        %s325 = smul.addr %s324, 8
        %s326 = scalar_lea.vmem %s0, %s325
        %s327 = smul.u32 8, %s23
      $region44: #{tpu_custom_call.1} parent=39 // pred_fallthru
        _
      // Predicated region
      $region45: #{tpu_custom_call.1} parent=39 // pred_check
        %p328 = pneg %p83
      $region46: #{tpu_custom_call.1} parent=39 // pred_check_branch
        %330 = sbr.rel (%p328) target = $region48
      $region47: #{tpu_custom_call.1} parent=39 // pred_region
        %s331 = ssub.s32 %s23, 1
        %p332 = scmp.gt.s32.totalorder %s331, 0
        %s333 = scalar_select %p332, %s331, 0
        %s334 = smul.u32 8, %s333
        %p335 = scmp.lt.s32.totalorder %s22, 1
        %s336 = scalar_select %p335, %s22, 1
        %p337 = scmp.lt.s32.totalorder %s334, 15
        %s338 = scalar_select %p337, %s334, 15
        %s339 = smul.addr %s338, 2
        %s340 = smul.addr %s336, 32
        %s341 = sadd.s32 %s339, %s340
        %s342 = smul.addr %s341, 8
        %s343 = scalar_lea.vmem %s1, %s342
        %s344 = ssub.s32 %s23, 1
        %p345 = scmp.gt.s32.totalorder %s344, 0
        %s346 = scalar_select %p345, %s344, 0
        %s347 = smul.u32 8, %s346
      $region48: #{tpu_custom_call.1} parent=39 // pred_fallthru
        _
      // Predicated region
      $region49: #{tpu_custom_call.1} parent=39 // pred_check
        %p348 = pneg %p117
      $region50: #{tpu_custom_call.1} parent=39 // pred_check_branch
        %350 = sbr.rel (%p348) target = $region52
      $region51: #{tpu_custom_call.1} parent=39 // pred_region
        %s351 = sadd.s32 %s23, 1
        %p352 = scmp.lt.s32.totalorder %s351, 1
        %s353 = scalar_select %p352, %s351, 1
        %s354 = smul.u32 8, %s353
        %p355 = scmp.lt.s32.totalorder %s22, 1
        %s356 = scalar_select %p355, %s22, 1
        %p357 = scmp.lt.s32.totalorder %s354, 15
        %s358 = scalar_select %p357, %s354, 15
        %s359 = smul.addr %s358, 2
        %s360 = smul.addr %s356, 32
        %s361 = sadd.s32 %s359, %s360
        %s362 = smul.addr %s361, 8
        %s363 = scalar_lea.vmem %s2, %s362
        %s364 = sadd.s32 %s23, 1
        %p365 = scmp.lt.s32.totalorder %s364, 1
        %s366 = scalar_select %p365, %s364, 1
        %s367 = smul.u32 8, %s366
      $region52: #{tpu_custom_call.1} parent=39 // pred_fallthru
        _
    $region40: #{tpu_custom_call.1} parent=5 // pred_fallthru
      _
    %p368 = scmp.le.s32.totalorder 1, %s15
    %p369 = scmp.lt.s32.totalorder %s15, 5
    %p370 = pnand %p368, %p369
    %p371 = pneg %p370
    // Predicated region
    $region53: #{tpu_custom_call.1} parent=5 // pred_check
      _
    $region54: #{tpu_custom_call.1} parent=5 // pred_check_branch
      %373 = sbr.rel (%p370) target = $region56
    $region55: #{tpu_custom_call.1} parent=5 // pred_region
      %s374 = ssub.s32 %s15, 1
      %s375 = smul.u32 8, %s25
      %p376 = scmp.lt.s32.totalorder %s24, 1
      %s377 = scalar_select %p376, %s24, 1
      %p378 = scmp.lt.s32.totalorder %s375, 15
      %s379 = scalar_select %p378, %s375, 15
      %s380 = smul.addr %s379, 2
      %s381 = smul.addr %s377, 32
      %s382 = sadd.s32 %s380, %s381
      %s383 = smul.addr %s382, 8
      %s384 = scalar_lea.vmem %s0, %s383
      %p385 = pneg %p55
      %p386 = pneg %p52
      %s387 = ssub.s32 %s25, 1
      %p388 = scmp.gt.s32.totalorder %s387, 0
      %s389 = scalar_select %p388, %s387, 0
      %s390 = smul.u32 8, %s389
      %p391 = scmp.lt.s32.totalorder %s24, 1
      %s392 = scalar_select %p391, %s24, 1
      %p393 = scmp.lt.s32.totalorder %s390, 15
      %s394 = scalar_select %p393, %s390, 15
      %s395 = smul.addr %s394, 2
      %s396 = smul.addr %s392, 32
      %s397 = sadd.s32 %s395, %s396
      %s398 = smul.addr %s397, 8
      %s399 = scalar_lea.vmem %s1, %s398
      %p400 = pneg %p89
      %p401 = pneg %p86
      %s402 = sadd.s32 %s25, 1
      %p403 = scmp.lt.s32.totalorder %s402, 1
      %s404 = scalar_select %p403, %s402, 1
      %s405 = smul.u32 8, %s404
      %p406 = scmp.lt.s32.totalorder %s24, 1
      %s407 = scalar_select %p406, %s24, 1
      %p408 = scmp.lt.s32.totalorder %s405, 15
      %s409 = scalar_select %p408, %s405, 15
      %s410 = smul.addr %s409, 2
      %s411 = smul.addr %s407, 32
      %s412 = sadd.s32 %s410, %s411
      %s413 = smul.addr %s412, 8
      %s414 = scalar_lea.vmem %s2, %s413
      %p415 = pneg %p123
      %p416 = pneg %p120
      %p417 = pneg %p144
      %p418 = pneg %p141
      %p419 = pneg %p165
      %p420 = pneg %p162
      %p421 = pneg %p186
      %p422 = pneg %p183
      %p423 = pneg %p207
      %p424 = pneg %p204
      %p425 = pneg %p228
      %p426 = pneg %p225
      %p427 = pneg %p249
      %p428 = pneg %p246
      %p429 = pneg %p277
      %p430 = pneg %p274
      %s431 = smul.u32 8, %s25
      %p432 = scmp.lt.s32.totalorder %s24, 1
      %s433 = scalar_select %p432, %s24, 1
      %p434 = scmp.lt.s32.totalorder %s431, 15
      %s435 = scalar_select %p434, %s431, 15
      %s436 = smul.addr %s435, 2
      %s437 = smul.addr %s433, 32
      %s438 = sadd.s32 %s436, %s437
      %s439 = smul.addr %s438, 8
      %s440 = scalar_lea.vmem %s9, %s439
      %s441 = smul.u32 8, %s25
      %p442 = scmp.lt.s32.totalorder %s24, 1
      %s443 = scalar_select %p442, %s24, 1
      %p444 = scmp.lt.s32.totalorder %s441, 15
      %s445 = scalar_select %p444, %s441, 15
      %s446 = smul.addr %s445, 2
      %s447 = smul.addr %s443, 32
      %s448 = sadd.s32 %s446, %s447
      %s449 = smul.addr %s448, 8
      %s450 = scalar_lea.vmem %s0, %s449
      %s451 = smul.u32 8, %s25
      %s452 = ssub.s32 %s25, 1
      %p453 = scmp.gt.s32.totalorder %s452, 0
      %s454 = scalar_select %p453, %s452, 0
      %s455 = smul.u32 8, %s454
      %p456 = scmp.lt.s32.totalorder %s24, 1
      %s457 = scalar_select %p456, %s24, 1
      %p458 = scmp.lt.s32.totalorder %s455, 15
      %s459 = scalar_select %p458, %s455, 15
      %s460 = smul.addr %s459, 2
      %s461 = smul.addr %s457, 32
      %s462 = sadd.s32 %s460, %s461
      %s463 = smul.addr %s462, 8
      %s464 = scalar_lea.vmem %s1, %s463
      %s465 = ssub.s32 %s25, 1
      %p466 = scmp.gt.s32.totalorder %s465, 0
      %s467 = scalar_select %p466, %s465, 0
      %s468 = smul.u32 8, %s467
      %s469 = sadd.s32 %s25, 1
      %p470 = scmp.lt.s32.totalorder %s469, 1
      %s471 = scalar_select %p470, %s469, 1
      %s472 = smul.u32 8, %s471
      %p473 = scmp.lt.s32.totalorder %s24, 1
      %s474 = scalar_select %p473, %s24, 1
      %p475 = scmp.lt.s32.totalorder %s472, 15
      %s476 = scalar_select %p475, %s472, 15
      %s477 = smul.addr %s476, 2
      %s478 = smul.addr %s474, 32
      %s479 = sadd.s32 %s477, %s478
      %s480 = smul.addr %s479, 8
      %s481 = scalar_lea.vmem %s2, %s480
      %s482 = sadd.s32 %s25, 1
      %p483 = scmp.lt.s32.totalorder %s482, 1
      %s484 = scalar_select %p483, %s482, 1
      %s485 = smul.u32 8, %s484
      %s486 = smul.u32 8, %s25
      %p487 = scmp.lt.s32.totalorder %s24, 1
      %s488 = scalar_select %p487, %s24, 1
      %p489 = scmp.lt.s32.totalorder %s486, 15
      %s490 = scalar_select %p489, %s486, 15
      %s491 = smul.addr %s490, 2
      %s492 = smul.addr %s488, 32
      %s493 = sadd.s32 %s491, %s492
      %s494 = smul.addr %s493, 8
      %s495 = scalar_lea.vmem %s9, %s494
      %s496 = smul.u32 8, %s25
      %vm497 = vcmask 9216
      %498 = vst.msk [vmem:[#allocation2] sm:$0x3] %vm497, -3.4028235e+38
      %499 = vst.msk [vmem:[#allocation2 + $0x18] sm:$0x3] %vm497, -3.4028235e+38
      %500 = vst.msk [vmem:[#allocation2 + $0x30] sm:$0x3] %vm497, -3.4028235e+38
      %501 = vst.msk [vmem:[#allocation2 + $0x48] sm:$0x3] %vm497, -3.4028235e+38
      %502 = vst.msk [vmem:[#allocation2 + $0x60] sm:$0x3] %vm497, -3.4028235e+38
      %503 = vst.msk [vmem:[#allocation2 + $0x78] sm:$0x3] %vm497, -3.4028235e+38
      %504 = vst.msk [vmem:[#allocation2 + $0x90] sm:$0x3] %vm497, -3.4028235e+38
      %505 = vst.msk [vmem:[#allocation2 + $0xa8] sm:$0x3] %vm497, -3.4028235e+38
      %506 = vst.msk [vmem:[#allocation2 + $0xc0] sm:$0x3] %vm497, -3.4028235e+38
      %507 = vst.msk [vmem:[#allocation2 + $0xd8] sm:$0x3] %vm497, -3.4028235e+38
      %508 = vst.msk [vmem:[#allocation2 + $0xf0] sm:$0x3] %vm497, -3.4028235e+38
      %509 = vst.msk [vmem:[#allocation2 + $0x108] sm:$0x3] %vm497, -3.4028235e+38
      %510 = vst.msk [vmem:[#allocation2 + $0x120] sm:$0x3] %vm497, -3.4028235e+38
      %511 = vst.msk [vmem:[#allocation2 + $0x138] sm:$0x3] %vm497, -3.4028235e+38
      %512 = vst.msk [vmem:[#allocation2 + $0x150] sm:$0x3] %vm497, -3.4028235e+38
      %513 = vst.msk [vmem:[#allocation2 + $0x168] sm:$0x3] %vm497, -3.4028235e+38
      %514 = vst.msk [vmem:[#allocation2 + $0x180] sm:$0x3] %vm497, -3.4028235e+38
      %515 = vst.msk [vmem:[#allocation2 + $0x198] sm:$0x3] %vm497, -3.4028235e+38
      %516 = vst.msk [vmem:[#allocation2 + $0x1b0] sm:$0x3] %vm497, -3.4028235e+38
      %517 = vst.msk [vmem:[#allocation2 + $0x1c8] sm:$0x3] %vm497, -3.4028235e+38
      %518 = vst.msk [vmem:[#allocation2 + $0x12] sm:$0x3] %vm497, -3.4028235e+38
      %519 = vst.msk [vmem:[#allocation2 + $0x2a] sm:$0x3] %vm497, -3.4028235e+38
      %520 = vst.msk [vmem:[#allocation2 + $0x42] sm:$0x3] %vm497, -3.4028235e+38
      %521 = vst.msk [vmem:[#allocation2 + $0x5a] sm:$0x3] %vm497, -3.4028235e+38
      %522 = vst.msk [vmem:[#allocation2 + $0x72] sm:$0x3] %vm497, -3.4028235e+38
      %523 = vst.msk [vmem:[#allocation2 + $0x8a] sm:$0x3] %vm497, -3.4028235e+38
      %524 = vst.msk [vmem:[#allocation2 + $0xa2] sm:$0x3] %vm497, -3.4028235e+38
      %525 = vst.msk [vmem:[#allocation2 + $0xba] sm:$0x3] %vm497, -3.4028235e+38
      %526 = vst.msk [vmem:[#allocation2 + $0xd2] sm:$0x3] %vm497, -3.4028235e+38
      %527 = vst.msk [vmem:[#allocation2 + $0xea] sm:$0x3] %vm497, -3.4028235e+38
      %528 = vst.msk [vmem:[#allocation2 + $0x102] sm:$0x3] %vm497, -3.4028235e+38
      %529 = vst.msk [vmem:[#allocation2 + $0x11a] sm:$0x3] %vm497, -3.4028235e+38
      %530 = vst.msk [vmem:[#allocation2 + $0x132] sm:$0x3] %vm497, -3.4028235e+38
      %531 = vst.msk [vmem:[#allocation2 + $0x14a] sm:$0x3] %vm497, -3.4028235e+38
      %532 = vst.msk [vmem:[#allocation2 + $0x162] sm:$0x3] %vm497, -3.4028235e+38
      %533 = vst.msk [vmem:[#allocation2 + $0x17a] sm:$0x3] %vm497, -3.4028235e+38
      %534 = vst.msk [vmem:[#allocation2 + $0x192] sm:$0x3] %vm497, -3.4028235e+38
      %535 = vst.msk [vmem:[#allocation2 + $0x1aa] sm:$0x3] %vm497, -3.4028235e+38
      %536 = vst.msk [vmem:[#allocation2 + $0x1c2] sm:$0x3] %vm497, -3.4028235e+38
      %537 = vst.msk [vmem:[#allocation2 + $0x1da] sm:$0x3] %vm497, -3.4028235e+38
      %v538 = vld [vmem:[%s464 + $0x20] sm:$0xff]
      %v539 = vld [vmem:[%s464 + $0x28] sm:$0xff]
      %v540 = vld [vmem:[%s464 + $0x30] sm:$0xff]
      %v541 = vld [vmem:[%s464 + $0x38] sm:$0xff]
      %v542 = vld [vmem:[%s464 + $0x40] sm:$0xff]
      %v543 = vld [vmem:[%s464 + $0x48] sm:$0xff]
      %v544 = vld [vmem:[%s464 + $0x50] sm:$0xff]
      %v545 = vld [vmem:[%s464 + $0x58] sm:$0xff]
      %v546 = vld [vmem:[%s464 + $0x60] sm:$0xff]
      %v547 = vld [vmem:[%s464 + $0x68] sm:$0xff]
      %v548 = vld [vmem:[%s464 + $0x70] sm:$0xff]
      %v549 = vld [vmem:[%s464 + $0x78] sm:$0xff]
      %v550 = vld [vmem:[%s450] sm:$0xff]
      %v551 = vld [vmem:[%s450 + $0x8] sm:$0xff]
      %v552 = vld [vmem:[%s450 + $0x10] sm:$0xff]
      %v553 = vld [vmem:[%s450 + $0x18] sm:$0xff]
      %v554 = vld [vmem:[%s450 + $0x20] sm:$0xff]
      %v555 = vld [vmem:[%s450 + $0x28] sm:$0xff]
      %v556 = vld [vmem:[%s450 + $0x30] sm:$0xff]
      %v557 = vld [vmem:[%s450 + $0x38] sm:$0xff]
      %v558 = vld [vmem:[%s450 + $0x40] sm:$0xff]
      %v559 = vld [vmem:[%s450 + $0x48] sm:$0xff]
      %v560 = vld [vmem:[%s450 + $0x50] sm:$0xff]
      %v561 = vld [vmem:[%s450 + $0x58] sm:$0xff]
      %v562 = vld [vmem:[%s450 + $0x60] sm:$0xff]
      %v563 = vld [vmem:[%s450 + $0x68] sm:$0xff]
      %v564 = vld [vmem:[%s450 + $0x70] sm:$0xff]
      %v565 = vld [vmem:[%s450 + $0x78] sm:$0xff]
      %v566 = vld [vmem:[%s481] sm:$0xff]
      %v567 = vld [vmem:[%s481 + $0x8] sm:$0xff]
      %v568 = vld [vmem:[%s481 + $0x10] sm:$0xff]
      %v569 = vld [vmem:[%s481 + $0x18] sm:$0xff]
      %v570 = vld [vmem:[%s481 + $0x20] sm:$0xff]
      %v571 = vld [vmem:[%s481 + $0x28] sm:$0xff]
      %v572 = vld [vmem:[%s481 + $0x30] sm:$0xff]
      %v573 = vld [vmem:[%s481 + $0x38] sm:$0xff]
      %v574 = vld [vmem:[%s481 + $0x40] sm:$0xff]
      %v575 = vld [vmem:[%s481 + $0x48] sm:$0xff]
      %v576 = vld [vmem:[%s481 + $0x50] sm:$0xff]
      %v577 = vld [vmem:[%s481 + $0x58] sm:$0xff]
      %v578 = vld [vmem:[%s3] sm:$0xf]
      %vm579 = vcmask 31744
      %v581 = vsel %vm579, %v538, 0
      %v584 = vsel %vm579, %v539, 0
      %v587 = vsel %vm579, %v540, 0
      %v590 = vsel %vm579, %v541, 0
      %v593 = vsel %vm579, %v542, 0
      %v596 = vsel %vm579, %v543, 0
      %v599 = vsel %vm579, %v544, 0
      %v602 = vsel %vm579, %v545, 0
      %v605 = vsel %vm579, %v546, 0
      %v608 = vsel %vm579, %v547, 0
      %v611 = vsel %vm579, %v548, 0
      %v614 = vsel %vm579, %v549, 0
      %v617 = vsel %vm579, %v550, 0
      %v620 = vsel %vm579, %v551, 0
      %v623 = vsel %vm579, %v552, 0
      %v626 = vsel %vm579, %v553, 0
      %v629 = vsel %vm579, %v554, 0
      %v632 = vsel %vm579, %v555, 0
      %v635 = vsel %vm579, %v556, 0
      %v638 = vsel %vm579, %v557, 0
      %v641 = vsel %vm579, %v558, 0
      %v644 = vsel %vm579, %v559, 0
      %v647 = vsel %vm579, %v560, 0
      %v650 = vsel %vm579, %v561, 0
      %v653 = vsel %vm579, %v562, 0
      %v656 = vsel %vm579, %v563, 0
      %v659 = vsel %vm579, %v564, 0
      %v662 = vsel %vm579, %v565, 0
      %v665 = vsel %vm579, %v566, 0
      %v668 = vsel %vm579, %v567, 0
      %v671 = vsel %vm579, %v568, 0
      %v674 = vsel %vm579, %v569, 0
      %v677 = vsel %vm579, %v570, 0
      %v680 = vsel %vm579, %v571, 0
      %v683 = vsel %vm579, %v572, 0
      %v686 = vsel %vm579, %v573, 0
      %v689 = vsel %vm579, %v574, 0
      %v692 = vsel %vm579, %v575, 0
      %v695 = vsel %vm579, %v576, 0
      %v698 = vsel %vm579, %v577, 0
      %vm700 = vcmask 1043456
      %v702 = vsel %vm700, %v578, 0
      %704 = vmatprep.subr.mxu0 0.0
      %705 = vmatpush1.msra.mxu0 %v702
      %706 = vmatprep.subr.mxu0 0.0
      %707 = vmatpush1.msra.mxu0 0.0
      %708 = vmatprep.subr.mxu0 0.0
      %709 = vmatpush1.msra.mxu0 0.0
      %710 = vmatprep.subr.mxu0 0.0
      %711 = vmatpush1.msra.mxu0 0.0
      %712 = vmatprep.subr.mxu0 0.0
      %713 = vmatpush1.msra.mxu0 0.0
      %714 = vmatprep.subr.mxu0 0.0
      %715 = vmatpush1.msra.mxu0 0.0
      %716 = vmatprep.subr.mxu0 0.0
      %717 = vmatpush1.msra.mxu0 0.0
      %718 = vmatprep.subr.mxu0 0.0
      %719 = vmatpush1.msra.mxu0 0.0
      %720 = vmatprep.subr.mxu0 0.0
      %721 = vmatpush1.msra.mxu0 0.0
      %722 = vmatprep.subr.mxu0 0.0
      %723 = vmatpush1.msra.mxu0 0.0
      %724 = vmatprep.subr.mxu0 0.0
      %725 = vmatpush1.msra.mxu0 0.0
      %726 = vmatprep.subr.mxu0 0.0
      %727 = vmatpush1.msra.mxu0 0.0
      %728 = vmatprep.subr.mxu0 0.0
      %729 = vmatpush1.msra.mxu0 0.0
      %730 = vmatprep.subr.mxu0 0.0
      %731 = vmatpush1.msra.mxu0 0.0
      %732 = vmatprep.subr.mxu0 0.0
      %733 = vmatpush1.msra.mxu0 0.0
      %734 = vmatprep.subr.mxu0 0.0
      %735 = vmatpush1.msra.mxu0 0.0
      %736 = vmatprep.subr.mxu0 0.0
      %737 = vmatpush1.msra.mxu0 0.0
      %738 = vmatprep.subr.mxu0 0.0
      %739 = vmatpush1.msra.mxu0 0.0
      %740 = vmatprep.subr.mxu0 0.0
      %741 = vmatpush1.msra.mxu0 0.0
      %742 = vmatprep.subr.mxu0 0.0
      %743 = vmatpush1.msra.mxu0 0.0
      %744 = vmatprep.subr.mxu0 0.0
      %745 = vmatpush1.msra.mxu0 0.0
      %746 = vmatprep.subr.mxu0 0.0
      %747 = vmatpush1.msra.mxu0 0.0
      %748 = vmatprep.subr.mxu0 0.0
      %749 = vmatpush1.msra.mxu0 0.0
      %750 = vmatprep.subr.mxu0 0.0
      %751 = vmatpush1.msra.mxu0 0.0
      %752 = vmatprep.subr.mxu0 0.0
      %753 = vmatpush1.msra.mxu0 0.0
      %754 = vmatprep.subr.mxu0 0.0
      %755 = vmatpush1.msra.mxu0 0.0
      %756 = vmatprep.subr.mxu0 0.0
      %757 = vmatpush1.msra.mxu0 0.0
      %758 = vmatprep.subr.mxu0 0.0
      %759 = vmatpush1.msra.mxu0 0.0
      %760 = vmatprep.subr.mxu0 0.0
      %761 = vmatpush1.msra.mxu0 0.0
      %762 = vmatprep.subr.mxu0 0.0
      %763 = vmatpush1.msra.mxu0 0.0
      %764 = vmatprep.subr.mxu0 0.0
      %765 = vmatpush1.msra.mxu0 0.0
      %766 = vmatprep.subr.mxu0 0.0
      %767 = vmatpush1.msra.mxu0 0.0
      %768 = vmatprep.mubr.f32.mxu0 0.0
      %769 = vmatmul.mubr.f32.gmra.mrb[0].mxu0 %v581
      %v770 = vpop.f32.mrb[0].mxu0
      %v771 = vadd.f32 0.0, %v770
      %v772 = vpop.f32.mrb[0].mxu0
      %773 = vmatprep.mubr.f32.mxu0 0.0
      %774 = vmatmul.mubr.f32.gmra.mrb[0].mxu0 %v584
      %v775 = vpop.f32.mrb[0].mxu0
      %v776 = vadd.f32 0.0, %v775
      %v777 = vpop.f32.mrb[0].mxu0
      %778 = vmatprep.mubr.f32.mxu0 0.0
      %779 = vmatmul.mubr.f32.gmra.mrb[0].mxu0 %v587
      %v780 = vpop.f32.mrb[0].mxu0
      %v781 = vadd.f32 0.0, %v780
      %v782 = vpop.f32.mrb[0].mxu0
      %783 = vmatprep.mubr.f32.mxu0 0.0
      %784 = vmatmul.mubr.f32.gmra.mrb[0].mxu0 %v590
      %v785 = vpop.f32.mrb[0].mxu0
      %v786 = vadd.f32 0.0, %v785
      %v787 = vpop.f32.mrb[0].mxu0
      %788 = vmatprep.mubr.f32.mxu0 0.0
      %789 = vmatmul.mubr.f32.gmra.mrb[0].mxu0 %v593
      %v790 = vpop.f32.mrb[0].mxu0
      %v791 = vadd.f32 0.0, %v790
      %v792 = vpop.f32.mrb[0].mxu0
      %793 = vmatprep.mubr.f32.mxu0 0.0
      %794 = vmatmul.mubr.f32.gmra.mrb[0].mxu0 %v596
      %v795 = vpop.f32.mrb[0].mxu0
      %v796 = vadd.f32 0.0, %v795
      %v797 = vpop.f32.mrb[0].mxu0
      %798 = vmatprep.mubr.f32.mxu0 0.0
      %799 = vmatmul.mubr.f32.gmra.mrb[0].mxu0 %v599
      %v800 = vpop.f32.mrb[0].mxu0
      %v801 = vadd.f32 0.0, %v800
      %v802 = vpop.f32.mrb[0].mxu0
      %803 = vmatprep.mubr.f32.mxu0 0.0
      %804 = vmatmul.mubr.f32.gmra.mrb[0].mxu0 %v602
      %v805 = vpop.f32.mrb[0].mxu0
      %v806 = vadd.f32 0.0, %v805
      %v807 = vpop.f32.mrb[0].mxu0
      %808 = vmatprep.mubr.f32.mxu0 0.0
      %809 = vmatmul.mubr.f32.gmra.mrb[0].mxu0 %v605
      %v810 = vpop.f32.mrb[0].mxu0
      %v811 = vadd.f32 0.0, %v810
      %v812 = vpop.f32.mrb[0].mxu0
      %813 = vmatprep.mubr.f32.mxu0 0.0
      %814 = vmatmul.mubr.f32.gmra.mrb[0].mxu0 %v608
      %v815 = vpop.f32.mrb[0].mxu0
      %v816 = vadd.f32 0.0, %v815
      %v817 = vpop.f32.mrb[0].mxu0
      %818 = vmatprep.mubr.f32.mxu0 0.0
      %819 = vmatmul.mubr.f32.gmra.mrb[0].mxu0 %v611
      %v820 = vpop.f32.mrb[0].mxu0
      %v821 = vadd.f32 0.0, %v820
      %v822 = vpop.f32.mrb[0].mxu0
      %823 = vmatprep.mubr.f32.mxu0 0.0
      %824 = vmatmul.mubr.f32.gmra.mrb[0].mxu0 %v614
      %v825 = vpop.f32.mrb[0].mxu0
      %v826 = vadd.f32 0.0, %v825
      %v827 = vpop.f32.mrb[0].mxu0
      %828 = vmatprep.mubr.f32.mxu0 0.0
      %829 = vmatmul.mubr.f32.gmra.mrb[0].mxu0 %v617
      %v830 = vpop.f32.mrb[0].mxu0
      %v831 = vadd.f32 0.0, %v830
      %v832 = vpop.f32.mrb[0].mxu0
      %833 = vmatprep.mubr.f32.mxu0 0.0
      %834 = vmatmul.mubr.f32.gmra.mrb[0].mxu0 %v620
      %v835 = vpop.f32.mrb[0].mxu0
      %v836 = vadd.f32 0.0, %v835
      %v837 = vpop.f32.mrb[0].mxu0
      %838 = vmatprep.mubr.f32.mxu0 0.0
      %839 = vmatmul.mubr.f32.gmra.mrb[0].mxu0 %v623
      %v840 = vpop.f32.mrb[0].mxu0
      %v841 = vadd.f32 0.0, %v840
      %v842 = vpop.f32.mrb[0].mxu0
      %843 = vmatprep.mubr.f32.mxu0 0.0
      %844 = vmatmul.mubr.f32.gmra.mrb[0].mxu0 %v626
      %v845 = vpop.f32.mrb[0].mxu0
      %v846 = vadd.f32 0.0, %v845
      %v847 = vpop.f32.mrb[0].mxu0
      %848 = vmatprep.mubr.f32.mxu0 0.0
      %849 = vmatmul.mubr.f32.gmra.mrb[0].mxu0 %v629
      %v850 = vpop.f32.mrb[0].mxu0
      %v851 = vadd.f32 0.0, %v850
      %v852 = vpop.f32.mrb[0].mxu0
      %853 = vmatprep.mubr.f32.mxu0 0.0
      %854 = vmatmul.mubr.f32.gmra.mrb[0].mxu0 %v632
      %v855 = vpop.f32.mrb[0].mxu0
      %v856 = vadd.f32 0.0, %v855
      %v857 = vpop.f32.mrb[0].mxu0
      %858 = vmatprep.mubr.f32.mxu0 0.0
      %859 = vmatmul.mubr.f32.gmra.mrb[0].mxu0 %v635
      %v860 = vpop.f32.mrb[0].mxu0
      %v861 = vadd.f32 0.0, %v860
      %v862 = vpop.f32.mrb[0].mxu0
      %863 = vmatprep.mubr.f32.mxu0 0.0
      %864 = vmatmul.mubr.f32.gmra.mrb[0].mxu0 %v638
      %v865 = vpop.f32.mrb[0].mxu0
      %v866 = vadd.f32 0.0, %v865
      %v867 = vpop.f32.mrb[0].mxu0
      %868 = vmatprep.mubr.f32.mxu0 0.0
      %869 = vmatmul.mubr.f32.gmra.mrb[0].mxu0 %v641
      %v870 = vpop.f32.mrb[0].mxu0
      %v871 = vadd.f32 0.0, %v870
      %v872 = vpop.f32.mrb[0].mxu0
      %873 = vmatprep.mubr.f32.mxu0 0.0
      %874 = vmatmul.mubr.f32.gmra.mrb[0].mxu0 %v644
      %v875 = vpop.f32.mrb[0].mxu0
      %v876 = vadd.f32 0.0, %v875
      %v877 = vpop.f32.mrb[0].mxu0
      %878 = vmatprep.mubr.f32.mxu0 0.0
      %879 = vmatmul.mubr.f32.gmra.mrb[0].mxu0 %v647
      %v880 = vpop.f32.mrb[0].mxu0
      %v881 = vadd.f32 0.0, %v880
      %v882 = vpop.f32.mrb[0].mxu0
      %883 = vmatprep.mubr.f32.mxu0 0.0
      %884 = vmatmul.mubr.f32.gmra.mrb[0].mxu0 %v650
      %v885 = vpop.f32.mrb[0].mxu0
      %v886 = vadd.f32 0.0, %v885
      %v887 = vpop.f32.mrb[0].mxu0
      %888 = vmatprep.mubr.f32.mxu0 0.0
      %889 = vmatmul.mubr.f32.gmra.mrb[0].mxu0 %v653
      %v890 = vpop.f32.mrb[0].mxu0
      %v891 = vadd.f32 0.0, %v890
      %v892 = vpop.f32.mrb[0].mxu0
      %893 = vmatprep.mubr.f32.mxu0 0.0
      %894 = vmatmul.mubr.f32.gmra.mrb[0].mxu0 %v656
      %v895 = vpop.f32.mrb[0].mxu0
      %v896 = vadd.f32 0.0, %v895
      %v897 = vpop.f32.mrb[0].mxu0
      %898 = vmatprep.mubr.f32.mxu0 0.0
      %899 = vmatmul.mubr.f32.gmra.mrb[0].mxu0 %v659
      %v900 = vpop.f32.mrb[0].mxu0
      %v901 = vadd.f32 0.0, %v900
      %v902 = vpop.f32.mrb[0].mxu0
      %903 = vmatprep.mubr.f32.mxu0 0.0
      %904 = vmatmul.mubr.f32.gmra.mrb[0].mxu0 %v662
      %v905 = vpop.f32.mrb[0].mxu0
      %v906 = vadd.f32 0.0, %v905
      %v907 = vpop.f32.mrb[0].mxu0
      %908 = vmatprep.mubr.f32.mxu0 0.0
      %909 = vmatmul.mubr.f32.gmra.mrb[0].mxu0 %v665
      %v910 = vpop.f32.mrb[0].mxu0
      %v911 = vadd.f32 0.0, %v910
      %v912 = vpop.f32.mrb[0].mxu0
      %913 = vmatprep.mubr.f32.mxu0 0.0
      %914 = vmatmul.mubr.f32.gmra.mrb[0].mxu0 %v668
      %v915 = vpop.f32.mrb[0].mxu0
      %v916 = vadd.f32 0.0, %v915
      %v917 = vpop.f32.mrb[0].mxu0
      %918 = vmatprep.mubr.f32.mxu0 0.0
      %919 = vmatmul.mubr.f32.gmra.mrb[0].mxu0 %v671
      %v920 = vpop.f32.mrb[0].mxu0
      %v921 = vadd.f32 0.0, %v920
      %v922 = vpop.f32.mrb[0].mxu0
      %923 = vmatprep.mubr.f32.mxu0 0.0
      %924 = vmatmul.mubr.f32.gmra.mrb[0].mxu0 %v674
      %v925 = vpop.f32.mrb[0].mxu0
      %v926 = vadd.f32 0.0, %v925
      %v927 = vpop.f32.mrb[0].mxu0
      %928 = vmatprep.mubr.f32.mxu0 0.0
      %929 = vmatmul.mubr.f32.gmra.mrb[0].mxu0 %v677
      %v930 = vpop.f32.mrb[0].mxu0
      %v931 = vadd.f32 0.0, %v930
      %v932 = vpop.f32.mrb[0].mxu0
      %933 = vmatprep.mubr.f32.mxu0 0.0
      %934 = vmatmul.mubr.f32.gmra.mrb[0].mxu0 %v680
      %v935 = vpop.f32.mrb[0].mxu0
      %v936 = vadd.f32 0.0, %v935
      %v937 = vpop.f32.mrb[0].mxu0
      %938 = vmatprep.mubr.f32.mxu0 0.0
      %939 = vmatmul.mubr.f32.gmra.mrb[0].mxu0 %v683
      %v940 = vpop.f32.mrb[0].mxu0
      %v941 = vadd.f32 0.0, %v940
      %v942 = vpop.f32.mrb[0].mxu0
      %943 = vmatprep.mubr.f32.mxu0 0.0
      %944 = vmatmul.mubr.f32.gmra.mrb[0].mxu0 %v686
      %v945 = vpop.f32.mrb[0].mxu0
      %v946 = vadd.f32 0.0, %v945
      %v947 = vpop.f32.mrb[0].mxu0
      %948 = vmatprep.mubr.f32.mxu0 0.0
      %949 = vmatmul.mubr.f32.gmra.mrb[0].mxu0 %v689
      %v950 = vpop.f32.mrb[0].mxu0
      %v951 = vadd.f32 0.0, %v950
      %v952 = vpop.f32.mrb[0].mxu0
      %953 = vmatprep.mubr.f32.mxu0 0.0
      %954 = vmatmul.mubr.f32.gmra.mrb[0].mxu0 %v692
      %v955 = vpop.f32.mrb[0].mxu0
      %v956 = vadd.f32 0.0, %v955
      %v957 = vpop.f32.mrb[0].mxu0
      %958 = vmatprep.mubr.f32.mxu0 0.0
      %959 = vmatmul.mubr.f32.gmra.mrb[0].mxu0 %v695
      %v960 = vpop.f32.mrb[0].mxu0
      %v961 = vadd.f32 0.0, %v960
      %v962 = vpop.f32.mrb[0].mxu0
      %963 = vmatprep.mubr.f32.mxu0 0.0
      %964 = vmatmul.mubr.f32.gmra.mrb[0].mxu0 %v698
      %v965 = vpop.f32.mrb[0].mxu0
      %v966 = vadd.f32 0.0, %v965
      %v967 = vpop.f32.mrb[0].mxu0
      %968 = vdwg.mxu0
      %v969 = vld [vmem:[%s4] sm:$0x1]
      %v971 = vlaneseq
      %v972 = vshrl.u32 %v971, 7
      %v973 = vsub.s32 0, %v972
      %v974 = vrot.slane %v969, %v973
      %v976 = vmul.f32 %v771, %v974
      %v977 = vmul.f32 %v776, %v974
      %v978 = vmul.f32 %v781, %v974
      %v979 = vmul.f32 %v786, %v974
      %v980 = vmul.f32 %v791, %v974
      %v981 = vmul.f32 %v796, %v974
      %v982 = vmul.f32 %v801, %v974
      %v983 = vmul.f32 %v806, %v974
      %v984 = vmul.f32 %v811, %v974
      %v985 = vmul.f32 %v816, %v974
      %v986 = vmul.f32 %v821, %v974
      %v987 = vmul.f32 %v826, %v974
      %v988 = vmul.f32 %v831, %v974
      %v989 = vmul.f32 %v836, %v974
      %v990 = vmul.f32 %v841, %v974
      %v991 = vmul.f32 %v846, %v974
      %v992 = vmul.f32 %v851, %v974
      %v993 = vmul.f32 %v856, %v974
      %v994 = vmul.f32 %v861, %v974
      %v995 = vmul.f32 %v866, %v974
      %v996 = vmul.f32 %v871, %v974
      %v997 = vmul.f32 %v876, %v974
      %v998 = vmul.f32 %v881, %v974
      %v999 = vmul.f32 %v886, %v974
      %v1000 = vmul.f32 %v891, %v974
      %v1001 = vmul.f32 %v896, %v974
      %v1002 = vmul.f32 %v901, %v974
      %v1003 = vmul.f32 %v906, %v974
      %v1004 = vmul.f32 %v911, %v974
      %v1005 = vmul.f32 %v916, %v974
      %v1006 = vmul.f32 %v921, %v974
      %v1007 = vmul.f32 %v926, %v974
      %v1008 = vmul.f32 %v931, %v974
      %v1009 = vmul.f32 %v936, %v974
      %v1010 = vmul.f32 %v941, %v974
      %v1011 = vmul.f32 %v946, %v974
      %v1012 = vmul.f32 %v951, %v974
      %v1013 = vmul.f32 %v956, %v974
      %v1014 = vmul.f32 %v961, %v974
      %v1015 = vmul.f32 %v966, %v974
      %v1016 = vld [vmem:[%s5] sm:$0x1]
      %v1018 = vlaneseq
      %v1019 = vshrl.u32 %v1018, 7
      %v1020 = vsub.s32 0, %v1019
      %v1021 = vrot.slane %v1016, %v1020
      %v1023 = vadd.f32 %v976, %v1021
      %v1024 = vadd.f32 %v977, %v1021
      %v1025 = vadd.f32 %v978, %v1021
      %v1026 = vadd.f32 %v979, %v1021
      %v1027 = vadd.f32 %v980, %v1021
      %v1028 = vadd.f32 %v981, %v1021
      %v1029 = vadd.f32 %v982, %v1021
      %v1030 = vadd.f32 %v983, %v1021
      %v1031 = vadd.f32 %v984, %v1021
      %v1032 = vadd.f32 %v985, %v1021
      %v1033 = vadd.f32 %v986, %v1021
      %v1034 = vadd.f32 %v987, %v1021
      %v1035 = vadd.f32 %v988, %v1021
      %v1036 = vadd.f32 %v989, %v1021
      %v1037 = vadd.f32 %v990, %v1021
      %v1038 = vadd.f32 %v991, %v1021
      %v1039 = vadd.f32 %v992, %v1021
      %v1040 = vadd.f32 %v993, %v1021
      %v1041 = vadd.f32 %v994, %v1021
      %v1042 = vadd.f32 %v995, %v1021
      %v1043 = vadd.f32 %v996, %v1021
      %v1044 = vadd.f32 %v997, %v1021
      %v1045 = vadd.f32 %v998, %v1021
      %v1046 = vadd.f32 %v999, %v1021
      %v1047 = vadd.f32 %v1000, %v1021
      %v1048 = vadd.f32 %v1001, %v1021
      %v1049 = vadd.f32 %v1002, %v1021
      %v1050 = vadd.f32 %v1003, %v1021
      %v1051 = vadd.f32 %v1004, %v1021
      %v1052 = vadd.f32 %v1005, %v1021
      %v1053 = vadd.f32 %v1006, %v1021
      %v1054 = vadd.f32 %v1007, %v1021
      %v1055 = vadd.f32 %v1008, %v1021
      %v1056 = vadd.f32 %v1009, %v1021
      %v1057 = vadd.f32 %v1010, %v1021
      %v1058 = vadd.f32 %v1011, %v1021
      %v1059 = vadd.f32 %v1012, %v1021
      %v1060 = vadd.f32 %v1013, %v1021
      %v1061 = vadd.f32 %v1014, %v1021
      %v1062 = vadd.f32 %v1015, %v1021
      %v1063 = vmul.f32 %v1023, 0.5
      %v1064 = vmul.f32 %v1024, 0.5
      %v1065 = vmul.f32 %v1025, 0.5
      %v1066 = vmul.f32 %v1026, 0.5
      %v1067 = vmul.f32 %v1027, 0.5
      %v1068 = vmul.f32 %v1028, 0.5
      %v1069 = vmul.f32 %v1029, 0.5
      %v1070 = vmul.f32 %v1030, 0.5
      %v1071 = vmul.f32 %v1031, 0.5
      %v1072 = vmul.f32 %v1032, 0.5
      %v1073 = vmul.f32 %v1033, 0.5
      %v1074 = vmul.f32 %v1034, 0.5
      %v1075 = vmul.f32 %v1035, 0.5
      %v1076 = vmul.f32 %v1036, 0.5
      %v1077 = vmul.f32 %v1037, 0.5
      %v1078 = vmul.f32 %v1038, 0.5
      %v1079 = vmul.f32 %v1039, 0.5
      %v1080 = vmul.f32 %v1040, 0.5
      %v1081 = vmul.f32 %v1041, 0.5
      %v1082 = vmul.f32 %v1042, 0.5
      %v1083 = vmul.f32 %v1043, 0.5
      %v1084 = vmul.f32 %v1044, 0.5
      %v1085 = vmul.f32 %v1045, 0.5
      %v1086 = vmul.f32 %v1046, 0.5
      %v1087 = vmul.f32 %v1047, 0.5
      %v1088 = vmul.f32 %v1048, 0.5
      %v1089 = vmul.f32 %v1049, 0.5
      %v1090 = vmul.f32 %v1050, 0.5
      %v1091 = vmul.f32 %v1051, 0.5
      %v1092 = vmul.f32 %v1052, 0.5
      %v1093 = vmul.f32 %v1053, 0.5
      %v1094 = vmul.f32 %v1054, 0.5
      %v1095 = vmul.f32 %v1055, 0.5
      %v1096 = vmul.f32 %v1056, 0.5
      %v1097 = vmul.f32 %v1057, 0.5
      %v1098 = vmul.f32 %v1058, 0.5
      %v1099 = vmul.f32 %v1059, 0.5
      %v1100 = vmul.f32 %v1060, 0.5
      %v1101 = vmul.f32 %v1061, 0.5
      %v1102 = vmul.f32 %v1062, 0.5
      %v1103 = vtanh.pop %v1063
      %v1104 = vtanh.pop %v1064
      %v1105 = vtanh.pop %v1065
      %v1106 = vtanh.pop %v1066
      %v1107 = vtanh.pop %v1067
      %v1108 = vtanh.pop %v1068
      %v1109 = vtanh.pop %v1069
      %v1110 = vtanh.pop %v1070
      %v1111 = vtanh.pop %v1071
      %v1112 = vtanh.pop %v1072
      %v1113 = vtanh.pop %v1073
      %v1114 = vtanh.pop %v1074
      %v1115 = vtanh.pop %v1075
      %v1116 = vtanh.pop %v1076
      %v1117 = vtanh.pop %v1077
      %v1118 = vtanh.pop %v1078
      %v1119 = vtanh.pop %v1079
      %v1120 = vtanh.pop %v1080
      %v1121 = vtanh.pop %v1081
      %v1122 = vtanh.pop %v1082
      %v1123 = vtanh.pop %v1083
      %v1124 = vtanh.pop %v1084
      %v1125 = vtanh.pop %v1085
      %v1126 = vtanh.pop %v1086
      %v1127 = vtanh.pop %v1087
      %v1128 = vtanh.pop %v1088
      %v1129 = vtanh.pop %v1089
      %v1130 = vtanh.pop %v1090
      %v1131 = vtanh.pop %v1091
      %v1132 = vtanh.pop %v1092
      %v1133 = vtanh.pop %v1093
      %v1134 = vtanh.pop %v1094
      %v1135 = vtanh.pop %v1095
      %v1136 = vtanh.pop %v1096
      %v1137 = vtanh.pop %v1097
      %v1138 = vtanh.pop %v1098
      %v1139 = vtanh.pop %v1099
      %v1140 = vtanh.pop %v1100
      %v1141 = vtanh.pop %v1101
      %v1142 = vtanh.pop %v1102
      %v1143 = vadd.f32 %v1103, 1.0
      %v1144 = vadd.f32 %v1104, 1.0
      %v1145 = vadd.f32 %v1105, 1.0
      %v1146 = vadd.f32 %v1106, 1.0
      %v1147 = vadd.f32 %v1107, 1.0
      %v1148 = vadd.f32 %v1108, 1.0
      %v1149 = vadd.f32 %v1109, 1.0
      %v1150 = vadd.f32 %v1110, 1.0
      %v1151 = vadd.f32 %v1111, 1.0
      %v1152 = vadd.f32 %v1112, 1.0
      %v1153 = vadd.f32 %v1113, 1.0
      %v1154 = vadd.f32 %v1114, 1.0
      %v1155 = vadd.f32 %v1115, 1.0
      %v1156 = vadd.f32 %v1116, 1.0
      %v1157 = vadd.f32 %v1117, 1.0
      %v1158 = vadd.f32 %v1118, 1.0
      %v1159 = vadd.f32 %v1119, 1.0
      %v1160 = vadd.f32 %v1120, 1.0
      %v1161 = vadd.f32 %v1121, 1.0
      %v1162 = vadd.f32 %v1122, 1.0
      %v1163 = vadd.f32 %v1123, 1.0
      %v1164 = vadd.f32 %v1124, 1.0
      %v1165 = vadd.f32 %v1125, 1.0
      %v1166 = vadd.f32 %v1126, 1.0
      %v1167 = vadd.f32 %v1127, 1.0
      %v1168 = vadd.f32 %v1128, 1.0
      %v1169 = vadd.f32 %v1129, 1.0
      %v1170 = vadd.f32 %v1130, 1.0
      %v1171 = vadd.f32 %v1131, 1.0
      %v1172 = vadd.f32 %v1132, 1.0
      %v1173 = vadd.f32 %v1133, 1.0
      %v1174 = vadd.f32 %v1134, 1.0
      %v1175 = vadd.f32 %v1135, 1.0
      %v1176 = vadd.f32 %v1136, 1.0
      %v1177 = vadd.f32 %v1137, 1.0
      %v1178 = vadd.f32 %v1138, 1.0
      %v1179 = vadd.f32 %v1139, 1.0
      %v1180 = vadd.f32 %v1140, 1.0
      %v1181 = vadd.f32 %v1141, 1.0
      %v1182 = vadd.f32 %v1142, 1.0
      %v1183 = vmul.f32 %v1143, 0.5
      %v1184 = vmul.f32 %v1144, 0.5
      %v1185 = vmul.f32 %v1145, 0.5
      %v1186 = vmul.f32 %v1146, 0.5
      %v1187 = vmul.f32 %v1147, 0.5
      %v1188 = vmul.f32 %v1148, 0.5
      %v1189 = vmul.f32 %v1149, 0.5
      %v1190 = vmul.f32 %v1150, 0.5
      %v1191 = vmul.f32 %v1151, 0.5
      %v1192 = vmul.f32 %v1152, 0.5
      %v1193 = vmul.f32 %v1153, 0.5
      %v1194 = vmul.f32 %v1154, 0.5
      %v1195 = vmul.f32 %v1155, 0.5
      %v1196 = vmul.f32 %v1156, 0.5
      %v1197 = vmul.f32 %v1157, 0.5
      %v1198 = vmul.f32 %v1158, 0.5
      %v1199 = vmul.f32 %v1159, 0.5
      %v1200 = vmul.f32 %v1160, 0.5
      %v1201 = vmul.f32 %v1161, 0.5
      %v1202 = vmul.f32 %v1162, 0.5
      %v1203 = vmul.f32 %v1163, 0.5
      %v1204 = vmul.f32 %v1164, 0.5
      %v1205 = vmul.f32 %v1165, 0.5
      %v1206 = vmul.f32 %v1166, 0.5
      %v1207 = vmul.f32 %v1167, 0.5
      %v1208 = vmul.f32 %v1168, 0.5
      %v1209 = vmul.f32 %v1169, 0.5
      %v1210 = vmul.f32 %v1170, 0.5
      %v1211 = vmul.f32 %v1171, 0.5
      %v1212 = vmul.f32 %v1172, 0.5
      %v1213 = vmul.f32 %v1173, 0.5
      %v1214 = vmul.f32 %v1174, 0.5
      %v1215 = vmul.f32 %v1175, 0.5
      %v1216 = vmul.f32 %v1176, 0.5
      %v1217 = vmul.f32 %v1177, 0.5
      %v1218 = vmul.f32 %v1178, 0.5
      %v1219 = vmul.f32 %v1179, 0.5
      %v1220 = vmul.f32 %v1180, 0.5
      %v1221 = vmul.f32 %v1181, 0.5
      %v1222 = vmul.f32 %v1182, 0.5
      %v1223 = vmul.f32 %v1023, %v1183
      %v1224 = vmul.f32 %v1024, %v1184
      %v1225 = vmul.f32 %v1025, %v1185
      %v1226 = vmul.f32 %v1026, %v1186
      %v1227 = vmul.f32 %v1027, %v1187
      %v1228 = vmul.f32 %v1028, %v1188
      %v1229 = vmul.f32 %v1029, %v1189
      %v1230 = vmul.f32 %v1030, %v1190
      %v1231 = vmul.f32 %v1031, %v1191
      %v1232 = vmul.f32 %v1032, %v1192
      %v1233 = vmul.f32 %v1033, %v1193
      %v1234 = vmul.f32 %v1034, %v1194
      %v1235 = vmul.f32 %v1035, %v1195
      %v1236 = vmul.f32 %v1036, %v1196
      %v1237 = vmul.f32 %v1037, %v1197
      %v1238 = vmul.f32 %v1038, %v1198
      %v1239 = vmul.f32 %v1039, %v1199
      %v1240 = vmul.f32 %v1040, %v1200
      %v1241 = vmul.f32 %v1041, %v1201
      %v1242 = vmul.f32 %v1042, %v1202
      %v1243 = vmul.f32 %v1043, %v1203
      %v1244 = vmul.f32 %v1044, %v1204
      %v1245 = vmul.f32 %v1045, %v1205
      %v1246 = vmul.f32 %v1046, %v1206
      %v1247 = vmul.f32 %v1047, %v1207
      %v1248 = vmul.f32 %v1048, %v1208
      %v1249 = vmul.f32 %v1049, %v1209
      %v1250 = vmul.f32 %v1050, %v1210
      %v1251 = vmul.f32 %v1051, %v1211
      %v1252 = vmul.f32 %v1052, %v1212
      %v1253 = vmul.f32 %v1053, %v1213
      %v1254 = vmul.f32 %v1054, %v1214
      %v1255 = vmul.f32 %v1055, %v1215
      %v1256 = vmul.f32 %v1056, %v1216
      %v1257 = vmul.f32 %v1057, %v1217
      %v1258 = vmul.f32 %v1058, %v1218
      %v1259 = vmul.f32 %v1059, %v1219
      %v1260 = vmul.f32 %v1060, %v1220
      %v1261 = vmul.f32 %v1061, %v1221
      %v1262 = vmul.f32 %v1062, %v1222
      %vm1263 = vcmask 15360
      %1264 = vst.msk [vmem:[#allocation2 + $0x2] sm:$0xff] %vm1263, %v1223
      %1265 = vst.msk [vmem:[#allocation2 + $0xa] sm:$0xff] %vm1263, %v1224
      %1266 = vst.msk [vmem:[#allocation2 + $0x1a] sm:$0xff] %vm1263, %v1225
      %1267 = vst.msk [vmem:[#allocation2 + $0x22] sm:$0xff] %vm1263, %v1226
      %1268 = vst.msk [vmem:[#allocation2 + $0x32] sm:$0xff] %vm1263, %v1227
      %1269 = vst.msk [vmem:[#allocation2 + $0x3a] sm:$0xff] %vm1263, %v1228
      %1270 = vst.msk [vmem:[#allocation2 + $0x4a] sm:$0xff] %vm1263, %v1229
      %1271 = vst.msk [vmem:[#allocation2 + $0x52] sm:$0xff] %vm1263, %v1230
      %1272 = vst.msk [vmem:[#allocation2 + $0x62] sm:$0xff] %vm1263, %v1231
      %1273 = vst.msk [vmem:[#allocation2 + $0x6a] sm:$0xff] %vm1263, %v1232
      %1274 = vst.msk [vmem:[#allocation2 + $0x7a] sm:$0xff] %vm1263, %v1233
      %1275 = vst.msk [vmem:[#allocation2 + $0x82] sm:$0xff] %vm1263, %v1234
      %1276 = vst.msk [vmem:[#allocation2 + $0x92] sm:$0xff] %vm1263, %v1235
      %1277 = vst.msk [vmem:[#allocation2 + $0x9a] sm:$0xff] %vm1263, %v1236
      %1278 = vst.msk [vmem:[#allocation2 + $0xaa] sm:$0xff] %vm1263, %v1237
      %1279 = vst.msk [vmem:[#allocation2 + $0xb2] sm:$0xff] %vm1263, %v1238
      %1280 = vst.msk [vmem:[#allocation2 + $0xc2] sm:$0xff] %vm1263, %v1239
      %1281 = vst.msk [vmem:[#allocation2 + $0xca] sm:$0xff] %vm1263, %v1240
      %1282 = vst.msk [vmem:[#allocation2 + $0xda] sm:$0xff] %vm1263, %v1241
      %1283 = vst.msk [vmem:[#allocation2 + $0xe2] sm:$0xff] %vm1263, %v1242
      %1284 = vst.msk [vmem:[#allocation2 + $0xf2] sm:$0xff] %vm1263, %v1243
      %1285 = vst.msk [vmem:[#allocation2 + $0xfa] sm:$0xff] %vm1263, %v1244
      %1286 = vst.msk [vmem:[#allocation2 + $0x10a] sm:$0xff] %vm1263, %v1245
      %1287 = vst.msk [vmem:[#allocation2 + $0x112] sm:$0xff] %vm1263, %v1246
      %1288 = vst.msk [vmem:[#allocation2 + $0x122] sm:$0xff] %vm1263, %v1247
      %1289 = vst.msk [vmem:[#allocation2 + $0x12a] sm:$0xff] %vm1263, %v1248
      %1290 = vst.msk [vmem:[#allocation2 + $0x13a] sm:$0xff] %vm1263, %v1249
      %1291 = vst.msk [vmem:[#allocation2 + $0x142] sm:$0xff] %vm1263, %v1250
      %1292 = vst.msk [vmem:[#allocation2 + $0x152] sm:$0xff] %vm1263, %v1251
      %1293 = vst.msk [vmem:[#allocation2 + $0x15a] sm:$0xff] %vm1263, %v1252
      %1294 = vst.msk [vmem:[#allocation2 + $0x16a] sm:$0xff] %vm1263, %v1253
      %1295 = vst.msk [vmem:[#allocation2 + $0x172] sm:$0xff] %vm1263, %v1254
      %1296 = vst.msk [vmem:[#allocation2 + $0x182] sm:$0xff] %vm1263, %v1255
      %1297 = vst.msk [vmem:[#allocation2 + $0x18a] sm:$0xff] %vm1263, %v1256
      %1298 = vst.msk [vmem:[#allocation2 + $0x19a] sm:$0xff] %vm1263, %v1257
      %1299 = vst.msk [vmem:[#allocation2 + $0x1a2] sm:$0xff] %vm1263, %v1258
      %1300 = vst.msk [vmem:[#allocation2 + $0x1b2] sm:$0xff] %vm1263, %v1259
      %1301 = vst.msk [vmem:[#allocation2 + $0x1ba] sm:$0xff] %vm1263, %v1260
      %1302 = vst.msk [vmem:[#allocation2 + $0x1ca] sm:$0xff] %vm1263, %v1261
      %1303 = vst.msk [vmem:[#allocation2 + $0x1d2] sm:$0xff] %vm1263, %v1262
      %p1304 = scmp.eq.s32.totalorder %s25, 0
      // Predicated region
      $region57: #{tpu_custom_call.1} parent=55 // pred_check
        %p1305 = pneg %p1304
      $region58: #{tpu_custom_call.1} parent=55 // pred_check_branch
        %1307 = sbr.rel (%p1305) target = $region60
      $region59: #{tpu_custom_call.1} parent=55 // pred_region
        %1308 = vst.msk [vmem:[#allocation2 + $0x2] sm:$0xff] %vm1263, -3.4028235e+38
        %1309 = vst.msk [vmem:[#allocation2 + $0xa] sm:$0xff] %vm1263, -3.4028235e+38
        %1310 = vst.msk [vmem:[#allocation2 + $0x1a] sm:$0xff] %vm1263, -3.4028235e+38
        %1311 = vst.msk [vmem:[#allocation2 + $0x22] sm:$0xff] %vm1263, -3.4028235e+38
        %1312 = vst.msk [vmem:[#allocation2 + $0x32] sm:$0xff] %vm1263, -3.4028235e+38
        %1313 = vst.msk [vmem:[#allocation2 + $0x3a] sm:$0xff] %vm1263, -3.4028235e+38
        %1314 = vst.msk [vmem:[#allocation2 + $0x4a] sm:$0xff] %vm1263, -3.4028235e+38
        %1315 = vst.msk [vmem:[#allocation2 + $0x52] sm:$0xff] %vm1263, -3.4028235e+38
        %1316 = vst.msk [vmem:[#allocation2 + $0x62] sm:$0xff] %vm1263, -3.4028235e+38
        %1317 = vst.msk [vmem:[#allocation2 + $0x6a] sm:$0xff] %vm1263, -3.4028235e+38
        %1318 = vst.msk [vmem:[#allocation2 + $0x7a] sm:$0xff] %vm1263, -3.4028235e+38
        %1319 = vst.msk [vmem:[#allocation2 + $0x82] sm:$0xff] %vm1263, -3.4028235e+38
      $region60: #{tpu_custom_call.1} parent=55 // pred_fallthru
        _
      %p1320 = scmp.eq.s32.totalorder %s25, 1
      // Predicated region
      $region61: #{tpu_custom_call.1} parent=55 // pred_check
        %p1321 = pneg %p1320
      $region62: #{tpu_custom_call.1} parent=55 // pred_check_branch
        %1323 = sbr.rel (%p1321) target = $region64
      $region63: #{tpu_custom_call.1} parent=55 // pred_region
        %s1324 = scalar_lea.vmem [#allocation2], 336
        %1325 = vst.msk [vmem:[%s1324 + $0x2] sm:$0xff] %vm1263, -3.4028235e+38
        %1326 = vst.msk [vmem:[%s1324 + $0xa] sm:$0xff] %vm1263, -3.4028235e+38
        %1327 = vst.msk [vmem:[%s1324 + $0x1a] sm:$0xff] %vm1263, -3.4028235e+38
        %1328 = vst.msk [vmem:[%s1324 + $0x22] sm:$0xff] %vm1263, -3.4028235e+38
        %1329 = vst.msk [vmem:[%s1324 + $0x32] sm:$0xff] %vm1263, -3.4028235e+38
        %1330 = vst.msk [vmem:[%s1324 + $0x3a] sm:$0xff] %vm1263, -3.4028235e+38
        %1331 = vst.msk [vmem:[%s1324 + $0x4a] sm:$0xff] %vm1263, -3.4028235e+38
        %1332 = vst.msk [vmem:[%s1324 + $0x52] sm:$0xff] %vm1263, -3.4028235e+38
        %1333 = vst.msk [vmem:[%s1324 + $0x62] sm:$0xff] %vm1263, -3.4028235e+38
        %1334 = vst.msk [vmem:[%s1324 + $0x6a] sm:$0xff] %vm1263, -3.4028235e+38
        %1335 = vst.msk [vmem:[%s1324 + $0x7a] sm:$0xff] %vm1263, -3.4028235e+38
        %1336 = vst.msk [vmem:[%s1324 + $0x82] sm:$0xff] %vm1263, -3.4028235e+38
      $region64: #{tpu_custom_call.1} parent=55 // pred_fallthru
        _
      %v1337 = vld [vmem:[%s6] sm:$0x3]
      %v1339 = vsel %vm1263, %v1235, 0
      %v1342 = vsel %vm1263, %v1236, 0
      %v1345 = vsel %vm1263, %v1237, 0
      %v1348 = vsel %vm1263, %v1238, 0
      %v1351 = vsel %vm1263, %v1239, 0
      %v1354 = vsel %vm1263, %v1240, 0
      %v1357 = vsel %vm1263, %v1241, 0
      %v1360 = vsel %vm1263, %v1242, 0
      %v1363 = vsel %vm1263, %v1243, 0
      %v1366 = vsel %vm1263, %v1244, 0
      %v1369 = vsel %vm1263, %v1245, 0
      %v1372 = vsel %vm1263, %v1246, 0
      %v1375 = vsel %vm1263, %v1247, 0
      %v1378 = vsel %vm1263, %v1248, 0
      %v1381 = vsel %vm1263, %v1249, 0
      %v1384 = vsel %vm1263, %v1250, 0
      %vm1386 = vcmask 1041408
      %v1388 = vsel %vm1386, %v1337, 0
      %1390 = vmatprep.subr.mxu0 0.0
      %1391 = vmatpush1.msra.mxu0 %v1388
      %1392 = vmatprep.subr.mxu0 0.0
      %1393 = vmatpush1.msra.mxu0 0.0
      %1394 = vmatprep.subr.mxu0 0.0
      %1395 = vmatpush1.msra.mxu0 0.0
      %1396 = vmatprep.subr.mxu0 0.0
      %1397 = vmatpush1.msra.mxu0 0.0
      %1398 = vmatprep.subr.mxu0 0.0
      %1399 = vmatpush1.msra.mxu0 0.0
      %1400 = vmatprep.subr.mxu0 0.0
      %1401 = vmatpush1.msra.mxu0 0.0
      %1402 = vmatprep.subr.mxu0 0.0
      %1403 = vmatpush1.msra.mxu0 0.0
      %1404 = vmatprep.subr.mxu0 0.0
      %1405 = vmatpush1.msra.mxu0 0.0
      %1406 = vmatprep.subr.mxu0 0.0
      %1407 = vmatpush1.msra.mxu0 0.0
      %1408 = vmatprep.subr.mxu0 0.0
      %1409 = vmatpush1.msra.mxu0 0.0
      %1410 = vmatprep.subr.mxu0 0.0
      %1411 = vmatpush1.msra.mxu0 0.0
      %1412 = vmatprep.subr.mxu0 0.0
      %1413 = vmatpush1.msra.mxu0 0.0
      %1414 = vmatprep.subr.mxu0 0.0
      %1415 = vmatpush1.msra.mxu0 0.0
      %1416 = vmatprep.subr.mxu0 0.0
      %1417 = vmatpush1.msra.mxu0 0.0
      %1418 = vmatprep.subr.mxu0 0.0
      %1419 = vmatpush1.msra.mxu0 0.0
      %1420 = vmatprep.subr.mxu0 0.0
      %1421 = vmatpush1.msra.mxu0 0.0
      %1422 = vmatprep.subr.mxu0 0.0
      %1423 = vmatpush1.msra.mxu0 0.0
      %1424 = vmatprep.subr.mxu0 0.0
      %1425 = vmatpush1.msra.mxu0 0.0
      %1426 = vmatprep.subr.mxu0 0.0
      %1427 = vmatpush1.msra.mxu0 0.0
      %1428 = vmatprep.subr.mxu0 0.0
      %1429 = vmatpush1.msra.mxu0 0.0
      %1430 = vmatprep.subr.mxu0 0.0
      %1431 = vmatpush1.msra.mxu0 0.0
      %1432 = vmatprep.subr.mxu0 0.0
      %1433 = vmatpush1.msra.mxu0 0.0
      %1434 = vmatprep.subr.mxu0 0.0
      %1435 = vmatpush1.msra.mxu0 0.0
      %1436 = vmatprep.subr.mxu0 0.0
      %1437 = vmatpush1.msra.mxu0 0.0
      %1438 = vmatprep.subr.mxu0 0.0
      %1439 = vmatpush1.msra.mxu0 0.0
      %1440 = vmatprep.subr.mxu0 0.0
      %1441 = vmatpush1.msra.mxu0 0.0
      %1442 = vmatprep.subr.mxu0 0.0
      %1443 = vmatpush1.msra.mxu0 0.0
      %1444 = vmatprep.subr.mxu0 0.0
      %1445 = vmatpush1.msra.mxu0 0.0
      %1446 = vmatprep.subr.mxu0 0.0
      %1447 = vmatpush1.msra.mxu0 0.0
      %1448 = vmatprep.subr.mxu0 0.0
      %1449 = vmatpush1.msra.mxu0 0.0
      %1450 = vmatprep.subr.mxu0 0.0
      %1451 = vmatpush1.msra.mxu0 0.0
      %1452 = vmatprep.subr.mxu0 0.0
      %1453 = vmatpush1.msra.mxu0 0.0
      %1454 = vmatprep.mubr.f32.mxu0 0.0
      %1455 = vmatmul.mubr.f32.gmra.mrb[0].mxu0 %v1339
      %v1456 = vpop.f32.mrb[0].mxu0
      %v1457 = vadd.f32 0.0, %v1456
      %v1458 = vpop.f32.mrb[0].mxu0
      %1459 = vmatprep.mubr.f32.mxu0 0.0
      %1460 = vmatmul.mubr.f32.gmra.mrb[0].mxu0 %v1342
      %v1461 = vpop.f32.mrb[0].mxu0
      %v1462 = vadd.f32 0.0, %v1461
      %v1463 = vpop.f32.mrb[0].mxu0
      %1464 = vmatprep.mubr.f32.mxu0 0.0
      %1465 = vmatmul.mubr.f32.gmra.mrb[0].mxu0 %v1345
      %v1466 = vpop.f32.mrb[0].mxu0
      %v1467 = vadd.f32 0.0, %v1466
      %v1468 = vpop.f32.mrb[0].mxu0
      %1469 = vmatprep.mubr.f32.mxu0 0.0
      %1470 = vmatmul.mubr.f32.gmra.mrb[0].mxu0 %v1348
      %v1471 = vpop.f32.mrb[0].mxu0
      %v1472 = vadd.f32 0.0, %v1471
      %v1473 = vpop.f32.mrb[0].mxu0
      %1474 = vmatprep.mubr.f32.mxu0 0.0
      %1475 = vmatmul.mubr.f32.gmra.mrb[0].mxu0 %v1351
      %v1476 = vpop.f32.mrb[0].mxu0
      %v1477 = vadd.f32 0.0, %v1476
      %v1478 = vpop.f32.mrb[0].mxu0
      %1479 = vmatprep.mubr.f32.mxu0 0.0
      %1480 = vmatmul.mubr.f32.gmra.mrb[0].mxu0 %v1354
      %v1481 = vpop.f32.mrb[0].mxu0
      %v1482 = vadd.f32 0.0, %v1481
      %v1483 = vpop.f32.mrb[0].mxu0
      %1484 = vmatprep.mubr.f32.mxu0 0.0
      %1485 = vmatmul.mubr.f32.gmra.mrb[0].mxu0 %v1357
      %v1486 = vpop.f32.mrb[0].mxu0
      %v1487 = vadd.f32 0.0, %v1486
      %v1488 = vpop.f32.mrb[0].mxu0
      %1489 = vmatprep.mubr.f32.mxu0 0.0
      %1490 = vmatmul.mubr.f32.gmra.mrb[0].mxu0 %v1360
      %v1491 = vpop.f32.mrb[0].mxu0
      %v1492 = vadd.f32 0.0, %v1491
      %v1493 = vpop.f32.mrb[0].mxu0
      %1494 = vmatprep.mubr.f32.mxu0 0.0
      %1495 = vmatmul.mubr.f32.gmra.mrb[0].mxu0 %v1363
      %v1496 = vpop.f32.mrb[0].mxu0
      %v1497 = vadd.f32 0.0, %v1496
      %v1498 = vpop.f32.mrb[0].mxu0
      %1499 = vmatprep.mubr.f32.mxu0 0.0
      %1500 = vmatmul.mubr.f32.gmra.mrb[0].mxu0 %v1366
      %v1501 = vpop.f32.mrb[0].mxu0
      %v1502 = vadd.f32 0.0, %v1501
      %v1503 = vpop.f32.mrb[0].mxu0
      %1504 = vmatprep.mubr.f32.mxu0 0.0
      %1505 = vmatmul.mubr.f32.gmra.mrb[0].mxu0 %v1369
      %v1506 = vpop.f32.mrb[0].mxu0
      %v1507 = vadd.f32 0.0, %v1506
      %v1508 = vpop.f32.mrb[0].mxu0
      %1509 = vmatprep.mubr.f32.mxu0 0.0
      %1510 = vmatmul.mubr.f32.gmra.mrb[0].mxu0 %v1372
      %v1511 = vpop.f32.mrb[0].mxu0
      %v1512 = vadd.f32 0.0, %v1511
      %v1513 = vpop.f32.mrb[0].mxu0
      %1514 = vmatprep.mubr.f32.mxu0 0.0
      %1515 = vmatmul.mubr.f32.gmra.mrb[0].mxu0 %v1375
      %v1516 = vpop.f32.mrb[0].mxu0
      %v1517 = vadd.f32 0.0, %v1516
      %v1518 = vpop.f32.mrb[0].mxu0
      %1519 = vmatprep.mubr.f32.mxu0 0.0
      %1520 = vmatmul.mubr.f32.gmra.mrb[0].mxu0 %v1378
      %v1521 = vpop.f32.mrb[0].mxu0
      %v1522 = vadd.f32 0.0, %v1521
      %v1523 = vpop.f32.mrb[0].mxu0
      %1524 = vmatprep.mubr.f32.mxu0 0.0
      %1525 = vmatmul.mubr.f32.gmra.mrb[0].mxu0 %v1381
      %v1526 = vpop.f32.mrb[0].mxu0
      %v1527 = vadd.f32 0.0, %v1526
      %v1528 = vpop.f32.mrb[0].mxu0
      %1529 = vmatprep.mubr.f32.mxu0 0.0
      %1530 = vmatmul.mubr.f32.gmra.mrb[0].mxu0 %v1384
      %v1531 = vpop.f32.mrb[0].mxu0
      %v1532 = vadd.f32 0.0, %v1531
      %v1533 = vpop.f32.mrb[0].mxu0
      %1534 = vdwg.mxu0
      %vm1535 = vcmask 64512
      %1536 = vst.msk [vmem:[#allocation3] sm:$0xff] %vm1535, %v1457
      %1537 = vst.msk [vmem:[#allocation3 + $0x8] sm:$0xff] %vm1535, %v1462
      %1538 = vst.msk [vmem:[#allocation3 + $0x10] sm:$0xff] %vm1535, %v1467
      %1539 = vst.msk [vmem:[#allocation3 + $0x18] sm:$0xff] %vm1535, %v1472
      %1540 = vst.msk [vmem:[#allocation3 + $0x20] sm:$0xff] %vm1535, %v1477
      %1541 = vst.msk [vmem:[#allocation3 + $0x28] sm:$0xff] %vm1535, %v1482
      %1542 = vst.msk [vmem:[#allocation3 + $0x30] sm:$0xff] %vm1535, %v1487
      %1543 = vst.msk [vmem:[#allocation3 + $0x38] sm:$0xff] %vm1535, %v1492
      %1544 = vst.msk [vmem:[#allocation3 + $0x40] sm:$0xff] %vm1535, %v1497
      %1545 = vst.msk [vmem:[#allocation3 + $0x48] sm:$0xff] %vm1535, %v1502
      %1546 = vst.msk [vmem:[#allocation3 + $0x50] sm:$0xff] %vm1535, %v1507
      %1547 = vst.msk [vmem:[#allocation3 + $0x58] sm:$0xff] %vm1535, %v1512
      %1548 = vst.msk [vmem:[#allocation3 + $0x60] sm:$0xff] %vm1535, %v1517
      %1549 = vst.msk [vmem:[#allocation3 + $0x68] sm:$0xff] %vm1535, %v1522
      %1550 = vst.msk [vmem:[#allocation3 + $0x70] sm:$0xff] %vm1535, %v1527
      %1551 = vst.msk [vmem:[#allocation3 + $0x78] sm:$0xff] %vm1535, %v1532
      %v1552 = vld [vmem:[#allocation2] sm:$0xff]
      %v1553 = vld [vmem:[#allocation2 + $0x8] sm:$0xff]
      %v1554 = vld [vmem:[#allocation2 + $0x18] sm:$0xff]
      %v1555 = vld [vmem:[#allocation2 + $0x20] sm:$0xff]
      %v1556 = vld [vmem:[#allocation2 + $0x30] sm:$0xff]
      %v1557 = vld [vmem:[#allocation2 + $0x38] sm:$0xff]
      %v1558 = vld [vmem:[#allocation2 + $0x48] sm:$0xff]
      %v1559 = vld [vmem:[#allocation2 + $0x50] sm:$0xff]
      %v1560 = vld [vmem:[#allocation2 + $0x60] sm:$0xff]
      %v1561 = vld [vmem:[#allocation2 + $0x68] sm:$0xff]
      %v1562 = vld [vmem:[#allocation2 + $0x78] sm:$0xff]
      %v1563 = vld [vmem:[#allocation2 + $0x80] sm:$0xff]
      %v1564 = vld [vmem:[#allocation2 + $0x90] sm:$0xff]
      %v1565 = vld [vmem:[#allocation2 + $0x98] sm:$0xff]
      %v1566 = vld [vmem:[#allocation2 + $0xa8] sm:$0xff]
      %v1567 = vld [vmem:[#allocation2 + $0xb0] sm:$0xff]
      %v1568 = vld [vmem:[#allocation2 + $0xc0] sm:$0xff]
      %v1569 = vld [vmem:[#allocation2 + $0xc8] sm:$0xff]
      %v1570 = vld [vmem:[#allocation2 + $0xd8] sm:$0xff]
      %v1571 = vld [vmem:[#allocation2 + $0xe0] sm:$0xff]
      %v1572 = vld [vmem:[#allocation2 + $0xf0] sm:$0xff]
      %v1573 = vld [vmem:[#allocation2 + $0xf8] sm:$0xff]
      %v1574 = vld [vmem:[#allocation2 + $0x108] sm:$0xff]
      %v1575 = vld [vmem:[#allocation2 + $0x110] sm:$0xff]
      %v1576 = vld [vmem:[#allocation2 + $0x120] sm:$0xff]
      %v1577 = vld [vmem:[#allocation2 + $0x128] sm:$0xff]
      %v1578 = vld [vmem:[#allocation2 + $0x138] sm:$0xff]
      %v1579 = vld [vmem:[#allocation2 + $0x140] sm:$0xff]
      %v1580 = vld [vmem:[#allocation2 + $0x150] sm:$0xff]
      %v1581 = vld [vmem:[#allocation2 + $0x158] sm:$0xff]
      %v1582 = vld [vmem:[#allocation2 + $0x168] sm:$0xff]
      %v1583 = vld [vmem:[#allocation2 + $0x170] sm:$0xff]
      %v1584 = vld [vmem:[#allocation2 + $0x180] sm:$0xff]
      %v1585 = vld [vmem:[#allocation2 + $0x188] sm:$0xff]
      %v1586 = vld [vmem:[#allocation2 + $0x198] sm:$0xff]
      %v1587 = vld [vmem:[#allocation2 + $0x1a0] sm:$0xff]
      %v1588 = vld [vmem:[#allocation2 + $0x1b0] sm:$0xff]
      %v1589 = vld [vmem:[#allocation2 + $0x1b8] sm:$0xff]
      %v1590 = vld [vmem:[#allocation2 + $0x1c8] sm:$0xff]
      %v1591 = vld [vmem:[#allocation2 + $0x1d0] sm:$0xff]
      %v1592 = vld [vmem:[#allocation2 + $0x1] sm:$0xff]
      %v1593 = vld [vmem:[#allocation2 + $0x9] sm:$0xff]
      %v1594 = vld [vmem:[#allocation2 + $0x19] sm:$0xff]
      %v1595 = vld [vmem:[#allocation2 + $0x21] sm:$0xff]
      %v1596 = vld [vmem:[#allocation2 + $0x31] sm:$0xff]
      %v1597 = vld [vmem:[#allocation2 + $0x39] sm:$0xff]
      %v1598 = vld [vmem:[#allocation2 + $0x49] sm:$0xff]
      %v1599 = vld [vmem:[#allocation2 + $0x51] sm:$0xff]
      %v1600 = vld [vmem:[#allocation2 + $0x61] sm:$0xff]
      %v1601 = vld [vmem:[#allocation2 + $0x69] sm:$0xff]
      %v1602 = vld [vmem:[#allocation2 + $0x79] sm:$0xff]
      %v1603 = vld [vmem:[#allocation2 + $0x81] sm:$0xff]
      %v1604 = vld [vmem:[#allocation2 + $0x91] sm:$0xff]
      %v1605 = vld [vmem:[#allocation2 + $0x99] sm:$0xff]
      %v1606 = vld [vmem:[#allocation2 + $0xa9] sm:$0xff]
      %v1607 = vld [vmem:[#allocation2 + $0xb1] sm:$0xff]
      %v1608 = vld [vmem:[#allocation2 + $0xc1] sm:$0xff]
      %v1609 = vld [vmem:[#allocation2 + $0xc9] sm:$0xff]
      %v1610 = vld [vmem:[#allocation2 + $0xd9] sm:$0xff]
      %v1611 = vld [vmem:[#allocation2 + $0xe1] sm:$0xff]
      %v1612 = vld [vmem:[#allocation2 + $0xf1] sm:$0xff]
      %v1613 = vld [vmem:[#allocation2 + $0xf9] sm:$0xff]
      %v1614 = vld [vmem:[#allocation2 + $0x109] sm:$0xff]
      %v1615 = vld [vmem:[#allocation2 + $0x111] sm:$0xff]
      %v1616 = vld [vmem:[#allocation2 + $0x121] sm:$0xff]
      %v1617 = vld [vmem:[#allocation2 + $0x129] sm:$0xff]
      %v1618 = vld [vmem:[#allocation2 + $0x139] sm:$0xff]
      %v1619 = vld [vmem:[#allocation2 + $0x141] sm:$0xff]
      %v1620 = vld [vmem:[#allocation2 + $0x151] sm:$0xff]
      %v1621 = vld [vmem:[#allocation2 + $0x159] sm:$0xff]
      %v1622 = vld [vmem:[#allocation2 + $0x169] sm:$0xff]
      %v1623 = vld [vmem:[#allocation2 + $0x171] sm:$0xff]
      %v1624 = vld [vmem:[#allocation2 + $0x181] sm:$0xff]
      %v1625 = vld [vmem:[#allocation2 + $0x189] sm:$0xff]
      %v1626 = vld [vmem:[#allocation2 + $0x199] sm:$0xff]
      %v1627 = vld [vmem:[#allocation2 + $0x1a1] sm:$0xff]
      %v1628 = vld [vmem:[#allocation2 + $0x1b1] sm:$0xff]
      %v1629 = vld [vmem:[#allocation2 + $0x1b9] sm:$0xff]
      %v1630 = vld [vmem:[#allocation2 + $0x1c9] sm:$0xff]
      %v1631 = vld [vmem:[#allocation2 + $0x1d1] sm:$0xff]
      %v1632 = vmax.f32 %v1552, %v1592
      %v1633 = vmax.f32 %v1553, %v1593
      %v1634 = vmax.f32 %v1554, %v1594
      %v1635 = vmax.f32 %v1555, %v1595
      %v1636 = vmax.f32 %v1556, %v1596
      %v1637 = vmax.f32 %v1557, %v1597
      %v1638 = vmax.f32 %v1558, %v1598
      %v1639 = vmax.f32 %v1559, %v1599
      %v1640 = vmax.f32 %v1560, %v1600
      %v1641 = vmax.f32 %v1561, %v1601
      %v1642 = vmax.f32 %v1562, %v1602
      %v1643 = vmax.f32 %v1563, %v1603
      %v1644 = vmax.f32 %v1564, %v1604
      %v1645 = vmax.f32 %v1565, %v1605
      %v1646 = vmax.f32 %v1566, %v1606
      %v1647 = vmax.f32 %v1567, %v1607
      %v1648 = vmax.f32 %v1568, %v1608
      %v1649 = vmax.f32 %v1569, %v1609
      %v1650 = vmax.f32 %v1570, %v1610
      %v1651 = vmax.f32 %v1571, %v1611
      %v1652 = vmax.f32 %v1572, %v1612
      %v1653 = vmax.f32 %v1573, %v1613
      %v1654 = vmax.f32 %v1574, %v1614
      %v1655 = vmax.f32 %v1575, %v1615
      %v1656 = vmax.f32 %v1576, %v1616
      %v1657 = vmax.f32 %v1577, %v1617
      %v1658 = vmax.f32 %v1578, %v1618
      %v1659 = vmax.f32 %v1579, %v1619
      %v1660 = vmax.f32 %v1580, %v1620
      %v1661 = vmax.f32 %v1581, %v1621
      %v1662 = vmax.f32 %v1582, %v1622
      %v1663 = vmax.f32 %v1583, %v1623
      %v1664 = vmax.f32 %v1584, %v1624
      %v1665 = vmax.f32 %v1585, %v1625
      %v1666 = vmax.f32 %v1586, %v1626
      %v1667 = vmax.f32 %v1587, %v1627
      %v1668 = vmax.f32 %v1588, %v1628
      %v1669 = vmax.f32 %v1589, %v1629
      %v1670 = vmax.f32 %v1590, %v1630
      %v1671 = vmax.f32 %v1591, %v1631
      %v1672 = vld [vmem:[#allocation2 + $0x2] sm:$0xff]
      %v1673 = vld [vmem:[#allocation2 + $0xa] sm:$0xff]
      %v1674 = vld [vmem:[#allocation2 + $0x1a] sm:$0xff]
      %v1675 = vld [vmem:[#allocation2 + $0x22] sm:$0xff]
      %v1676 = vld [vmem:[#allocation2 + $0x32] sm:$0xff]
      %v1677 = vld [vmem:[#allocation2 + $0x3a] sm:$0xff]
      %v1678 = vld [vmem:[#allocation2 + $0x4a] sm:$0xff]
      %v1679 = vld [vmem:[#allocation2 + $0x52] sm:$0xff]
      %v1680 = vld [vmem:[#allocation2 + $0x62] sm:$0xff]
      %v1681 = vld [vmem:[#allocation2 + $0x6a] sm:$0xff]
      %v1682 = vld [vmem:[#allocation2 + $0x7a] sm:$0xff]
      %v1683 = vld [vmem:[#allocation2 + $0x82] sm:$0xff]
      %v1684 = vld [vmem:[#allocation2 + $0x92] sm:$0xff]
      %v1685 = vld [vmem:[#allocation2 + $0x9a] sm:$0xff]
      %v1686 = vld [vmem:[#allocation2 + $0xaa] sm:$0xff]
      %v1687 = vld [vmem:[#allocation2 + $0xb2] sm:$0xff]
      %v1688 = vld [vmem:[#allocation2 + $0xc2] sm:$0xff]
      %v1689 = vld [vmem:[#allocation2 + $0xca] sm:$0xff]
      %v1690 = vld [vmem:[#allocation2 + $0xda] sm:$0xff]
      %v1691 = vld [vmem:[#allocation2 + $0xe2] sm:$0xff]
      %v1692 = vld [vmem:[#allocation2 + $0xf2] sm:$0xff]
      %v1693 = vld [vmem:[#allocation2 + $0xfa] sm:$0xff]
      %v1694 = vld [vmem:[#allocation2 + $0x10a] sm:$0xff]
      %v1695 = vld [vmem:[#allocation2 + $0x112] sm:$0xff]
      %v1696 = vld [vmem:[#allocation2 + $0x122] sm:$0xff]
      %v1697 = vld [vmem:[#allocation2 + $0x12a] sm:$0xff]
      %v1698 = vld [vmem:[#allocation2 + $0x13a] sm:$0xff]
      %v1699 = vld [vmem:[#allocation2 + $0x142] sm:$0xff]
      %v1700 = vld [vmem:[#allocation2 + $0x152] sm:$0xff]
      %v1701 = vld [vmem:[#allocation2 + $0x15a] sm:$0xff]
      %v1702 = vld [vmem:[#allocation2 + $0x16a] sm:$0xff]
      %v1703 = vld [vmem:[#allocation2 + $0x172] sm:$0xff]
      %v1704 = vld [vmem:[#allocation2 + $0x182] sm:$0xff]
      %v1705 = vld [vmem:[#allocation2 + $0x18a] sm:$0xff]
      %v1706 = vld [vmem:[#allocation2 + $0x19a] sm:$0xff]
      %v1707 = vld [vmem:[#allocation2 + $0x1a2] sm:$0xff]
      %v1708 = vld [vmem:[#allocation2 + $0x1b2] sm:$0xff]
      %v1709 = vld [vmem:[#allocation2 + $0x1ba] sm:$0xff]
      %v1710 = vld [vmem:[#allocation2 + $0x1ca] sm:$0xff]
      %v1711 = vld [vmem:[#allocation2 + $0x1d2] sm:$0xff]
      %v1712 = vmax.f32 %v1632, %v1672
      %v1713 = vmax.f32 %v1633, %v1673
      %v1714 = vmax.f32 %v1634, %v1674
      %v1715 = vmax.f32 %v1635, %v1675
      %v1716 = vmax.f32 %v1636, %v1676
      %v1717 = vmax.f32 %v1637, %v1677
      %v1718 = vmax.f32 %v1638, %v1678
      %v1719 = vmax.f32 %v1639, %v1679
      %v1720 = vmax.f32 %v1640, %v1680
      %v1721 = vmax.f32 %v1641, %v1681
      %v1722 = vmax.f32 %v1642, %v1682
      %v1723 = vmax.f32 %v1643, %v1683
      %v1724 = vmax.f32 %v1644, %v1684
      %v1725 = vmax.f32 %v1645, %v1685
      %v1726 = vmax.f32 %v1646, %v1686
      %v1727 = vmax.f32 %v1647, %v1687
      %v1728 = vmax.f32 %v1648, %v1688
      %v1729 = vmax.f32 %v1649, %v1689
      %v1730 = vmax.f32 %v1650, %v1690
      %v1731 = vmax.f32 %v1651, %v1691
      %v1732 = vmax.f32 %v1652, %v1692
      %v1733 = vmax.f32 %v1653, %v1693
      %v1734 = vmax.f32 %v1654, %v1694
      %v1735 = vmax.f32 %v1655, %v1695
      %v1736 = vmax.f32 %v1656, %v1696
      %v1737 = vmax.f32 %v1657, %v1697
      %v1738 = vmax.f32 %v1658, %v1698
      %v1739 = vmax.f32 %v1659, %v1699
      %v1740 = vmax.f32 %v1660, %v1700
      %v1741 = vmax.f32 %v1661, %v1701
      %v1742 = vmax.f32 %v1662, %v1702
      %v1743 = vmax.f32 %v1663, %v1703
      %v1744 = vmax.f32 %v1664, %v1704
      %v1745 = vmax.f32 %v1665, %v1705
      %v1746 = vmax.f32 %v1666, %v1706
      %v1747 = vmax.f32 %v1667, %v1707
      %v1748 = vmax.f32 %v1668, %v1708
      %v1749 = vmax.f32 %v1669, %v1709
      %v1750 = vmax.f32 %v1670, %v1710
      %v1751 = vmax.f32 %v1671, %v1711
      %v1752 = vld [vmem:[#allocation2 + $0x3] sm:$0xff]
      %v1753 = vld [vmem:[#allocation2 + $0xb] sm:$0xff]
      %v1754 = vld [vmem:[#allocation2 + $0x1b] sm:$0xff]
      %v1755 = vld [vmem:[#allocation2 + $0x23] sm:$0xff]
      %v1756 = vld [vmem:[#allocation2 + $0x33] sm:$0xff]
      %v1757 = vld [vmem:[#allocation2 + $0x3b] sm:$0xff]
      %v1758 = vld [vmem:[#allocation2 + $0x4b] sm:$0xff]
      %v1759 = vld [vmem:[#allocation2 + $0x53] sm:$0xff]
      %v1760 = vld [vmem:[#allocation2 + $0x63] sm:$0xff]
      %v1761 = vld [vmem:[#allocation2 + $0x6b] sm:$0xff]
      %v1762 = vld [vmem:[#allocation2 + $0x7b] sm:$0xff]
      %v1763 = vld [vmem:[#allocation2 + $0x83] sm:$0xff]
      %v1764 = vld [vmem:[#allocation2 + $0x93] sm:$0xff]
      %v1765 = vld [vmem:[#allocation2 + $0x9b] sm:$0xff]
      %v1766 = vld [vmem:[#allocation2 + $0xab] sm:$0xff]
      %v1767 = vld [vmem:[#allocation2 + $0xb3] sm:$0xff]
      %v1768 = vld [vmem:[#allocation2 + $0xc3] sm:$0xff]
      %v1769 = vld [vmem:[#allocation2 + $0xcb] sm:$0xff]
      %v1770 = vld [vmem:[#allocation2 + $0xdb] sm:$0xff]
      %v1771 = vld [vmem:[#allocation2 + $0xe3] sm:$0xff]
      %v1772 = vld [vmem:[#allocation2 + $0xf3] sm:$0xff]
      %v1773 = vld [vmem:[#allocation2 + $0xfb] sm:$0xff]
      %v1774 = vld [vmem:[#allocation2 + $0x10b] sm:$0xff]
      %v1775 = vld [vmem:[#allocation2 + $0x113] sm:$0xff]
      %v1776 = vld [vmem:[#allocation2 + $0x123] sm:$0xff]
      %v1777 = vld [vmem:[#allocation2 + $0x12b] sm:$0xff]
      %v1778 = vld [vmem:[#allocation2 + $0x13b] sm:$0xff]
      %v1779 = vld [vmem:[#allocation2 + $0x143] sm:$0xff]
      %v1780 = vld [vmem:[#allocation2 + $0x153] sm:$0xff]
      %v1781 = vld [vmem:[#allocation2 + $0x15b] sm:$0xff]
      %v1782 = vld [vmem:[#allocation2 + $0x16b] sm:$0xff]
      %v1783 = vld [vmem:[#allocation2 + $0x173] sm:$0xff]
      %v1784 = vld [vmem:[#allocation2 + $0x183] sm:$0xff]
      %v1785 = vld [vmem:[#allocation2 + $0x18b] sm:$0xff]
      %v1786 = vld [vmem:[#allocation2 + $0x19b] sm:$0xff]
      %v1787 = vld [vmem:[#allocation2 + $0x1a3] sm:$0xff]
      %v1788 = vld [vmem:[#allocation2 + $0x1b3] sm:$0xff]
      %v1789 = vld [vmem:[#allocation2 + $0x1bb] sm:$0xff]
      %v1790 = vld [vmem:[#allocation2 + $0x1cb] sm:$0xff]
      %v1791 = vld [vmem:[#allocation2 + $0x1d3] sm:$0xff]
      %v1792 = vmax.f32 %v1712, %v1752
      %v1793 = vmax.f32 %v1713, %v1753
      %v1794 = vmax.f32 %v1714, %v1754
      %v1795 = vmax.f32 %v1715, %v1755
      %v1796 = vmax.f32 %v1716, %v1756
      %v1797 = vmax.f32 %v1717, %v1757
      %v1798 = vmax.f32 %v1718, %v1758
      %v1799 = vmax.f32 %v1719, %v1759
      %v1800 = vmax.f32 %v1720, %v1760
      %v1801 = vmax.f32 %v1721, %v1761
      %v1802 = vmax.f32 %v1722, %v1762
      %v1803 = vmax.f32 %v1723, %v1763
      %v1804 = vmax.f32 %v1724, %v1764
      %v1805 = vmax.f32 %v1725, %v1765
      %v1806 = vmax.f32 %v1726, %v1766
      %v1807 = vmax.f32 %v1727, %v1767
      %v1808 = vmax.f32 %v1728, %v1768
      %v1809 = vmax.f32 %v1729, %v1769
      %v1810 = vmax.f32 %v1730, %v1770
      %v1811 = vmax.f32 %v1731, %v1771
      %v1812 = vmax.f32 %v1732, %v1772
      %v1813 = vmax.f32 %v1733, %v1773
      %v1814 = vmax.f32 %v1734, %v1774
      %v1815 = vmax.f32 %v1735, %v1775
      %v1816 = vmax.f32 %v1736, %v1776
      %v1817 = vmax.f32 %v1737, %v1777
      %v1818 = vmax.f32 %v1738, %v1778
      %v1819 = vmax.f32 %v1739, %v1779
      %v1820 = vmax.f32 %v1740, %v1780
      %v1821 = vmax.f32 %v1741, %v1781
      %v1822 = vmax.f32 %v1742, %v1782
      %v1823 = vmax.f32 %v1743, %v1783
      %v1824 = vmax.f32 %v1744, %v1784
      %v1825 = vmax.f32 %v1745, %v1785
      %v1826 = vmax.f32 %v1746, %v1786
      %v1827 = vmax.f32 %v1747, %v1787
      %v1828 = vmax.f32 %v1748, %v1788
      %v1829 = vmax.f32 %v1749, %v1789
      %v1830 = vmax.f32 %v1750, %v1790
      %v1831 = vmax.f32 %v1751, %v1791
      %v1832 = vld [vmem:[#allocation2 + $0x4] sm:$0xff]
      %v1833 = vld [vmem:[#allocation2 + $0xc] sm:$0xff]
      %v1834 = vld [vmem:[#allocation2 + $0x1c] sm:$0xff]
      %v1835 = vld [vmem:[#allocation2 + $0x24] sm:$0xff]
      %v1836 = vld [vmem:[#allocation2 + $0x34] sm:$0xff]
      %v1837 = vld [vmem:[#allocation2 + $0x3c] sm:$0xff]
      %v1838 = vld [vmem:[#allocation2 + $0x4c] sm:$0xff]
      %v1839 = vld [vmem:[#allocation2 + $0x54] sm:$0xff]
      %v1840 = vld [vmem:[#allocation2 + $0x64] sm:$0xff]
      %v1841 = vld [vmem:[#allocation2 + $0x6c] sm:$0xff]
      %v1842 = vld [vmem:[#allocation2 + $0x7c] sm:$0xff]
      %v1843 = vld [vmem:[#allocation2 + $0x84] sm:$0xff]
      %v1844 = vld [vmem:[#allocation2 + $0x94] sm:$0xff]
      %v1845 = vld [vmem:[#allocation2 + $0x9c] sm:$0xff]
      %v1846 = vld [vmem:[#allocation2 + $0xac] sm:$0xff]
      %v1847 = vld [vmem:[#allocation2 + $0xb4] sm:$0xff]
      %v1848 = vld [vmem:[#allocation2 + $0xc4] sm:$0xff]
      %v1849 = vld [vmem:[#allocation2 + $0xcc] sm:$0xff]
      %v1850 = vld [vmem:[#allocation2 + $0xdc] sm:$0xff]
      %v1851 = vld [vmem:[#allocation2 + $0xe4] sm:$0xff]
      %v1852 = vld [vmem:[#allocation2 + $0xf4] sm:$0xff]
      %v1853 = vld [vmem:[#allocation2 + $0xfc] sm:$0xff]
      %v1854 = vld [vmem:[#allocation2 + $0x10c] sm:$0xff]
      %v1855 = vld [vmem:[#allocation2 + $0x114] sm:$0xff]
      %v1856 = vld [vmem:[#allocation2 + $0x124] sm:$0xff]
      %v1857 = vld [vmem:[#allocation2 + $0x12c] sm:$0xff]
      %v1858 = vld [vmem:[#allocation2 + $0x13c] sm:$0xff]
      %v1859 = vld [vmem:[#allocation2 + $0x144] sm:$0xff]
      %v1860 = vld [vmem:[#allocation2 + $0x154] sm:$0xff]
      %v1861 = vld [vmem:[#allocation2 + $0x15c] sm:$0xff]
      %v1862 = vld [vmem:[#allocation2 + $0x16c] sm:$0xff]
      %v1863 = vld [vmem:[#allocation2 + $0x174] sm:$0xff]
      %v1864 = vld [vmem:[#allocation2 + $0x184] sm:$0xff]
      %v1865 = vld [vmem:[#allocation2 + $0x18c] sm:$0xff]
      %v1866 = vld [vmem:[#allocation2 + $0x19c] sm:$0xff]
      %v1867 = vld [vmem:[#allocation2 + $0x1a4] sm:$0xff]
      %v1868 = vld [vmem:[#allocation2 + $0x1b4] sm:$0xff]
      %v1869 = vld [vmem:[#allocation2 + $0x1bc] sm:$0xff]
      %v1870 = vld [vmem:[#allocation2 + $0x1cc] sm:$0xff]
      %v1871 = vld [vmem:[#allocation2 + $0x1d4] sm:$0xff]
      %v1872 = vmax.f32 %v1792, %v1832
      %v1873 = vmax.f32 %v1793, %v1833
      %v1874 = vmax.f32 %v1794, %v1834
      %v1875 = vmax.f32 %v1795, %v1835
      %v1876 = vmax.f32 %v1796, %v1836
      %v1877 = vmax.f32 %v1797, %v1837
      %v1878 = vmax.f32 %v1798, %v1838
      %v1879 = vmax.f32 %v1799, %v1839
      %v1880 = vmax.f32 %v1800, %v1840
      %v1881 = vmax.f32 %v1801, %v1841
      %v1882 = vmax.f32 %v1802, %v1842
      %v1883 = vmax.f32 %v1803, %v1843
      %v1884 = vmax.f32 %v1804, %v1844
      %v1885 = vmax.f32 %v1805, %v1845
      %v1886 = vmax.f32 %v1806, %v1846
      %v1887 = vmax.f32 %v1807, %v1847
      %v1888 = vmax.f32 %v1808, %v1848
      %v1889 = vmax.f32 %v1809, %v1849
      %v1890 = vmax.f32 %v1810, %v1850
      %v1891 = vmax.f32 %v1811, %v1851
      %v1892 = vmax.f32 %v1812, %v1852
      %v1893 = vmax.f32 %v1813, %v1853
      %v1894 = vmax.f32 %v1814, %v1854
      %v1895 = vmax.f32 %v1815, %v1855
      %v1896 = vmax.f32 %v1816, %v1856
      %v1897 = vmax.f32 %v1817, %v1857
      %v1898 = vmax.f32 %v1818, %v1858
      %v1899 = vmax.f32 %v1819, %v1859
      %v1900 = vmax.f32 %v1820, %v1860
      %v1901 = vmax.f32 %v1821, %v1861
      %v1902 = vmax.f32 %v1822, %v1862
      %v1903 = vmax.f32 %v1823, %v1863
      %v1904 = vmax.f32 %v1824, %v1864
      %v1905 = vmax.f32 %v1825, %v1865
      %v1906 = vmax.f32 %v1826, %v1866
      %v1907 = vmax.f32 %v1827, %v1867
      %v1908 = vmax.f32 %v1828, %v1868
      %v1909 = vmax.f32 %v1829, %v1869
      %v1910 = vmax.f32 %v1830, %v1870
      %v1911 = vmax.f32 %v1831, %v1871
      %v1912 = vmax.f32 %v1872, %v1874
      %v1913 = vmax.f32 %v1873, %v1875
      %v1914 = vmax.f32 %v1874, %v1876
      %v1915 = vmax.f32 %v1875, %v1877
      %v1916 = vmax.f32 %v1876, %v1878
      %v1917 = vmax.f32 %v1877, %v1879
      %v1918 = vmax.f32 %v1878, %v1880
      %v1919 = vmax.f32 %v1879, %v1881
      %v1920 = vmax.f32 %v1880, %v1882
      %v1921 = vmax.f32 %v1881, %v1883
      %v1922 = vmax.f32 %v1882, %v1884
      %v1923 = vmax.f32 %v1883, %v1885
      %v1924 = vmax.f32 %v1884, %v1886
      %v1925 = vmax.f32 %v1885, %v1887
      %v1926 = vmax.f32 %v1886, %v1888
      %v1927 = vmax.f32 %v1887, %v1889
      %v1928 = vmax.f32 %v1888, %v1890
      %v1929 = vmax.f32 %v1889, %v1891
      %v1930 = vmax.f32 %v1890, %v1892
      %v1931 = vmax.f32 %v1891, %v1893
      %v1932 = vmax.f32 %v1892, %v1894
      %v1933 = vmax.f32 %v1893, %v1895
      %v1934 = vmax.f32 %v1894, %v1896
      %v1935 = vmax.f32 %v1895, %v1897
      %v1936 = vmax.f32 %v1896, %v1898
      %v1937 = vmax.f32 %v1897, %v1899
      %v1938 = vmax.f32 %v1898, %v1900
      %v1939 = vmax.f32 %v1899, %v1901
      %v1940 = vmax.f32 %v1900, %v1902
      %v1941 = vmax.f32 %v1901, %v1903
      %v1942 = vmax.f32 %v1902, %v1904
      %v1943 = vmax.f32 %v1903, %v1905
      %v1944 = vmax.f32 %v1912, %v1876
      %v1945 = vmax.f32 %v1913, %v1877
      %v1946 = vmax.f32 %v1914, %v1878
      %v1947 = vmax.f32 %v1915, %v1879
      %v1948 = vmax.f32 %v1916, %v1880
      %v1949 = vmax.f32 %v1917, %v1881
      %v1950 = vmax.f32 %v1918, %v1882
      %v1951 = vmax.f32 %v1919, %v1883
      %v1952 = vmax.f32 %v1920, %v1884
      %v1953 = vmax.f32 %v1921, %v1885
      %v1954 = vmax.f32 %v1922, %v1886
      %v1955 = vmax.f32 %v1923, %v1887
      %v1956 = vmax.f32 %v1924, %v1888
      %v1957 = vmax.f32 %v1925, %v1889
      %v1958 = vmax.f32 %v1926, %v1890
      %v1959 = vmax.f32 %v1927, %v1891
      %v1960 = vmax.f32 %v1928, %v1892
      %v1961 = vmax.f32 %v1929, %v1893
      %v1962 = vmax.f32 %v1930, %v1894
      %v1963 = vmax.f32 %v1931, %v1895
      %v1964 = vmax.f32 %v1932, %v1896
      %v1965 = vmax.f32 %v1933, %v1897
      %v1966 = vmax.f32 %v1934, %v1898
      %v1967 = vmax.f32 %v1935, %v1899
      %v1968 = vmax.f32 %v1936, %v1900
      %v1969 = vmax.f32 %v1937, %v1901
      %v1970 = vmax.f32 %v1938, %v1902
      %v1971 = vmax.f32 %v1939, %v1903
      %v1972 = vmax.f32 %v1940, %v1904
      %v1973 = vmax.f32 %v1941, %v1905
      %v1974 = vmax.f32 %v1942, %v1906
      %v1975 = vmax.f32 %v1943, %v1907
      %v1976 = vmax.f32 %v1944, %v1878
      %v1977 = vmax.f32 %v1945, %v1879
      %v1978 = vmax.f32 %v1946, %v1880
      %v1979 = vmax.f32 %v1947, %v1881
      %v1980 = vmax.f32 %v1948, %v1882
      %v1981 = vmax.f32 %v1949, %v1883
      %v1982 = vmax.f32 %v1950, %v1884
      %v1983 = vmax.f32 %v1951, %v1885
      %v1984 = vmax.f32 %v1952, %v1886
      %v1985 = vmax.f32 %v1953, %v1887
      %v1986 = vmax.f32 %v1954, %v1888
      %v1987 = vmax.f32 %v1955, %v1889
      %v1988 = vmax.f32 %v1956, %v1890
      %v1989 = vmax.f32 %v1957, %v1891
      %v1990 = vmax.f32 %v1958, %v1892
      %v1991 = vmax.f32 %v1959, %v1893
      %v1992 = vmax.f32 %v1960, %v1894
      %v1993 = vmax.f32 %v1961, %v1895
      %v1994 = vmax.f32 %v1962, %v1896
      %v1995 = vmax.f32 %v1963, %v1897
      %v1996 = vmax.f32 %v1964, %v1898
      %v1997 = vmax.f32 %v1965, %v1899
      %v1998 = vmax.f32 %v1966, %v1900
      %v1999 = vmax.f32 %v1967, %v1901
      %v2000 = vmax.f32 %v1968, %v1902
      %v2001 = vmax.f32 %v1969, %v1903
      %v2002 = vmax.f32 %v1970, %v1904
      %v2003 = vmax.f32 %v1971, %v1905
      %v2004 = vmax.f32 %v1972, %v1906
      %v2005 = vmax.f32 %v1973, %v1907
      %v2006 = vmax.f32 %v1974, %v1908
      %v2007 = vmax.f32 %v1975, %v1909
      %v2008 = vmax.f32 %v1976, %v1880
      %v2009 = vmax.f32 %v1977, %v1881
      %v2010 = vmax.f32 %v1978, %v1882
      %v2011 = vmax.f32 %v1979, %v1883
      %v2012 = vmax.f32 %v1980, %v1884
      %v2013 = vmax.f32 %v1981, %v1885
      %v2014 = vmax.f32 %v1982, %v1886
      %v2015 = vmax.f32 %v1983, %v1887
      %v2016 = vmax.f32 %v1984, %v1888
      %v2017 = vmax.f32 %v1985, %v1889
      %v2018 = vmax.f32 %v1986, %v1890
      %v2019 = vmax.f32 %v1987, %v1891
      %v2020 = vmax.f32 %v1988, %v1892
      %v2021 = vmax.f32 %v1989, %v1893
      %v2022 = vmax.f32 %v1990, %v1894
      %v2023 = vmax.f32 %v1991, %v1895
      %v2024 = vmax.f32 %v1992, %v1896
      %v2025 = vmax.f32 %v1993, %v1897
      %v2026 = vmax.f32 %v1994, %v1898
      %v2027 = vmax.f32 %v1995, %v1899
      %v2028 = vmax.f32 %v1996, %v1900
      %v2029 = vmax.f32 %v1997, %v1901
      %v2030 = vmax.f32 %v1998, %v1902
      %v2031 = vmax.f32 %v1999, %v1903
      %v2032 = vmax.f32 %v2000, %v1904
      %v2033 = vmax.f32 %v2001, %v1905
      %v2034 = vmax.f32 %v2002, %v1906
      %v2035 = vmax.f32 %v2003, %v1907
      %v2036 = vmax.f32 %v2004, %v1908
      %v2037 = vmax.f32 %v2005, %v1909
      %v2038 = vmax.f32 %v2006, %v1910
      %v2039 = vmax.f32 %v2007, %v1911
      %v2040 = vld [vmem:[#allocation3] sm:$0xff]
      %v2041 = vld [vmem:[#allocation3 + $0x8] sm:$0xff]
      %v2042 = vld [vmem:[#allocation3 + $0x10] sm:$0xff]
      %v2043 = vld [vmem:[#allocation3 + $0x18] sm:$0xff]
      %v2044 = vld [vmem:[#allocation3 + $0x20] sm:$0xff]
      %v2045 = vld [vmem:[#allocation3 + $0x28] sm:$0xff]
      %v2046 = vld [vmem:[#allocation3 + $0x30] sm:$0xff]
      %v2047 = vld [vmem:[#allocation3 + $0x38] sm:$0xff]
      %v2048 = vld [vmem:[#allocation3 + $0x40] sm:$0xff]
      %v2049 = vld [vmem:[#allocation3 + $0x48] sm:$0xff]
      %v2050 = vld [vmem:[#allocation3 + $0x50] sm:$0xff]
      %v2051 = vld [vmem:[#allocation3 + $0x58] sm:$0xff]
      %v2052 = vld [vmem:[#allocation3 + $0x60] sm:$0xff]
      %v2053 = vld [vmem:[#allocation3 + $0x68] sm:$0xff]
      %v2054 = vld [vmem:[#allocation3 + $0x70] sm:$0xff]
      %v2055 = vld [vmem:[#allocation3 + $0x78] sm:$0xff]
      %s2056 = scalar_lea.vmem %s6, 2
      %v2057 = vld [vmem:[%s2056] sm:$0x3]
      %v2059 = vsel %vm1263, %v2016, 0
      %v2062 = vsel %vm1263, %v2017, 0
      %v2065 = vsel %vm1263, %v2018, 0
      %v2068 = vsel %vm1263, %v2019, 0
      %v2071 = vsel %vm1263, %v2020, 0
      %v2074 = vsel %vm1263, %v2021, 0
      %v2077 = vsel %vm1263, %v2022, 0
      %v2080 = vsel %vm1263, %v2023, 0
      %v2083 = vsel %vm1263, %v2024, 0
      %v2086 = vsel %vm1263, %v2025, 0
      %v2089 = vsel %vm1263, %v2026, 0
      %v2092 = vsel %vm1263, %v2027, 0
      %v2095 = vsel %vm1263, %v2028, 0
      %v2098 = vsel %vm1263, %v2029, 0
      %v2101 = vsel %vm1263, %v2030, 0
      %v2104 = vsel %vm1263, %v2031, 0
      %v2107 = vsel %vm1386, %v2057, 0
      %2109 = vmatprep.subr.mxu0 0.0
      %2110 = vmatpush1.msra.mxu0 %v2107
      %2111 = vmatprep.subr.mxu0 0.0
      %2112 = vmatpush1.msra.mxu0 0.0
      %2113 = vmatprep.subr.mxu0 0.0
      %2114 = vmatpush1.msra.mxu0 0.0
      %2115 = vmatprep.subr.mxu0 0.0
      %2116 = vmatpush1.msra.mxu0 0.0
      %2117 = vmatprep.subr.mxu0 0.0
      %2118 = vmatpush1.msra.mxu0 0.0
      %2119 = vmatprep.subr.mxu0 0.0
      %2120 = vmatpush1.msra.mxu0 0.0
      %2121 = vmatprep.subr.mxu0 0.0
      %2122 = vmatpush1.msra.mxu0 0.0
      %2123 = vmatprep.subr.mxu0 0.0
      %2124 = vmatpush1.msra.mxu0 0.0
      %2125 = vmatprep.subr.mxu0 0.0
      %2126 = vmatpush1.msra.mxu0 0.0
      %2127 = vmatprep.subr.mxu0 0.0
      %2128 = vmatpush1.msra.mxu0 0.0
      %2129 = vmatprep.subr.mxu0 0.0
      %2130 = vmatpush1.msra.mxu0 0.0
      %2131 = vmatprep.subr.mxu0 0.0
      %2132 = vmatpush1.msra.mxu0 0.0
      %2133 = vmatprep.subr.mxu0 0.0
      %2134 = vmatpush1.msra.mxu0 0.0
      %2135 = vmatprep.subr.mxu0 0.0
      %2136 = vmatpush1.msra.mxu0 0.0
      %2137 = vmatprep.subr.mxu0 0.0
      %2138 = vmatpush1.msra.mxu0 0.0
      %2139 = vmatprep.subr.mxu0 0.0
      %2140 = vmatpush1.msra.mxu0 0.0
      %2141 = vmatprep.subr.mxu0 0.0
      %2142 = vmatpush1.msra.mxu0 0.0
      %2143 = vmatprep.subr.mxu0 0.0
      %2144 = vmatpush1.msra.mxu0 0.0
      %2145 = vmatprep.subr.mxu0 0.0
      %2146 = vmatpush1.msra.mxu0 0.0
      %2147 = vmatprep.subr.mxu0 0.0
      %2148 = vmatpush1.msra.mxu0 0.0
      %2149 = vmatprep.subr.mxu0 0.0
      %2150 = vmatpush1.msra.mxu0 0.0
      %2151 = vmatprep.subr.mxu0 0.0
      %2152 = vmatpush1.msra.mxu0 0.0
      %2153 = vmatprep.subr.mxu0 0.0
      %2154 = vmatpush1.msra.mxu0 0.0
      %2155 = vmatprep.subr.mxu0 0.0
      %2156 = vmatpush1.msra.mxu0 0.0
      %2157 = vmatprep.subr.mxu0 0.0
      %2158 = vmatpush1.msra.mxu0 0.0
      %2159 = vmatprep.subr.mxu0 0.0
      %2160 = vmatpush1.msra.mxu0 0.0
      %2161 = vmatprep.subr.mxu0 0.0
      %2162 = vmatpush1.msra.mxu0 0.0
      %2163 = vmatprep.subr.mxu0 0.0
      %2164 = vmatpush1.msra.mxu0 0.0
      %2165 = vmatprep.subr.mxu0 0.0
      %2166 = vmatpush1.msra.mxu0 0.0
      %2167 = vmatprep.subr.mxu0 0.0
      %2168 = vmatpush1.msra.mxu0 0.0
      %2169 = vmatprep.subr.mxu0 0.0
      %2170 = vmatpush1.msra.mxu0 0.0
      %2171 = vmatprep.subr.mxu0 0.0
      %2172 = vmatpush1.msra.mxu0 0.0
      %2173 = vmatprep.mubr.f32.mxu0 0.0
      %2174 = vmatmul.mubr.f32.gmra.mrb[0].mxu0 %v2059
      %v2175 = vpop.f32.mrb[0].mxu0
      %v2176 = vadd.f32 0.0, %v2175
      %v2177 = vpop.f32.mrb[0].mxu0
      %2178 = vmatprep.mubr.f32.mxu0 0.0
      %2179 = vmatmul.mubr.f32.gmra.mrb[0].mxu0 %v2062
      %v2180 = vpop.f32.mrb[0].mxu0
      %v2181 = vadd.f32 0.0, %v2180
      %v2182 = vpop.f32.mrb[0].mxu0
      %2183 = vmatprep.mubr.f32.mxu0 0.0
      %2184 = vmatmul.mubr.f32.gmra.mrb[0].mxu0 %v2065
      %v2185 = vpop.f32.mrb[0].mxu0
      %v2186 = vadd.f32 0.0, %v2185
      %v2187 = vpop.f32.mrb[0].mxu0
      %2188 = vmatprep.mubr.f32.mxu0 0.0
      %2189 = vmatmul.mubr.f32.gmra.mrb[0].mxu0 %v2068
      %v2190 = vpop.f32.mrb[0].mxu0
      %v2191 = vadd.f32 0.0, %v2190
      %v2192 = vpop.f32.mrb[0].mxu0
      %2193 = vmatprep.mubr.f32.mxu0 0.0
      %2194 = vmatmul.mubr.f32.gmra.mrb[0].mxu0 %v2071
      %v2195 = vpop.f32.mrb[0].mxu0
      %v2196 = vadd.f32 0.0, %v2195
      %v2197 = vpop.f32.mrb[0].mxu0
      %2198 = vmatprep.mubr.f32.mxu0 0.0
      %2199 = vmatmul.mubr.f32.gmra.mrb[0].mxu0 %v2074
      %v2200 = vpop.f32.mrb[0].mxu0
      %v2201 = vadd.f32 0.0, %v2200
      %v2202 = vpop.f32.mrb[0].mxu0
      %2203 = vmatprep.mubr.f32.mxu0 0.0
      %2204 = vmatmul.mubr.f32.gmra.mrb[0].mxu0 %v2077
      %v2205 = vpop.f32.mrb[0].mxu0
      %v2206 = vadd.f32 0.0, %v2205
      %v2207 = vpop.f32.mrb[0].mxu0
      %2208 = vmatprep.mubr.f32.mxu0 0.0
      %2209 = vmatmul.mubr.f32.gmra.mrb[0].mxu0 %v2080
      %v2210 = vpop.f32.mrb[0].mxu0
      %v2211 = vadd.f32 0.0, %v2210
      %v2212 = vpop.f32.mrb[0].mxu0
      %2213 = vmatprep.mubr.f32.mxu0 0.0
      %2214 = vmatmul.mubr.f32.gmra.mrb[0].mxu0 %v2083
      %v2215 = vpop.f32.mrb[0].mxu0
      %v2216 = vadd.f32 0.0, %v2215
      %v2217 = vpop.f32.mrb[0].mxu0
      %2218 = vmatprep.mubr.f32.mxu0 0.0
      %2219 = vmatmul.mubr.f32.gmra.mrb[0].mxu0 %v2086
      %v2220 = vpop.f32.mrb[0].mxu0
      %v2221 = vadd.f32 0.0, %v2220
      %v2222 = vpop.f32.mrb[0].mxu0
      %2223 = vmatprep.mubr.f32.mxu0 0.0
      %2224 = vmatmul.mubr.f32.gmra.mrb[0].mxu0 %v2089
      %v2225 = vpop.f32.mrb[0].mxu0
      %v2226 = vadd.f32 0.0, %v2225
      %v2227 = vpop.f32.mrb[0].mxu0
      %2228 = vmatprep.mubr.f32.mxu0 0.0
      %2229 = vmatmul.mubr.f32.gmra.mrb[0].mxu0 %v2092
      %v2230 = vpop.f32.mrb[0].mxu0
      %v2231 = vadd.f32 0.0, %v2230
      %v2232 = vpop.f32.mrb[0].mxu0
      %2233 = vmatprep.mubr.f32.mxu0 0.0
      %2234 = vmatmul.mubr.f32.gmra.mrb[0].mxu0 %v2095
      %v2235 = vpop.f32.mrb[0].mxu0
      %v2236 = vadd.f32 0.0, %v2235
      %v2237 = vpop.f32.mrb[0].mxu0
      %2238 = vmatprep.mubr.f32.mxu0 0.0
      %2239 = vmatmul.mubr.f32.gmra.mrb[0].mxu0 %v2098
      %v2240 = vpop.f32.mrb[0].mxu0
      %v2241 = vadd.f32 0.0, %v2240
      %v2242 = vpop.f32.mrb[0].mxu0
      %2243 = vmatprep.mubr.f32.mxu0 0.0
      %2244 = vmatmul.mubr.f32.gmra.mrb[0].mxu0 %v2101
      %v2245 = vpop.f32.mrb[0].mxu0
      %v2246 = vadd.f32 0.0, %v2245
      %v2247 = vpop.f32.mrb[0].mxu0
      %2248 = vmatprep.mubr.f32.mxu0 0.0
      %2249 = vmatmul.mubr.f32.gmra.mrb[0].mxu0 %v2104
      %v2250 = vpop.f32.mrb[0].mxu0
      %v2251 = vadd.f32 0.0, %v2250
      %v2252 = vpop.f32.mrb[0].mxu0
      %2253 = vdwg.mxu0
      %v2254 = vadd.f32 %v2040, %v2176
      %v2255 = vadd.f32 %v2041, %v2181
      %v2256 = vadd.f32 %v2042, %v2186
      %v2257 = vadd.f32 %v2043, %v2191
      %v2258 = vadd.f32 %v2044, %v2196
      %v2259 = vadd.f32 %v2045, %v2201
      %v2260 = vadd.f32 %v2046, %v2206
      %v2261 = vadd.f32 %v2047, %v2211
      %v2262 = vadd.f32 %v2048, %v2216
      %v2263 = vadd.f32 %v2049, %v2221
      %v2264 = vadd.f32 %v2050, %v2226
      %v2265 = vadd.f32 %v2051, %v2231
      %v2266 = vadd.f32 %v2052, %v2236
      %v2267 = vadd.f32 %v2053, %v2241
      %v2268 = vadd.f32 %v2054, %v2246
      %v2269 = vadd.f32 %v2055, %v2251
      %2270 = vst.msk [vmem:[#allocation3] sm:$0xff] %vm1535, %v2254
      %2271 = vst.msk [vmem:[#allocation3 + $0x8] sm:$0xff] %vm1535, %v2255
      %2272 = vst.msk [vmem:[#allocation3 + $0x10] sm:$0xff] %vm1535, %v2256
      %2273 = vst.msk [vmem:[#allocation3 + $0x18] sm:$0xff] %vm1535, %v2257
      %2274 = vst.msk [vmem:[#allocation3 + $0x20] sm:$0xff] %vm1535, %v2258
      %2275 = vst.msk [vmem:[#allocation3 + $0x28] sm:$0xff] %vm1535, %v2259
      %2276 = vst.msk [vmem:[#allocation3 + $0x30] sm:$0xff] %vm1535, %v2260
      %2277 = vst.msk [vmem:[#allocation3 + $0x38] sm:$0xff] %vm1535, %v2261
      %2278 = vst.msk [vmem:[#allocation3 + $0x40] sm:$0xff] %vm1535, %v2262
      %2279 = vst.msk [vmem:[#allocation3 + $0x48] sm:$0xff] %vm1535, %v2263
      %2280 = vst.msk [vmem:[#allocation3 + $0x50] sm:$0xff] %vm1535, %v2264
      %2281 = vst.msk [vmem:[#allocation3 + $0x58] sm:$0xff] %vm1535, %v2265
      %2282 = vst.msk [vmem:[#allocation3 + $0x60] sm:$0xff] %vm1535, %v2266
      %2283 = vst.msk [vmem:[#allocation3 + $0x68] sm:$0xff] %vm1535, %v2267
      %2284 = vst.msk [vmem:[#allocation3 + $0x70] sm:$0xff] %vm1535, %v2268
      %2285 = vst.msk [vmem:[#allocation3 + $0x78] sm:$0xff] %vm1535, %v2269
      %2286 = vst.msk [vmem:[#allocation2 + $0x2] sm:$0xff] %vm1263, %v2008
      %2287 = vst.msk [vmem:[#allocation2 + $0xa] sm:$0xff] %vm1263, %v2009
      %2288 = vst.msk [vmem:[#allocation2 + $0x1a] sm:$0xff] %vm1263, %v2010
      %2289 = vst.msk [vmem:[#allocation2 + $0x22] sm:$0xff] %vm1263, %v2011
      %2290 = vst.msk [vmem:[#allocation2 + $0x32] sm:$0xff] %vm1263, %v2012
      %2291 = vst.msk [vmem:[#allocation2 + $0x3a] sm:$0xff] %vm1263, %v2013
      %2292 = vst.msk [vmem:[#allocation2 + $0x4a] sm:$0xff] %vm1263, %v2014
      %2293 = vst.msk [vmem:[#allocation2 + $0x52] sm:$0xff] %vm1263, %v2015
      %2294 = vst.msk [vmem:[#allocation2 + $0x62] sm:$0xff] %vm1263, %v2016
      %2295 = vst.msk [vmem:[#allocation2 + $0x6a] sm:$0xff] %vm1263, %v2017
      %2296 = vst.msk [vmem:[#allocation2 + $0x7a] sm:$0xff] %vm1263, %v2018
      %2297 = vst.msk [vmem:[#allocation2 + $0x82] sm:$0xff] %vm1263, %v2019
      %2298 = vst.msk [vmem:[#allocation2 + $0x92] sm:$0xff] %vm1263, %v2020
      %2299 = vst.msk [vmem:[#allocation2 + $0x9a] sm:$0xff] %vm1263, %v2021
      %2300 = vst.msk [vmem:[#allocation2 + $0xaa] sm:$0xff] %vm1263, %v2022
      %2301 = vst.msk [vmem:[#allocation2 + $0xb2] sm:$0xff] %vm1263, %v2023
      %2302 = vst.msk [vmem:[#allocation2 + $0xc2] sm:$0xff] %vm1263, %v2024
      %2303 = vst.msk [vmem:[#allocation2 + $0xca] sm:$0xff] %vm1263, %v2025
      %2304 = vst.msk [vmem:[#allocation2 + $0xda] sm:$0xff] %vm1263, %v2026
      %2305 = vst.msk [vmem:[#allocation2 + $0xe2] sm:$0xff] %vm1263, %v2027
      %2306 = vst.msk [vmem:[#allocation2 + $0xf2] sm:$0xff] %vm1263, %v2028
      %2307 = vst.msk [vmem:[#allocation2 + $0xfa] sm:$0xff] %vm1263, %v2029
      %2308 = vst.msk [vmem:[#allocation2 + $0x10a] sm:$0xff] %vm1263, %v2030
      %2309 = vst.msk [vmem:[#allocation2 + $0x112] sm:$0xff] %vm1263, %v2031
      %2310 = vst.msk [vmem:[#allocation2 + $0x122] sm:$0xff] %vm1263, %v2032
      %2311 = vst.msk [vmem:[#allocation2 + $0x12a] sm:$0xff] %vm1263, %v2033
      %2312 = vst.msk [vmem:[#allocation2 + $0x13a] sm:$0xff] %vm1263, %v2034
      %2313 = vst.msk [vmem:[#allocation2 + $0x142] sm:$0xff] %vm1263, %v2035
      %2314 = vst.msk [vmem:[#allocation2 + $0x152] sm:$0xff] %vm1263, %v2036
      %2315 = vst.msk [vmem:[#allocation2 + $0x15a] sm:$0xff] %vm1263, %v2037
      %2316 = vst.msk [vmem:[#allocation2 + $0x16a] sm:$0xff] %vm1263, %v2038
      %2317 = vst.msk [vmem:[#allocation2 + $0x172] sm:$0xff] %vm1263, %v2039
      %v2318 = vld [vmem:[#allocation2] sm:$0xff]
      %v2319 = vld [vmem:[#allocation2 + $0x8] sm:$0xff]
      %v2320 = vld [vmem:[#allocation2 + $0x18] sm:$0xff]
      %v2321 = vld [vmem:[#allocation2 + $0x20] sm:$0xff]
      %v2322 = vld [vmem:[#allocation2 + $0x30] sm:$0xff]
      %v2323 = vld [vmem:[#allocation2 + $0x38] sm:$0xff]
      %v2324 = vld [vmem:[#allocation2 + $0x48] sm:$0xff]
      %v2325 = vld [vmem:[#allocation2 + $0x50] sm:$0xff]
      %v2326 = vld [vmem:[#allocation2 + $0x60] sm:$0xff]
      %v2327 = vld [vmem:[#allocation2 + $0x68] sm:$0xff]
      %v2328 = vld [vmem:[#allocation2 + $0x78] sm:$0xff]
      %v2329 = vld [vmem:[#allocation2 + $0x80] sm:$0xff]
      %v2330 = vld [vmem:[#allocation2 + $0x90] sm:$0xff]
      %v2331 = vld [vmem:[#allocation2 + $0x98] sm:$0xff]
      %v2332 = vld [vmem:[#allocation2 + $0xa8] sm:$0xff]
      %v2333 = vld [vmem:[#allocation2 + $0xb0] sm:$0xff]
      %v2334 = vld [vmem:[#allocation2 + $0xc0] sm:$0xff]
      %v2335 = vld [vmem:[#allocation2 + $0xc8] sm:$0xff]
      %v2336 = vld [vmem:[#allocation2 + $0xd8] sm:$0xff]
      %v2337 = vld [vmem:[#allocation2 + $0xe0] sm:$0xff]
      %v2338 = vld [vmem:[#allocation2 + $0xf0] sm:$0xff]
      %v2339 = vld [vmem:[#allocation2 + $0xf8] sm:$0xff]
      %v2340 = vld [vmem:[#allocation2 + $0x108] sm:$0xff]
      %v2341 = vld [vmem:[#allocation2 + $0x110] sm:$0xff]
      %v2342 = vld [vmem:[#allocation2 + $0x120] sm:$0xff]
      %v2343 = vld [vmem:[#allocation2 + $0x128] sm:$0xff]
      %v2344 = vld [vmem:[#allocation2 + $0x138] sm:$0xff]
      %v2345 = vld [vmem:[#allocation2 + $0x140] sm:$0xff]
      %v2346 = vld [vmem:[#allocation2 + $0x150] sm:$0xff]
      %v2347 = vld [vmem:[#allocation2 + $0x158] sm:$0xff]
      %v2348 = vld [vmem:[#allocation2 + $0x168] sm:$0xff]
      %v2349 = vld [vmem:[#allocation2 + $0x170] sm:$0xff]
      %v2350 = vld [vmem:[#allocation2 + $0x1] sm:$0xff]
      %v2351 = vld [vmem:[#allocation2 + $0x9] sm:$0xff]
      %v2352 = vld [vmem:[#allocation2 + $0x19] sm:$0xff]
      %v2353 = vld [vmem:[#allocation2 + $0x21] sm:$0xff]
      %v2354 = vld [vmem:[#allocation2 + $0x31] sm:$0xff]
      %v2355 = vld [vmem:[#allocation2 + $0x39] sm:$0xff]
      %v2356 = vld [vmem:[#allocation2 + $0x49] sm:$0xff]
      %v2357 = vld [vmem:[#allocation2 + $0x51] sm:$0xff]
      %v2358 = vld [vmem:[#allocation2 + $0x61] sm:$0xff]
      %v2359 = vld [vmem:[#allocation2 + $0x69] sm:$0xff]
      %v2360 = vld [vmem:[#allocation2 + $0x79] sm:$0xff]
      %v2361 = vld [vmem:[#allocation2 + $0x81] sm:$0xff]
      %v2362 = vld [vmem:[#allocation2 + $0x91] sm:$0xff]
      %v2363 = vld [vmem:[#allocation2 + $0x99] sm:$0xff]
      %v2364 = vld [vmem:[#allocation2 + $0xa9] sm:$0xff]
      %v2365 = vld [vmem:[#allocation2 + $0xb1] sm:$0xff]
      %v2366 = vld [vmem:[#allocation2 + $0xc1] sm:$0xff]
      %v2367 = vld [vmem:[#allocation2 + $0xc9] sm:$0xff]
      %v2368 = vld [vmem:[#allocation2 + $0xd9] sm:$0xff]
      %v2369 = vld [vmem:[#allocation2 + $0xe1] sm:$0xff]
      %v2370 = vld [vmem:[#allocation2 + $0xf1] sm:$0xff]
      %v2371 = vld [vmem:[#allocation2 + $0xf9] sm:$0xff]
      %v2372 = vld [vmem:[#allocation2 + $0x109] sm:$0xff]
      %v2373 = vld [vmem:[#allocation2 + $0x111] sm:$0xff]
      %v2374 = vld [vmem:[#allocation2 + $0x121] sm:$0xff]
      %v2375 = vld [vmem:[#allocation2 + $0x129] sm:$0xff]
      %v2376 = vld [vmem:[#allocation2 + $0x139] sm:$0xff]
      %v2377 = vld [vmem:[#allocation2 + $0x141] sm:$0xff]
      %v2378 = vld [vmem:[#allocation2 + $0x151] sm:$0xff]
      %v2379 = vld [vmem:[#allocation2 + $0x159] sm:$0xff]
      %v2380 = vld [vmem:[#allocation2 + $0x169] sm:$0xff]
      %v2381 = vld [vmem:[#allocation2 + $0x171] sm:$0xff]
      %v2382 = vmax.f32 %v2318, %v2350
      %v2383 = vmax.f32 %v2319, %v2351
      %v2384 = vmax.f32 %v2320, %v2352
      %v2385 = vmax.f32 %v2321, %v2353
      %v2386 = vmax.f32 %v2322, %v2354
      %v2387 = vmax.f32 %v2323, %v2355
      %v2388 = vmax.f32 %v2324, %v2356
      %v2389 = vmax.f32 %v2325, %v2357
      %v2390 = vmax.f32 %v2326, %v2358
      %v2391 = vmax.f32 %v2327, %v2359
      %v2392 = vmax.f32 %v2328, %v2360
      %v2393 = vmax.f32 %v2329, %v2361
      %v2394 = vmax.f32 %v2330, %v2362
      %v2395 = vmax.f32 %v2331, %v2363
      %v2396 = vmax.f32 %v2332, %v2364
      %v2397 = vmax.f32 %v2333, %v2365
      %v2398 = vmax.f32 %v2334, %v2366
      %v2399 = vmax.f32 %v2335, %v2367
      %v2400 = vmax.f32 %v2336, %v2368
      %v2401 = vmax.f32 %v2337, %v2369
      %v2402 = vmax.f32 %v2338, %v2370
      %v2403 = vmax.f32 %v2339, %v2371
      %v2404 = vmax.f32 %v2340, %v2372
      %v2405 = vmax.f32 %v2341, %v2373
      %v2406 = vmax.f32 %v2342, %v2374
      %v2407 = vmax.f32 %v2343, %v2375
      %v2408 = vmax.f32 %v2344, %v2376
      %v2409 = vmax.f32 %v2345, %v2377
      %v2410 = vmax.f32 %v2346, %v2378
      %v2411 = vmax.f32 %v2347, %v2379
      %v2412 = vmax.f32 %v2348, %v2380
      %v2413 = vmax.f32 %v2349, %v2381
      %v2414 = vld [vmem:[#allocation2 + $0x2] sm:$0xff]
      %v2415 = vld [vmem:[#allocation2 + $0xa] sm:$0xff]
      %v2416 = vld [vmem:[#allocation2 + $0x1a] sm:$0xff]
      %v2417 = vld [vmem:[#allocation2 + $0x22] sm:$0xff]
      %v2418 = vld [vmem:[#allocation2 + $0x32] sm:$0xff]
      %v2419 = vld [vmem:[#allocation2 + $0x3a] sm:$0xff]
      %v2420 = vld [vmem:[#allocation2 + $0x4a] sm:$0xff]
      %v2421 = vld [vmem:[#allocation2 + $0x52] sm:$0xff]
      %v2422 = vld [vmem:[#allocation2 + $0x62] sm:$0xff]
      %v2423 = vld [vmem:[#allocation2 + $0x6a] sm:$0xff]
      %v2424 = vld [vmem:[#allocation2 + $0x7a] sm:$0xff]
      %v2425 = vld [vmem:[#allocation2 + $0x82] sm:$0xff]
      %v2426 = vld [vmem:[#allocation2 + $0x92] sm:$0xff]
      %v2427 = vld [vmem:[#allocation2 + $0x9a] sm:$0xff]
      %v2428 = vld [vmem:[#allocation2 + $0xaa] sm:$0xff]
      %v2429 = vld [vmem:[#allocation2 + $0xb2] sm:$0xff]
      %v2430 = vld [vmem:[#allocation2 + $0xc2] sm:$0xff]
      %v2431 = vld [vmem:[#allocation2 + $0xca] sm:$0xff]
      %v2432 = vld [vmem:[#allocation2 + $0xda] sm:$0xff]
      %v2433 = vld [vmem:[#allocation2 + $0xe2] sm:$0xff]
      %v2434 = vld [vmem:[#allocation2 + $0xf2] sm:$0xff]
      %v2435 = vld [vmem:[#allocation2 + $0xfa] sm:$0xff]
      %v2436 = vld [vmem:[#allocation2 + $0x10a] sm:$0xff]
      %v2437 = vld [vmem:[#allocation2 + $0x112] sm:$0xff]
      %v2438 = vld [vmem:[#allocation2 + $0x122] sm:$0xff]
      %v2439 = vld [vmem:[#allocation2 + $0x12a] sm:$0xff]
      %v2440 = vld [vmem:[#allocation2 + $0x13a] sm:$0xff]
      %v2441 = vld [vmem:[#allocation2 + $0x142] sm:$0xff]
      %v2442 = vld [vmem:[#allocation2 + $0x152] sm:$0xff]
      %v2443 = vld [vmem:[#allocation2 + $0x15a] sm:$0xff]
      %v2444 = vld [vmem:[#allocation2 + $0x16a] sm:$0xff]
      %v2445 = vld [vmem:[#allocation2 + $0x172] sm:$0xff]
      %v2446 = vmax.f32 %v2382, %v2414
      %v2447 = vmax.f32 %v2383, %v2415
      %v2448 = vmax.f32 %v2384, %v2416
      %v2449 = vmax.f32 %v2385, %v2417
      %v2450 = vmax.f32 %v2386, %v2418
      %v2451 = vmax.f32 %v2387, %v2419
      %v2452 = vmax.f32 %v2388, %v2420
      %v2453 = vmax.f32 %v2389, %v2421
      %v2454 = vmax.f32 %v2390, %v2422
      %v2455 = vmax.f32 %v2391, %v2423
      %v2456 = vmax.f32 %v2392, %v2424
      %v2457 = vmax.f32 %v2393, %v2425
      %v2458 = vmax.f32 %v2394, %v2426
      %v2459 = vmax.f32 %v2395, %v2427
      %v2460 = vmax.f32 %v2396, %v2428
      %v2461 = vmax.f32 %v2397, %v2429
      %v2462 = vmax.f32 %v2398, %v2430
      %v2463 = vmax.f32 %v2399, %v2431
      %v2464 = vmax.f32 %v2400, %v2432
      %v2465 = vmax.f32 %v2401, %v2433
      %v2466 = vmax.f32 %v2402, %v2434
      %v2467 = vmax.f32 %v2403, %v2435
      %v2468 = vmax.f32 %v2404, %v2436
      %v2469 = vmax.f32 %v2405, %v2437
      %v2470 = vmax.f32 %v2406, %v2438
      %v2471 = vmax.f32 %v2407, %v2439
      %v2472 = vmax.f32 %v2408, %v2440
      %v2473 = vmax.f32 %v2409, %v2441
      %v2474 = vmax.f32 %v2410, %v2442
      %v2475 = vmax.f32 %v2411, %v2443
      %v2476 = vmax.f32 %v2412, %v2444
      %v2477 = vmax.f32 %v2413, %v2445
      %v2478 = vld [vmem:[#allocation2 + $0x3] sm:$0xff]
      %v2479 = vld [vmem:[#allocation2 + $0xb] sm:$0xff]
      %v2480 = vld [vmem:[#allocation2 + $0x1b] sm:$0xff]
      %v2481 = vld [vmem:[#allocation2 + $0x23] sm:$0xff]
      %v2482 = vld [vmem:[#allocation2 + $0x33] sm:$0xff]
      %v2483 = vld [vmem:[#allocation2 + $0x3b] sm:$0xff]
      %v2484 = vld [vmem:[#allocation2 + $0x4b] sm:$0xff]
      %v2485 = vld [vmem:[#allocation2 + $0x53] sm:$0xff]
      %v2486 = vld [vmem:[#allocation2 + $0x63] sm:$0xff]
      %v2487 = vld [vmem:[#allocation2 + $0x6b] sm:$0xff]
      %v2488 = vld [vmem:[#allocation2 + $0x7b] sm:$0xff]
      %v2489 = vld [vmem:[#allocation2 + $0x83] sm:$0xff]
      %v2490 = vld [vmem:[#allocation2 + $0x93] sm:$0xff]
      %v2491 = vld [vmem:[#allocation2 + $0x9b] sm:$0xff]
      %v2492 = vld [vmem:[#allocation2 + $0xab] sm:$0xff]
      %v2493 = vld [vmem:[#allocation2 + $0xb3] sm:$0xff]
      %v2494 = vld [vmem:[#allocation2 + $0xc3] sm:$0xff]
      %v2495 = vld [vmem:[#allocation2 + $0xcb] sm:$0xff]
      %v2496 = vld [vmem:[#allocation2 + $0xdb] sm:$0xff]
      %v2497 = vld [vmem:[#allocation2 + $0xe3] sm:$0xff]
      %v2498 = vld [vmem:[#allocation2 + $0xf3] sm:$0xff]
      %v2499 = vld [vmem:[#allocation2 + $0xfb] sm:$0xff]
      %v2500 = vld [vmem:[#allocation2 + $0x10b] sm:$0xff]
      %v2501 = vld [vmem:[#allocation2 + $0x113] sm:$0xff]
      %v2502 = vld [vmem:[#allocation2 + $0x123] sm:$0xff]
      %v2503 = vld [vmem:[#allocation2 + $0x12b] sm:$0xff]
      %v2504 = vld [vmem:[#allocation2 + $0x13b] sm:$0xff]
      %v2505 = vld [vmem:[#allocation2 + $0x143] sm:$0xff]
      %v2506 = vld [vmem:[#allocation2 + $0x153] sm:$0xff]
      %v2507 = vld [vmem:[#allocation2 + $0x15b] sm:$0xff]
      %v2508 = vld [vmem:[#allocation2 + $0x16b] sm:$0xff]
      %v2509 = vld [vmem:[#allocation2 + $0x173] sm:$0xff]
      %v2510 = vmax.f32 %v2446, %v2478
      %v2511 = vmax.f32 %v2447, %v2479
      %v2512 = vmax.f32 %v2448, %v2480
      %v2513 = vmax.f32 %v2449, %v2481
      %v2514 = vmax.f32 %v2450, %v2482
      %v2515 = vmax.f32 %v2451, %v2483
      %v2516 = vmax.f32 %v2452, %v2484
      %v2517 = vmax.f32 %v2453, %v2485
      %v2518 = vmax.f32 %v2454, %v2486
      %v2519 = vmax.f32 %v2455, %v2487
      %v2520 = vmax.f32 %v2456, %v2488
      %v2521 = vmax.f32 %v2457, %v2489
      %v2522 = vmax.f32 %v2458, %v2490
      %v2523 = vmax.f32 %v2459, %v2491
      %v2524 = vmax.f32 %v2460, %v2492
      %v2525 = vmax.f32 %v2461, %v2493
      %v2526 = vmax.f32 %v2462, %v2494
      %v2527 = vmax.f32 %v2463, %v2495
      %v2528 = vmax.f32 %v2464, %v2496
      %v2529 = vmax.f32 %v2465, %v2497
      %v2530 = vmax.f32 %v2466, %v2498
      %v2531 = vmax.f32 %v2467, %v2499
      %v2532 = vmax.f32 %v2468, %v2500
      %v2533 = vmax.f32 %v2469, %v2501
      %v2534 = vmax.f32 %v2470, %v2502
      %v2535 = vmax.f32 %v2471, %v2503
      %v2536 = vmax.f32 %v2472, %v2504
      %v2537 = vmax.f32 %v2473, %v2505
      %v2538 = vmax.f32 %v2474, %v2506
      %v2539 = vmax.f32 %v2475, %v2507
      %v2540 = vmax.f32 %v2476, %v2508
      %v2541 = vmax.f32 %v2477, %v2509
      %v2542 = vld [vmem:[#allocation2 + $0x4] sm:$0xff]
      %v2543 = vld [vmem:[#allocation2 + $0xc] sm:$0xff]
      %v2544 = vld [vmem:[#allocation2 + $0x1c] sm:$0xff]
      %v2545 = vld [vmem:[#allocation2 + $0x24] sm:$0xff]
      %v2546 = vld [vmem:[#allocation2 + $0x34] sm:$0xff]
      %v2547 = vld [vmem:[#allocation2 + $0x3c] sm:$0xff]
      %v2548 = vld [vmem:[#allocation2 + $0x4c] sm:$0xff]
      %v2549 = vld [vmem:[#allocation2 + $0x54] sm:$0xff]
      %v2550 = vld [vmem:[#allocation2 + $0x64] sm:$0xff]
      %v2551 = vld [vmem:[#allocation2 + $0x6c] sm:$0xff]
      %v2552 = vld [vmem:[#allocation2 + $0x7c] sm:$0xff]
      %v2553 = vld [vmem:[#allocation2 + $0x84] sm:$0xff]
      %v2554 = vld [vmem:[#allocation2 + $0x94] sm:$0xff]
      %v2555 = vld [vmem:[#allocation2 + $0x9c] sm:$0xff]
      %v2556 = vld [vmem:[#allocation2 + $0xac] sm:$0xff]
      %v2557 = vld [vmem:[#allocation2 + $0xb4] sm:$0xff]
      %v2558 = vld [vmem:[#allocation2 + $0xc4] sm:$0xff]
      %v2559 = vld [vmem:[#allocation2 + $0xcc] sm:$0xff]
      %v2560 = vld [vmem:[#allocation2 + $0xdc] sm:$0xff]
      %v2561 = vld [vmem:[#allocation2 + $0xe4] sm:$0xff]
      %v2562 = vld [vmem:[#allocation2 + $0xf4] sm:$0xff]
      %v2563 = vld [vmem:[#allocation2 + $0xfc] sm:$0xff]
      %v2564 = vld [vmem:[#allocation2 + $0x10c] sm:$0xff]
      %v2565 = vld [vmem:[#allocation2 + $0x114] sm:$0xff]
      %v2566 = vld [vmem:[#allocation2 + $0x124] sm:$0xff]
      %v2567 = vld [vmem:[#allocation2 + $0x12c] sm:$0xff]
      %v2568 = vld [vmem:[#allocation2 + $0x13c] sm:$0xff]
      %v2569 = vld [vmem:[#allocation2 + $0x144] sm:$0xff]
      %v2570 = vld [vmem:[#allocation2 + $0x154] sm:$0xff]
      %v2571 = vld [vmem:[#allocation2 + $0x15c] sm:$0xff]
      %v2572 = vld [vmem:[#allocation2 + $0x16c] sm:$0xff]
      %v2573 = vld [vmem:[#allocation2 + $0x174] sm:$0xff]
      %v2574 = vmax.f32 %v2510, %v2542
      %v2575 = vmax.f32 %v2511, %v2543
      %v2576 = vmax.f32 %v2512, %v2544
      %v2577 = vmax.f32 %v2513, %v2545
      %v2578 = vmax.f32 %v2514, %v2546
      %v2579 = vmax.f32 %v2515, %v2547
      %v2580 = vmax.f32 %v2516, %v2548
      %v2581 = vmax.f32 %v2517, %v2549
      %v2582 = vmax.f32 %v2518, %v2550
      %v2583 = vmax.f32 %v2519, %v2551
      %v2584 = vmax.f32 %v2520, %v2552
      %v2585 = vmax.f32 %v2521, %v2553
      %v2586 = vmax.f32 %v2522, %v2554
      %v2587 = vmax.f32 %v2523, %v2555
      %v2588 = vmax.f32 %v2524, %v2556
      %v2589 = vmax.f32 %v2525, %v2557
      %v2590 = vmax.f32 %v2526, %v2558
      %v2591 = vmax.f32 %v2527, %v2559
      %v2592 = vmax.f32 %v2528, %v2560
      %v2593 = vmax.f32 %v2529, %v2561
      %v2594 = vmax.f32 %v2530, %v2562
      %v2595 = vmax.f32 %v2531, %v2563
      %v2596 = vmax.f32 %v2532, %v2564
      %v2597 = vmax.f32 %v2533, %v2565
      %v2598 = vmax.f32 %v2534, %v2566
      %v2599 = vmax.f32 %v2535, %v2567
      %v2600 = vmax.f32 %v2536, %v2568
      %v2601 = vmax.f32 %v2537, %v2569
      %v2602 = vmax.f32 %v2538, %v2570
      %v2603 = vmax.f32 %v2539, %v2571
      %v2604 = vmax.f32 %v2540, %v2572
      %v2605 = vmax.f32 %v2541, %v2573
      %v2606 = vmax.f32 %v2574, %v2576
      %v2607 = vmax.f32 %v2575, %v2577
      %v2608 = vmax.f32 %v2576, %v2578
      %v2609 = vmax.f32 %v2577, %v2579
      %v2610 = vmax.f32 %v2578, %v2580
      %v2611 = vmax.f32 %v2579, %v2581
      %v2612 = vmax.f32 %v2580, %v2582
      %v2613 = vmax.f32 %v2581, %v2583
      %v2614 = vmax.f32 %v2582, %v2584
      %v2615 = vmax.f32 %v2583, %v2585
      %v2616 = vmax.f32 %v2584, %v2586
      %v2617 = vmax.f32 %v2585, %v2587
      %v2618 = vmax.f32 %v2586, %v2588
      %v2619 = vmax.f32 %v2587, %v2589
      %v2620 = vmax.f32 %v2588, %v2590
      %v2621 = vmax.f32 %v2589, %v2591
      %v2622 = vmax.f32 %v2590, %v2592
      %v2623 = vmax.f32 %v2591, %v2593
      %v2624 = vmax.f32 %v2592, %v2594
      %v2625 = vmax.f32 %v2593, %v2595
      %v2626 = vmax.f32 %v2594, %v2596
      %v2627 = vmax.f32 %v2595, %v2597
      %v2628 = vmax.f32 %v2596, %v2598
      %v2629 = vmax.f32 %v2597, %v2599
      %v2630 = vmax.f32 %v2606, %v2578
      %v2631 = vmax.f32 %v2607, %v2579
      %v2632 = vmax.f32 %v2608, %v2580
      %v2633 = vmax.f32 %v2609, %v2581
      %v2634 = vmax.f32 %v2610, %v2582
      %v2635 = vmax.f32 %v2611, %v2583
      %v2636 = vmax.f32 %v2612, %v2584
      %v2637 = vmax.f32 %v2613, %v2585
      %v2638 = vmax.f32 %v2614, %v2586
      %v2639 = vmax.f32 %v2615, %v2587
      %v2640 = vmax.f32 %v2616, %v2588
      %v2641 = vmax.f32 %v2617, %v2589
      %v2642 = vmax.f32 %v2618, %v2590
      %v2643 = vmax.f32 %v2619, %v2591
      %v2644 = vmax.f32 %v2620, %v2592
      %v2645 = vmax.f32 %v2621, %v2593
      %v2646 = vmax.f32 %v2622, %v2594
      %v2647 = vmax.f32 %v2623, %v2595
      %v2648 = vmax.f32 %v2624, %v2596
      %v2649 = vmax.f32 %v2625, %v2597
      %v2650 = vmax.f32 %v2626, %v2598
      %v2651 = vmax.f32 %v2627, %v2599
      %v2652 = vmax.f32 %v2628, %v2600
      %v2653 = vmax.f32 %v2629, %v2601
      %v2654 = vmax.f32 %v2630, %v2580
      %v2655 = vmax.f32 %v2631, %v2581
      %v2656 = vmax.f32 %v2632, %v2582
      %v2657 = vmax.f32 %v2633, %v2583
      %v2658 = vmax.f32 %v2634, %v2584
      %v2659 = vmax.f32 %v2635, %v2585
      %v2660 = vmax.f32 %v2636, %v2586
      %v2661 = vmax.f32 %v2637, %v2587
      %v2662 = vmax.f32 %v2638, %v2588
      %v2663 = vmax.f32 %v2639, %v2589
      %v2664 = vmax.f32 %v2640, %v2590
      %v2665 = vmax.f32 %v2641, %v2591
      %v2666 = vmax.f32 %v2642, %v2592
      %v2667 = vmax.f32 %v2643, %v2593
      %v2668 = vmax.f32 %v2644, %v2594
      %v2669 = vmax.f32 %v2645, %v2595
      %v2670 = vmax.f32 %v2646, %v2596
      %v2671 = vmax.f32 %v2647, %v2597
      %v2672 = vmax.f32 %v2648, %v2598
      %v2673 = vmax.f32 %v2649, %v2599
      %v2674 = vmax.f32 %v2650, %v2600
      %v2675 = vmax.f32 %v2651, %v2601
      %v2676 = vmax.f32 %v2652, %v2602
      %v2677 = vmax.f32 %v2653, %v2603
      %v2678 = vmax.f32 %v2654, %v2582
      %v2679 = vmax.f32 %v2655, %v2583
      %v2680 = vmax.f32 %v2656, %v2584
      %v2681 = vmax.f32 %v2657, %v2585
      %v2682 = vmax.f32 %v2658, %v2586
      %v2683 = vmax.f32 %v2659, %v2587
      %v2684 = vmax.f32 %v2660, %v2588
      %v2685 = vmax.f32 %v2661, %v2589
      %v2686 = vmax.f32 %v2662, %v2590
      %v2687 = vmax.f32 %v2663, %v2591
      %v2688 = vmax.f32 %v2664, %v2592
      %v2689 = vmax.f32 %v2665, %v2593
      %v2690 = vmax.f32 %v2666, %v2594
      %v2691 = vmax.f32 %v2667, %v2595
      %v2692 = vmax.f32 %v2668, %v2596
      %v2693 = vmax.f32 %v2669, %v2597
      %v2694 = vmax.f32 %v2670, %v2598
      %v2695 = vmax.f32 %v2671, %v2599
      %v2696 = vmax.f32 %v2672, %v2600
      %v2697 = vmax.f32 %v2673, %v2601
      %v2698 = vmax.f32 %v2674, %v2602
      %v2699 = vmax.f32 %v2675, %v2603
      %v2700 = vmax.f32 %v2676, %v2604
      %v2701 = vmax.f32 %v2677, %v2605
      %v2702 = vld [vmem:[#allocation3] sm:$0xff]
      %v2703 = vld [vmem:[#allocation3 + $0x8] sm:$0xff]
      %v2704 = vld [vmem:[#allocation3 + $0x10] sm:$0xff]
      %v2705 = vld [vmem:[#allocation3 + $0x18] sm:$0xff]
      %v2706 = vld [vmem:[#allocation3 + $0x20] sm:$0xff]
      %v2707 = vld [vmem:[#allocation3 + $0x28] sm:$0xff]
      %v2708 = vld [vmem:[#allocation3 + $0x30] sm:$0xff]
      %v2709 = vld [vmem:[#allocation3 + $0x38] sm:$0xff]
      %v2710 = vld [vmem:[#allocation3 + $0x40] sm:$0xff]
      %v2711 = vld [vmem:[#allocation3 + $0x48] sm:$0xff]
      %v2712 = vld [vmem:[#allocation3 + $0x50] sm:$0xff]
      %v2713 = vld [vmem:[#allocation3 + $0x58] sm:$0xff]
      %v2714 = vld [vmem:[#allocation3 + $0x60] sm:$0xff]
      %v2715 = vld [vmem:[#allocation3 + $0x68] sm:$0xff]
      %v2716 = vld [vmem:[#allocation3 + $0x70] sm:$0xff]
      %v2717 = vld [vmem:[#allocation3 + $0x78] sm:$0xff]
      %s2718 = scalar_lea.vmem %s6, 4
      %v2719 = vld [vmem:[%s2718] sm:$0x3]
      %v2721 = vsel %vm1263, %v2682, 0
      %v2724 = vsel %vm1263, %v2683, 0
      %v2727 = vsel %vm1263, %v2684, 0
      %v2730 = vsel %vm1263, %v2685, 0
      %v2733 = vsel %vm1263, %v2686, 0
      %v2736 = vsel %vm1263, %v2687, 0
      %v2739 = vsel %vm1263, %v2688, 0
      %v2742 = vsel %vm1263, %v2689, 0
      %v2745 = vsel %vm1263, %v2690, 0
      %v2748 = vsel %vm1263, %v2691, 0
      %v2751 = vsel %vm1263, %v2692, 0
      %v2754 = vsel %vm1263, %v2693, 0
      %v2757 = vsel %vm1263, %v2694, 0
      %v2760 = vsel %vm1263, %v2695, 0
      %v2763 = vsel %vm1263, %v2696, 0
      %v2766 = vsel %vm1263, %v2697, 0
      %v2769 = vsel %vm1386, %v2719, 0
      %2771 = vmatprep.subr.mxu0 0.0
      %2772 = vmatpush1.msra.mxu0 %v2769
      %2773 = vmatprep.subr.mxu0 0.0
      %2774 = vmatpush1.msra.mxu0 0.0
      %2775 = vmatprep.subr.mxu0 0.0
      %2776 = vmatpush1.msra.mxu0 0.0
      %2777 = vmatprep.subr.mxu0 0.0
      %2778 = vmatpush1.msra.mxu0 0.0
      %2779 = vmatprep.subr.mxu0 0.0
      %2780 = vmatpush1.msra.mxu0 0.0
      %2781 = vmatprep.subr.mxu0 0.0
      %2782 = vmatpush1.msra.mxu0 0.0
      %2783 = vmatprep.subr.mxu0 0.0
      %2784 = vmatpush1.msra.mxu0 0.0
      %2785 = vmatprep.subr.mxu0 0.0
      %2786 = vmatpush1.msra.mxu0 0.0
      %2787 = vmatprep.subr.mxu0 0.0
      %2788 = vmatpush1.msra.mxu0 0.0
      %2789 = vmatprep.subr.mxu0 0.0
      %2790 = vmatpush1.msra.mxu0 0.0
      %2791 = vmatprep.subr.mxu0 0.0
      %2792 = vmatpush1.msra.mxu0 0.0
      %2793 = vmatprep.subr.mxu0 0.0
      %2794 = vmatpush1.msra.mxu0 0.0
      %2795 = vmatprep.subr.mxu0 0.0
      %2796 = vmatpush1.msra.mxu0 0.0
      %2797 = vmatprep.subr.mxu0 0.0
      %2798 = vmatpush1.msra.mxu0 0.0
      %2799 = vmatprep.subr.mxu0 0.0
      %2800 = vmatpush1.msra.mxu0 0.0
      %2801 = vmatprep.subr.mxu0 0.0
      %2802 = vmatpush1.msra.mxu0 0.0
      %2803 = vmatprep.subr.mxu0 0.0
      %2804 = vmatpush1.msra.mxu0 0.0
      %2805 = vmatprep.subr.mxu0 0.0
      %2806 = vmatpush1.msra.mxu0 0.0
      %2807 = vmatprep.subr.mxu0 0.0
      %2808 = vmatpush1.msra.mxu0 0.0
      %2809 = vmatprep.subr.mxu0 0.0
      %2810 = vmatpush1.msra.mxu0 0.0
      %2811 = vmatprep.subr.mxu0 0.0
      %2812 = vmatpush1.msra.mxu0 0.0
      %2813 = vmatprep.subr.mxu0 0.0
      %2814 = vmatpush1.msra.mxu0 0.0
      %2815 = vmatprep.subr.mxu0 0.0
      %2816 = vmatpush1.msra.mxu0 0.0
      %2817 = vmatprep.subr.mxu0 0.0
      %2818 = vmatpush1.msra.mxu0 0.0
      %2819 = vmatprep.subr.mxu0 0.0
      %2820 = vmatpush1.msra.mxu0 0.0
      %2821 = vmatprep.subr.mxu0 0.0
      %2822 = vmatpush1.msra.mxu0 0.0
      %2823 = vmatprep.subr.mxu0 0.0
      %2824 = vmatpush1.msra.mxu0 0.0
      %2825 = vmatprep.subr.mxu0 0.0
      %2826 = vmatpush1.msra.mxu0 0.0
      %2827 = vmatprep.subr.mxu0 0.0
      %2828 = vmatpush1.msra.mxu0 0.0
      %2829 = vmatprep.subr.mxu0 0.0
      %2830 = vmatpush1.msra.mxu0 0.0
      %2831 = vmatprep.subr.mxu0 0.0
      %2832 = vmatpush1.msra.mxu0 0.0
      %2833 = vmatprep.subr.mxu0 0.0
      %2834 = vmatpush1.msra.mxu0 0.0
      %2835 = vmatprep.mubr.f32.mxu0 0.0
      %2836 = vmatmul.mubr.f32.gmra.mrb[0].mxu0 %v2721
      %v2837 = vpop.f32.mrb[0].mxu0
      %v2838 = vadd.f32 0.0, %v2837
      %v2839 = vpop.f32.mrb[0].mxu0
      %2840 = vmatprep.mubr.f32.mxu0 0.0
      %2841 = vmatmul.mubr.f32.gmra.mrb[0].mxu0 %v2724
      %v2842 = vpop.f32.mrb[0].mxu0
      %v2843 = vadd.f32 0.0, %v2842
      %v2844 = vpop.f32.mrb[0].mxu0
      %2845 = vmatprep.mubr.f32.mxu0 0.0
      %2846 = vmatmul.mubr.f32.gmra.mrb[0].mxu0 %v2727
      %v2847 = vpop.f32.mrb[0].mxu0
      %v2848 = vadd.f32 0.0, %v2847
      %v2849 = vpop.f32.mrb[0].mxu0
      %2850 = vmatprep.mubr.f32.mxu0 0.0
      %2851 = vmatmul.mubr.f32.gmra.mrb[0].mxu0 %v2730
      %v2852 = vpop.f32.mrb[0].mxu0
      %v2853 = vadd.f32 0.0, %v2852
      %v2854 = vpop.f32.mrb[0].mxu0
      %2855 = vmatprep.mubr.f32.mxu0 0.0
      %2856 = vmatmul.mubr.f32.gmra.mrb[0].mxu0 %v2733
      %v2857 = vpop.f32.mrb[0].mxu0
      %v2858 = vadd.f32 0.0, %v2857
      %v2859 = vpop.f32.mrb[0].mxu0
      %2860 = vmatprep.mubr.f32.mxu0 0.0
      %2861 = vmatmul.mubr.f32.gmra.mrb[0].mxu0 %v2736
      %v2862 = vpop.f32.mrb[0].mxu0
      %v2863 = vadd.f32 0.0, %v2862
      %v2864 = vpop.f32.mrb[0].mxu0
      %2865 = vmatprep.mubr.f32.mxu0 0.0
      %2866 = vmatmul.mubr.f32.gmra.mrb[0].mxu0 %v2739
      %v2867 = vpop.f32.mrb[0].mxu0
      %v2868 = vadd.f32 0.0, %v2867
      %v2869 = vpop.f32.mrb[0].mxu0
      %2870 = vmatprep.mubr.f32.mxu0 0.0
      %2871 = vmatmul.mubr.f32.gmra.mrb[0].mxu0 %v2742
      %v2872 = vpop.f32.mrb[0].mxu0
      %v2873 = vadd.f32 0.0, %v2872
      %v2874 = vpop.f32.mrb[0].mxu0
      %2875 = vmatprep.mubr.f32.mxu0 0.0
      %2876 = vmatmul.mubr.f32.gmra.mrb[0].mxu0 %v2745
      %v2877 = vpop.f32.mrb[0].mxu0
      %v2878 = vadd.f32 0.0, %v2877
      %v2879 = vpop.f32.mrb[0].mxu0
      %2880 = vmatprep.mubr.f32.mxu0 0.0
      %2881 = vmatmul.mubr.f32.gmra.mrb[0].mxu0 %v2748
      %v2882 = vpop.f32.mrb[0].mxu0
      %v2883 = vadd.f32 0.0, %v2882
      %v2884 = vpop.f32.mrb[0].mxu0
      %2885 = vmatprep.mubr.f32.mxu0 0.0
      %2886 = vmatmul.mubr.f32.gmra.mrb[0].mxu0 %v2751
      %v2887 = vpop.f32.mrb[0].mxu0
      %v2888 = vadd.f32 0.0, %v2887
      %v2889 = vpop.f32.mrb[0].mxu0
      %2890 = vmatprep.mubr.f32.mxu0 0.0
      %2891 = vmatmul.mubr.f32.gmra.mrb[0].mxu0 %v2754
      %v2892 = vpop.f32.mrb[0].mxu0
      %v2893 = vadd.f32 0.0, %v2892
      %v2894 = vpop.f32.mrb[0].mxu0
      %2895 = vmatprep.mubr.f32.mxu0 0.0
      %2896 = vmatmul.mubr.f32.gmra.mrb[0].mxu0 %v2757
      %v2897 = vpop.f32.mrb[0].mxu0
      %v2898 = vadd.f32 0.0, %v2897
      %v2899 = vpop.f32.mrb[0].mxu0
      %2900 = vmatprep.mubr.f32.mxu0 0.0
      %2901 = vmatmul.mubr.f32.gmra.mrb[0].mxu0 %v2760
      %v2902 = vpop.f32.mrb[0].mxu0
      %v2903 = vadd.f32 0.0, %v2902
      %v2904 = vpop.f32.mrb[0].mxu0
      %2905 = vmatprep.mubr.f32.mxu0 0.0
      %2906 = vmatmul.mubr.f32.gmra.mrb[0].mxu0 %v2763
      %v2907 = vpop.f32.mrb[0].mxu0
      %v2908 = vadd.f32 0.0, %v2907
      %v2909 = vpop.f32.mrb[0].mxu0
      %2910 = vmatprep.mubr.f32.mxu0 0.0
      %2911 = vmatmul.mubr.f32.gmra.mrb[0].mxu0 %v2766
      %v2912 = vpop.f32.mrb[0].mxu0
      %v2913 = vadd.f32 0.0, %v2912
      %v2914 = vpop.f32.mrb[0].mxu0
      %2915 = vdwg.mxu0
      %v2916 = vadd.f32 %v2702, %v2838
      %v2917 = vadd.f32 %v2703, %v2843
      %v2918 = vadd.f32 %v2704, %v2848
      %v2919 = vadd.f32 %v2705, %v2853
      %v2920 = vadd.f32 %v2706, %v2858
      %v2921 = vadd.f32 %v2707, %v2863
      %v2922 = vadd.f32 %v2708, %v2868
      %v2923 = vadd.f32 %v2709, %v2873
      %v2924 = vadd.f32 %v2710, %v2878
      %v2925 = vadd.f32 %v2711, %v2883
      %v2926 = vadd.f32 %v2712, %v2888
      %v2927 = vadd.f32 %v2713, %v2893
      %v2928 = vadd.f32 %v2714, %v2898
      %v2929 = vadd.f32 %v2715, %v2903
      %v2930 = vadd.f32 %v2716, %v2908
      %v2931 = vadd.f32 %v2717, %v2913
      %2932 = vst.msk [vmem:[#allocation3] sm:$0xff] %vm1535, %v2916
      %2933 = vst.msk [vmem:[#allocation3 + $0x8] sm:$0xff] %vm1535, %v2917
      %2934 = vst.msk [vmem:[#allocation3 + $0x10] sm:$0xff] %vm1535, %v2918
      %2935 = vst.msk [vmem:[#allocation3 + $0x18] sm:$0xff] %vm1535, %v2919
      %2936 = vst.msk [vmem:[#allocation3 + $0x20] sm:$0xff] %vm1535, %v2920
      %2937 = vst.msk [vmem:[#allocation3 + $0x28] sm:$0xff] %vm1535, %v2921
      %2938 = vst.msk [vmem:[#allocation3 + $0x30] sm:$0xff] %vm1535, %v2922
      %2939 = vst.msk [vmem:[#allocation3 + $0x38] sm:$0xff] %vm1535, %v2923
      %2940 = vst.msk [vmem:[#allocation3 + $0x40] sm:$0xff] %vm1535, %v2924
      %2941 = vst.msk [vmem:[#allocation3 + $0x48] sm:$0xff] %vm1535, %v2925
      %2942 = vst.msk [vmem:[#allocation3 + $0x50] sm:$0xff] %vm1535, %v2926
      %2943 = vst.msk [vmem:[#allocation3 + $0x58] sm:$0xff] %vm1535, %v2927
      %2944 = vst.msk [vmem:[#allocation3 + $0x60] sm:$0xff] %vm1535, %v2928
      %2945 = vst.msk [vmem:[#allocation3 + $0x68] sm:$0xff] %vm1535, %v2929
      %2946 = vst.msk [vmem:[#allocation3 + $0x70] sm:$0xff] %vm1535, %v2930
      %2947 = vst.msk [vmem:[#allocation3 + $0x78] sm:$0xff] %vm1535, %v2931
      %2948 = vst.msk [vmem:[#allocation2 + $0x2] sm:$0xff] %vm1263, %v2678
      %2949 = vst.msk [vmem:[#allocation2 + $0xa] sm:$0xff] %vm1263, %v2679
      %2950 = vst.msk [vmem:[#allocation2 + $0x1a] sm:$0xff] %vm1263, %v2680
      %2951 = vst.msk [vmem:[#allocation2 + $0x22] sm:$0xff] %vm1263, %v2681
      %2952 = vst.msk [vmem:[#allocation2 + $0x32] sm:$0xff] %vm1263, %v2682
      %2953 = vst.msk [vmem:[#allocation2 + $0x3a] sm:$0xff] %vm1263, %v2683
      %2954 = vst.msk [vmem:[#allocation2 + $0x4a] sm:$0xff] %vm1263, %v2684
      %2955 = vst.msk [vmem:[#allocation2 + $0x52] sm:$0xff] %vm1263, %v2685
      %2956 = vst.msk [vmem:[#allocation2 + $0x62] sm:$0xff] %vm1263, %v2686
      %2957 = vst.msk [vmem:[#allocation2 + $0x6a] sm:$0xff] %vm1263, %v2687
      %2958 = vst.msk [vmem:[#allocation2 + $0x7a] sm:$0xff] %vm1263, %v2688
      %2959 = vst.msk [vmem:[#allocation2 + $0x82] sm:$0xff] %vm1263, %v2689
      %2960 = vst.msk [vmem:[#allocation2 + $0x92] sm:$0xff] %vm1263, %v2690
      %2961 = vst.msk [vmem:[#allocation2 + $0x9a] sm:$0xff] %vm1263, %v2691
      %2962 = vst.msk [vmem:[#allocation2 + $0xaa] sm:$0xff] %vm1263, %v2692
      %2963 = vst.msk [vmem:[#allocation2 + $0xb2] sm:$0xff] %vm1263, %v2693
      %2964 = vst.msk [vmem:[#allocation2 + $0xc2] sm:$0xff] %vm1263, %v2694
      %2965 = vst.msk [vmem:[#allocation2 + $0xca] sm:$0xff] %vm1263, %v2695
      %2966 = vst.msk [vmem:[#allocation2 + $0xda] sm:$0xff] %vm1263, %v2696
      %2967 = vst.msk [vmem:[#allocation2 + $0xe2] sm:$0xff] %vm1263, %v2697
      %2968 = vst.msk [vmem:[#allocation2 + $0xf2] sm:$0xff] %vm1263, %v2698
      %2969 = vst.msk [vmem:[#allocation2 + $0xfa] sm:$0xff] %vm1263, %v2699
      %2970 = vst.msk [vmem:[#allocation2 + $0x10a] sm:$0xff] %vm1263, %v2700
      %2971 = vst.msk [vmem:[#allocation2 + $0x112] sm:$0xff] %vm1263, %v2701
      %v2972 = vld [vmem:[#allocation2] sm:$0xff]
      %v2973 = vld [vmem:[#allocation2 + $0x8] sm:$0xff]
      %v2974 = vld [vmem:[#allocation2 + $0x18] sm:$0xff]
      %v2975 = vld [vmem:[#allocation2 + $0x20] sm:$0xff]
      %v2976 = vld [vmem:[#allocation2 + $0x30] sm:$0xff]
      %v2977 = vld [vmem:[#allocation2 + $0x38] sm:$0xff]
      %v2978 = vld [vmem:[#allocation2 + $0x48] sm:$0xff]
      %v2979 = vld [vmem:[#allocation2 + $0x50] sm:$0xff]
      %v2980 = vld [vmem:[#allocation2 + $0x60] sm:$0xff]
      %v2981 = vld [vmem:[#allocation2 + $0x68] sm:$0xff]
      %v2982 = vld [vmem:[#allocation2 + $0x78] sm:$0xff]
      %v2983 = vld [vmem:[#allocation2 + $0x80] sm:$0xff]
      %v2984 = vld [vmem:[#allocation2 + $0x90] sm:$0xff]
      %v2985 = vld [vmem:[#allocation2 + $0x98] sm:$0xff]
      %v2986 = vld [vmem:[#allocation2 + $0xa8] sm:$0xff]
      %v2987 = vld [vmem:[#allocation2 + $0xb0] sm:$0xff]
      %v2988 = vld [vmem:[#allocation2 + $0xc0] sm:$0xff]
      %v2989 = vld [vmem:[#allocation2 + $0xc8] sm:$0xff]
      %v2990 = vld [vmem:[#allocation2 + $0xd8] sm:$0xff]
      %v2991 = vld [vmem:[#allocation2 + $0xe0] sm:$0xff]
      %v2992 = vld [vmem:[#allocation2 + $0xf0] sm:$0xff]
      %v2993 = vld [vmem:[#allocation2 + $0xf8] sm:$0xff]
      %v2994 = vld [vmem:[#allocation2 + $0x108] sm:$0xff]
      %v2995 = vld [vmem:[#allocation2 + $0x110] sm:$0xff]
      %v2996 = vld [vmem:[#allocation2 + $0x1] sm:$0xff]
      %v2997 = vld [vmem:[#allocation2 + $0x9] sm:$0xff]
      %v2998 = vld [vmem:[#allocation2 + $0x19] sm:$0xff]
      %v2999 = vld [vmem:[#allocation2 + $0x21] sm:$0xff]
      %v3000 = vld [vmem:[#allocation2 + $0x31] sm:$0xff]
      %v3001 = vld [vmem:[#allocation2 + $0x39] sm:$0xff]
      %v3002 = vld [vmem:[#allocation2 + $0x49] sm:$0xff]
      %v3003 = vld [vmem:[#allocation2 + $0x51] sm:$0xff]
      %v3004 = vld [vmem:[#allocation2 + $0x61] sm:$0xff]
      %v3005 = vld [vmem:[#allocation2 + $0x69] sm:$0xff]
      %v3006 = vld [vmem:[#allocation2 + $0x79] sm:$0xff]
      %v3007 = vld [vmem:[#allocation2 + $0x81] sm:$0xff]
      %v3008 = vld [vmem:[#allocation2 + $0x91] sm:$0xff]
      %v3009 = vld [vmem:[#allocation2 + $0x99] sm:$0xff]
      %v3010 = vld [vmem:[#allocation2 + $0xa9] sm:$0xff]
      %v3011 = vld [vmem:[#allocation2 + $0xb1] sm:$0xff]
      %v3012 = vld [vmem:[#allocation2 + $0xc1] sm:$0xff]
      %v3013 = vld [vmem:[#allocation2 + $0xc9] sm:$0xff]
      %v3014 = vld [vmem:[#allocation2 + $0xd9] sm:$0xff]
      %v3015 = vld [vmem:[#allocation2 + $0xe1] sm:$0xff]
      %v3016 = vld [vmem:[#allocation2 + $0xf1] sm:$0xff]
      %v3017 = vld [vmem:[#allocation2 + $0xf9] sm:$0xff]
      %v3018 = vld [vmem:[#allocation2 + $0x109] sm:$0xff]
      %v3019 = vld [vmem:[#allocation2 + $0x111] sm:$0xff]
      %v3020 = vmax.f32 %v2972, %v2996
      %v3021 = vmax.f32 %v2973, %v2997
      %v3022 = vmax.f32 %v2974, %v2998
      %v3023 = vmax.f32 %v2975, %v2999
      %v3024 = vmax.f32 %v2976, %v3000
      %v3025 = vmax.f32 %v2977, %v3001
      %v3026 = vmax.f32 %v2978, %v3002
      %v3027 = vmax.f32 %v2979, %v3003
      %v3028 = vmax.f32 %v2980, %v3004
      %v3029 = vmax.f32 %v2981, %v3005
      %v3030 = vmax.f32 %v2982, %v3006
      %v3031 = vmax.f32 %v2983, %v3007
      %v3032 = vmax.f32 %v2984, %v3008
      %v3033 = vmax.f32 %v2985, %v3009
      %v3034 = vmax.f32 %v2986, %v3010
      %v3035 = vmax.f32 %v2987, %v3011
      %v3036 = vmax.f32 %v2988, %v3012
      %v3037 = vmax.f32 %v2989, %v3013
      %v3038 = vmax.f32 %v2990, %v3014
      %v3039 = vmax.f32 %v2991, %v3015
      %v3040 = vmax.f32 %v2992, %v3016
      %v3041 = vmax.f32 %v2993, %v3017
      %v3042 = vmax.f32 %v2994, %v3018
      %v3043 = vmax.f32 %v2995, %v3019
      %v3044 = vld [vmem:[#allocation2 + $0x2] sm:$0xff]
      %v3045 = vld [vmem:[#allocation2 + $0xa] sm:$0xff]
      %v3046 = vld [vmem:[#allocation2 + $0x1a] sm:$0xff]
      %v3047 = vld [vmem:[#allocation2 + $0x22] sm:$0xff]
      %v3048 = vld [vmem:[#allocation2 + $0x32] sm:$0xff]
      %v3049 = vld [vmem:[#allocation2 + $0x3a] sm:$0xff]
      %v3050 = vld [vmem:[#allocation2 + $0x4a] sm:$0xff]
      %v3051 = vld [vmem:[#allocation2 + $0x52] sm:$0xff]
      %v3052 = vld [vmem:[#allocation2 + $0x62] sm:$0xff]
      %v3053 = vld [vmem:[#allocation2 + $0x6a] sm:$0xff]
      %v3054 = vld [vmem:[#allocation2 + $0x7a] sm:$0xff]
      %v3055 = vld [vmem:[#allocation2 + $0x82] sm:$0xff]
      %v3056 = vld [vmem:[#allocation2 + $0x92] sm:$0xff]
      %v3057 = vld [vmem:[#allocation2 + $0x9a] sm:$0xff]
      %v3058 = vld [vmem:[#allocation2 + $0xaa] sm:$0xff]
      %v3059 = vld [vmem:[#allocation2 + $0xb2] sm:$0xff]
      %v3060 = vld [vmem:[#allocation2 + $0xc2] sm:$0xff]
      %v3061 = vld [vmem:[#allocation2 + $0xca] sm:$0xff]
      %v3062 = vld [vmem:[#allocation2 + $0xda] sm:$0xff]
      %v3063 = vld [vmem:[#allocation2 + $0xe2] sm:$0xff]
      %v3064 = vld [vmem:[#allocation2 + $0xf2] sm:$0xff]
      %v3065 = vld [vmem:[#allocation2 + $0xfa] sm:$0xff]
      %v3066 = vld [vmem:[#allocation2 + $0x10a] sm:$0xff]
      %v3067 = vld [vmem:[#allocation2 + $0x112] sm:$0xff]
      %v3068 = vmax.f32 %v3020, %v3044
      %v3069 = vmax.f32 %v3021, %v3045
      %v3070 = vmax.f32 %v3022, %v3046
      %v3071 = vmax.f32 %v3023, %v3047
      %v3072 = vmax.f32 %v3024, %v3048
      %v3073 = vmax.f32 %v3025, %v3049
      %v3074 = vmax.f32 %v3026, %v3050
      %v3075 = vmax.f32 %v3027, %v3051
      %v3076 = vmax.f32 %v3028, %v3052
      %v3077 = vmax.f32 %v3029, %v3053
      %v3078 = vmax.f32 %v3030, %v3054
      %v3079 = vmax.f32 %v3031, %v3055
      %v3080 = vmax.f32 %v3032, %v3056
      %v3081 = vmax.f32 %v3033, %v3057
      %v3082 = vmax.f32 %v3034, %v3058
      %v3083 = vmax.f32 %v3035, %v3059
      %v3084 = vmax.f32 %v3036, %v3060
      %v3085 = vmax.f32 %v3037, %v3061
      %v3086 = vmax.f32 %v3038, %v3062
      %v3087 = vmax.f32 %v3039, %v3063
      %v3088 = vmax.f32 %v3040, %v3064
      %v3089 = vmax.f32 %v3041, %v3065
      %v3090 = vmax.f32 %v3042, %v3066
      %v3091 = vmax.f32 %v3043, %v3067
      %v3092 = vld [vmem:[#allocation2 + $0x3] sm:$0xff]
      %v3093 = vld [vmem:[#allocation2 + $0xb] sm:$0xff]
      %v3094 = vld [vmem:[#allocation2 + $0x1b] sm:$0xff]
      %v3095 = vld [vmem:[#allocation2 + $0x23] sm:$0xff]
      %v3096 = vld [vmem:[#allocation2 + $0x33] sm:$0xff]
      %v3097 = vld [vmem:[#allocation2 + $0x3b] sm:$0xff]
      %v3098 = vld [vmem:[#allocation2 + $0x4b] sm:$0xff]
      %v3099 = vld [vmem:[#allocation2 + $0x53] sm:$0xff]
      %v3100 = vld [vmem:[#allocation2 + $0x63] sm:$0xff]
      %v3101 = vld [vmem:[#allocation2 + $0x6b] sm:$0xff]
      %v3102 = vld [vmem:[#allocation2 + $0x7b] sm:$0xff]
      %v3103 = vld [vmem:[#allocation2 + $0x83] sm:$0xff]
      %v3104 = vld [vmem:[#allocation2 + $0x93] sm:$0xff]
      %v3105 = vld [vmem:[#allocation2 + $0x9b] sm:$0xff]
      %v3106 = vld [vmem:[#allocation2 + $0xab] sm:$0xff]
      %v3107 = vld [vmem:[#allocation2 + $0xb3] sm:$0xff]
      %v3108 = vld [vmem:[#allocation2 + $0xc3] sm:$0xff]
      %v3109 = vld [vmem:[#allocation2 + $0xcb] sm:$0xff]
      %v3110 = vld [vmem:[#allocation2 + $0xdb] sm:$0xff]
      %v3111 = vld [vmem:[#allocation2 + $0xe3] sm:$0xff]
      %v3112 = vld [vmem:[#allocation2 + $0xf3] sm:$0xff]
      %v3113 = vld [vmem:[#allocation2 + $0xfb] sm:$0xff]
      %v3114 = vld [vmem:[#allocation2 + $0x10b] sm:$0xff]
      %v3115 = vld [vmem:[#allocation2 + $0x113] sm:$0xff]
      %v3116 = vmax.f32 %v3068, %v3092
      %v3117 = vmax.f32 %v3069, %v3093
      %v3118 = vmax.f32 %v3070, %v3094
      %v3119 = vmax.f32 %v3071, %v3095
      %v3120 = vmax.f32 %v3072, %v3096
      %v3121 = vmax.f32 %v3073, %v3097
      %v3122 = vmax.f32 %v3074, %v3098
      %v3123 = vmax.f32 %v3075, %v3099
      %v3124 = vmax.f32 %v3076, %v3100
      %v3125 = vmax.f32 %v3077, %v3101
      %v3126 = vmax.f32 %v3078, %v3102
      %v3127 = vmax.f32 %v3079, %v3103
      %v3128 = vmax.f32 %v3080, %v3104
      %v3129 = vmax.f32 %v3081, %v3105
      %v3130 = vmax.f32 %v3082, %v3106
      %v3131 = vmax.f32 %v3083, %v3107
      %v3132 = vmax.f32 %v3084, %v3108
      %v3133 = vmax.f32 %v3085, %v3109
      %v3134 = vmax.f32 %v3086, %v3110
      %v3135 = vmax.f32 %v3087, %v3111
      %v3136 = vmax.f32 %v3088, %v3112
      %v3137 = vmax.f32 %v3089, %v3113
      %v3138 = vmax.f32 %v3090, %v3114
      %v3139 = vmax.f32 %v3091, %v3115
      %v3140 = vld [vmem:[#allocation2 + $0x4] sm:$0xff]
      %v3141 = vld [vmem:[#allocation2 + $0xc] sm:$0xff]
      %v3142 = vld [vmem:[#allocation2 + $0x1c] sm:$0xff]
      %v3143 = vld [vmem:[#allocation2 + $0x24] sm:$0xff]
      %v3144 = vld [vmem:[#allocation2 + $0x34] sm:$0xff]
      %v3145 = vld [vmem:[#allocation2 + $0x3c] sm:$0xff]
      %v3146 = vld [vmem:[#allocation2 + $0x4c] sm:$0xff]
      %v3147 = vld [vmem:[#allocation2 + $0x54] sm:$0xff]
      %v3148 = vld [vmem:[#allocation2 + $0x64] sm:$0xff]
      %v3149 = vld [vmem:[#allocation2 + $0x6c] sm:$0xff]
      %v3150 = vld [vmem:[#allocation2 + $0x7c] sm:$0xff]
      %v3151 = vld [vmem:[#allocation2 + $0x84] sm:$0xff]
      %v3152 = vld [vmem:[#allocation2 + $0x94] sm:$0xff]
      %v3153 = vld [vmem:[#allocation2 + $0x9c] sm:$0xff]
      %v3154 = vld [vmem:[#allocation2 + $0xac] sm:$0xff]
      %v3155 = vld [vmem:[#allocation2 + $0xb4] sm:$0xff]
      %v3156 = vld [vmem:[#allocation2 + $0xc4] sm:$0xff]
      %v3157 = vld [vmem:[#allocation2 + $0xcc] sm:$0xff]
      %v3158 = vld [vmem:[#allocation2 + $0xdc] sm:$0xff]
      %v3159 = vld [vmem:[#allocation2 + $0xe4] sm:$0xff]
      %v3160 = vld [vmem:[#allocation2 + $0xf4] sm:$0xff]
      %v3161 = vld [vmem:[#allocation2 + $0xfc] sm:$0xff]
      %v3162 = vld [vmem:[#allocation2 + $0x10c] sm:$0xff]
      %v3163 = vld [vmem:[#allocation2 + $0x114] sm:$0xff]
      %v3164 = vmax.f32 %v3116, %v3140
      %v3165 = vmax.f32 %v3117, %v3141
      %v3166 = vmax.f32 %v3118, %v3142
      %v3167 = vmax.f32 %v3119, %v3143
      %v3168 = vmax.f32 %v3120, %v3144
      %v3169 = vmax.f32 %v3121, %v3145
      %v3170 = vmax.f32 %v3122, %v3146
      %v3171 = vmax.f32 %v3123, %v3147
      %v3172 = vmax.f32 %v3124, %v3148
      %v3173 = vmax.f32 %v3125, %v3149
      %v3174 = vmax.f32 %v3126, %v3150
      %v3175 = vmax.f32 %v3127, %v3151
      %v3176 = vmax.f32 %v3128, %v3152
      %v3177 = vmax.f32 %v3129, %v3153
      %v3178 = vmax.f32 %v3130, %v3154
      %v3179 = vmax.f32 %v3131, %v3155
      %v3180 = vmax.f32 %v3132, %v3156
      %v3181 = vmax.f32 %v3133, %v3157
      %v3182 = vmax.f32 %v3134, %v3158
      %v3183 = vmax.f32 %v3135, %v3159
      %v3184 = vmax.f32 %v3136, %v3160
      %v3185 = vmax.f32 %v3137, %v3161
      %v3186 = vmax.f32 %v3138, %v3162
      %v3187 = vmax.f32 %v3139, %v3163
      %v3188 = vmax.f32 %v3164, %v3166
      %v3189 = vmax.f32 %v3165, %v3167
      %v3190 = vmax.f32 %v3166, %v3168
      %v3191 = vmax.f32 %v3167, %v3169
      %v3192 = vmax.f32 %v3168, %v3170
      %v3193 = vmax.f32 %v3169, %v3171
      %v3194 = vmax.f32 %v3170, %v3172
      %v3195 = vmax.f32 %v3171, %v3173
      %v3196 = vmax.f32 %v3172, %v3174
      %v3197 = vmax.f32 %v3173, %v3175
      %v3198 = vmax.f32 %v3174, %v3176
      %v3199 = vmax.f32 %v3175, %v3177
      %v3200 = vmax.f32 %v3176, %v3178
      %v3201 = vmax.f32 %v3177, %v3179
      %v3202 = vmax.f32 %v3178, %v3180
      %v3203 = vmax.f32 %v3179, %v3181
      %v3204 = vmax.f32 %v3188, %v3168
      %v3205 = vmax.f32 %v3189, %v3169
      %v3206 = vmax.f32 %v3190, %v3170
      %v3207 = vmax.f32 %v3191, %v3171
      %v3208 = vmax.f32 %v3192, %v3172
      %v3209 = vmax.f32 %v3193, %v3173
      %v3210 = vmax.f32 %v3194, %v3174
      %v3211 = vmax.f32 %v3195, %v3175
      %v3212 = vmax.f32 %v3196, %v3176
      %v3213 = vmax.f32 %v3197, %v3177
      %v3214 = vmax.f32 %v3198, %v3178
      %v3215 = vmax.f32 %v3199, %v3179
      %v3216 = vmax.f32 %v3200, %v3180
      %v3217 = vmax.f32 %v3201, %v3181
      %v3218 = vmax.f32 %v3202, %v3182
      %v3219 = vmax.f32 %v3203, %v3183
      %v3220 = vmax.f32 %v3204, %v3170
      %v3221 = vmax.f32 %v3205, %v3171
      %v3222 = vmax.f32 %v3206, %v3172
      %v3223 = vmax.f32 %v3207, %v3173
      %v3224 = vmax.f32 %v3208, %v3174
      %v3225 = vmax.f32 %v3209, %v3175
      %v3226 = vmax.f32 %v3210, %v3176
      %v3227 = vmax.f32 %v3211, %v3177
      %v3228 = vmax.f32 %v3212, %v3178
      %v3229 = vmax.f32 %v3213, %v3179
      %v3230 = vmax.f32 %v3214, %v3180
      %v3231 = vmax.f32 %v3215, %v3181
      %v3232 = vmax.f32 %v3216, %v3182
      %v3233 = vmax.f32 %v3217, %v3183
      %v3234 = vmax.f32 %v3218, %v3184
      %v3235 = vmax.f32 %v3219, %v3185
      %v3236 = vmax.f32 %v3220, %v3172
      %v3237 = vmax.f32 %v3221, %v3173
      %v3238 = vmax.f32 %v3222, %v3174
      %v3239 = vmax.f32 %v3223, %v3175
      %v3240 = vmax.f32 %v3224, %v3176
      %v3241 = vmax.f32 %v3225, %v3177
      %v3242 = vmax.f32 %v3226, %v3178
      %v3243 = vmax.f32 %v3227, %v3179
      %v3244 = vmax.f32 %v3228, %v3180
      %v3245 = vmax.f32 %v3229, %v3181
      %v3246 = vmax.f32 %v3230, %v3182
      %v3247 = vmax.f32 %v3231, %v3183
      %v3248 = vmax.f32 %v3232, %v3184
      %v3249 = vmax.f32 %v3233, %v3185
      %v3250 = vmax.f32 %v3234, %v3186
      %v3251 = vmax.f32 %v3235, %v3187
      %v3252 = vld [vmem:[#allocation3] sm:$0xff]
      %v3253 = vld [vmem:[#allocation3 + $0x8] sm:$0xff]
      %v3254 = vld [vmem:[#allocation3 + $0x10] sm:$0xff]
      %v3255 = vld [vmem:[#allocation3 + $0x18] sm:$0xff]
      %v3256 = vld [vmem:[#allocation3 + $0x20] sm:$0xff]
      %v3257 = vld [vmem:[#allocation3 + $0x28] sm:$0xff]
      %v3258 = vld [vmem:[#allocation3 + $0x30] sm:$0xff]
      %v3259 = vld [vmem:[#allocation3 + $0x38] sm:$0xff]
      %v3260 = vld [vmem:[#allocation3 + $0x40] sm:$0xff]
      %v3261 = vld [vmem:[#allocation3 + $0x48] sm:$0xff]
      %v3262 = vld [vmem:[#allocation3 + $0x50] sm:$0xff]
      %v3263 = vld [vmem:[#allocation3 + $0x58] sm:$0xff]
      %v3264 = vld [vmem:[#allocation3 + $0x60] sm:$0xff]
      %v3265 = vld [vmem:[#allocation3 + $0x68] sm:$0xff]
      %v3266 = vld [vmem:[#allocation3 + $0x70] sm:$0xff]
      %v3267 = vld [vmem:[#allocation3 + $0x78] sm:$0xff]
      %s3268 = scalar_lea.vmem %s6, 6
      %v3269 = vld [vmem:[%s3268] sm:$0x3]
      %v3271 = vsel %vm1263, %v3236, 0
      %v3274 = vsel %vm1263, %v3237, 0
      %v3277 = vsel %vm1263, %v3238, 0
      %v3280 = vsel %vm1263, %v3239, 0
      %v3283 = vsel %vm1263, %v3240, 0
      %v3286 = vsel %vm1263, %v3241, 0
      %v3289 = vsel %vm1263, %v3242, 0
      %v3292 = vsel %vm1263, %v3243, 0
      %v3295 = vsel %vm1263, %v3244, 0
      %v3298 = vsel %vm1263, %v3245, 0
      %v3301 = vsel %vm1263, %v3246, 0
      %v3304 = vsel %vm1263, %v3247, 0
      %v3307 = vsel %vm1263, %v3248, 0
      %v3310 = vsel %vm1263, %v3249, 0
      %v3313 = vsel %vm1263, %v3250, 0
      %v3316 = vsel %vm1263, %v3251, 0
      %v3319 = vsel %vm1386, %v3269, 0
      %3321 = vmatprep.subr.mxu0 0.0
      %3322 = vmatpush1.msra.mxu0 %v3319
      %3323 = vmatprep.subr.mxu0 0.0
      %3324 = vmatpush1.msra.mxu0 0.0
      %3325 = vmatprep.subr.mxu0 0.0
      %3326 = vmatpush1.msra.mxu0 0.0
      %3327 = vmatprep.subr.mxu0 0.0
      %3328 = vmatpush1.msra.mxu0 0.0
      %3329 = vmatprep.subr.mxu0 0.0
      %3330 = vmatpush1.msra.mxu0 0.0
      %3331 = vmatprep.subr.mxu0 0.0
      %3332 = vmatpush1.msra.mxu0 0.0
      %3333 = vmatprep.subr.mxu0 0.0
      %3334 = vmatpush1.msra.mxu0 0.0
      %3335 = vmatprep.subr.mxu0 0.0
      %3336 = vmatpush1.msra.mxu0 0.0
      %3337 = vmatprep.subr.mxu0 0.0
      %3338 = vmatpush1.msra.mxu0 0.0
      %3339 = vmatprep.subr.mxu0 0.0
      %3340 = vmatpush1.msra.mxu0 0.0
      %3341 = vmatprep.subr.mxu0 0.0
      %3342 = vmatpush1.msra.mxu0 0.0
      %3343 = vmatprep.subr.mxu0 0.0
      %3344 = vmatpush1.msra.mxu0 0.0
      %3345 = vmatprep.subr.mxu0 0.0
      %3346 = vmatpush1.msra.mxu0 0.0
      %3347 = vmatprep.subr.mxu0 0.0
      %3348 = vmatpush1.msra.mxu0 0.0
      %3349 = vmatprep.subr.mxu0 0.0
      %3350 = vmatpush1.msra.mxu0 0.0
      %3351 = vmatprep.subr.mxu0 0.0
      %3352 = vmatpush1.msra.mxu0 0.0
      %3353 = vmatprep.subr.mxu0 0.0
      %3354 = vmatpush1.msra.mxu0 0.0
      %3355 = vmatprep.subr.mxu0 0.0
      %3356 = vmatpush1.msra.mxu0 0.0
      %3357 = vmatprep.subr.mxu0 0.0
      %3358 = vmatpush1.msra.mxu0 0.0
      %3359 = vmatprep.subr.mxu0 0.0
      %3360 = vmatpush1.msra.mxu0 0.0
      %3361 = vmatprep.subr.mxu0 0.0
      %3362 = vmatpush1.msra.mxu0 0.0
      %3363 = vmatprep.subr.mxu0 0.0
      %3364 = vmatpush1.msra.mxu0 0.0
      %3365 = vmatprep.subr.mxu0 0.0
      %3366 = vmatpush1.msra.mxu0 0.0
      %3367 = vmatprep.subr.mxu0 0.0
      %3368 = vmatpush1.msra.mxu0 0.0
      %3369 = vmatprep.subr.mxu0 0.0
      %3370 = vmatpush1.msra.mxu0 0.0
      %3371 = vmatprep.subr.mxu0 0.0
      %3372 = vmatpush1.msra.mxu0 0.0
      %3373 = vmatprep.subr.mxu0 0.0
      %3374 = vmatpush1.msra.mxu0 0.0
      %3375 = vmatprep.subr.mxu0 0.0
      %3376 = vmatpush1.msra.mxu0 0.0
      %3377 = vmatprep.subr.mxu0 0.0
      %3378 = vmatpush1.msra.mxu0 0.0
      %3379 = vmatprep.subr.mxu0 0.0
      %3380 = vmatpush1.msra.mxu0 0.0
      %3381 = vmatprep.subr.mxu0 0.0
      %3382 = vmatpush1.msra.mxu0 0.0
      %3383 = vmatprep.subr.mxu0 0.0
      %3384 = vmatpush1.msra.mxu0 0.0
      %3385 = vmatprep.mubr.f32.mxu0 0.0
      %3386 = vmatmul.mubr.f32.gmra.mrb[0].mxu0 %v3271
      %v3387 = vpop.f32.mrb[0].mxu0
      %v3388 = vadd.f32 0.0, %v3387
      %v3389 = vpop.f32.mrb[0].mxu0
      %3390 = vmatprep.mubr.f32.mxu0 0.0
      %3391 = vmatmul.mubr.f32.gmra.mrb[0].mxu0 %v3274
      %v3392 = vpop.f32.mrb[0].mxu0
      %v3393 = vadd.f32 0.0, %v3392
      %v3394 = vpop.f32.mrb[0].mxu0
      %3395 = vmatprep.mubr.f32.mxu0 0.0
      %3396 = vmatmul.mubr.f32.gmra.mrb[0].mxu0 %v3277
      %v3397 = vpop.f32.mrb[0].mxu0
      %v3398 = vadd.f32 0.0, %v3397
      %v3399 = vpop.f32.mrb[0].mxu0
      %3400 = vmatprep.mubr.f32.mxu0 0.0
      %3401 = vmatmul.mubr.f32.gmra.mrb[0].mxu0 %v3280
      %v3402 = vpop.f32.mrb[0].mxu0
      %v3403 = vadd.f32 0.0, %v3402
      %v3404 = vpop.f32.mrb[0].mxu0
      %3405 = vmatprep.mubr.f32.mxu0 0.0
      %3406 = vmatmul.mubr.f32.gmra.mrb[0].mxu0 %v3283
      %v3407 = vpop.f32.mrb[0].mxu0
      %v3408 = vadd.f32 0.0, %v3407
      %v3409 = vpop.f32.mrb[0].mxu0
      %3410 = vmatprep.mubr.f32.mxu0 0.0
      %3411 = vmatmul.mubr.f32.gmra.mrb[0].mxu0 %v3286
      %v3412 = vpop.f32.mrb[0].mxu0
      %v3413 = vadd.f32 0.0, %v3412
      %v3414 = vpop.f32.mrb[0].mxu0
      %3415 = vmatprep.mubr.f32.mxu0 0.0
      %3416 = vmatmul.mubr.f32.gmra.mrb[0].mxu0 %v3289
      %v3417 = vpop.f32.mrb[0].mxu0
      %v3418 = vadd.f32 0.0, %v3417
      %v3419 = vpop.f32.mrb[0].mxu0
      %3420 = vmatprep.mubr.f32.mxu0 0.0
      %3421 = vmatmul.mubr.f32.gmra.mrb[0].mxu0 %v3292
      %v3422 = vpop.f32.mrb[0].mxu0
      %v3423 = vadd.f32 0.0, %v3422
      %v3424 = vpop.f32.mrb[0].mxu0
      %3425 = vmatprep.mubr.f32.mxu0 0.0
      %3426 = vmatmul.mubr.f32.gmra.mrb[0].mxu0 %v3295
      %v3427 = vpop.f32.mrb[0].mxu0
      %v3428 = vadd.f32 0.0, %v3427
      %v3429 = vpop.f32.mrb[0].mxu0
      %3430 = vmatprep.mubr.f32.mxu0 0.0
      %3431 = vmatmul.mubr.f32.gmra.mrb[0].mxu0 %v3298
      %v3432 = vpop.f32.mrb[0].mxu0
      %v3433 = vadd.f32 0.0, %v3432
      %v3434 = vpop.f32.mrb[0].mxu0
      %3435 = vmatprep.mubr.f32.mxu0 0.0
      %3436 = vmatmul.mubr.f32.gmra.mrb[0].mxu0 %v3301
      %v3437 = vpop.f32.mrb[0].mxu0
      %v3438 = vadd.f32 0.0, %v3437
      %v3439 = vpop.f32.mrb[0].mxu0
      %3440 = vmatprep.mubr.f32.mxu0 0.0
      %3441 = vmatmul.mubr.f32.gmra.mrb[0].mxu0 %v3304
      %v3442 = vpop.f32.mrb[0].mxu0
      %v3443 = vadd.f32 0.0, %v3442
      %v3444 = vpop.f32.mrb[0].mxu0
      %3445 = vmatprep.mubr.f32.mxu0 0.0
      %3446 = vmatmul.mubr.f32.gmra.mrb[0].mxu0 %v3307
      %v3447 = vpop.f32.mrb[0].mxu0
      %v3448 = vadd.f32 0.0, %v3447
      %v3449 = vpop.f32.mrb[0].mxu0
      %3450 = vmatprep.mubr.f32.mxu0 0.0
      %3451 = vmatmul.mubr.f32.gmra.mrb[0].mxu0 %v3310
      %v3452 = vpop.f32.mrb[0].mxu0
      %v3453 = vadd.f32 0.0, %v3452
      %v3454 = vpop.f32.mrb[0].mxu0
      %3455 = vmatprep.mubr.f32.mxu0 0.0
      %3456 = vmatmul.mubr.f32.gmra.mrb[0].mxu0 %v3313
      %v3457 = vpop.f32.mrb[0].mxu0
      %v3458 = vadd.f32 0.0, %v3457
      %v3459 = vpop.f32.mrb[0].mxu0
      %3460 = vmatprep.mubr.f32.mxu0 0.0
      %3461 = vmatmul.mubr.f32.gmra.mrb[0].mxu0 %v3316
      %v3462 = vpop.f32.mrb[0].mxu0
      %v3463 = vadd.f32 0.0, %v3462
      %v3464 = vpop.f32.mrb[0].mxu0
      %3465 = vdwg.mxu0
      %v3466 = vadd.f32 %v3252, %v3388
      %v3467 = vadd.f32 %v3253, %v3393
      %v3468 = vadd.f32 %v3254, %v3398
      %v3469 = vadd.f32 %v3255, %v3403
      %v3470 = vadd.f32 %v3256, %v3408
      %v3471 = vadd.f32 %v3257, %v3413
      %v3472 = vadd.f32 %v3258, %v3418
      %v3473 = vadd.f32 %v3259, %v3423
      %v3474 = vadd.f32 %v3260, %v3428
      %v3475 = vadd.f32 %v3261, %v3433
      %v3476 = vadd.f32 %v3262, %v3438
      %v3477 = vadd.f32 %v3263, %v3443
      %v3478 = vadd.f32 %v3264, %v3448
      %v3479 = vadd.f32 %v3265, %v3453
      %v3480 = vadd.f32 %v3266, %v3458
      %v3481 = vadd.f32 %v3267, %v3463
      %3482 = vst.msk [vmem:[#allocation3] sm:$0xff] %vm1535, %v3466
      %3483 = vst.msk [vmem:[#allocation3 + $0x8] sm:$0xff] %vm1535, %v3467
      %3484 = vst.msk [vmem:[#allocation3 + $0x10] sm:$0xff] %vm1535, %v3468
      %3485 = vst.msk [vmem:[#allocation3 + $0x18] sm:$0xff] %vm1535, %v3469
      %3486 = vst.msk [vmem:[#allocation3 + $0x20] sm:$0xff] %vm1535, %v3470
      %3487 = vst.msk [vmem:[#allocation3 + $0x28] sm:$0xff] %vm1535, %v3471
      %3488 = vst.msk [vmem:[#allocation3 + $0x30] sm:$0xff] %vm1535, %v3472
      %3489 = vst.msk [vmem:[#allocation3 + $0x38] sm:$0xff] %vm1535, %v3473
      %3490 = vst.msk [vmem:[#allocation3 + $0x40] sm:$0xff] %vm1535, %v3474
      %3491 = vst.msk [vmem:[#allocation3 + $0x48] sm:$0xff] %vm1535, %v3475
      %3492 = vst.msk [vmem:[#allocation3 + $0x50] sm:$0xff] %vm1535, %v3476
      %3493 = vst.msk [vmem:[#allocation3 + $0x58] sm:$0xff] %vm1535, %v3477
      %3494 = vst.msk [vmem:[#allocation3 + $0x60] sm:$0xff] %vm1535, %v3478
      %3495 = vst.msk [vmem:[#allocation3 + $0x68] sm:$0xff] %vm1535, %v3479
      %3496 = vst.msk [vmem:[#allocation3 + $0x70] sm:$0xff] %vm1535, %v3480
      %3497 = vst.msk [vmem:[#allocation3 + $0x78] sm:$0xff] %vm1535, %v3481
      %v3498 = vld [vmem:[#allocation3] sm:$0xff]
      %v3499 = vld [vmem:[#allocation3 + $0x8] sm:$0xff]
      %v3500 = vld [vmem:[#allocation3 + $0x10] sm:$0xff]
      %v3501 = vld [vmem:[#allocation3 + $0x18] sm:$0xff]
      %v3502 = vld [vmem:[#allocation3 + $0x20] sm:$0xff]
      %v3503 = vld [vmem:[#allocation3 + $0x28] sm:$0xff]
      %v3504 = vld [vmem:[#allocation3 + $0x30] sm:$0xff]
      %v3505 = vld [vmem:[#allocation3 + $0x38] sm:$0xff]
      %v3506 = vld [vmem:[#allocation3 + $0x40] sm:$0xff]
      %v3507 = vld [vmem:[#allocation3 + $0x48] sm:$0xff]
      %v3508 = vld [vmem:[#allocation3 + $0x50] sm:$0xff]
      %v3509 = vld [vmem:[#allocation3 + $0x58] sm:$0xff]
      %v3510 = vld [vmem:[#allocation3 + $0x60] sm:$0xff]
      %v3511 = vld [vmem:[#allocation3 + $0x68] sm:$0xff]
      %v3512 = vld [vmem:[#allocation3 + $0x70] sm:$0xff]
      %v3513 = vld [vmem:[#allocation3 + $0x78] sm:$0xff]
      %v3514 = vld [vmem:[%s7] sm:$0x1]
      %v3516 = vlaneseq
      %v3517 = vshrl.u32 %v3516, 7
      %v3518 = vsub.s32 0, %v3517
      %v3519 = vrot.slane %v3514, %v3518
      %v3521 = vmul.f32 %v3498, %v3519
      %v3522 = vmul.f32 %v3499, %v3519
      %v3523 = vmul.f32 %v3500, %v3519
      %v3524 = vmul.f32 %v3501, %v3519
      %v3525 = vmul.f32 %v3502, %v3519
      %v3526 = vmul.f32 %v3503, %v3519
      %v3527 = vmul.f32 %v3504, %v3519
      %v3528 = vmul.f32 %v3505, %v3519
      %v3529 = vmul.f32 %v3506, %v3519
      %v3530 = vmul.f32 %v3507, %v3519
      %v3531 = vmul.f32 %v3508, %v3519
      %v3532 = vmul.f32 %v3509, %v3519
      %v3533 = vmul.f32 %v3510, %v3519
      %v3534 = vmul.f32 %v3511, %v3519
      %v3535 = vmul.f32 %v3512, %v3519
      %v3536 = vmul.f32 %v3513, %v3519
      %v3537 = vld [vmem:[%s8] sm:$0x1]
      %v3539 = vlaneseq
      %v3540 = vshrl.u32 %v3539, 7
      %v3541 = vsub.s32 0, %v3540
      %v3542 = vrot.slane %v3537, %v3541
      %v3544 = vadd.f32 %v3521, %v3542
      %v3545 = vadd.f32 %v3522, %v3542
      %v3546 = vadd.f32 %v3523, %v3542
      %v3547 = vadd.f32 %v3524, %v3542
      %v3548 = vadd.f32 %v3525, %v3542
      %v3549 = vadd.f32 %v3526, %v3542
      %v3550 = vadd.f32 %v3527, %v3542
      %v3551 = vadd.f32 %v3528, %v3542
      %v3552 = vadd.f32 %v3529, %v3542
      %v3553 = vadd.f32 %v3530, %v3542
      %v3554 = vadd.f32 %v3531, %v3542
      %v3555 = vadd.f32 %v3532, %v3542
      %v3556 = vadd.f32 %v3533, %v3542
      %v3557 = vadd.f32 %v3534, %v3542
      %v3558 = vadd.f32 %v3535, %v3542
      %v3559 = vadd.f32 %v3536, %v3542
      %v3560 = vmul.f32 %v3544, 0.5
      %v3561 = vmul.f32 %v3545, 0.5
      %v3562 = vmul.f32 %v3546, 0.5
      %v3563 = vmul.f32 %v3547, 0.5
      %v3564 = vmul.f32 %v3548, 0.5
      %v3565 = vmul.f32 %v3549, 0.5
      %v3566 = vmul.f32 %v3550, 0.5
      %v3567 = vmul.f32 %v3551, 0.5
      %v3568 = vmul.f32 %v3552, 0.5
      %v3569 = vmul.f32 %v3553, 0.5
      %v3570 = vmul.f32 %v3554, 0.5
      %v3571 = vmul.f32 %v3555, 0.5
      %v3572 = vmul.f32 %v3556, 0.5
      %v3573 = vmul.f32 %v3557, 0.5
      %v3574 = vmul.f32 %v3558, 0.5
      %v3575 = vmul.f32 %v3559, 0.5
      %v3576 = vtanh.pop %v3560
      %v3577 = vtanh.pop %v3561
      %v3578 = vtanh.pop %v3562
      %v3579 = vtanh.pop %v3563
      %v3580 = vtanh.pop %v3564
      %v3581 = vtanh.pop %v3565
      %v3582 = vtanh.pop %v3566
      %v3583 = vtanh.pop %v3567
      %v3584 = vtanh.pop %v3568
      %v3585 = vtanh.pop %v3569
      %v3586 = vtanh.pop %v3570
      %v3587 = vtanh.pop %v3571
      %v3588 = vtanh.pop %v3572
      %v3589 = vtanh.pop %v3573
      %v3590 = vtanh.pop %v3574
      %v3591 = vtanh.pop %v3575
      %v3592 = vadd.f32 %v3576, 1.0
      %v3593 = vadd.f32 %v3577, 1.0
      %v3594 = vadd.f32 %v3578, 1.0
      %v3595 = vadd.f32 %v3579, 1.0
      %v3596 = vadd.f32 %v3580, 1.0
      %v3597 = vadd.f32 %v3581, 1.0
      %v3598 = vadd.f32 %v3582, 1.0
      %v3599 = vadd.f32 %v3583, 1.0
      %v3600 = vadd.f32 %v3584, 1.0
      %v3601 = vadd.f32 %v3585, 1.0
      %v3602 = vadd.f32 %v3586, 1.0
      %v3603 = vadd.f32 %v3587, 1.0
      %v3604 = vadd.f32 %v3588, 1.0
      %v3605 = vadd.f32 %v3589, 1.0
      %v3606 = vadd.f32 %v3590, 1.0
      %v3607 = vadd.f32 %v3591, 1.0
      %v3608 = vmul.f32 %v3592, 0.5
      %v3609 = vmul.f32 %v3593, 0.5
      %v3610 = vmul.f32 %v3594, 0.5
      %v3611 = vmul.f32 %v3595, 0.5
      %v3612 = vmul.f32 %v3596, 0.5
      %v3613 = vmul.f32 %v3597, 0.5
      %v3614 = vmul.f32 %v3598, 0.5
      %v3615 = vmul.f32 %v3599, 0.5
      %v3616 = vmul.f32 %v3600, 0.5
      %v3617 = vmul.f32 %v3601, 0.5
      %v3618 = vmul.f32 %v3602, 0.5
      %v3619 = vmul.f32 %v3603, 0.5
      %v3620 = vmul.f32 %v3604, 0.5
      %v3621 = vmul.f32 %v3605, 0.5
      %v3622 = vmul.f32 %v3606, 0.5
      %v3623 = vmul.f32 %v3607, 0.5
      %v3624 = vmul.f32 %v3544, %v3608
      %v3625 = vmul.f32 %v3545, %v3609
      %v3626 = vmul.f32 %v3546, %v3610
      %v3627 = vmul.f32 %v3547, %v3611
      %v3628 = vmul.f32 %v3548, %v3612
      %v3629 = vmul.f32 %v3549, %v3613
      %v3630 = vmul.f32 %v3550, %v3614
      %v3631 = vmul.f32 %v3551, %v3615
      %v3632 = vmul.f32 %v3552, %v3616
      %v3633 = vmul.f32 %v3553, %v3617
      %v3634 = vmul.f32 %v3554, %v3618
      %v3635 = vmul.f32 %v3555, %v3619
      %v3636 = vmul.f32 %v3556, %v3620
      %v3637 = vmul.f32 %v3557, %v3621
      %v3638 = vmul.f32 %v3558, %v3622
      %v3639 = vmul.f32 %v3559, %v3623
      %3640 = vst.msk [vmem:[%s495] sm:$0xff] %vm1535, %v3624
      %3641 = vst.msk [vmem:[%s495 + $0x8] sm:$0xff] %vm1535, %v3625
      %3642 = vst.msk [vmem:[%s495 + $0x10] sm:$0xff] %vm1535, %v3626
      %3643 = vst.msk [vmem:[%s495 + $0x18] sm:$0xff] %vm1535, %v3627
      %3644 = vst.msk [vmem:[%s495 + $0x20] sm:$0xff] %vm1535, %v3628
      %3645 = vst.msk [vmem:[%s495 + $0x28] sm:$0xff] %vm1535, %v3629
      %3646 = vst.msk [vmem:[%s495 + $0x30] sm:$0xff] %vm1535, %v3630
      %3647 = vst.msk [vmem:[%s495 + $0x38] sm:$0xff] %vm1535, %v3631
      %3648 = vst.msk [vmem:[%s495 + $0x40] sm:$0xff] %vm1535, %v3632
      %3649 = vst.msk [vmem:[%s495 + $0x48] sm:$0xff] %vm1535, %v3633
      %3650 = vst.msk [vmem:[%s495 + $0x50] sm:$0xff] %vm1535, %v3634
      %3651 = vst.msk [vmem:[%s495 + $0x58] sm:$0xff] %vm1535, %v3635
      %3652 = vst.msk [vmem:[%s495 + $0x60] sm:$0xff] %vm1535, %v3636
      %3653 = vst.msk [vmem:[%s495 + $0x68] sm:$0xff] %vm1535, %v3637
      %3654 = vst.msk [vmem:[%s495 + $0x70] sm:$0xff] %vm1535, %v3638
      %3655 = vst.msk [vmem:[%s495 + $0x78] sm:$0xff] %vm1535, %v3639
      %s3656 = smul.u32 8, %s25
      %p3657 = scmp.lt.s32.totalorder %s24, 1
      %s3658 = scalar_select %p3657, %s24, 1
      %p3659 = scmp.lt.s32.totalorder %s3656, 15
      %s3660 = scalar_select %p3659, %s3656, 15
      %s3661 = smul.addr %s3660, 2
      %s3662 = smul.addr %s3658, 32
      %s3663 = sadd.s32 %s3661, %s3662
      %s3664 = smul.addr %s3663, 8
      %s3665 = scalar_lea.vmem %s9, %s3664
      // Predicated region
      $region65: #{tpu_custom_call.1} parent=55 // pred_check
        %p3666 = pneg %p274
      $region66: #{tpu_custom_call.1} parent=55 // pred_check_branch
        %3668 = sbr.rel (%p3666) target = $region68
      $region67: #{tpu_custom_call.1} parent=55 // pred_region
        %s3669 = smul.u32 8, %s25
      $region68: #{tpu_custom_call.1} parent=55 // pred_fallthru
        _
    $region56: #{tpu_custom_call.1} parent=5 // pred_fallthru
      _
    %p3670 = scmp.le.s32.totalorder 2, %s15
    // Predicated region
    $region69: #{tpu_custom_call.1} parent=5 // pred_check
      %p3671 = pneg %p3670
    $region70: #{tpu_custom_call.1} parent=5 // pred_check_branch
      %3673 = sbr.rel (%p3671) target = $region72
    $region71: #{tpu_custom_call.1} parent=5 // pred_region
      %s3674 = ssub.s32 %s15, 2
      // Predicated region
      $region73: #{tpu_custom_call.1} parent=71 // pred_check
        %p3675 = pneg %p280
      $region74: #{tpu_custom_call.1} parent=71 // pred_check_branch
        %3677 = sbr.rel (%p3675) target = $region76
      $region75: #{tpu_custom_call.1} parent=71 // pred_region
        %s3678 = smul.u32 8, %s27
        %p3679 = scmp.lt.s32.totalorder %s26, 1
        %s3680 = scalar_select %p3679, %s26, 1
        %p3681 = scmp.lt.s32.totalorder %s3678, 15
        %s3682 = scalar_select %p3681, %s3678, 15
        %s3683 = smul.addr %s3682, 2
        %s3684 = smul.addr %s3680, 32
        %s3685 = sadd.s32 %s3683, %s3684
        %s3686 = smul.addr %s3685, 8
        %s3687 = scalar_lea.vmem %s9, %s3686
      $region76: #{tpu_custom_call.1} parent=71 // pred_fallthru
        _
    $region72: #{tpu_custom_call.1} parent=5 // pred_fallthru
      _
  $region6: #{tpu_custom_call.1} parent=0 // loop_footer
    %s19 = sadd.s32 1, %s15
  $region7: #{tpu_custom_call.1} parent=0 // loop_footer_branch
    %14 = sbr.rel target = $region3
  $region8: #{tpu_custom_call.1} parent=0 // loop_exit
    _

// kernel: tpu_custom_call.1
$region0: #{tpu_custom_call.1}
  #allocation0 [shape = 'u32[]', space=smem, size = 0x4, offset = 0x4, fixed_abs, tag = 'smem constant byte address 0x4 - core index']
  #allocation1 [shape = 'u32[144,128]{1,0:T(1,128)}', space=vmem, size = 0x12000, scoped, tag = 'internal scratch']
  #allocation2 [shape = 'f32[20,20,2]{2,1,0:T(8,128)}', space=vmem, size = 0x3c000, scoped, tag = 'scratch operand']
  #allocation3 [shape = 'f32[128,8]{1,0:T(8,128)}', space=vmem, size = 0x10000, scoped, tag = 'scratch operand']
  %s0 = inlined_call_operand.vmem [shape: f32[2,16,16,4], index: 0, kind: input, shape index: {}]
  %s1 = inlined_call_operand.vmem [shape: f32[2,16,16,4], index: 1, kind: input, shape index: {}]
  %s2 = inlined_call_operand.vmem [shape: f32[2,16,16,4], index: 2, kind: input, shape index: {}]
  %s3 = inlined_call_operand.vmem [shape: f32[4,2], index: 3, kind: input, shape index: {}]
  %s4 = inlined_call_operand.vmem [shape: f32[1,2], index: 4, kind: input, shape index: {}]
  %s5 = inlined_call_operand.vmem [shape: f32[1,2], index: 5, kind: input, shape index: {}]
  %s6 = inlined_call_operand.vmem [shape: f32[4,2,8], index: 6, kind: input, shape index: {}]
  %s7 = inlined_call_operand.vmem [shape: f32[1,8], index: 7, kind: input, shape index: {}]
  %s8 = inlined_call_operand.vmem [shape: f32[1,8], index: 8, kind: input, shape index: {}]
  %s9 = inlined_call_operand.vmem [shape: f32[2,16,16,8], index: 9, kind: output, shape index: {}]
  %s10 = sld [smem:[#allocation0]]
  $region77: #{tpu_custom_call.1} parent=0
    _
  %s12 = ssub.s32 1, %s10
  %s13 = scalar_select 0, %s12, %s10
  loop: start=0, step=1, limit=6
  $region2: #{tpu_custom_call.1} parent=0 // loop_pre_header
    _
  $region3: #{tpu_custom_call.1} parent=0 // loop_header
    %s15 = sphi 0, %s19
    %p16 = scmp.ge.s32.totalorder %s15, 6
    %s22 = sphi 0, %s34
    %s23 = sphi 0, %s30
    %s24 = sphi 0, %s22
    %s25 = sphi 0, %s23
    %s26 = sphi 0, %s24
    %s27 = sphi 0, %s25
    %s39 = sphi 0, %s41
    %s42 = sphi 0, %s39
    %s43 = sphi 0, %s42
    %s59 = sphi 0, %s43
    %s73 = sphi 0, %s75
    %s76 = sphi 0, %s73
    %s77 = sphi 0, %s76
    %s93 = sphi 0, %s77
    %s107 = sphi 0, %s109
    %s110 = sphi 0, %s107
    %s111 = sphi 0, %s110
    %s127 = sphi 0, %s111
    %s131 = sphi 0, %s131
    %s133 = sphi 0, %s131
    %s134 = sphi 0, %s133
    %s148 = sphi 0, %s134
    %s152 = sphi 0, %s152
    %s154 = sphi 0, %s152
    %s155 = sphi 0, %s154
    %s169 = sphi 0, %s155
    %s173 = sphi 0, %s173
    %s175 = sphi 0, %s173
    %s176 = sphi 0, %s175
    %s190 = sphi 0, %s176
    %s194 = sphi 0, %s194
    %s196 = sphi 0, %s194
    %s197 = sphi 0, %s196
    %s211 = sphi 0, %s197
    %s215 = sphi 0, %s215
    %s217 = sphi 0, %s215
    %s218 = sphi 0, %s217
    %s232 = sphi 0, %s218
    %s236 = sphi 0, %s236
    %s238 = sphi 0, %s236
    %s239 = sphi 0, %s238
    %s253 = sphi 0, %s239
    %s261 = sphi 0, %s263
    %s264 = sphi 0, %s261
    %s265 = sphi 0, %s264
    %s281 = sphi 0, %s265
  $region4: #{tpu_custom_call.1} parent=0 // loop_header_branch
    %18 = sbr.rel (%p16) target = $region8
  $region5: #{tpu_custom_call.1} parent=0 // loop_body
    %s20 = ssub.s32 %s15, 1
    %s21 = ssub.s32 %s15, 2
    %s28 = sadd.s32 1, %s23
    %p29 = scmp.ge.s32.totalorder %s28, 2
    %s30 = scalar_select %p29, 0, %s28
    %s31 = sadd.s32 1, %s22
    %s32 = scalar_select %p29, %s31, %s22
    %p33 = scmp.ge.s32.totalorder %s32, 2
    %s34 = scalar_select %p33, 0, %s32
    %s35 = ssub.s32 %s22, %s34
    %s36 = ssub.s32 %s23, %s30
    %s37 = sor.u32 %s35, %s36
    %p38 = scmp.eq.s32.totalorder %s37, 0
    %s40 = sadd.s32 %s39, 1
    %s41 = scalar_select %p38, %s39, %s40
    %p44 = pneg %p38
    %p45 = scmp.eq.s32.totalorder %s15, 3
    %p46 = por %p44, %p45
    %p47 = scmp.ne.s32.totalorder %s39, %s42
    %p48 = scmp.eq.s32.totalorder %s15, 0
    %p49 = por %p47, %p48
    %p50 = scmp.ne.s32.totalorder %s39, %s42
    %p51 = scmp.eq.s32.totalorder %s20, 3
    %p52 = por %p50, %p51
    %p53 = scmp.ne.s32.totalorder %s42, %s43
    %p54 = scmp.eq.s32.totalorder %s20, 0
    %p55 = por %p53, %p54
    %p56 = scmp.ne.s32.totalorder %s42, %s43
    %p57 = scmp.eq.s32.totalorder %s21, 3
    %p58 = por %p56, %p57
    %p60 = scmp.ne.s32.totalorder %s43, %s59
    %p61 = scmp.eq.s32.totalorder %s21, 0
    %p62 = por %p60, %p61
    %s63 = ssub.s32 %s23, 1
    %p64 = scmp.gt.s32.totalorder %s63, 0
    %s65 = scalar_select %p64, %s63, 0
    %s66 = ssub.s32 %s30, 1
    %p67 = scmp.gt.s32.totalorder %s66, 0
    %s68 = scalar_select %p67, %s66, 0
    %s69 = ssub.s32 %s22, %s34
    %s70 = ssub.s32 %s65, %s68
    %s71 = sor.u32 %s69, %s70
    %p72 = scmp.eq.s32.totalorder %s71, 0
    %s74 = sadd.s32 %s73, 1
    %s75 = scalar_select %p72, %s73, %s74
    %p78 = pneg %p72
    %p79 = scmp.eq.s32.totalorder %s15, 3
    %p80 = por %p78, %p79
    %p81 = scmp.ne.s32.totalorder %s73, %s76
    %p82 = scmp.eq.s32.totalorder %s15, 0
    %p83 = por %p81, %p82
    %p84 = scmp.ne.s32.totalorder %s73, %s76
    %p85 = scmp.eq.s32.totalorder %s20, 3
    %p86 = por %p84, %p85
    %p87 = scmp.ne.s32.totalorder %s76, %s77
    %p88 = scmp.eq.s32.totalorder %s20, 0
    %p89 = por %p87, %p88
    %p90 = scmp.ne.s32.totalorder %s76, %s77
    %p91 = scmp.eq.s32.totalorder %s21, 3
    %p92 = por %p90, %p91
    %p94 = scmp.ne.s32.totalorder %s77, %s93
    %p95 = scmp.eq.s32.totalorder %s21, 0
    %p96 = por %p94, %p95
    %s97 = sadd.s32 %s23, 1
    %p98 = scmp.lt.s32.totalorder %s97, 1
    %s99 = scalar_select %p98, %s97, 1
    %s100 = sadd.s32 %s30, 1
    %p101 = scmp.lt.s32.totalorder %s100, 1
    %s102 = scalar_select %p101, %s100, 1
    %s103 = ssub.s32 %s22, %s34
    %s104 = ssub.s32 %s99, %s102
    %s105 = sor.u32 %s103, %s104
    %p106 = scmp.eq.s32.totalorder %s105, 0
    %s108 = sadd.s32 %s107, 1
    %s109 = scalar_select %p106, %s107, %s108
    %p112 = pneg %p106
    %p113 = scmp.eq.s32.totalorder %s15, 3
    %p114 = por %p112, %p113
    %p115 = scmp.ne.s32.totalorder %s107, %s110
    %p116 = scmp.eq.s32.totalorder %s15, 0
    %p117 = por %p115, %p116
    %p118 = scmp.ne.s32.totalorder %s107, %s110
    %p119 = scmp.eq.s32.totalorder %s20, 3
    %p120 = por %p118, %p119
    %p121 = scmp.ne.s32.totalorder %s110, %s111
    %p122 = scmp.eq.s32.totalorder %s20, 0
    %p123 = por %p121, %p122
    %p124 = scmp.ne.s32.totalorder %s110, %s111
    %p125 = scmp.eq.s32.totalorder %s21, 3
    %p126 = por %p124, %p125
    %p128 = scmp.ne.s32.totalorder %s111, %s127
    %p129 = scmp.eq.s32.totalorder %s21, 0
    %p130 = por %p128, %p129
    %s132 = sadd.s32 %s131, 1
    %p135 = scmp.eq.s32.totalorder %s15, 3
    %p136 = scmp.ne.s32.totalorder %s131, %s133
    %p137 = scmp.eq.s32.totalorder %s15, 0
    %p138 = por %p136, %p137
    %p139 = scmp.ne.s32.totalorder %s131, %s133
    %p140 = scmp.eq.s32.totalorder %s20, 3
    %p141 = por %p139, %p140
    %p142 = scmp.ne.s32.totalorder %s133, %s134
    %p143 = scmp.eq.s32.totalorder %s20, 0
    %p144 = por %p142, %p143
    %p145 = scmp.ne.s32.totalorder %s133, %s134
    %p146 = scmp.eq.s32.totalorder %s21, 3
    %p147 = por %p145, %p146
    %p149 = scmp.ne.s32.totalorder %s134, %s148
    %p150 = scmp.eq.s32.totalorder %s21, 0
    %p151 = por %p149, %p150
    %s153 = sadd.s32 %s152, 1
    %p156 = scmp.eq.s32.totalorder %s15, 3
    %p157 = scmp.ne.s32.totalorder %s152, %s154
    %p158 = scmp.eq.s32.totalorder %s15, 0
    %p159 = por %p157, %p158
    %p160 = scmp.ne.s32.totalorder %s152, %s154
    %p161 = scmp.eq.s32.totalorder %s20, 3
    %p162 = por %p160, %p161
    %p163 = scmp.ne.s32.totalorder %s154, %s155
    %p164 = scmp.eq.s32.totalorder %s20, 0
    %p165 = por %p163, %p164
    %p166 = scmp.ne.s32.totalorder %s154, %s155
    %p167 = scmp.eq.s32.totalorder %s21, 3
    %p168 = por %p166, %p167
    %p170 = scmp.ne.s32.totalorder %s155, %s169
    %p171 = scmp.eq.s32.totalorder %s21, 0
    %p172 = por %p170, %p171
    %s174 = sadd.s32 %s173, 1
    %p177 = scmp.eq.s32.totalorder %s15, 3
    %p178 = scmp.ne.s32.totalorder %s173, %s175
    %p179 = scmp.eq.s32.totalorder %s15, 0
    %p180 = por %p178, %p179
    %p181 = scmp.ne.s32.totalorder %s173, %s175
    %p182 = scmp.eq.s32.totalorder %s20, 3
    %p183 = por %p181, %p182
    %p184 = scmp.ne.s32.totalorder %s175, %s176
    %p185 = scmp.eq.s32.totalorder %s20, 0
    %p186 = por %p184, %p185
    %p187 = scmp.ne.s32.totalorder %s175, %s176
    %p188 = scmp.eq.s32.totalorder %s21, 3
    %p189 = por %p187, %p188
    %p191 = scmp.ne.s32.totalorder %s176, %s190
    %p192 = scmp.eq.s32.totalorder %s21, 0
    %p193 = por %p191, %p192
    %s195 = sadd.s32 %s194, 1
    %p198 = scmp.eq.s32.totalorder %s15, 3
    %p199 = scmp.ne.s32.totalorder %s194, %s196
    %p200 = scmp.eq.s32.totalorder %s15, 0
    %p201 = por %p199, %p200
    %p202 = scmp.ne.s32.totalorder %s194, %s196
    %p203 = scmp.eq.s32.totalorder %s20, 3
    %p204 = por %p202, %p203
    %p205 = scmp.ne.s32.totalorder %s196, %s197
    %p206 = scmp.eq.s32.totalorder %s20, 0
    %p207 = por %p205, %p206
    %p208 = scmp.ne.s32.totalorder %s196, %s197
    %p209 = scmp.eq.s32.totalorder %s21, 3
    %p210 = por %p208, %p209
    %p212 = scmp.ne.s32.totalorder %s197, %s211
    %p213 = scmp.eq.s32.totalorder %s21, 0
    %p214 = por %p212, %p213
    %s216 = sadd.s32 %s215, 1
    %p219 = scmp.eq.s32.totalorder %s15, 3
    %p220 = scmp.ne.s32.totalorder %s215, %s217
    %p221 = scmp.eq.s32.totalorder %s15, 0
    %p222 = por %p220, %p221
    %p223 = scmp.ne.s32.totalorder %s215, %s217
    %p224 = scmp.eq.s32.totalorder %s20, 3
    %p225 = por %p223, %p224
    %p226 = scmp.ne.s32.totalorder %s217, %s218
    %p227 = scmp.eq.s32.totalorder %s20, 0
    %p228 = por %p226, %p227
    %p229 = scmp.ne.s32.totalorder %s217, %s218
    %p230 = scmp.eq.s32.totalorder %s21, 3
    %p231 = por %p229, %p230
    %p233 = scmp.ne.s32.totalorder %s218, %s232
    %p234 = scmp.eq.s32.totalorder %s21, 0
    %p235 = por %p233, %p234
    %s237 = sadd.s32 %s236, 1
    %p240 = scmp.eq.s32.totalorder %s15, 3
    %p241 = scmp.ne.s32.totalorder %s236, %s238
    %p242 = scmp.eq.s32.totalorder %s15, 0
    %p243 = por %p241, %p242
    %p244 = scmp.ne.s32.totalorder %s236, %s238
    %p245 = scmp.eq.s32.totalorder %s20, 3
    %p246 = por %p244, %p245
    %p247 = scmp.ne.s32.totalorder %s238, %s239
    %p248 = scmp.eq.s32.totalorder %s20, 0
    %p249 = por %p247, %p248
    %p250 = scmp.ne.s32.totalorder %s238, %s239
    %p251 = scmp.eq.s32.totalorder %s21, 3
    %p252 = por %p250, %p251
    %p254 = scmp.ne.s32.totalorder %s239, %s253
    %p255 = scmp.eq.s32.totalorder %s21, 0
    %p256 = por %p254, %p255
    %s257 = ssub.s32 %s22, %s34
    %s258 = ssub.s32 %s23, %s30
    %s259 = sor.u32 %s257, %s258
    %p260 = scmp.eq.s32.totalorder %s259, 0
    %s262 = sadd.s32 %s261, 1
    %s263 = scalar_select %p260, %s261, %s262
    %p266 = pneg %p260
    %p267 = scmp.eq.s32.totalorder %s15, 3
    %p268 = por %p266, %p267
    %p269 = scmp.ne.s32.totalorder %s261, %s264
    %p270 = scmp.eq.s32.totalorder %s15, 0
    %p271 = por %p269, %p270
    %p272 = scmp.ne.s32.totalorder %s261, %s264
    %p273 = scmp.eq.s32.totalorder %s20, 3
    %p274 = por %p272, %p273
    %p275 = scmp.ne.s32.totalorder %s264, %s265
    %p276 = scmp.eq.s32.totalorder %s20, 0
    %p277 = por %p275, %p276
    %p278 = scmp.ne.s32.totalorder %s264, %s265
    %p279 = scmp.eq.s32.totalorder %s21, 3
    %p280 = por %p278, %p279
    %p282 = scmp.ne.s32.totalorder %s265, %s281
    %p283 = scmp.eq.s32.totalorder %s21, 0
    %p284 = por %p282, %p283
    %p285 = scmp.le.s32.totalorder 1, %s15
    %p286 = scmp.lt.s32.totalorder %s15, 5
    %p287 = pnand %p285, %p286
    %p288 = pneg %p287
    // Predicated region
    $region9: #{tpu_custom_call.1} parent=5 // pred_check
      _
    $region10: #{tpu_custom_call.1} parent=5 // pred_check_branch
      %290 = sbr.rel (%p287) target = $region12
    $region11: #{tpu_custom_call.1} parent=5 // pred_region
      %s291 = ssub.s32 %s15, 1
      // Predicated region
      $region13: #{tpu_custom_call.1} parent=11 // pred_check
        %p292 = pneg %p144
      $region14: #{tpu_custom_call.1} parent=11 // pred_check_branch
        %294 = sbr.rel (%p292) target = $region16
      $region15: #{tpu_custom_call.1} parent=11 // pred_region
        _
      $region16: #{tpu_custom_call.1} parent=11 // pred_fallthru
        _
      // Predicated region
      $region17: #{tpu_custom_call.1} parent=11 // pred_check
        %p295 = pneg %p165
      $region18: #{tpu_custom_call.1} parent=11 // pred_check_branch
        %297 = sbr.rel (%p295) target = $region20
      $region19: #{tpu_custom_call.1} parent=11 // pred_region
        _
      $region20: #{tpu_custom_call.1} parent=11 // pred_fallthru
        _
      // Predicated region
      $region21: #{tpu_custom_call.1} parent=11 // pred_check
        %p298 = pneg %p186
      $region22: #{tpu_custom_call.1} parent=11 // pred_check_branch
        %300 = sbr.rel (%p298) target = $region24
      $region23: #{tpu_custom_call.1} parent=11 // pred_region
        _
      $region24: #{tpu_custom_call.1} parent=11 // pred_fallthru
        _
      // Predicated region
      $region25: #{tpu_custom_call.1} parent=11 // pred_check
        %p301 = pneg %p207
      $region26: #{tpu_custom_call.1} parent=11 // pred_check_branch
        %303 = sbr.rel (%p301) target = $region28
      $region27: #{tpu_custom_call.1} parent=11 // pred_region
        _
      $region28: #{tpu_custom_call.1} parent=11 // pred_fallthru
        _
      // Predicated region
      $region29: #{tpu_custom_call.1} parent=11 // pred_check
        %p304 = pneg %p228
      $region30: #{tpu_custom_call.1} parent=11 // pred_check_branch
        %306 = sbr.rel (%p304) target = $region32
      $region31: #{tpu_custom_call.1} parent=11 // pred_region
        _
      $region32: #{tpu_custom_call.1} parent=11 // pred_fallthru
        _
      // Predicated region
      $region33: #{tpu_custom_call.1} parent=11 // pred_check
        %p307 = pneg %p249
      $region34: #{tpu_custom_call.1} parent=11 // pred_check_branch
        %309 = sbr.rel (%p307) target = $region36
      $region35: #{tpu_custom_call.1} parent=11 // pred_region
        _
      $region36: #{tpu_custom_call.1} parent=11 // pred_fallthru
        _
    $region12: #{tpu_custom_call.1} parent=5 // pred_fallthru
      _
    %p310 = scmp.lt.s32.totalorder %s15, 4
    // Predicated region
    $region37: #{tpu_custom_call.1} parent=5 // pred_check
      %p311 = pneg %p310
    $region38: #{tpu_custom_call.1} parent=5 // pred_check_branch
      %313 = sbr.rel (%p311) target = $region40
    $region39: #{tpu_custom_call.1} parent=5 // pred_region
      // Predicated region
      $region41: #{tpu_custom_call.1} parent=39 // pred_check
        %p314 = pneg %p49
      $region42: #{tpu_custom_call.1} parent=39 // pred_check_branch
        %316 = sbr.rel (%p314) target = $region44
      $region43: #{tpu_custom_call.1} parent=39 // pred_region
        %s317 = smul.u32 8, %s23
        %p318 = scmp.lt.s32.totalorder %s22, 1
        %s319 = scalar_select %p318, %s22, 1
        %p320 = scmp.lt.s32.totalorder %s317, 15
        %s321 = scalar_select %p320, %s317, 15
        %s322 = smul.addr %s321, 2
        %s323 = smul.addr %s319, 32
        %s324 = sadd.s32 %s322, %s323
        %s325 = smul.addr %s324, 8
        %s326 = scalar_lea.vmem %s0, %s325
        %s327 = smul.u32 8, %s23
      $region44: #{tpu_custom_call.1} parent=39 // pred_fallthru
        _
      // Predicated region
      $region45: #{tpu_custom_call.1} parent=39 // pred_check
        %p328 = pneg %p83
      $region46: #{tpu_custom_call.1} parent=39 // pred_check_branch
        %330 = sbr.rel (%p328) target = $region48
      $region47: #{tpu_custom_call.1} parent=39 // pred_region
        %s331 = ssub.s32 %s23, 1
        %p332 = scmp.gt.s32.totalorder %s331, 0
        %s333 = scalar_select %p332, %s331, 0
        %s334 = smul.u32 8, %s333
        %p335 = scmp.lt.s32.totalorder %s22, 1
        %s336 = scalar_select %p335, %s22, 1
        %p337 = scmp.lt.s32.totalorder %s334, 15
        %s338 = scalar_select %p337, %s334, 15
        %s339 = smul.addr %s338, 2
        %s340 = smul.addr %s336, 32
        %s341 = sadd.s32 %s339, %s340
        %s342 = smul.addr %s341, 8
        %s343 = scalar_lea.vmem %s1, %s342
        %s344 = ssub.s32 %s23, 1
        %p345 = scmp.gt.s32.totalorder %s344, 0
        %s346 = scalar_select %p345, %s344, 0
        %s347 = smul.u32 8, %s346
      $region48: #{tpu_custom_call.1} parent=39 // pred_fallthru
        _
      // Predicated region
      $region49: #{tpu_custom_call.1} parent=39 // pred_check
        %p348 = pneg %p117
      $region50: #{tpu_custom_call.1} parent=39 // pred_check_branch
        %350 = sbr.rel (%p348) target = $region52
      $region51: #{tpu_custom_call.1} parent=39 // pred_region
        %s351 = sadd.s32 %s23, 1
        %p352 = scmp.lt.s32.totalorder %s351, 1
        %s353 = scalar_select %p352, %s351, 1
        %s354 = smul.u32 8, %s353
        %p355 = scmp.lt.s32.totalorder %s22, 1
        %s356 = scalar_select %p355, %s22, 1
        %p357 = scmp.lt.s32.totalorder %s354, 15
        %s358 = scalar_select %p357, %s354, 15
        %s359 = smul.addr %s358, 2
        %s360 = smul.addr %s356, 32
        %s361 = sadd.s32 %s359, %s360
        %s362 = smul.addr %s361, 8
        %s363 = scalar_lea.vmem %s2, %s362
        %s364 = sadd.s32 %s23, 1
        %p365 = scmp.lt.s32.totalorder %s364, 1
        %s366 = scalar_select %p365, %s364, 1
        %s367 = smul.u32 8, %s366
      $region52: #{tpu_custom_call.1} parent=39 // pred_fallthru
        _
    $region40: #{tpu_custom_call.1} parent=5 // pred_fallthru
      _
    %p368 = scmp.le.s32.totalorder 1, %s15
    %p369 = scmp.lt.s32.totalorder %s15, 5
    %p370 = pnand %p368, %p369
    %p371 = pneg %p370
    // Predicated region
    $region53: #{tpu_custom_call.1} parent=5 // pred_check
      _
    $region54: #{tpu_custom_call.1} parent=5 // pred_check_branch
      %373 = sbr.rel (%p370) target = $region56
    $region55: #{tpu_custom_call.1} parent=5 // pred_region
      %s374 = ssub.s32 %s15, 1
      %s375 = smul.u32 8, %s25
      %p376 = scmp.lt.s32.totalorder %s24, 1
      %s377 = scalar_select %p376, %s24, 1
      %p378 = scmp.lt.s32.totalorder %s375, 15
      %s379 = scalar_select %p378, %s375, 15
      %s380 = smul.addr %s379, 2
      %s381 = smul.addr %s377, 32
      %s382 = sadd.s32 %s380, %s381
      %s383 = smul.addr %s382, 8
      %s384 = scalar_lea.vmem %s0, %s383
      %p385 = pneg %p55
      %p386 = pneg %p52
      %s387 = ssub.s32 %s25, 1
      %p388 = scmp.gt.s32.totalorder %s387, 0
      %s389 = scalar_select %p388, %s387, 0
      %s390 = smul.u32 8, %s389
      %p391 = scmp.lt.s32.totalorder %s24, 1
      %s392 = scalar_select %p391, %s24, 1
      %p393 = scmp.lt.s32.totalorder %s390, 15
      %s394 = scalar_select %p393, %s390, 15
      %s395 = smul.addr %s394, 2
      %s396 = smul.addr %s392, 32
      %s397 = sadd.s32 %s395, %s396
      %s398 = smul.addr %s397, 8
      %s399 = scalar_lea.vmem %s1, %s398
      %p400 = pneg %p89
      %p401 = pneg %p86
      %s402 = sadd.s32 %s25, 1
      %p403 = scmp.lt.s32.totalorder %s402, 1
      %s404 = scalar_select %p403, %s402, 1
      %s405 = smul.u32 8, %s404
      %p406 = scmp.lt.s32.totalorder %s24, 1
      %s407 = scalar_select %p406, %s24, 1
      %p408 = scmp.lt.s32.totalorder %s405, 15
      %s409 = scalar_select %p408, %s405, 15
      %s410 = smul.addr %s409, 2
      %s411 = smul.addr %s407, 32
      %s412 = sadd.s32 %s410, %s411
      %s413 = smul.addr %s412, 8
      %s414 = scalar_lea.vmem %s2, %s413
      %p415 = pneg %p123
      %p416 = pneg %p120
      %p417 = pneg %p144
      %p418 = pneg %p141
      %p419 = pneg %p165
      %p420 = pneg %p162
      %p421 = pneg %p186
      %p422 = pneg %p183
      %p423 = pneg %p207
      %p424 = pneg %p204
      %p425 = pneg %p228
      %p426 = pneg %p225
      %p427 = pneg %p249
      %p428 = pneg %p246
      %p429 = pneg %p277
      %p430 = pneg %p274
      %s431 = smul.u32 8, %s25
      %p432 = scmp.lt.s32.totalorder %s24, 1
      %s433 = scalar_select %p432, %s24, 1
      %p434 = scmp.lt.s32.totalorder %s431, 15
      %s435 = scalar_select %p434, %s431, 15
      %s436 = smul.addr %s435, 2
      %s437 = smul.addr %s433, 32
      %s438 = sadd.s32 %s436, %s437
      %s439 = smul.addr %s438, 8
      %s440 = scalar_lea.vmem %s9, %s439
      %s441 = smul.u32 8, %s25
      %p442 = scmp.lt.s32.totalorder %s24, 1
      %s443 = scalar_select %p442, %s24, 1
      %p444 = scmp.lt.s32.totalorder %s441, 15
      %s445 = scalar_select %p444, %s441, 15
      %s446 = smul.addr %s445, 2
      %s447 = smul.addr %s443, 32
      %s448 = sadd.s32 %s446, %s447
      %s449 = smul.addr %s448, 8
      %s450 = scalar_lea.vmem %s0, %s449
      %s451 = smul.u32 8, %s25
      %s452 = ssub.s32 %s25, 1
      %p453 = scmp.gt.s32.totalorder %s452, 0
      %s454 = scalar_select %p453, %s452, 0
      %s455 = smul.u32 8, %s454
      %p456 = scmp.lt.s32.totalorder %s24, 1
      %s457 = scalar_select %p456, %s24, 1
      %p458 = scmp.lt.s32.totalorder %s455, 15
      %s459 = scalar_select %p458, %s455, 15
      %s460 = smul.addr %s459, 2
      %s461 = smul.addr %s457, 32
      %s462 = sadd.s32 %s460, %s461
      %s463 = smul.addr %s462, 8
      %s464 = scalar_lea.vmem %s1, %s463
      %s465 = ssub.s32 %s25, 1
      %p466 = scmp.gt.s32.totalorder %s465, 0
      %s467 = scalar_select %p466, %s465, 0
      %s468 = smul.u32 8, %s467
      %s469 = sadd.s32 %s25, 1
      %p470 = scmp.lt.s32.totalorder %s469, 1
      %s471 = scalar_select %p470, %s469, 1
      %s472 = smul.u32 8, %s471
      %p473 = scmp.lt.s32.totalorder %s24, 1
      %s474 = scalar_select %p473, %s24, 1
      %p475 = scmp.lt.s32.totalorder %s472, 15
      %s476 = scalar_select %p475, %s472, 15
      %s477 = smul.addr %s476, 2
      %s478 = smul.addr %s474, 32
      %s479 = sadd.s32 %s477, %s478
      %s480 = smul.addr %s479, 8
      %s481 = scalar_lea.vmem %s2, %s480
      %s482 = sadd.s32 %s25, 1
      %p483 = scmp.lt.s32.totalorder %s482, 1
      %s484 = scalar_select %p483, %s482, 1
      %s485 = smul.u32 8, %s484
      %s486 = smul.u32 8, %s25
      %p487 = scmp.lt.s32.totalorder %s24, 1
      %s488 = scalar_select %p487, %s24, 1
      %p489 = scmp.lt.s32.totalorder %s486, 15
      %s490 = scalar_select %p489, %s486, 15
      %s491 = smul.addr %s490, 2
      %s492 = smul.addr %s488, 32
      %s493 = sadd.s32 %s491, %s492
      %s494 = smul.addr %s493, 8
      %s495 = scalar_lea.vmem %s9, %s494
      %s496 = smul.u32 8, %s25
      %vm497 = vcmask 9216
      %498 = vst.msk [vmem:[#allocation2] sm:$0x3] %vm497, -3.4028235e+38
      %499 = vst.msk [vmem:[#allocation2 + $0x18] sm:$0x3] %vm497, -3.4028235e+38
      %500 = vst.msk [vmem:[#allocation2 + $0x30] sm:$0x3] %vm497, -3.4028235e+38
      %501 = vst.msk [vmem:[#allocation2 + $0x48] sm:$0x3] %vm497, -3.4028235e+38
      %502 = vst.msk [vmem:[#allocation2 + $0x60] sm:$0x3] %vm497, -3.4028235e+38
      %503 = vst.msk [vmem:[#allocation2 + $0x78] sm:$0x3] %vm497, -3.4028235e+38
      %504 = vst.msk [vmem:[#allocation2 + $0x90] sm:$0x3] %vm497, -3.4028235e+38
      %505 = vst.msk [vmem:[#allocation2 + $0xa8] sm:$0x3] %vm497, -3.4028235e+38
      %506 = vst.msk [vmem:[#allocation2 + $0xc0] sm:$0x3] %vm497, -3.4028235e+38
      %507 = vst.msk [vmem:[#allocation2 + $0xd8] sm:$0x3] %vm497, -3.4028235e+38
      %508 = vst.msk [vmem:[#allocation2 + $0xf0] sm:$0x3] %vm497, -3.4028235e+38
      %509 = vst.msk [vmem:[#allocation2 + $0x108] sm:$0x3] %vm497, -3.4028235e+38
      %510 = vst.msk [vmem:[#allocation2 + $0x120] sm:$0x3] %vm497, -3.4028235e+38
      %511 = vst.msk [vmem:[#allocation2 + $0x138] sm:$0x3] %vm497, -3.4028235e+38
      %512 = vst.msk [vmem:[#allocation2 + $0x150] sm:$0x3] %vm497, -3.4028235e+38
      %513 = vst.msk [vmem:[#allocation2 + $0x168] sm:$0x3] %vm497, -3.4028235e+38
      %514 = vst.msk [vmem:[#allocation2 + $0x180] sm:$0x3] %vm497, -3.4028235e+38
      %515 = vst.msk [vmem:[#allocation2 + $0x198] sm:$0x3] %vm497, -3.4028235e+38
      %516 = vst.msk [vmem:[#allocation2 + $0x1b0] sm:$0x3] %vm497, -3.4028235e+38
      %517 = vst.msk [vmem:[#allocation2 + $0x1c8] sm:$0x3] %vm497, -3.4028235e+38
      %518 = vst.msk [vmem:[#allocation2 + $0x12] sm:$0x3] %vm497, -3.4028235e+38
      %519 = vst.msk [vmem:[#allocation2 + $0x2a] sm:$0x3] %vm497, -3.4028235e+38
      %520 = vst.msk [vmem:[#allocation2 + $0x42] sm:$0x3] %vm497, -3.4028235e+38
      %521 = vst.msk [vmem:[#allocation2 + $0x5a] sm:$0x3] %vm497, -3.4028235e+38
      %522 = vst.msk [vmem:[#allocation2 + $0x72] sm:$0x3] %vm497, -3.4028235e+38
      %523 = vst.msk [vmem:[#allocation2 + $0x8a] sm:$0x3] %vm497, -3.4028235e+38
      %524 = vst.msk [vmem:[#allocation2 + $0xa2] sm:$0x3] %vm497, -3.4028235e+38
      %525 = vst.msk [vmem:[#allocation2 + $0xba] sm:$0x3] %vm497, -3.4028235e+38
      %526 = vst.msk [vmem:[#allocation2 + $0xd2] sm:$0x3] %vm497, -3.4028235e+38
      %527 = vst.msk [vmem:[#allocation2 + $0xea] sm:$0x3] %vm497, -3.4028235e+38
      %528 = vst.msk [vmem:[#allocation2 + $0x102] sm:$0x3] %vm497, -3.4028235e+38
      %529 = vst.msk [vmem:[#allocation2 + $0x11a] sm:$0x3] %vm497, -3.4028235e+38
      %530 = vst.msk [vmem:[#allocation2 + $0x132] sm:$0x3] %vm497, -3.4028235e+38
      %531 = vst.msk [vmem:[#allocation2 + $0x14a] sm:$0x3] %vm497, -3.4028235e+38
      %532 = vst.msk [vmem:[#allocation2 + $0x162] sm:$0x3] %vm497, -3.4028235e+38
      %533 = vst.msk [vmem:[#allocation2 + $0x17a] sm:$0x3] %vm497, -3.4028235e+38
      %534 = vst.msk [vmem:[#allocation2 + $0x192] sm:$0x3] %vm497, -3.4028235e+38
      %535 = vst.msk [vmem:[#allocation2 + $0x1aa] sm:$0x3] %vm497, -3.4028235e+38
      %536 = vst.msk [vmem:[#allocation2 + $0x1c2] sm:$0x3] %vm497, -3.4028235e+38
      %537 = vst.msk [vmem:[#allocation2 + $0x1da] sm:$0x3] %vm497, -3.4028235e+38
      %v538 = vld [vmem:[%s464 + $0x20] sm:$0xff]
      %v539 = vld [vmem:[%s464 + $0x28] sm:$0xff]
      %v540 = vld [vmem:[%s464 + $0x30] sm:$0xff]
      %v541 = vld [vmem:[%s464 + $0x38] sm:$0xff]
      %v542 = vld [vmem:[%s464 + $0x40] sm:$0xff]
      %v543 = vld [vmem:[%s464 + $0x48] sm:$0xff]
      %v544 = vld [vmem:[%s464 + $0x50] sm:$0xff]
      %v545 = vld [vmem:[%s464 + $0x58] sm:$0xff]
      %v546 = vld [vmem:[%s464 + $0x60] sm:$0xff]
      %v547 = vld [vmem:[%s464 + $0x68] sm:$0xff]
      %v548 = vld [vmem:[%s464 + $0x70] sm:$0xff]
      %v549 = vld [vmem:[%s464 + $0x78] sm:$0xff]
      %v550 = vld [vmem:[%s450] sm:$0xff]
      %v551 = vld [vmem:[%s450 + $0x8] sm:$0xff]
      %v552 = vld [vmem:[%s450 + $0x10] sm:$0xff]
      %v553 = vld [vmem:[%s450 + $0x18] sm:$0xff]
      %v554 = vld [vmem:[%s450 + $0x20] sm:$0xff]
      %v555 = vld [vmem:[%s450 + $0x28] sm:$0xff]
      %v556 = vld [vmem:[%s450 + $0x30] sm:$0xff]
      %v557 = vld [vmem:[%s450 + $0x38] sm:$0xff]
      %v558 = vld [vmem:[%s450 + $0x40] sm:$0xff]
      %v559 = vld [vmem:[%s450 + $0x48] sm:$0xff]
      %v560 = vld [vmem:[%s450 + $0x50] sm:$0xff]
      %v561 = vld [vmem:[%s450 + $0x58] sm:$0xff]
      %v562 = vld [vmem:[%s450 + $0x60] sm:$0xff]
      %v563 = vld [vmem:[%s450 + $0x68] sm:$0xff]
      %v564 = vld [vmem:[%s450 + $0x70] sm:$0xff]
      %v565 = vld [vmem:[%s450 + $0x78] sm:$0xff]
      %v566 = vld [vmem:[%s481] sm:$0xff]
      %v567 = vld [vmem:[%s481 + $0x8] sm:$0xff]
      %v568 = vld [vmem:[%s481 + $0x10] sm:$0xff]
      %v569 = vld [vmem:[%s481 + $0x18] sm:$0xff]
      %v570 = vld [vmem:[%s481 + $0x20] sm:$0xff]
      %v571 = vld [vmem:[%s481 + $0x28] sm:$0xff]
      %v572 = vld [vmem:[%s481 + $0x30] sm:$0xff]
      %v573 = vld [vmem:[%s481 + $0x38] sm:$0xff]
      %v574 = vld [vmem:[%s481 + $0x40] sm:$0xff]
      %v575 = vld [vmem:[%s481 + $0x48] sm:$0xff]
      %v576 = vld [vmem:[%s481 + $0x50] sm:$0xff]
      %v577 = vld [vmem:[%s481 + $0x58] sm:$0xff]
      %v578 = vld [vmem:[%s3] sm:$0xf]
      %vm579 = vcmask 31744
      %v581 = vsel %vm579, %v538, 0
      %v584 = vsel %vm579, %v539, 0
      %v587 = vsel %vm579, %v540, 0
      %v590 = vsel %vm579, %v541, 0
      %v593 = vsel %vm579, %v542, 0
      %v596 = vsel %vm579, %v543, 0
      %v599 = vsel %vm579, %v544, 0
      %v602 = vsel %vm579, %v545, 0
      %v605 = vsel %vm579, %v546, 0
      %v608 = vsel %vm579, %v547, 0
      %v611 = vsel %vm579, %v548, 0
      %v614 = vsel %vm579, %v549, 0
      %v617 = vsel %vm579, %v550, 0
      %v620 = vsel %vm579, %v551, 0
      %v623 = vsel %vm579, %v552, 0
      %v626 = vsel %vm579, %v553, 0
      %v629 = vsel %vm579, %v554, 0
      %v632 = vsel %vm579, %v555, 0
      %v635 = vsel %vm579, %v556, 0
      %v638 = vsel %vm579, %v557, 0
      %v641 = vsel %vm579, %v558, 0
      %v644 = vsel %vm579, %v559, 0
      %v647 = vsel %vm579, %v560, 0
      %v650 = vsel %vm579, %v561, 0
      %v653 = vsel %vm579, %v562, 0
      %v656 = vsel %vm579, %v563, 0
      %v659 = vsel %vm579, %v564, 0
      %v662 = vsel %vm579, %v565, 0
      %v665 = vsel %vm579, %v566, 0
      %v668 = vsel %vm579, %v567, 0
      %v671 = vsel %vm579, %v568, 0
      %v674 = vsel %vm579, %v569, 0
      %v677 = vsel %vm579, %v570, 0
      %v680 = vsel %vm579, %v571, 0
      %v683 = vsel %vm579, %v572, 0
      %v686 = vsel %vm579, %v573, 0
      %v689 = vsel %vm579, %v574, 0
      %v692 = vsel %vm579, %v575, 0
      %v695 = vsel %vm579, %v576, 0
      %v698 = vsel %vm579, %v577, 0
      %vm700 = vcmask 1043456
      %v702 = vsel %vm700, %v578, 0
      %704 = vmatprep.subr.mxu0 0.0
      %705 = vmatpush1.msra.mxu0 %v702
      %706 = vmatprep.subr.mxu0 0.0
      %707 = vmatpush1.msra.mxu0 0.0
      %708 = vmatprep.subr.mxu0 0.0
      %709 = vmatpush1.msra.mxu0 0.0
      %710 = vmatprep.subr.mxu0 0.0
      %711 = vmatpush1.msra.mxu0 0.0
      %712 = vmatprep.subr.mxu0 0.0
      %713 = vmatpush1.msra.mxu0 0.0
      %714 = vmatprep.subr.mxu0 0.0
      %715 = vmatpush1.msra.mxu0 0.0
      %716 = vmatprep.subr.mxu0 0.0
      %717 = vmatpush1.msra.mxu0 0.0
      %718 = vmatprep.subr.mxu0 0.0
      %719 = vmatpush1.msra.mxu0 0.0
      %720 = vmatprep.subr.mxu0 0.0
      %721 = vmatpush1.msra.mxu0 0.0
      %722 = vmatprep.subr.mxu0 0.0
      %723 = vmatpush1.msra.mxu0 0.0
      %724 = vmatprep.subr.mxu0 0.0
      %725 = vmatpush1.msra.mxu0 0.0
      %726 = vmatprep.subr.mxu0 0.0
      %727 = vmatpush1.msra.mxu0 0.0
      %728 = vmatprep.subr.mxu0 0.0
      %729 = vmatpush1.msra.mxu0 0.0
      %730 = vmatprep.subr.mxu0 0.0
      %731 = vmatpush1.msra.mxu0 0.0
      %732 = vmatprep.subr.mxu0 0.0
      %733 = vmatpush1.msra.mxu0 0.0
      %734 = vmatprep.subr.mxu0 0.0
      %735 = vmatpush1.msra.mxu0 0.0
      %736 = vmatprep.subr.mxu0 0.0
      %737 = vmatpush1.msra.mxu0 0.0
      %738 = vmatprep.subr.mxu0 0.0
      %739 = vmatpush1.msra.mxu0 0.0
      %740 = vmatprep.subr.mxu0 0.0
      %741 = vmatpush1.msra.mxu0 0.0
      %742 = vmatprep.subr.mxu0 0.0
      %743 = vmatpush1.msra.mxu0 0.0
      %744 = vmatprep.subr.mxu0 0.0
      %745 = vmatpush1.msra.mxu0 0.0
      %746 = vmatprep.subr.mxu0 0.0
      %747 = vmatpush1.msra.mxu0 0.0
      %748 = vmatprep.subr.mxu0 0.0
      %749 = vmatpush1.msra.mxu0 0.0
      %750 = vmatprep.subr.mxu0 0.0
      %751 = vmatpush1.msra.mxu0 0.0
      %752 = vmatprep.subr.mxu0 0.0
      %753 = vmatpush1.msra.mxu0 0.0
      %754 = vmatprep.subr.mxu0 0.0
      %755 = vmatpush1.msra.mxu0 0.0
      %756 = vmatprep.subr.mxu0 0.0
      %757 = vmatpush1.msra.mxu0 0.0
      %758 = vmatprep.subr.mxu0 0.0
      %759 = vmatpush1.msra.mxu0 0.0
      %760 = vmatprep.subr.mxu0 0.0
      %761 = vmatpush1.msra.mxu0 0.0
      %762 = vmatprep.subr.mxu0 0.0
      %763 = vmatpush1.msra.mxu0 0.0
      %764 = vmatprep.subr.mxu0 0.0
      %765 = vmatpush1.msra.mxu0 0.0
      %766 = vmatprep.subr.mxu0 0.0
      %767 = vmatpush1.msra.mxu0 0.0
      %768 = vmatprep.mubr.f32.mxu0 0.0
      %769 = vmatmul.mubr.f32.gmra.mrb[0].mxu0 %v581
      %v770 = vpop.f32.mrb[0].mxu0
      %v771 = vadd.f32 0.0, %v770
      %v772 = vpop.f32.mrb[0].mxu0
      %773 = vmatprep.mubr.f32.mxu0 0.0
      %774 = vmatmul.mubr.f32.gmra.mrb[0].mxu0 %v584
      %v775 = vpop.f32.mrb[0].mxu0
      %v776 = vadd.f32 0.0, %v775
      %v777 = vpop.f32.mrb[0].mxu0
      %778 = vmatprep.mubr.f32.mxu0 0.0
      %779 = vmatmul.mubr.f32.gmra.mrb[0].mxu0 %v587
      %v780 = vpop.f32.mrb[0].mxu0
      %v781 = vadd.f32 0.0, %v780
      %v782 = vpop.f32.mrb[0].mxu0
      %783 = vmatprep.mubr.f32.mxu0 0.0
      %784 = vmatmul.mubr.f32.gmra.mrb[0].mxu0 %v590
      %v785 = vpop.f32.mrb[0].mxu0
      %v786 = vadd.f32 0.0, %v785
      %v787 = vpop.f32.mrb[0].mxu0
      %788 = vmatprep.mubr.f32.mxu0 0.0
      %789 = vmatmul.mubr.f32.gmra.mrb[0].mxu0 %v593
      %v790 = vpop.f32.mrb[0].mxu0
      %v791 = vadd.f32 0.0, %v790
      %v792 = vpop.f32.mrb[0].mxu0
      %793 = vmatprep.mubr.f32.mxu0 0.0
      %794 = vmatmul.mubr.f32.gmra.mrb[0].mxu0 %v596
      %v795 = vpop.f32.mrb[0].mxu0
      %v796 = vadd.f32 0.0, %v795
      %v797 = vpop.f32.mrb[0].mxu0
      %798 = vmatprep.mubr.f32.mxu0 0.0
      %799 = vmatmul.mubr.f32.gmra.mrb[0].mxu0 %v599
      %v800 = vpop.f32.mrb[0].mxu0
      %v801 = vadd.f32 0.0, %v800
      %v802 = vpop.f32.mrb[0].mxu0
      %803 = vmatprep.mubr.f32.mxu0 0.0
      %804 = vmatmul.mubr.f32.gmra.mrb[0].mxu0 %v602
      %v805 = vpop.f32.mrb[0].mxu0
      %v806 = vadd.f32 0.0, %v805
      %v807 = vpop.f32.mrb[0].mxu0
      %808 = vmatprep.mubr.f32.mxu0 0.0
      %809 = vmatmul.mubr.f32.gmra.mrb[0].mxu0 %v605
      %v810 = vpop.f32.mrb[0].mxu0
      %v811 = vadd.f32 0.0, %v810
      %v812 = vpop.f32.mrb[0].mxu0
      %813 = vmatprep.mubr.f32.mxu0 0.0
      %814 = vmatmul.mubr.f32.gmra.mrb[0].mxu0 %v608
      %v815 = vpop.f32.mrb[0].mxu0
      %v816 = vadd.f32 0.0, %v815
      %v817 = vpop.f32.mrb[0].mxu0
      %818 = vmatprep.mubr.f32.mxu0 0.0
      %819 = vmatmul.mubr.f32.gmra.mrb[0].mxu0 %v611
      %v820 = vpop.f32.mrb[0].mxu0
      %v821 = vadd.f32 0.0, %v820
      %v822 = vpop.f32.mrb[0].mxu0
      %823 = vmatprep.mubr.f32.mxu0 0.0
      %824 = vmatmul.mubr.f32.gmra.mrb[0].mxu0 %v614
      %v825 = vpop.f32.mrb[0].mxu0
      %v826 = vadd.f32 0.0, %v825
      %v827 = vpop.f32.mrb[0].mxu0
      %828 = vmatprep.mubr.f32.mxu0 0.0
      %829 = vmatmul.mubr.f32.gmra.mrb[0].mxu0 %v617
      %v830 = vpop.f32.mrb[0].mxu0
      %v831 = vadd.f32 0.0, %v830
      %v832 = vpop.f32.mrb[0].mxu0
      %833 = vmatprep.mubr.f32.mxu0 0.0
      %834 = vmatmul.mubr.f32.gmra.mrb[0].mxu0 %v620
      %v835 = vpop.f32.mrb[0].mxu0
      %v836 = vadd.f32 0.0, %v835
      %v837 = vpop.f32.mrb[0].mxu0
      %838 = vmatprep.mubr.f32.mxu0 0.0
      %839 = vmatmul.mubr.f32.gmra.mrb[0].mxu0 %v623
      %v840 = vpop.f32.mrb[0].mxu0
      %v841 = vadd.f32 0.0, %v840
      %v842 = vpop.f32.mrb[0].mxu0
      %843 = vmatprep.mubr.f32.mxu0 0.0
      %844 = vmatmul.mubr.f32.gmra.mrb[0].mxu0 %v626
      %v845 = vpop.f32.mrb[0].mxu0
      %v846 = vadd.f32 0.0, %v845
      %v847 = vpop.f32.mrb[0].mxu0
      %848 = vmatprep.mubr.f32.mxu0 0.0
      %849 = vmatmul.mubr.f32.gmra.mrb[0].mxu0 %v629
      %v850 = vpop.f32.mrb[0].mxu0
      %v851 = vadd.f32 0.0, %v850
      %v852 = vpop.f32.mrb[0].mxu0
      %853 = vmatprep.mubr.f32.mxu0 0.0
      %854 = vmatmul.mubr.f32.gmra.mrb[0].mxu0 %v632
      %v855 = vpop.f32.mrb[0].mxu0
      %v856 = vadd.f32 0.0, %v855
      %v857 = vpop.f32.mrb[0].mxu0
      %858 = vmatprep.mubr.f32.mxu0 0.0
      %859 = vmatmul.mubr.f32.gmra.mrb[0].mxu0 %v635
      %v860 = vpop.f32.mrb[0].mxu0
      %v861 = vadd.f32 0.0, %v860
      %v862 = vpop.f32.mrb[0].mxu0
      %863 = vmatprep.mubr.f32.mxu0 0.0
      %864 = vmatmul.mubr.f32.gmra.mrb[0].mxu0 %v638
      %v865 = vpop.f32.mrb[0].mxu0
      %v866 = vadd.f32 0.0, %v865
      %v867 = vpop.f32.mrb[0].mxu0
      %868 = vmatprep.mubr.f32.mxu0 0.0
      %869 = vmatmul.mubr.f32.gmra.mrb[0].mxu0 %v641
      %v870 = vpop.f32.mrb[0].mxu0
      %v871 = vadd.f32 0.0, %v870
      %v872 = vpop.f32.mrb[0].mxu0
      %873 = vmatprep.mubr.f32.mxu0 0.0
      %874 = vmatmul.mubr.f32.gmra.mrb[0].mxu0 %v644
      %v875 = vpop.f32.mrb[0].mxu0
      %v876 = vadd.f32 0.0, %v875
      %v877 = vpop.f32.mrb[0].mxu0
      %878 = vmatprep.mubr.f32.mxu0 0.0
      %879 = vmatmul.mubr.f32.gmra.mrb[0].mxu0 %v647
      %v880 = vpop.f32.mrb[0].mxu0
      %v881 = vadd.f32 0.0, %v880
      %v882 = vpop.f32.mrb[0].mxu0
      %883 = vmatprep.mubr.f32.mxu0 0.0
      %884 = vmatmul.mubr.f32.gmra.mrb[0].mxu0 %v650
      %v885 = vpop.f32.mrb[0].mxu0
      %v886 = vadd.f32 0.0, %v885
      %v887 = vpop.f32.mrb[0].mxu0
      %888 = vmatprep.mubr.f32.mxu0 0.0
      %889 = vmatmul.mubr.f32.gmra.mrb[0].mxu0 %v653
      %v890 = vpop.f32.mrb[0].mxu0
      %v891 = vadd.f32 0.0, %v890
      %v892 = vpop.f32.mrb[0].mxu0
      %893 = vmatprep.mubr.f32.mxu0 0.0
      %894 = vmatmul.mubr.f32.gmra.mrb[0].mxu0 %v656
      %v895 = vpop.f32.mrb[0].mxu0
      %v896 = vadd.f32 0.0, %v895
      %v897 = vpop.f32.mrb[0].mxu0
      %898 = vmatprep.mubr.f32.mxu0 0.0
      %899 = vmatmul.mubr.f32.gmra.mrb[0].mxu0 %v659
      %v900 = vpop.f32.mrb[0].mxu0
      %v901 = vadd.f32 0.0, %v900
      %v902 = vpop.f32.mrb[0].mxu0
      %903 = vmatprep.mubr.f32.mxu0 0.0
      %904 = vmatmul.mubr.f32.gmra.mrb[0].mxu0 %v662
      %v905 = vpop.f32.mrb[0].mxu0
      %v906 = vadd.f32 0.0, %v905
      %v907 = vpop.f32.mrb[0].mxu0
      %908 = vmatprep.mubr.f32.mxu0 0.0
      %909 = vmatmul.mubr.f32.gmra.mrb[0].mxu0 %v665
      %v910 = vpop.f32.mrb[0].mxu0
      %v911 = vadd.f32 0.0, %v910
      %v912 = vpop.f32.mrb[0].mxu0
      %913 = vmatprep.mubr.f32.mxu0 0.0
      %914 = vmatmul.mubr.f32.gmra.mrb[0].mxu0 %v668
      %v915 = vpop.f32.mrb[0].mxu0
      %v916 = vadd.f32 0.0, %v915
      %v917 = vpop.f32.mrb[0].mxu0
      %918 = vmatprep.mubr.f32.mxu0 0.0
      %919 = vmatmul.mubr.f32.gmra.mrb[0].mxu0 %v671
      %v920 = vpop.f32.mrb[0].mxu0
      %v921 = vadd.f32 0.0, %v920
      %v922 = vpop.f32.mrb[0].mxu0
      %923 = vmatprep.mubr.f32.mxu0 0.0
      %924 = vmatmul.mubr.f32.gmra.mrb[0].mxu0 %v674
      %v925 = vpop.f32.mrb[0].mxu0
      %v926 = vadd.f32 0.0, %v925
      %v927 = vpop.f32.mrb[0].mxu0
      %928 = vmatprep.mubr.f32.mxu0 0.0
      %929 = vmatmul.mubr.f32.gmra.mrb[0].mxu0 %v677
      %v930 = vpop.f32.mrb[0].mxu0
      %v931 = vadd.f32 0.0, %v930
      %v932 = vpop.f32.mrb[0].mxu0
      %933 = vmatprep.mubr.f32.mxu0 0.0
      %934 = vmatmul.mubr.f32.gmra.mrb[0].mxu0 %v680
      %v935 = vpop.f32.mrb[0].mxu0
      %v936 = vadd.f32 0.0, %v935
      %v937 = vpop.f32.mrb[0].mxu0
      %938 = vmatprep.mubr.f32.mxu0 0.0
      %939 = vmatmul.mubr.f32.gmra.mrb[0].mxu0 %v683
      %v940 = vpop.f32.mrb[0].mxu0
      %v941 = vadd.f32 0.0, %v940
      %v942 = vpop.f32.mrb[0].mxu0
      %943 = vmatprep.mubr.f32.mxu0 0.0
      %944 = vmatmul.mubr.f32.gmra.mrb[0].mxu0 %v686
      %v945 = vpop.f32.mrb[0].mxu0
      %v946 = vadd.f32 0.0, %v945
      %v947 = vpop.f32.mrb[0].mxu0
      %948 = vmatprep.mubr.f32.mxu0 0.0
      %949 = vmatmul.mubr.f32.gmra.mrb[0].mxu0 %v689
      %v950 = vpop.f32.mrb[0].mxu0
      %v951 = vadd.f32 0.0, %v950
      %v952 = vpop.f32.mrb[0].mxu0
      %953 = vmatprep.mubr.f32.mxu0 0.0
      %954 = vmatmul.mubr.f32.gmra.mrb[0].mxu0 %v692
      %v955 = vpop.f32.mrb[0].mxu0
      %v956 = vadd.f32 0.0, %v955
      %v957 = vpop.f32.mrb[0].mxu0
      %958 = vmatprep.mubr.f32.mxu0 0.0
      %959 = vmatmul.mubr.f32.gmra.mrb[0].mxu0 %v695
      %v960 = vpop.f32.mrb[0].mxu0
      %v961 = vadd.f32 0.0, %v960
      %v962 = vpop.f32.mrb[0].mxu0
      %963 = vmatprep.mubr.f32.mxu0 0.0
      %964 = vmatmul.mubr.f32.gmra.mrb[0].mxu0 %v698
      %v965 = vpop.f32.mrb[0].mxu0
      %v966 = vadd.f32 0.0, %v965
      %v967 = vpop.f32.mrb[0].mxu0
      %968 = vdwg.mxu0
      %v969 = vld [vmem:[%s4] sm:$0x1]
      %v971 = vlaneseq
      %v972 = vshrl.u32 %v971, 7
      %v973 = vsub.s32 0, %v972
      %v974 = vrot.slane %v969, %v973
      %v976 = vmul.f32 %v771, %v974
      %v977 = vmul.f32 %v776, %v974
      %v978 = vmul.f32 %v781, %v974
      %v979 = vmul.f32 %v786, %v974
      %v980 = vmul.f32 %v791, %v974
      %v981 = vmul.f32 %v796, %v974
      %v982 = vmul.f32 %v801, %v974
      %v983 = vmul.f32 %v806, %v974
      %v984 = vmul.f32 %v811, %v974
      %v985 = vmul.f32 %v816, %v974
      %v986 = vmul.f32 %v821, %v974
      %v987 = vmul.f32 %v826, %v974
      %v988 = vmul.f32 %v831, %v974
      %v989 = vmul.f32 %v836, %v974
      %v990 = vmul.f32 %v841, %v974
      %v991 = vmul.f32 %v846, %v974
      %v992 = vmul.f32 %v851, %v974
      %v993 = vmul.f32 %v856, %v974
      %v994 = vmul.f32 %v861, %v974
      %v995 = vmul.f32 %v866, %v974
      %v996 = vmul.f32 %v871, %v974
      %v997 = vmul.f32 %v876, %v974
      %v998 = vmul.f32 %v881, %v974
      %v999 = vmul.f32 %v886, %v974
      %v1000 = vmul.f32 %v891, %v974
      %v1001 = vmul.f32 %v896, %v974
      %v1002 = vmul.f32 %v901, %v974
      %v1003 = vmul.f32 %v906, %v974
      %v1004 = vmul.f32 %v911, %v974
      %v1005 = vmul.f32 %v916, %v974
      %v1006 = vmul.f32 %v921, %v974
      %v1007 = vmul.f32 %v926, %v974
      %v1008 = vmul.f32 %v931, %v974
      %v1009 = vmul.f32 %v936, %v974
      %v1010 = vmul.f32 %v941, %v974
      %v1011 = vmul.f32 %v946, %v974
      %v1012 = vmul.f32 %v951, %v974
      %v1013 = vmul.f32 %v956, %v974
      %v1014 = vmul.f32 %v961, %v974
      %v1015 = vmul.f32 %v966, %v974
      %v1016 = vld [vmem:[%s5] sm:$0x1]
      %v1018 = vlaneseq
      %v1019 = vshrl.u32 %v1018, 7
      %v1020 = vsub.s32 0, %v1019
      %v1021 = vrot.slane %v1016, %v1020
      %v1023 = vadd.f32 %v976, %v1021
      %v1024 = vadd.f32 %v977, %v1021
      %v1025 = vadd.f32 %v978, %v1021
      %v1026 = vadd.f32 %v979, %v1021
      %v1027 = vadd.f32 %v980, %v1021
      %v1028 = vadd.f32 %v981, %v1021
      %v1029 = vadd.f32 %v982, %v1021
      %v1030 = vadd.f32 %v983, %v1021
      %v1031 = vadd.f32 %v984, %v1021
      %v1032 = vadd.f32 %v985, %v1021
      %v1033 = vadd.f32 %v986, %v1021
      %v1034 = vadd.f32 %v987, %v1021
      %v1035 = vadd.f32 %v988, %v1021
      %v1036 = vadd.f32 %v989, %v1021
      %v1037 = vadd.f32 %v990, %v1021
      %v1038 = vadd.f32 %v991, %v1021
      %v1039 = vadd.f32 %v992, %v1021
      %v1040 = vadd.f32 %v993, %v1021
      %v1041 = vadd.f32 %v994, %v1021
      %v1042 = vadd.f32 %v995, %v1021
      %v1043 = vadd.f32 %v996, %v1021
      %v1044 = vadd.f32 %v997, %v1021
      %v1045 = vadd.f32 %v998, %v1021
      %v1046 = vadd.f32 %v999, %v1021
      %v1047 = vadd.f32 %v1000, %v1021
      %v1048 = vadd.f32 %v1001, %v1021
      %v1049 = vadd.f32 %v1002, %v1021
      %v1050 = vadd.f32 %v1003, %v1021
      %v1051 = vadd.f32 %v1004, %v1021
      %v1052 = vadd.f32 %v1005, %v1021
      %v1053 = vadd.f32 %v1006, %v1021
      %v1054 = vadd.f32 %v1007, %v1021
      %v1055 = vadd.f32 %v1008, %v1021
      %v1056 = vadd.f32 %v1009, %v1021
      %v1057 = vadd.f32 %v1010, %v1021
      %v1058 = vadd.f32 %v1011, %v1021
      %v1059 = vadd.f32 %v1012, %v1021
      %v1060 = vadd.f32 %v1013, %v1021
      %v1061 = vadd.f32 %v1014, %v1021
      %v1062 = vadd.f32 %v1015, %v1021
      %v1063 = vmul.f32 %v1023, 0.5
      %v1064 = vmul.f32 %v1024, 0.5
      %v1065 = vmul.f32 %v1025, 0.5
      %v1066 = vmul.f32 %v1026, 0.5
      %v1067 = vmul.f32 %v1027, 0.5
      %v1068 = vmul.f32 %v1028, 0.5
      %v1069 = vmul.f32 %v1029, 0.5
      %v1070 = vmul.f32 %v1030, 0.5
      %v1071 = vmul.f32 %v1031, 0.5
      %v1072 = vmul.f32 %v1032, 0.5
      %v1073 = vmul.f32 %v1033, 0.5
      %v1074 = vmul.f32 %v1034, 0.5
      %v1075 = vmul.f32 %v1035, 0.5
      %v1076 = vmul.f32 %v1036, 0.5
      %v1077 = vmul.f32 %v1037, 0.5
      %v1078 = vmul.f32 %v1038, 0.5
      %v1079 = vmul.f32 %v1039, 0.5
      %v1080 = vmul.f32 %v1040, 0.5
      %v1081 = vmul.f32 %v1041, 0.5
      %v1082 = vmul.f32 %v1042, 0.5
      %v1083 = vmul.f32 %v1043, 0.5
      %v1084 = vmul.f32 %v1044, 0.5
      %v1085 = vmul.f32 %v1045, 0.5
      %v1086 = vmul.f32 %v1046, 0.5
      %v1087 = vmul.f32 %v1047, 0.5
      %v1088 = vmul.f32 %v1048, 0.5
      %v1089 = vmul.f32 %v1049, 0.5
      %v1090 = vmul.f32 %v1050, 0.5
      %v1091 = vmul.f32 %v1051, 0.5
      %v1092 = vmul.f32 %v1052, 0.5
      %v1093 = vmul.f32 %v1053, 0.5
      %v1094 = vmul.f32 %v1054, 0.5
      %v1095 = vmul.f32 %v1055, 0.5
      %v1096 = vmul.f32 %v1056, 0.5
      %v1097 = vmul.f32 %v1057, 0.5
      %v1098 = vmul.f32 %v1058, 0.5
      %v1099 = vmul.f32 %v1059, 0.5
      %v1100 = vmul.f32 %v1060, 0.5
      %v1101 = vmul.f32 %v1061, 0.5
      %v1102 = vmul.f32 %v1062, 0.5
      %v1103 = vtanh.pop %v1063
      %v1104 = vtanh.pop %v1064
      %v1105 = vtanh.pop %v1065
      %v1106 = vtanh.pop %v1066
      %v1107 = vtanh.pop %v1067
      %v1108 = vtanh.pop %v1068
      %v1109 = vtanh.pop %v1069
      %v1110 = vtanh.pop %v1070
      %v1111 = vtanh.pop %v1071
      %v1112 = vtanh.pop %v1072
      %v1113 = vtanh.pop %v1073
      %v1114 = vtanh.pop %v1074
      %v1115 = vtanh.pop %v1075
      %v1116 = vtanh.pop %v1076
      %v1117 = vtanh.pop %v1077
      %v1118 = vtanh.pop %v1078
      %v1119 = vtanh.pop %v1079
      %v1120 = vtanh.pop %v1080
      %v1121 = vtanh.pop %v1081
      %v1122 = vtanh.pop %v1082
      %v1123 = vtanh.pop %v1083
      %v1124 = vtanh.pop %v1084
      %v1125 = vtanh.pop %v1085
      %v1126 = vtanh.pop %v1086
      %v1127 = vtanh.pop %v1087
      %v1128 = vtanh.pop %v1088
      %v1129 = vtanh.pop %v1089
      %v1130 = vtanh.pop %v1090
      %v1131 = vtanh.pop %v1091
      %v1132 = vtanh.pop %v1092
      %v1133 = vtanh.pop %v1093
      %v1134 = vtanh.pop %v1094
      %v1135 = vtanh.pop %v1095
      %v1136 = vtanh.pop %v1096
      %v1137 = vtanh.pop %v1097
      %v1138 = vtanh.pop %v1098
      %v1139 = vtanh.pop %v1099
      %v1140 = vtanh.pop %v1100
      %v1141 = vtanh.pop %v1101
      %v1142 = vtanh.pop %v1102
      %v1143 = vadd.f32 %v1103, 1.0
      %v1144 = vadd.f32 %v1104, 1.0
      %v1145 = vadd.f32 %v1105, 1.0
      %v1146 = vadd.f32 %v1106, 1.0
      %v1147 = vadd.f32 %v1107, 1.0
      %v1148 = vadd.f32 %v1108, 1.0
      %v1149 = vadd.f32 %v1109, 1.0
      %v1150 = vadd.f32 %v1110, 1.0
      %v1151 = vadd.f32 %v1111, 1.0
      %v1152 = vadd.f32 %v1112, 1.0
      %v1153 = vadd.f32 %v1113, 1.0
      %v1154 = vadd.f32 %v1114, 1.0
      %v1155 = vadd.f32 %v1115, 1.0
      %v1156 = vadd.f32 %v1116, 1.0
      %v1157 = vadd.f32 %v1117, 1.0
      %v1158 = vadd.f32 %v1118, 1.0
      %v1159 = vadd.f32 %v1119, 1.0
      %v1160 = vadd.f32 %v1120, 1.0
      %v1161 = vadd.f32 %v1121, 1.0
      %v1162 = vadd.f32 %v1122, 1.0
      %v1163 = vadd.f32 %v1123, 1.0
      %v1164 = vadd.f32 %v1124, 1.0
      %v1165 = vadd.f32 %v1125, 1.0
      %v1166 = vadd.f32 %v1126, 1.0
      %v1167 = vadd.f32 %v1127, 1.0
      %v1168 = vadd.f32 %v1128, 1.0
      %v1169 = vadd.f32 %v1129, 1.0
      %v1170 = vadd.f32 %v1130, 1.0
      %v1171 = vadd.f32 %v1131, 1.0
      %v1172 = vadd.f32 %v1132, 1.0
      %v1173 = vadd.f32 %v1133, 1.0
      %v1174 = vadd.f32 %v1134, 1.0
      %v1175 = vadd.f32 %v1135, 1.0
      %v1176 = vadd.f32 %v1136, 1.0
      %v1177 = vadd.f32 %v1137, 1.0
      %v1178 = vadd.f32 %v1138, 1.0
      %v1179 = vadd.f32 %v1139, 1.0
      %v1180 = vadd.f32 %v1140, 1.0
      %v1181 = vadd.f32 %v1141, 1.0
      %v1182 = vadd.f32 %v1142, 1.0
      %v1183 = vmul.f32 %v1143, 0.5
      %v1184 = vmul.f32 %v1144, 0.5
      %v1185 = vmul.f32 %v1145, 0.5
      %v1186 = vmul.f32 %v1146, 0.5
      %v1187 = vmul.f32 %v1147, 0.5
      %v1188 = vmul.f32 %v1148, 0.5
      %v1189 = vmul.f32 %v1149, 0.5
      %v1190 = vmul.f32 %v1150, 0.5
      %v1191 = vmul.f32 %v1151, 0.5
      %v1192 = vmul.f32 %v1152, 0.5
      %v1193 = vmul.f32 %v1153, 0.5
      %v1194 = vmul.f32 %v1154, 0.5
      %v1195 = vmul.f32 %v1155, 0.5
      %v1196 = vmul.f32 %v1156, 0.5
      %v1197 = vmul.f32 %v1157, 0.5
      %v1198 = vmul.f32 %v1158, 0.5
      %v1199 = vmul.f32 %v1159, 0.5
      %v1200 = vmul.f32 %v1160, 0.5
      %v1201 = vmul.f32 %v1161, 0.5
      %v1202 = vmul.f32 %v1162, 0.5
      %v1203 = vmul.f32 %v1163, 0.5
      %v1204 = vmul.f32 %v1164, 0.5
      %v1205 = vmul.f32 %v1165, 0.5
      %v1206 = vmul.f32 %v1166, 0.5
      %v1207 = vmul.f32 %v1167, 0.5
      %v1208 = vmul.f32 %v1168, 0.5
      %v1209 = vmul.f32 %v1169, 0.5
      %v1210 = vmul.f32 %v1170, 0.5
      %v1211 = vmul.f32 %v1171, 0.5
      %v1212 = vmul.f32 %v1172, 0.5
      %v1213 = vmul.f32 %v1173, 0.5
      %v1214 = vmul.f32 %v1174, 0.5
      %v1215 = vmul.f32 %v1175, 0.5
      %v1216 = vmul.f32 %v1176, 0.5
      %v1217 = vmul.f32 %v1177, 0.5
      %v1218 = vmul.f32 %v1178, 0.5
      %v1219 = vmul.f32 %v1179, 0.5
      %v1220 = vmul.f32 %v1180, 0.5
      %v1221 = vmul.f32 %v1181, 0.5
      %v1222 = vmul.f32 %v1182, 0.5
      %v1223 = vmul.f32 %v1023, %v1183
      %v1224 = vmul.f32 %v1024, %v1184
      %v1225 = vmul.f32 %v1025, %v1185
      %v1226 = vmul.f32 %v1026, %v1186
      %v1227 = vmul.f32 %v1027, %v1187
      %v1228 = vmul.f32 %v1028, %v1188
      %v1229 = vmul.f32 %v1029, %v1189
      %v1230 = vmul.f32 %v1030, %v1190
      %v1231 = vmul.f32 %v1031, %v1191
      %v1232 = vmul.f32 %v1032, %v1192
      %v1233 = vmul.f32 %v1033, %v1193
      %v1234 = vmul.f32 %v1034, %v1194
      %v1235 = vmul.f32 %v1035, %v1195
      %v1236 = vmul.f32 %v1036, %v1196
      %v1237 = vmul.f32 %v1037, %v1197
      %v1238 = vmul.f32 %v1038, %v1198
      %v1239 = vmul.f32 %v1039, %v1199
      %v1240 = vmul.f32 %v1040, %v1200
      %v1241 = vmul.f32 %v1041, %v1201
      %v1242 = vmul.f32 %v1042, %v1202
      %v1243 = vmul.f32 %v1043, %v1203
      %v1244 = vmul.f32 %v1044, %v1204
      %v1245 = vmul.f32 %v1045, %v1205
      %v1246 = vmul.f32 %v1046, %v1206
      %v1247 = vmul.f32 %v1047, %v1207
      %v1248 = vmul.f32 %v1048, %v1208
      %v1249 = vmul.f32 %v1049, %v1209
      %v1250 = vmul.f32 %v1050, %v1210
      %v1251 = vmul.f32 %v1051, %v1211
      %v1252 = vmul.f32 %v1052, %v1212
      %v1253 = vmul.f32 %v1053, %v1213
      %v1254 = vmul.f32 %v1054, %v1214
      %v1255 = vmul.f32 %v1055, %v1215
      %v1256 = vmul.f32 %v1056, %v1216
      %v1257 = vmul.f32 %v1057, %v1217
      %v1258 = vmul.f32 %v1058, %v1218
      %v1259 = vmul.f32 %v1059, %v1219
      %v1260 = vmul.f32 %v1060, %v1220
      %v1261 = vmul.f32 %v1061, %v1221
      %v1262 = vmul.f32 %v1062, %v1222
      %vm1263 = vcmask 15360
      %1264 = vst.msk [vmem:[#allocation2 + $0x2] sm:$0xff] %vm1263, %v1223
      %1265 = vst.msk [vmem:[#allocation2 + $0xa] sm:$0xff] %vm1263, %v1224
      %1266 = vst.msk [vmem:[#allocation2 + $0x1a] sm:$0xff] %vm1263, %v1225
      %1267 = vst.msk [vmem:[#allocation2 + $0x22] sm:$0xff] %vm1263, %v1226
      %1268 = vst.msk [vmem:[#allocation2 + $0x32] sm:$0xff] %vm1263, %v1227
      %1269 = vst.msk [vmem:[#allocation2 + $0x3a] sm:$0xff] %vm1263, %v1228
      %1270 = vst.msk [vmem:[#allocation2 + $0x4a] sm:$0xff] %vm1263, %v1229
      %1271 = vst.msk [vmem:[#allocation2 + $0x52] sm:$0xff] %vm1263, %v1230
      %1272 = vst.msk [vmem:[#allocation2 + $0x62] sm:$0xff] %vm1263, %v1231
      %1273 = vst.msk [vmem:[#allocation2 + $0x6a] sm:$0xff] %vm1263, %v1232
      %1274 = vst.msk [vmem:[#allocation2 + $0x7a] sm:$0xff] %vm1263, %v1233
      %1275 = vst.msk [vmem:[#allocation2 + $0x82] sm:$0xff] %vm1263, %v1234
      %1276 = vst.msk [vmem:[#allocation2 + $0x92] sm:$0xff] %vm1263, %v1235
      %1277 = vst.msk [vmem:[#allocation2 + $0x9a] sm:$0xff] %vm1263, %v1236
      %1278 = vst.msk [vmem:[#allocation2 + $0xaa] sm:$0xff] %vm1263, %v1237
      %1279 = vst.msk [vmem:[#allocation2 + $0xb2] sm:$0xff] %vm1263, %v1238
      %1280 = vst.msk [vmem:[#allocation2 + $0xc2] sm:$0xff] %vm1263, %v1239
      %1281 = vst.msk [vmem:[#allocation2 + $0xca] sm:$0xff] %vm1263, %v1240
      %1282 = vst.msk [vmem:[#allocation2 + $0xda] sm:$0xff] %vm1263, %v1241
      %1283 = vst.msk [vmem:[#allocation2 + $0xe2] sm:$0xff] %vm1263, %v1242
      %1284 = vst.msk [vmem:[#allocation2 + $0xf2] sm:$0xff] %vm1263, %v1243
      %1285 = vst.msk [vmem:[#allocation2 + $0xfa] sm:$0xff] %vm1263, %v1244
      %1286 = vst.msk [vmem:[#allocation2 + $0x10a] sm:$0xff] %vm1263, %v1245
      %1287 = vst.msk [vmem:[#allocation2 + $0x112] sm:$0xff] %vm1263, %v1246
      %1288 = vst.msk [vmem:[#allocation2 + $0x122] sm:$0xff] %vm1263, %v1247
      %1289 = vst.msk [vmem:[#allocation2 + $0x12a] sm:$0xff] %vm1263, %v1248
      %1290 = vst.msk [vmem:[#allocation2 + $0x13a] sm:$0xff] %vm1263, %v1249
      %1291 = vst.msk [vmem:[#allocation2 + $0x142] sm:$0xff] %vm1263, %v1250
      %1292 = vst.msk [vmem:[#allocation2 + $0x152] sm:$0xff] %vm1263, %v1251
      %1293 = vst.msk [vmem:[#allocation2 + $0x15a] sm:$0xff] %vm1263, %v1252
      %1294 = vst.msk [vmem:[#allocation2 + $0x16a] sm:$0xff] %vm1263, %v1253
      %1295 = vst.msk [vmem:[#allocation2 + $0x172] sm:$0xff] %vm1263, %v1254
      %1296 = vst.msk [vmem:[#allocation2 + $0x182] sm:$0xff] %vm1263, %v1255
      %1297 = vst.msk [vmem:[#allocation2 + $0x18a] sm:$0xff] %vm1263, %v1256
      %1298 = vst.msk [vmem:[#allocation2 + $0x19a] sm:$0xff] %vm1263, %v1257
      %1299 = vst.msk [vmem:[#allocation2 + $0x1a2] sm:$0xff] %vm1263, %v1258
      %1300 = vst.msk [vmem:[#allocation2 + $0x1b2] sm:$0xff] %vm1263, %v1259
      %1301 = vst.msk [vmem:[#allocation2 + $0x1ba] sm:$0xff] %vm1263, %v1260
      %1302 = vst.msk [vmem:[#allocation2 + $0x1ca] sm:$0xff] %vm1263, %v1261
      %1303 = vst.msk [vmem:[#allocation2 + $0x1d2] sm:$0xff] %vm1263, %v1262
      %p1304 = scmp.eq.s32.totalorder %s25, 0
      // Predicated region
      $region57: #{tpu_custom_call.1} parent=55 // pred_check
        %p1305 = pneg %p1304
      $region58: #{tpu_custom_call.1} parent=55 // pred_check_branch
        %1307 = sbr.rel (%p1305) target = $region60
      $region59: #{tpu_custom_call.1} parent=55 // pred_region
        %1308 = vst.msk [vmem:[#allocation2 + $0x2] sm:$0xff] %vm1263, -3.4028235e+38
        %1309 = vst.msk [vmem:[#allocation2 + $0xa] sm:$0xff] %vm1263, -3.4028235e+38
        %1310 = vst.msk [vmem:[#allocation2 + $0x1a] sm:$0xff] %vm1263, -3.4028235e+38
        %1311 = vst.msk [vmem:[#allocation2 + $0x22] sm:$0xff] %vm1263, -3.4028235e+38
        %1312 = vst.msk [vmem:[#allocation2 + $0x32] sm:$0xff] %vm1263, -3.4028235e+38
        %1313 = vst.msk [vmem:[#allocation2 + $0x3a] sm:$0xff] %vm1263, -3.4028235e+38
        %1314 = vst.msk [vmem:[#allocation2 + $0x4a] sm:$0xff] %vm1263, -3.4028235e+38
        %1315 = vst.msk [vmem:[#allocation2 + $0x52] sm:$0xff] %vm1263, -3.4028235e+38
        %1316 = vst.msk [vmem:[#allocation2 + $0x62] sm:$0xff] %vm1263, -3.4028235e+38
        %1317 = vst.msk [vmem:[#allocation2 + $0x6a] sm:$0xff] %vm1263, -3.4028235e+38
        %1318 = vst.msk [vmem:[#allocation2 + $0x7a] sm:$0xff] %vm1263, -3.4028235e+38
        %1319 = vst.msk [vmem:[#allocation2 + $0x82] sm:$0xff] %vm1263, -3.4028235e+38
      $region60: #{tpu_custom_call.1} parent=55 // pred_fallthru
        _
      %p1320 = scmp.eq.s32.totalorder %s25, 1
      // Predicated region
      $region61: #{tpu_custom_call.1} parent=55 // pred_check
        %p1321 = pneg %p1320
      $region62: #{tpu_custom_call.1} parent=55 // pred_check_branch
        %1323 = sbr.rel (%p1321) target = $region64
      $region63: #{tpu_custom_call.1} parent=55 // pred_region
        %s1324 = scalar_lea.vmem [#allocation2], 336
        %1325 = vst.msk [vmem:[%s1324 + $0x2] sm:$0xff] %vm1263, -3.4028235e+38
        %1326 = vst.msk [vmem:[%s1324 + $0xa] sm:$0xff] %vm1263, -3.4028235e+38
        %1327 = vst.msk [vmem:[%s1324 + $0x1a] sm:$0xff] %vm1263, -3.4028235e+38
        %1328 = vst.msk [vmem:[%s1324 + $0x22] sm:$0xff] %vm1263, -3.4028235e+38
        %1329 = vst.msk [vmem:[%s1324 + $0x32] sm:$0xff] %vm1263, -3.4028235e+38
        %1330 = vst.msk [vmem:[%s1324 + $0x3a] sm:$0xff] %vm1263, -3.4028235e+38
        %1331 = vst.msk [vmem:[%s1324 + $0x4a] sm:$0xff] %vm1263, -3.4028235e+38
        %1332 = vst.msk [vmem:[%s1324 + $0x52] sm:$0xff] %vm1263, -3.4028235e+38
        %1333 = vst.msk [vmem:[%s1324 + $0x62] sm:$0xff] %vm1263, -3.4028235e+38
        %1334 = vst.msk [vmem:[%s1324 + $0x6a] sm:$0xff] %vm1263, -3.4028235e+38
        %1335 = vst.msk [vmem:[%s1324 + $0x7a] sm:$0xff] %vm1263, -3.4028235e+38
        %1336 = vst.msk [vmem:[%s1324 + $0x82] sm:$0xff] %vm1263, -3.4028235e+38
      $region64: #{tpu_custom_call.1} parent=55 // pred_fallthru
        _
      %v1337 = vld [vmem:[%s6] sm:$0x3]
      %v1339 = vsel %vm1263, %v1235, 0
      %v1342 = vsel %vm1263, %v1236, 0
      %v1345 = vsel %vm1263, %v1237, 0
      %v1348 = vsel %vm1263, %v1238, 0
      %v1351 = vsel %vm1263, %v1239, 0
      %v1354 = vsel %vm1263, %v1240, 0
      %v1357 = vsel %vm1263, %v1241, 0
      %v1360 = vsel %vm1263, %v1242, 0
      %v1363 = vsel %vm1263, %v1243, 0
      %v1366 = vsel %vm1263, %v1244, 0
      %v1369 = vsel %vm1263, %v1245, 0
      %v1372 = vsel %vm1263, %v1246, 0
      %v1375 = vsel %vm1263, %v1247, 0
      %v1378 = vsel %vm1263, %v1248, 0
      %v1381 = vsel %vm1263, %v1249, 0
      %v1384 = vsel %vm1263, %v1250, 0
      %vm1386 = vcmask 1041408
      %v1388 = vsel %vm1386, %v1337, 0
      %1390 = vmatprep.subr.mxu0 0.0
      %1391 = vmatpush1.msra.mxu0 %v1388
      %1392 = vmatprep.subr.mxu0 0.0
      %1393 = vmatpush1.msra.mxu0 0.0
      %1394 = vmatprep.subr.mxu0 0.0
      %1395 = vmatpush1.msra.mxu0 0.0
      %1396 = vmatprep.subr.mxu0 0.0
      %1397 = vmatpush1.msra.mxu0 0.0
      %1398 = vmatprep.subr.mxu0 0.0
      %1399 = vmatpush1.msra.mxu0 0.0
      %1400 = vmatprep.subr.mxu0 0.0
      %1401 = vmatpush1.msra.mxu0 0.0
      %1402 = vmatprep.subr.mxu0 0.0
      %1403 = vmatpush1.msra.mxu0 0.0
      %1404 = vmatprep.subr.mxu0 0.0
      %1405 = vmatpush1.msra.mxu0 0.0
      %1406 = vmatprep.subr.mxu0 0.0
      %1407 = vmatpush1.msra.mxu0 0.0
      %1408 = vmatprep.subr.mxu0 0.0
      %1409 = vmatpush1.msra.mxu0 0.0
      %1410 = vmatprep.subr.mxu0 0.0
      %1411 = vmatpush1.msra.mxu0 0.0
      %1412 = vmatprep.subr.mxu0 0.0
      %1413 = vmatpush1.msra.mxu0 0.0
      %1414 = vmatprep.subr.mxu0 0.0
      %1415 = vmatpush1.msra.mxu0 0.0
      %1416 = vmatprep.subr.mxu0 0.0
      %1417 = vmatpush1.msra.mxu0 0.0
      %1418 = vmatprep.subr.mxu0 0.0
      %1419 = vmatpush1.msra.mxu0 0.0
      %1420 = vmatprep.subr.mxu0 0.0
      %1421 = vmatpush1.msra.mxu0 0.0
      %1422 = vmatprep.subr.mxu0 0.0
      %1423 = vmatpush1.msra.mxu0 0.0
      %1424 = vmatprep.subr.mxu0 0.0
      %1425 = vmatpush1.msra.mxu0 0.0
      %1426 = vmatprep.subr.mxu0 0.0
      %1427 = vmatpush1.msra.mxu0 0.0
      %1428 = vmatprep.subr.mxu0 0.0
      %1429 = vmatpush1.msra.mxu0 0.0
      %1430 = vmatprep.subr.mxu0 0.0
      %1431 = vmatpush1.msra.mxu0 0.0
      %1432 = vmatprep.subr.mxu0 0.0
      %1433 = vmatpush1.msra.mxu0 0.0
      %1434 = vmatprep.subr.mxu0 0.0
      %1435 = vmatpush1.msra.mxu0 0.0
      %1436 = vmatprep.subr.mxu0 0.0
      %1437 = vmatpush1.msra.mxu0 0.0
      %1438 = vmatprep.subr.mxu0 0.0
      %1439 = vmatpush1.msra.mxu0 0.0
      %1440 = vmatprep.subr.mxu0 0.0
      %1441 = vmatpush1.msra.mxu0 0.0
      %1442 = vmatprep.subr.mxu0 0.0
      %1443 = vmatpush1.msra.mxu0 0.0
      %1444 = vmatprep.subr.mxu0 0.0
      %1445 = vmatpush1.msra.mxu0 0.0
      %1446 = vmatprep.subr.mxu0 0.0
      %1447 = vmatpush1.msra.mxu0 0.0
      %1448 = vmatprep.subr.mxu0 0.0
      %1449 = vmatpush1.msra.mxu0 0.0
      %1450 = vmatprep.subr.mxu0 0.0
      %1451 = vmatpush1.msra.mxu0 0.0
      %1452 = vmatprep.subr.mxu0 0.0
      %1453 = vmatpush1.msra.mxu0 0.0
      %1454 = vmatprep.mubr.f32.mxu0 0.0
      %1455 = vmatmul.mubr.f32.gmra.mrb[0].mxu0 %v1339
      %v1456 = vpop.f32.mrb[0].mxu0
      %v1457 = vadd.f32 0.0, %v1456
      %v1458 = vpop.f32.mrb[0].mxu0
      %1459 = vmatprep.mubr.f32.mxu0 0.0
      %1460 = vmatmul.mubr.f32.gmra.mrb[0].mxu0 %v1342
      %v1461 = vpop.f32.mrb[0].mxu0
      %v1462 = vadd.f32 0.0, %v1461
      %v1463 = vpop.f32.mrb[0].mxu0
      %1464 = vmatprep.mubr.f32.mxu0 0.0
      %1465 = vmatmul.mubr.f32.gmra.mrb[0].mxu0 %v1345
      %v1466 = vpop.f32.mrb[0].mxu0
      %v1467 = vadd.f32 0.0, %v1466
      %v1468 = vpop.f32.mrb[0].mxu0
      %1469 = vmatprep.mubr.f32.mxu0 0.0
      %1470 = vmatmul.mubr.f32.gmra.mrb[0].mxu0 %v1348
      %v1471 = vpop.f32.mrb[0].mxu0
      %v1472 = vadd.f32 0.0, %v1471
      %v1473 = vpop.f32.mrb[0].mxu0
      %1474 = vmatprep.mubr.f32.mxu0 0.0
      %1475 = vmatmul.mubr.f32.gmra.mrb[0].mxu0 %v1351
      %v1476 = vpop.f32.mrb[0].mxu0
      %v1477 = vadd.f32 0.0, %v1476
      %v1478 = vpop.f32.mrb[0].mxu0
      %1479 = vmatprep.mubr.f32.mxu0 0.0
      %1480 = vmatmul.mubr.f32.gmra.mrb[0].mxu0 %v1354
      %v1481 = vpop.f32.mrb[0].mxu0
      %v1482 = vadd.f32 0.0, %v1481
      %v1483 = vpop.f32.mrb[0].mxu0
      %1484 = vmatprep.mubr.f32.mxu0 0.0
      %1485 = vmatmul.mubr.f32.gmra.mrb[0].mxu0 %v1357
      %v1486 = vpop.f32.mrb[0].mxu0
      %v1487 = vadd.f32 0.0, %v1486
      %v1488 = vpop.f32.mrb[0].mxu0
      %1489 = vmatprep.mubr.f32.mxu0 0.0
      %1490 = vmatmul.mubr.f32.gmra.mrb[0].mxu0 %v1360
      %v1491 = vpop.f32.mrb[0].mxu0
      %v1492 = vadd.f32 0.0, %v1491
      %v1493 = vpop.f32.mrb[0].mxu0
      %1494 = vmatprep.mubr.f32.mxu0 0.0
      %1495 = vmatmul.mubr.f32.gmra.mrb[0].mxu0 %v1363
      %v1496 = vpop.f32.mrb[0].mxu0
      %v1497 = vadd.f32 0.0, %v1496
      %v1498 = vpop.f32.mrb[0].mxu0
      %1499 = vmatprep.mubr.f32.mxu0 0.0
      %1500 = vmatmul.mubr.f32.gmra.mrb[0].mxu0 %v1366
      %v1501 = vpop.f32.mrb[0].mxu0
      %v1502 = vadd.f32 0.0, %v1501
      %v1503 = vpop.f32.mrb[0].mxu0
      %1504 = vmatprep.mubr.f32.mxu0 0.0
      %1505 = vmatmul.mubr.f32.gmra.mrb[0].mxu0 %v1369
      %v1506 = vpop.f32.mrb[0].mxu0
      %v1507 = vadd.f32 0.0, %v1506
      %v1508 = vpop.f32.mrb[0].mxu0
      %1509 = vmatprep.mubr.f32.mxu0 0.0
      %1510 = vmatmul.mubr.f32.gmra.mrb[0].mxu0 %v1372
      %v1511 = vpop.f32.mrb[0].mxu0
      %v1512 = vadd.f32 0.0, %v1511
      %v1513 = vpop.f32.mrb[0].mxu0
      %1514 = vmatprep.mubr.f32.mxu0 0.0
      %1515 = vmatmul.mubr.f32.gmra.mrb[0].mxu0 %v1375
      %v1516 = vpop.f32.mrb[0].mxu0
      %v1517 = vadd.f32 0.0, %v1516
      %v1518 = vpop.f32.mrb[0].mxu0
      %1519 = vmatprep.mubr.f32.mxu0 0.0
      %1520 = vmatmul.mubr.f32.gmra.mrb[0].mxu0 %v1378
      %v1521 = vpop.f32.mrb[0].mxu0
      %v1522 = vadd.f32 0.0, %v1521
      %v1523 = vpop.f32.mrb[0].mxu0
      %1524 = vmatprep.mubr.f32.mxu0 0.0
      %1525 = vmatmul.mubr.f32.gmra.mrb[0].mxu0 %v1381
      %v1526 = vpop.f32.mrb[0].mxu0
      %v1527 = vadd.f32 0.0, %v1526
      %v1528 = vpop.f32.mrb[0].mxu0
      %1529 = vmatprep.mubr.f32.mxu0 0.0
      %1530 = vmatmul.mubr.f32.gmra.mrb[0].mxu0 %v1384
      %v1531 = vpop.f32.mrb[0].mxu0
      %v1532 = vadd.f32 0.0, %v1531
      %v1533 = vpop.f32.mrb[0].mxu0
      %1534 = vdwg.mxu0
      %vm1535 = vcmask 64512
      %1536 = vst.msk [vmem:[#allocation3] sm:$0xff] %vm1535, %v1457
      %1537 = vst.msk [vmem:[#allocation3 + $0x8] sm:$0xff] %vm1535, %v1462
      %1538 = vst.msk [vmem:[#allocation3 + $0x10] sm:$0xff] %vm1535, %v1467
      %1539 = vst.msk [vmem:[#allocation3 + $0x18] sm:$0xff] %vm1535, %v1472
      %1540 = vst.msk [vmem:[#allocation3 + $0x20] sm:$0xff] %vm1535, %v1477
      %1541 = vst.msk [vmem:[#allocation3 + $0x28] sm:$0xff] %vm1535, %v1482
      %1542 = vst.msk [vmem:[#allocation3 + $0x30] sm:$0xff] %vm1535, %v1487
      %1543 = vst.msk [vmem:[#allocation3 + $0x38] sm:$0xff] %vm1535, %v1492
      %1544 = vst.msk [vmem:[#allocation3 + $0x40] sm:$0xff] %vm1535, %v1497
      %1545 = vst.msk [vmem:[#allocation3 + $0x48] sm:$0xff] %vm1535, %v1502
      %1546 = vst.msk [vmem:[#allocation3 + $0x50] sm:$0xff] %vm1535, %v1507
      %1547 = vst.msk [vmem:[#allocation3 + $0x58] sm:$0xff] %vm1535, %v1512
      %1548 = vst.msk [vmem:[#allocation3 + $0x60] sm:$0xff] %vm1535, %v1517
      %1549 = vst.msk [vmem:[#allocation3 + $0x68] sm:$0xff] %vm1535, %v1522
      %1550 = vst.msk [vmem:[#allocation3 + $0x70] sm:$0xff] %vm1535, %v1527
      %1551 = vst.msk [vmem:[#allocation3 + $0x78] sm:$0xff] %vm1535, %v1532
      %v1552 = vld [vmem:[#allocation2] sm:$0xff]
      %v1553 = vld [vmem:[#allocation2 + $0x8] sm:$0xff]
      %v1554 = vld [vmem:[#allocation2 + $0x18] sm:$0xff]
      %v1555 = vld [vmem:[#allocation2 + $0x20] sm:$0xff]
      %v1556 = vld [vmem:[#allocation2 + $0x30] sm:$0xff]
      %v1557 = vld [vmem:[#allocation2 + $0x38] sm:$0xff]
      %v1558 = vld [vmem:[#allocation2 + $0x48] sm:$0xff]
      %v1559 = vld [vmem:[#allocation2 + $0x50] sm:$0xff]
      %v1560 = vld [vmem:[#allocation2 + $0x60] sm:$0xff]
      %v1561 = vld [vmem:[#allocation2 + $0x68] sm:$0xff]
      %v1562 = vld [vmem:[#allocation2 + $0x78] sm:$0xff]
      %v1563 = vld [vmem:[#allocation2 + $0x80] sm:$0xff]
      %v1564 = vld [vmem:[#allocation2 + $0x90] sm:$0xff]
      %v1565 = vld [vmem:[#allocation2 + $0x98] sm:$0xff]
      %v1566 = vld [vmem:[#allocation2 + $0xa8] sm:$0xff]
      %v1567 = vld [vmem:[#allocation2 + $0xb0] sm:$0xff]
      %v1568 = vld [vmem:[#allocation2 + $0xc0] sm:$0xff]
      %v1569 = vld [vmem:[#allocation2 + $0xc8] sm:$0xff]
      %v1570 = vld [vmem:[#allocation2 + $0xd8] sm:$0xff]
      %v1571 = vld [vmem:[#allocation2 + $0xe0] sm:$0xff]
      %v1572 = vld [vmem:[#allocation2 + $0xf0] sm:$0xff]
      %v1573 = vld [vmem:[#allocation2 + $0xf8] sm:$0xff]
      %v1574 = vld [vmem:[#allocation2 + $0x108] sm:$0xff]
      %v1575 = vld [vmem:[#allocation2 + $0x110] sm:$0xff]
      %v1576 = vld [vmem:[#allocation2 + $0x120] sm:$0xff]
      %v1577 = vld [vmem:[#allocation2 + $0x128] sm:$0xff]
      %v1578 = vld [vmem:[#allocation2 + $0x138] sm:$0xff]
      %v1579 = vld [vmem:[#allocation2 + $0x140] sm:$0xff]
      %v1580 = vld [vmem:[#allocation2 + $0x150] sm:$0xff]
      %v1581 = vld [vmem:[#allocation2 + $0x158] sm:$0xff]
      %v1582 = vld [vmem:[#allocation2 + $0x168] sm:$0xff]
      %v1583 = vld [vmem:[#allocation2 + $0x170] sm:$0xff]
      %v1584 = vld [vmem:[#allocation2 + $0x180] sm:$0xff]
      %v1585 = vld [vmem:[#allocation2 + $0x188] sm:$0xff]
      %v1586 = vld [vmem:[#allocation2 + $0x198] sm:$0xff]
      %v1587 = vld [vmem:[#allocation2 + $0x1a0] sm:$0xff]
      %v1588 = vld [vmem:[#allocation2 + $0x1b0] sm:$0xff]
      %v1589 = vld [vmem:[#allocation2 + $0x1b8] sm:$0xff]
      %v1590 = vld [vmem:[#allocation2 + $0x1c8] sm:$0xff]
      %v1591 = vld [vmem:[#allocation2 + $0x1d0] sm:$0xff]
      %v1592 = vld [vmem:[#allocation2 + $0x1] sm:$0xff]
      %v1593 = vld [vmem:[#allocation2 + $0x9] sm:$0xff]
      %v1594 = vld [vmem:[#allocation2 + $0x19] sm:$0xff]
      %v1595 = vld [vmem:[#allocation2 + $0x21] sm:$0xff]
      %v1596 = vld [vmem:[#allocation2 + $0x31] sm:$0xff]
      %v1597 = vld [vmem:[#allocation2 + $0x39] sm:$0xff]
      %v1598 = vld [vmem:[#allocation2 + $0x49] sm:$0xff]
      %v1599 = vld [vmem:[#allocation2 + $0x51] sm:$0xff]
      %v1600 = vld [vmem:[#allocation2 + $0x61] sm:$0xff]
      %v1601 = vld [vmem:[#allocation2 + $0x69] sm:$0xff]
      %v1602 = vld [vmem:[#allocation2 + $0x79] sm:$0xff]
      %v1603 = vld [vmem:[#allocation2 + $0x81] sm:$0xff]
      %v1604 = vld [vmem:[#allocation2 + $0x91] sm:$0xff]
      %v1605 = vld [vmem:[#allocation2 + $0x99] sm:$0xff]
      %v1606 = vld [vmem:[#allocation2 + $0xa9] sm:$0xff]
      %v1607 = vld [vmem:[#allocation2 + $0xb1] sm:$0xff]
      %v1608 = vld [vmem:[#allocation2 + $0xc1] sm:$0xff]
      %v1609 = vld [vmem:[#allocation2 + $0xc9] sm:$0xff]
      %v1610 = vld [vmem:[#allocation2 + $0xd9] sm:$0xff]
      %v1611 = vld [vmem:[#allocation2 + $0xe1] sm:$0xff]
      %v1612 = vld [vmem:[#allocation2 + $0xf1] sm:$0xff]
      %v1613 = vld [vmem:[#allocation2 + $0xf9] sm:$0xff]
      %v1614 = vld [vmem:[#allocation2 + $0x109] sm:$0xff]
      %v1615 = vld [vmem:[#allocation2 + $0x111] sm:$0xff]
      %v1616 = vld [vmem:[#allocation2 + $0x121] sm:$0xff]
      %v1617 = vld [vmem:[#allocation2 + $0x129] sm:$0xff]
      %v1618 = vld [vmem:[#allocation2 + $0x139] sm:$0xff]
      %v1619 = vld [vmem:[#allocation2 + $0x141] sm:$0xff]
      %v1620 = vld [vmem:[#allocation2 + $0x151] sm:$0xff]
      %v1621 = vld [vmem:[#allocation2 + $0x159] sm:$0xff]
      %v1622 = vld [vmem:[#allocation2 + $0x169] sm:$0xff]
      %v1623 = vld [vmem:[#allocation2 + $0x171] sm:$0xff]
      %v1624 = vld [vmem:[#allocation2 + $0x181] sm:$0xff]
      %v1625 = vld [vmem:[#allocation2 + $0x189] sm:$0xff]
      %v1626 = vld [vmem:[#allocation2 + $0x199] sm:$0xff]
      %v1627 = vld [vmem:[#allocation2 + $0x1a1] sm:$0xff]
      %v1628 = vld [vmem:[#allocation2 + $0x1b1] sm:$0xff]
      %v1629 = vld [vmem:[#allocation2 + $0x1b9] sm:$0xff]
      %v1630 = vld [vmem:[#allocation2 + $0x1c9] sm:$0xff]
      %v1631 = vld [vmem:[#allocation2 + $0x1d1] sm:$0xff]
      %v1632 = vmax.f32 %v1552, %v1592
      %v1633 = vmax.f32 %v1553, %v1593
      %v1634 = vmax.f32 %v1554, %v1594
      %v1635 = vmax.f32 %v1555, %v1595
      %v1636 = vmax.f32 %v1556, %v1596
      %v1637 = vmax.f32 %v1557, %v1597
      %v1638 = vmax.f32 %v1558, %v1598
      %v1639 = vmax.f32 %v1559, %v1599
      %v1640 = vmax.f32 %v1560, %v1600
      %v1641 = vmax.f32 %v1561, %v1601
      %v1642 = vmax.f32 %v1562, %v1602
      %v1643 = vmax.f32 %v1563, %v1603
      %v1644 = vmax.f32 %v1564, %v1604
      %v1645 = vmax.f32 %v1565, %v1605
      %v1646 = vmax.f32 %v1566, %v1606
      %v1647 = vmax.f32 %v1567, %v1607
      %v1648 = vmax.f32 %v1568, %v1608
      %v1649 = vmax.f32 %v1569, %v1609
      %v1650 = vmax.f32 %v1570, %v1610
      %v1651 = vmax.f32 %v1571, %v1611
      %v1652 = vmax.f32 %v1572, %v1612
      %v1653 = vmax.f32 %v1573, %v1613
      %v1654 = vmax.f32 %v1574, %v1614
      %v1655 = vmax.f32 %v1575, %v1615
      %v1656 = vmax.f32 %v1576, %v1616
      %v1657 = vmax.f32 %v1577, %v1617
      %v1658 = vmax.f32 %v1578, %v1618
      %v1659 = vmax.f32 %v1579, %v1619
      %v1660 = vmax.f32 %v1580, %v1620
      %v1661 = vmax.f32 %v1581, %v1621
      %v1662 = vmax.f32 %v1582, %v1622
      %v1663 = vmax.f32 %v1583, %v1623
      %v1664 = vmax.f32 %v1584, %v1624
      %v1665 = vmax.f32 %v1585, %v1625
      %v1666 = vmax.f32 %v1586, %v1626
      %v1667 = vmax.f32 %v1587, %v1627
      %v1668 = vmax.f32 %v1588, %v1628
      %v1669 = vmax.f32 %v1589, %v1629
      %v1670 = vmax.f32 %v1590, %v1630
      %v1671 = vmax.f32 %v1591, %v1631
      %v1672 = vld [vmem:[#allocation2 + $0x2] sm:$0xff]
      %v1673 = vld [vmem:[#allocation2 + $0xa] sm:$0xff]
      %v1674 = vld [vmem:[#allocation2 + $0x1a] sm:$0xff]
      %v1675 = vld [vmem:[#allocation2 + $0x22] sm:$0xff]
      %v1676 = vld [vmem:[#allocation2 + $0x32] sm:$0xff]
      %v1677 = vld [vmem:[#allocation2 + $0x3a] sm:$0xff]
      %v1678 = vld [vmem:[#allocation2 + $0x4a] sm:$0xff]
      %v1679 = vld [vmem:[#allocation2 + $0x52] sm:$0xff]
      %v1680 = vld [vmem:[#allocation2 + $0x62] sm:$0xff]
      %v1681 = vld [vmem:[#allocation2 + $0x6a] sm:$0xff]
      %v1682 = vld [vmem:[#allocation2 + $0x7a] sm:$0xff]
      %v1683 = vld [vmem:[#allocation2 + $0x82] sm:$0xff]
      %v1684 = vld [vmem:[#allocation2 + $0x92] sm:$0xff]
      %v1685 = vld [vmem:[#allocation2 + $0x9a] sm:$0xff]
      %v1686 = vld [vmem:[#allocation2 + $0xaa] sm:$0xff]
      %v1687 = vld [vmem:[#allocation2 + $0xb2] sm:$0xff]
      %v1688 = vld [vmem:[#allocation2 + $0xc2] sm:$0xff]
      %v1689 = vld [vmem:[#allocation2 + $0xca] sm:$0xff]
      %v1690 = vld [vmem:[#allocation2 + $0xda] sm:$0xff]
      %v1691 = vld [vmem:[#allocation2 + $0xe2] sm:$0xff]
      %v1692 = vld [vmem:[#allocation2 + $0xf2] sm:$0xff]
      %v1693 = vld [vmem:[#allocation2 + $0xfa] sm:$0xff]
      %v1694 = vld [vmem:[#allocation2 + $0x10a] sm:$0xff]
      %v1695 = vld [vmem:[#allocation2 + $0x112] sm:$0xff]
      %v1696 = vld [vmem:[#allocation2 + $0x122] sm:$0xff]
      %v1697 = vld [vmem:[#allocation2 + $0x12a] sm:$0xff]
      %v1698 = vld [vmem:[#allocation2 + $0x13a] sm:$0xff]
      %v1699 = vld [vmem:[#allocation2 + $0x142] sm:$0xff]
      %v1700 = vld [vmem:[#allocation2 + $0x152] sm:$0xff]
      %v1701 = vld [vmem:[#allocation2 + $0x15a] sm:$0xff]
      %v1702 = vld [vmem:[#allocation2 + $0x16a] sm:$0xff]
      %v1703 = vld [vmem:[#allocation2 + $0x172] sm:$0xff]
      %v1704 = vld [vmem:[#allocation2 + $0x182] sm:$0xff]
      %v1705 = vld [vmem:[#allocation2 + $0x18a] sm:$0xff]
      %v1706 = vld [vmem:[#allocation2 + $0x19a] sm:$0xff]
      %v1707 = vld [vmem:[#allocation2 + $0x1a2] sm:$0xff]
      %v1708 = vld [vmem:[#allocation2 + $0x1b2] sm:$0xff]
      %v1709 = vld [vmem:[#allocation2 + $0x1ba] sm:$0xff]
      %v1710 = vld [vmem:[#allocation2 + $0x1ca] sm:$0xff]
      %v1711 = vld [vmem:[#allocation2 + $0x1d2] sm:$0xff]
      %v1712 = vmax.f32 %v1632, %v1672
      %v1713 = vmax.f32 %v1633, %v1673
      %v1714 = vmax.f32 %v1634, %v1674
      %v1715 = vmax.f32 %v1635, %v1675
      %v1716 = vmax.f32 %v1636, %v1676
      %v1717 = vmax.f32 %v1637, %v1677
      %v1718 = vmax.f32 %v1638, %v1678
      %v1719 = vmax.f32 %v1639, %v1679
      %v1720 = vmax.f32 %v1640, %v1680
      %v1721 = vmax.f32 %v1641, %v1681
      %v1722 = vmax.f32 %v1642, %v1682
      %v1723 = vmax.f32 %v1643, %v1683
      %v1724 = vmax.f32 %v1644, %v1684
      %v1725 = vmax.f32 %v1645, %v1685
      %v1726 = vmax.f32 %v1646, %v1686
      %v1727 = vmax.f32 %v1647, %v1687
      %v1728 = vmax.f32 %v1648, %v1688
      %v1729 = vmax.f32 %v1649, %v1689
      %v1730 = vmax.f32 %v1650, %v1690
      %v1731 = vmax.f32 %v1651, %v1691
      %v1732 = vmax.f32 %v1652, %v1692
      %v1733 = vmax.f32 %v1653, %v1693
      %v1734 = vmax.f32 %v1654, %v1694
      %v1735 = vmax.f32 %v1655, %v1695
      %v1736 = vmax.f32 %v1656, %v1696
      %v1737 = vmax.f32 %v1657, %v1697
      %v1738 = vmax.f32 %v1658, %v1698
      %v1739 = vmax.f32 %v1659, %v1699
      %v1740 = vmax.f32 %v1660, %v1700
      %v1741 = vmax.f32 %v1661, %v1701
      %v1742 = vmax.f32 %v1662, %v1702
      %v1743 = vmax.f32 %v1663, %v1703
      %v1744 = vmax.f32 %v1664, %v1704
      %v1745 = vmax.f32 %v1665, %v1705
      %v1746 = vmax.f32 %v1666, %v1706
      %v1747 = vmax.f32 %v1667, %v1707
      %v1748 = vmax.f32 %v1668, %v1708
      %v1749 = vmax.f32 %v1669, %v1709
      %v1750 = vmax.f32 %v1670, %v1710
      %v1751 = vmax.f32 %v1671, %v1711
      %v1752 = vld [vmem:[#allocation2 + $0x3] sm:$0xff]
      %v1753 = vld [vmem:[#allocation2 + $0xb] sm:$0xff]
      %v1754 = vld [vmem:[#allocation2 + $0x1b] sm:$0xff]
      %v1755 = vld [vmem:[#allocation2 + $0x23] sm:$0xff]
      %v1756 = vld [vmem:[#allocation2 + $0x33] sm:$0xff]
      %v1757 = vld [vmem:[#allocation2 + $0x3b] sm:$0xff]
      %v1758 = vld [vmem:[#allocation2 + $0x4b] sm:$0xff]
      %v1759 = vld [vmem:[#allocation2 + $0x53] sm:$0xff]
      %v1760 = vld [vmem:[#allocation2 + $0x63] sm:$0xff]
      %v1761 = vld [vmem:[#allocation2 + $0x6b] sm:$0xff]
      %v1762 = vld [vmem:[#allocation2 + $0x7b] sm:$0xff]
      %v1763 = vld [vmem:[#allocation2 + $0x83] sm:$0xff]
      %v1764 = vld [vmem:[#allocation2 + $0x93] sm:$0xff]
      %v1765 = vld [vmem:[#allocation2 + $0x9b] sm:$0xff]
      %v1766 = vld [vmem:[#allocation2 + $0xab] sm:$0xff]
      %v1767 = vld [vmem:[#allocation2 + $0xb3] sm:$0xff]
      %v1768 = vld [vmem:[#allocation2 + $0xc3] sm:$0xff]
      %v1769 = vld [vmem:[#allocation2 + $0xcb] sm:$0xff]
      %v1770 = vld [vmem:[#allocation2 + $0xdb] sm:$0xff]
      %v1771 = vld [vmem:[#allocation2 + $0xe3] sm:$0xff]
      %v1772 = vld [vmem:[#allocation2 + $0xf3] sm:$0xff]
      %v1773 = vld [vmem:[#allocation2 + $0xfb] sm:$0xff]
      %v1774 = vld [vmem:[#allocation2 + $0x10b] sm:$0xff]
      %v1775 = vld [vmem:[#allocation2 + $0x113] sm:$0xff]
      %v1776 = vld [vmem:[#allocation2 + $0x123] sm:$0xff]
      %v1777 = vld [vmem:[#allocation2 + $0x12b] sm:$0xff]
      %v1778 = vld [vmem:[#allocation2 + $0x13b] sm:$0xff]
      %v1779 = vld [vmem:[#allocation2 + $0x143] sm:$0xff]
      %v1780 = vld [vmem:[#allocation2 + $0x153] sm:$0xff]
      %v1781 = vld [vmem:[#allocation2 + $0x15b] sm:$0xff]
      %v1782 = vld [vmem:[#allocation2 + $0x16b] sm:$0xff]
      %v1783 = vld [vmem:[#allocation2 + $0x173] sm:$0xff]
      %v1784 = vld [vmem:[#allocation2 + $0x183] sm:$0xff]
      %v1785 = vld [vmem:[#allocation2 + $0x18b] sm:$0xff]
      %v1786 = vld [vmem:[#allocation2 + $0x19b] sm:$0xff]
      %v1787 = vld [vmem:[#allocation2 + $0x1a3] sm:$0xff]
      %v1788 = vld [vmem:[#allocation2 + $0x1b3] sm:$0xff]
      %v1789 = vld [vmem:[#allocation2 + $0x1bb] sm:$0xff]
      %v1790 = vld [vmem:[#allocation2 + $0x1cb] sm:$0xff]
      %v1791 = vld [vmem:[#allocation2 + $0x1d3] sm:$0xff]
      %v1792 = vmax.f32 %v1712, %v1752
      %v1793 = vmax.f32 %v1713, %v1753
      %v1794 = vmax.f32 %v1714, %v1754
      %v1795 = vmax.f32 %v1715, %v1755
      %v1796 = vmax.f32 %v1716, %v1756
      %v1797 = vmax.f32 %v1717, %v1757
      %v1798 = vmax.f32 %v1718, %v1758
      %v1799 = vmax.f32 %v1719, %v1759
      %v1800 = vmax.f32 %v1720, %v1760
      %v1801 = vmax.f32 %v1721, %v1761
      %v1802 = vmax.f32 %v1722, %v1762
      %v1803 = vmax.f32 %v1723, %v1763
      %v1804 = vmax.f32 %v1724, %v1764
      %v1805 = vmax.f32 %v1725, %v1765
      %v1806 = vmax.f32 %v1726, %v1766
      %v1807 = vmax.f32 %v1727, %v1767
      %v1808 = vmax.f32 %v1728, %v1768
      %v1809 = vmax.f32 %v1729, %v1769
      %v1810 = vmax.f32 %v1730, %v1770
      %v1811 = vmax.f32 %v1731, %v1771
      %v1812 = vmax.f32 %v1732, %v1772
      %v1813 = vmax.f32 %v1733, %v1773
      %v1814 = vmax.f32 %v1734, %v1774
      %v1815 = vmax.f32 %v1735, %v1775
      %v1816 = vmax.f32 %v1736, %v1776
      %v1817 = vmax.f32 %v1737, %v1777
      %v1818 = vmax.f32 %v1738, %v1778
      %v1819 = vmax.f32 %v1739, %v1779
      %v1820 = vmax.f32 %v1740, %v1780
      %v1821 = vmax.f32 %v1741, %v1781
      %v1822 = vmax.f32 %v1742, %v1782
      %v1823 = vmax.f32 %v1743, %v1783
      %v1824 = vmax.f32 %v1744, %v1784
      %v1825 = vmax.f32 %v1745, %v1785
      %v1826 = vmax.f32 %v1746, %v1786
      %v1827 = vmax.f32 %v1747, %v1787
      %v1828 = vmax.f32 %v1748, %v1788
      %v1829 = vmax.f32 %v1749, %v1789
      %v1830 = vmax.f32 %v1750, %v1790
      %v1831 = vmax.f32 %v1751, %v1791
      %v1832 = vld [vmem:[#allocation2 + $0x4] sm:$0xff]
      %v1833 = vld [vmem:[#allocation2 + $0xc] sm:$0xff]
      %v1834 = vld [vmem:[#allocation2 + $0x1c] sm:$0xff]
      %v1835 = vld [vmem:[#allocation2 + $0x24] sm:$0xff]
      %v1836 = vld [vmem:[#allocation2 + $0x34] sm:$0xff]
      %v1837 = vld [vmem:[#allocation2 + $0x3c] sm:$0xff]
      %v1838 = vld [vmem:[#allocation2 + $0x4c] sm:$0xff]
      %v1839 = vld [vmem:[#allocation2 + $0x54] sm:$0xff]
      %v1840 = vld [vmem:[#allocation2 + $0x64] sm:$0xff]
      %v1841 = vld [vmem:[#allocation2 + $0x6c] sm:$0xff]
      %v1842 = vld [vmem:[#allocation2 + $0x7c] sm:$0xff]
      %v1843 = vld [vmem:[#allocation2 + $0x84] sm:$0xff]
      %v1844 = vld [vmem:[#allocation2 + $0x94] sm:$0xff]
      %v1845 = vld [vmem:[#allocation2 + $0x9c] sm:$0xff]
      %v1846 = vld [vmem:[#allocation2 + $0xac] sm:$0xff]
      %v1847 = vld [vmem:[#allocation2 + $0xb4] sm:$0xff]
      %v1848 = vld [vmem:[#allocation2 + $0xc4] sm:$0xff]
      %v1849 = vld [vmem:[#allocation2 + $0xcc] sm:$0xff]
      %v1850 = vld [vmem:[#allocation2 + $0xdc] sm:$0xff]
      %v1851 = vld [vmem:[#allocation2 + $0xe4] sm:$0xff]
      %v1852 = vld [vmem:[#allocation2 + $0xf4] sm:$0xff]
      %v1853 = vld [vmem:[#allocation2 + $0xfc] sm:$0xff]
      %v1854 = vld [vmem:[#allocation2 + $0x10c] sm:$0xff]
      %v1855 = vld [vmem:[#allocation2 + $0x114] sm:$0xff]
      %v1856 = vld [vmem:[#allocation2 + $0x124] sm:$0xff]
      %v1857 = vld [vmem:[#allocation2 + $0x12c] sm:$0xff]
      %v1858 = vld [vmem:[#allocation2 + $0x13c] sm:$0xff]
      %v1859 = vld [vmem:[#allocation2 + $0x144] sm:$0xff]
      %v1860 = vld [vmem:[#allocation2 + $0x154] sm:$0xff]
      %v1861 = vld [vmem:[#allocation2 + $0x15c] sm:$0xff]
      %v1862 = vld [vmem:[#allocation2 + $0x16c] sm:$0xff]
      %v1863 = vld [vmem:[#allocation2 + $0x174] sm:$0xff]
      %v1864 = vld [vmem:[#allocation2 + $0x184] sm:$0xff]
      %v1865 = vld [vmem:[#allocation2 + $0x18c] sm:$0xff]
      %v1866 = vld [vmem:[#allocation2 + $0x19c] sm:$0xff]
      %v1867 = vld [vmem:[#allocation2 + $0x1a4] sm:$0xff]
      %v1868 = vld [vmem:[#allocation2 + $0x1b4] sm:$0xff]
      %v1869 = vld [vmem:[#allocation2 + $0x1bc] sm:$0xff]
      %v1870 = vld [vmem:[#allocation2 + $0x1cc] sm:$0xff]
      %v1871 = vld [vmem:[#allocation2 + $0x1d4] sm:$0xff]
      %v1872 = vmax.f32 %v1792, %v1832
      %v1873 = vmax.f32 %v1793, %v1833
      %v1874 = vmax.f32 %v1794, %v1834
      %v1875 = vmax.f32 %v1795, %v1835
      %v1876 = vmax.f32 %v1796, %v1836
      %v1877 = vmax.f32 %v1797, %v1837
      %v1878 = vmax.f32 %v1798, %v1838
      %v1879 = vmax.f32 %v1799, %v1839
      %v1880 = vmax.f32 %v1800, %v1840
      %v1881 = vmax.f32 %v1801, %v1841
      %v1882 = vmax.f32 %v1802, %v1842
      %v1883 = vmax.f32 %v1803, %v1843
      %v1884 = vmax.f32 %v1804, %v1844
      %v1885 = vmax.f32 %v1805, %v1845
      %v1886 = vmax.f32 %v1806, %v1846
      %v1887 = vmax.f32 %v1807, %v1847
      %v1888 = vmax.f32 %v1808, %v1848
      %v1889 = vmax.f32 %v1809, %v1849
      %v1890 = vmax.f32 %v1810, %v1850
      %v1891 = vmax.f32 %v1811, %v1851
      %v1892 = vmax.f32 %v1812, %v1852
      %v1893 = vmax.f32 %v1813, %v1853
      %v1894 = vmax.f32 %v1814, %v1854
      %v1895 = vmax.f32 %v1815, %v1855
      %v1896 = vmax.f32 %v1816, %v1856
      %v1897 = vmax.f32 %v1817, %v1857
      %v1898 = vmax.f32 %v1818, %v1858
      %v1899 = vmax.f32 %v1819, %v1859
      %v1900 = vmax.f32 %v1820, %v1860
      %v1901 = vmax.f32 %v1821, %v1861
      %v1902 = vmax.f32 %v1822, %v1862
      %v1903 = vmax.f32 %v1823, %v1863
      %v1904 = vmax.f32 %v1824, %v1864
      %v1905 = vmax.f32 %v1825, %v1865
      %v1906 = vmax.f32 %v1826, %v1866
      %v1907 = vmax.f32 %v1827, %v1867
      %v1908 = vmax.f32 %v1828, %v1868
      %v1909 = vmax.f32 %v1829, %v1869
      %v1910 = vmax.f32 %v1830, %v1870
      %v1911 = vmax.f32 %v1831, %v1871
      %v1912 = vmax.f32 %v1872, %v1874
      %v1913 = vmax.f32 %v1873, %v1875
      %v1914 = vmax.f32 %v1874, %v1876
      %v1915 = vmax.f32 %v1875, %v1877
      %v1916 = vmax.f32 %v1876, %v1878
      %v1917 = vmax.f32 %v1877, %v1879
      %v1918 = vmax.f32 %v1878, %v1880
      %v1919 = vmax.f32 %v1879, %v1881
      %v1920 = vmax.f32 %v1880, %v1882
      %v1921 = vmax.f32 %v1881, %v1883
      %v1922 = vmax.f32 %v1882, %v1884
      %v1923 = vmax.f32 %v1883, %v1885
      %v1924 = vmax.f32 %v1884, %v1886
      %v1925 = vmax.f32 %v1885, %v1887
      %v1926 = vmax.f32 %v1886, %v1888
      %v1927 = vmax.f32 %v1887, %v1889
      %v1928 = vmax.f32 %v1888, %v1890
      %v1929 = vmax.f32 %v1889, %v1891
      %v1930 = vmax.f32 %v1890, %v1892
      %v1931 = vmax.f32 %v1891, %v1893
      %v1932 = vmax.f32 %v1892, %v1894
      %v1933 = vmax.f32 %v1893, %v1895
      %v1934 = vmax.f32 %v1894, %v1896
      %v1935 = vmax.f32 %v1895, %v1897
      %v1936 = vmax.f32 %v1896, %v1898
      %v1937 = vmax.f32 %v1897, %v1899
      %v1938 = vmax.f32 %v1898, %v1900
      %v1939 = vmax.f32 %v1899, %v1901
      %v1940 = vmax.f32 %v1900, %v1902
      %v1941 = vmax.f32 %v1901, %v1903
      %v1942 = vmax.f32 %v1902, %v1904
      %v1943 = vmax.f32 %v1903, %v1905
      %v1944 = vmax.f32 %v1912, %v1876
      %v1945 = vmax.f32 %v1913, %v1877
      %v1946 = vmax.f32 %v1914, %v1878
      %v1947 = vmax.f32 %v1915, %v1879
      %v1948 = vmax.f32 %v1916, %v1880
      %v1949 = vmax.f32 %v1917, %v1881
      %v1950 = vmax.f32 %v1918, %v1882
      %v1951 = vmax.f32 %v1919, %v1883
      %v1952 = vmax.f32 %v1920, %v1884
      %v1953 = vmax.f32 %v1921, %v1885
      %v1954 = vmax.f32 %v1922, %v1886
      %v1955 = vmax.f32 %v1923, %v1887
      %v1956 = vmax.f32 %v1924, %v1888
      %v1957 = vmax.f32 %v1925, %v1889
      %v1958 = vmax.f32 %v1926, %v1890
      %v1959 = vmax.f32 %v1927, %v1891
      %v1960 = vmax.f32 %v1928, %v1892
      %v1961 = vmax.f32 %v1929, %v1893
      %v1962 = vmax.f32 %v1930, %v1894
      %v1963 = vmax.f32 %v1931, %v1895
      %v1964 = vmax.f32 %v1932, %v1896
      %v1965 = vmax.f32 %v1933, %v1897
      %v1966 = vmax.f32 %v1934, %v1898
      %v1967 = vmax.f32 %v1935, %v1899
      %v1968 = vmax.f32 %v1936, %v1900
      %v1969 = vmax.f32 %v1937, %v1901
      %v1970 = vmax.f32 %v1938, %v1902
      %v1971 = vmax.f32 %v1939, %v1903
      %v1972 = vmax.f32 %v1940, %v1904
      %v1973 = vmax.f32 %v1941, %v1905
      %v1974 = vmax.f32 %v1942, %v1906
      %v1975 = vmax.f32 %v1943, %v1907
      %v1976 = vmax.f32 %v1944, %v1878
      %v1977 = vmax.f32 %v1945, %v1879
      %v1978 = vmax.f32 %v1946, %v1880
      %v1979 = vmax.f32 %v1947, %v1881
      %v1980 = vmax.f32 %v1948, %v1882
      %v1981 = vmax.f32 %v1949, %v1883
      %v1982 = vmax.f32 %v1950, %v1884
      %v1983 = vmax.f32 %v1951, %v1885
      %v1984 = vmax.f32 %v1952, %v1886
      %v1985 = vmax.f32 %v1953, %v1887
      %v1986 = vmax.f32 %v1954, %v1888
      %v1987 = vmax.f32 %v1955, %v1889
      %v1988 = vmax.f32 %v1956, %v1890
      %v1989 = vmax.f32 %v1957, %v1891
      %v1990 = vmax.f32 %v1958, %v1892
      %v1991 = vmax.f32 %v1959, %v1893
      %v1992 = vmax.f32 %v1960, %v1894
      %v1993 = vmax.f32 %v1961, %v1895
      %v1994 = vmax.f32 %v1962, %v1896
      %v1995 = vmax.f32 %v1963, %v1897
      %v1996 = vmax.f32 %v1964, %v1898
      %v1997 = vmax.f32 %v1965, %v1899
      %v1998 = vmax.f32 %v1966, %v1900
      %v1999 = vmax.f32 %v1967, %v1901
      %v2000 = vmax.f32 %v1968, %v1902
      %v2001 = vmax.f32 %v1969, %v1903
      %v2002 = vmax.f32 %v1970, %v1904
      %v2003 = vmax.f32 %v1971, %v1905
      %v2004 = vmax.f32 %v1972, %v1906
      %v2005 = vmax.f32 %v1973, %v1907
      %v2006 = vmax.f32 %v1974, %v1908
      %v2007 = vmax.f32 %v1975, %v1909
      %v2008 = vmax.f32 %v1976, %v1880
      %v2009 = vmax.f32 %v1977, %v1881
      %v2010 = vmax.f32 %v1978, %v1882
      %v2011 = vmax.f32 %v1979, %v1883
      %v2012 = vmax.f32 %v1980, %v1884
      %v2013 = vmax.f32 %v1981, %v1885
      %v2014 = vmax.f32 %v1982, %v1886
      %v2015 = vmax.f32 %v1983, %v1887
      %v2016 = vmax.f32 %v1984, %v1888
      %v2017 = vmax.f32 %v1985, %v1889
      %v2018 = vmax.f32 %v1986, %v1890
      %v2019 = vmax.f32 %v1987, %v1891
      %v2020 = vmax.f32 %v1988, %v1892
      %v2021 = vmax.f32 %v1989, %v1893
      %v2022 = vmax.f32 %v1990, %v1894
      %v2023 = vmax.f32 %v1991, %v1895
      %v2024 = vmax.f32 %v1992, %v1896
      %v2025 = vmax.f32 %v1993, %v1897
      %v2026 = vmax.f32 %v1994, %v1898
      %v2027 = vmax.f32 %v1995, %v1899
      %v2028 = vmax.f32 %v1996, %v1900
      %v2029 = vmax.f32 %v1997, %v1901
      %v2030 = vmax.f32 %v1998, %v1902
      %v2031 = vmax.f32 %v1999, %v1903
      %v2032 = vmax.f32 %v2000, %v1904
      %v2033 = vmax.f32 %v2001, %v1905
      %v2034 = vmax.f32 %v2002, %v1906
      %v2035 = vmax.f32 %v2003, %v1907
      %v2036 = vmax.f32 %v2004, %v1908
      %v2037 = vmax.f32 %v2005, %v1909
      %v2038 = vmax.f32 %v2006, %v1910
      %v2039 = vmax.f32 %v2007, %v1911
      %v2040 = vld [vmem:[#allocation3] sm:$0xff]
      %v2041 = vld [vmem:[#allocation3 + $0x8] sm:$0xff]
      %v2042 = vld [vmem:[#allocation3 + $0x10] sm:$0xff]
      %v2043 = vld [vmem:[#allocation3 + $0x18] sm:$0xff]
      %v2044 = vld [vmem:[#allocation3 + $0x20] sm:$0xff]
      %v2045 = vld [vmem:[#allocation3 + $0x28] sm:$0xff]
      %v2046 = vld [vmem:[#allocation3 + $0x30] sm:$0xff]
      %v2047 = vld [vmem:[#allocation3 + $0x38] sm:$0xff]
      %v2048 = vld [vmem:[#allocation3 + $0x40] sm:$0xff]
      %v2049 = vld [vmem:[#allocation3 + $0x48] sm:$0xff]
      %v2050 = vld [vmem:[#allocation3 + $0x50] sm:$0xff]
      %v2051 = vld [vmem:[#allocation3 + $0x58] sm:$0xff]
      %v2052 = vld [vmem:[#allocation3 + $0x60] sm:$0xff]
      %v2053 = vld [vmem:[#allocation3 + $0x68] sm:$0xff]
      %v2054 = vld [vmem:[#allocation3 + $0x70] sm:$0xff]
      %v2055 = vld [vmem:[#allocation3 + $0x78] sm:$0xff]
      %s2056 = scalar_lea.vmem %s6, 2
      %v2057 = vld [vmem:[%s2056] sm:$0x3]
      %v2059 = vsel %vm1263, %v2016, 0
      %v2062 = vsel %vm1263, %v2017, 0
      %v2065 = vsel %vm1263, %v2018, 0
      %v2068 = vsel %vm1263, %v2019, 0
      %v2071 = vsel %vm1263, %v2020, 0
      %v2074 = vsel %vm1263, %v2021, 0
      %v2077 = vsel %vm1263, %v2022, 0
      %v2080 = vsel %vm1263, %v2023, 0
      %v2083 = vsel %vm1263, %v2024, 0
      %v2086 = vsel %vm1263, %v2025, 0
      %v2089 = vsel %vm1263, %v2026, 0
      %v2092 = vsel %vm1263, %v2027, 0
      %v2095 = vsel %vm1263, %v2028, 0
      %v2098 = vsel %vm1263, %v2029, 0
      %v2101 = vsel %vm1263, %v2030, 0
      %v2104 = vsel %vm1263, %v2031, 0
      %v2107 = vsel %vm1386, %v2057, 0
      %2109 = vmatprep.subr.mxu0 0.0
      %2110 = vmatpush1.msra.mxu0 %v2107
      %2111 = vmatprep.subr.mxu0 0.0
      %2112 = vmatpush1.msra.mxu0 0.0
      %2113 = vmatprep.subr.mxu0 0.0
      %2114 = vmatpush1.msra.mxu0 0.0
      %2115 = vmatprep.subr.mxu0 0.0
      %2116 = vmatpush1.msra.mxu0 0.0
      %2117 = vmatprep.subr.mxu0 0.0
      %2118 = vmatpush1.msra.mxu0 0.0
      %2119 = vmatprep.subr.mxu0 0.0
      %2120 = vmatpush1.msra.mxu0 0.0
      %2121 = vmatprep.subr.mxu0 0.0
      %2122 = vmatpush1.msra.mxu0 0.0
      %2123 = vmatprep.subr.mxu0 0.0
      %2124 = vmatpush1.msra.mxu0 0.0
      %2125 = vmatprep.subr.mxu0 0.0
      %2126 = vmatpush1.msra.mxu0 0.0
      %2127 = vmatprep.subr.mxu0 0.0
      %2128 = vmatpush1.msra.mxu0 0.0
      %2129 = vmatprep.subr.mxu0 0.0
      %2130 = vmatpush1.msra.mxu0 0.0
      %2131 = vmatprep.subr.mxu0 0.0
      %2132 = vmatpush1.msra.mxu0 0.0
      %2133 = vmatprep.subr.mxu0 0.0
      %2134 = vmatpush1.msra.mxu0 0.0
      %2135 = vmatprep.subr.mxu0 0.0
      %2136 = vmatpush1.msra.mxu0 0.0
      %2137 = vmatprep.subr.mxu0 0.0
      %2138 = vmatpush1.msra.mxu0 0.0
      %2139 = vmatprep.subr.mxu0 0.0
      %2140 = vmatpush1.msra.mxu0 0.0
      %2141 = vmatprep.subr.mxu0 0.0
      %2142 = vmatpush1.msra.mxu0 0.0
      %2143 = vmatprep.subr.mxu0 0.0
      %2144 = vmatpush1.msra.mxu0 0.0
      %2145 = vmatprep.subr.mxu0 0.0
      %2146 = vmatpush1.msra.mxu0 0.0
      %2147 = vmatprep.subr.mxu0 0.0
      %2148 = vmatpush1.msra.mxu0 0.0
      %2149 = vmatprep.subr.mxu0 0.0
      %2150 = vmatpush1.msra.mxu0 0.0
      %2151 = vmatprep.subr.mxu0 0.0
      %2152 = vmatpush1.msra.mxu0 0.0
      %2153 = vmatprep.subr.mxu0 0.0
      %2154 = vmatpush1.msra.mxu0 0.0
      %2155 = vmatprep.subr.mxu0 0.0
      %2156 = vmatpush1.msra.mxu0 0.0
      %2157 = vmatprep.subr.mxu0 0.0
      %2158 = vmatpush1.msra.mxu0 0.0
      %2159 = vmatprep.subr.mxu0 0.0
      %2160 = vmatpush1.msra.mxu0 0.0
      %2161 = vmatprep.subr.mxu0 0.0
      %2162 = vmatpush1.msra.mxu0 0.0
      %2163 = vmatprep.subr.mxu0 0.0
      %2164 = vmatpush1.msra.mxu0 0.0
      %2165 = vmatprep.subr.mxu0 0.0
      %2166 = vmatpush1.msra.mxu0 0.0
      %2167 = vmatprep.subr.mxu0 0.0
      %2168 = vmatpush1.msra.mxu0 0.0
      %2169 = vmatprep.subr.mxu0 0.0
      %2170 = vmatpush1.msra.mxu0 0.0
      %2171 = vmatprep.subr.mxu0 0.0
      %2172 = vmatpush1.msra.mxu0 0.0
      %2173 = vmatprep.mubr.f32.mxu0 0.0
      %2174 = vmatmul.mubr.f32.gmra.mrb[0].mxu0 %v2059
      %v2175 = vpop.f32.mrb[0].mxu0
      %v2176 = vadd.f32 0.0, %v2175
      %v2177 = vpop.f32.mrb[0].mxu0
      %2178 = vmatprep.mubr.f32.mxu0 0.0
      %2179 = vmatmul.mubr.f32.gmra.mrb[0].mxu0 %v2062
      %v2180 = vpop.f32.mrb[0].mxu0
      %v2181 = vadd.f32 0.0, %v2180
      %v2182 = vpop.f32.mrb[0].mxu0
      %2183 = vmatprep.mubr.f32.mxu0 0.0
      %2184 = vmatmul.mubr.f32.gmra.mrb[0].mxu0 %v2065
      %v2185 = vpop.f32.mrb[0].mxu0
      %v2186 = vadd.f32 0.0, %v2185
      %v2187 = vpop.f32.mrb[0].mxu0
      %2188 = vmatprep.mubr.f32.mxu0 0.0
      %2189 = vmatmul.mubr.f32.gmra.mrb[0].mxu0 %v2068
      %v2190 = vpop.f32.mrb[0].mxu0
      %v2191 = vadd.f32 0.0, %v2190
      %v2192 = vpop.f32.mrb[0].mxu0
      %2193 = vmatprep.mubr.f32.mxu0 0.0
      %2194 = vmatmul.mubr.f32.gmra.mrb[0].mxu0 %v2071
      %v2195 = vpop.f32.mrb[0].mxu0
      %v2196 = vadd.f32 0.0, %v2195
      %v2197 = vpop.f32.mrb[0].mxu0
      %2198 = vmatprep.mubr.f32.mxu0 0.0
      %2199 = vmatmul.mubr.f32.gmra.mrb[0].mxu0 %v2074
      %v2200 = vpop.f32.mrb[0].mxu0
      %v2201 = vadd.f32 0.0, %v2200
      %v2202 = vpop.f32.mrb[0].mxu0
      %2203 = vmatprep.mubr.f32.mxu0 0.0
      %2204 = vmatmul.mubr.f32.gmra.mrb[0].mxu0 %v2077
      %v2205 = vpop.f32.mrb[0].mxu0
      %v2206 = vadd.f32 0.0, %v2205
      %v2207 = vpop.f32.mrb[0].mxu0
      %2208 = vmatprep.mubr.f32.mxu0 0.0
      %2209 = vmatmul.mubr.f32.gmra.mrb[0].mxu0 %v2080
      %v2210 = vpop.f32.mrb[0].mxu0
      %v2211 = vadd.f32 0.0, %v2210
      %v2212 = vpop.f32.mrb[0].mxu0
      %2213 = vmatprep.mubr.f32.mxu0 0.0
      %2214 = vmatmul.mubr.f32.gmra.mrb[0].mxu0 %v2083
      %v2215 = vpop.f32.mrb[0].mxu0
      %v2216 = vadd.f32 0.0, %v2215
      %v2217 = vpop.f32.mrb[0].mxu0
      %2218 = vmatprep.mubr.f32.mxu0 0.0
      %2219 = vmatmul.mubr.f32.gmra.mrb[0].mxu0 %v2086
      %v2220 = vpop.f32.mrb[0].mxu0
      %v2221 = vadd.f32 0.0, %v2220
      %v2222 = vpop.f32.mrb[0].mxu0
      %2223 = vmatprep.mubr.f32.mxu0 0.0
      %2224 = vmatmul.mubr.f32.gmra.mrb[0].mxu0 %v2089
      %v2225 = vpop.f32.mrb[0].mxu0
      %v2226 = vadd.f32 0.0, %v2225
      %v2227 = vpop.f32.mrb[0].mxu0
      %2228 = vmatprep.mubr.f32.mxu0 0.0
      %2229 = vmatmul.mubr.f32.gmra.mrb[0].mxu0 %v2092
      %v2230 = vpop.f32.mrb[0].mxu0
      %v2231 = vadd.f32 0.0, %v2230
      %v2232 = vpop.f32.mrb[0].mxu0
      %2233 = vmatprep.mubr.f32.mxu0 0.0
      %2234 = vmatmul.mubr.f32.gmra.mrb[0].mxu0 %v2095
      %v2235 = vpop.f32.mrb[0].mxu0
      %v2236 = vadd.f32 0.0, %v2235
      %v2237 = vpop.f32.mrb[0].mxu0
      %2238 = vmatprep.mubr.f32.mxu0 0.0
      %2239 = vmatmul.mubr.f32.gmra.mrb[0].mxu0 %v2098
      %v2240 = vpop.f32.mrb[0].mxu0
      %v2241 = vadd.f32 0.0, %v2240
      %v2242 = vpop.f32.mrb[0].mxu0
      %2243 = vmatprep.mubr.f32.mxu0 0.0
      %2244 = vmatmul.mubr.f32.gmra.mrb[0].mxu0 %v2101
      %v2245 = vpop.f32.mrb[0].mxu0
      %v2246 = vadd.f32 0.0, %v2245
      %v2247 = vpop.f32.mrb[0].mxu0
      %2248 = vmatprep.mubr.f32.mxu0 0.0
      %2249 = vmatmul.mubr.f32.gmra.mrb[0].mxu0 %v2104
      %v2250 = vpop.f32.mrb[0].mxu0
      %v2251 = vadd.f32 0.0, %v2250
      %v2252 = vpop.f32.mrb[0].mxu0
      %2253 = vdwg.mxu0
      %v2254 = vadd.f32 %v2040, %v2176
      %v2255 = vadd.f32 %v2041, %v2181
      %v2256 = vadd.f32 %v2042, %v2186
      %v2257 = vadd.f32 %v2043, %v2191
      %v2258 = vadd.f32 %v2044, %v2196
      %v2259 = vadd.f32 %v2045, %v2201
      %v2260 = vadd.f32 %v2046, %v2206
      %v2261 = vadd.f32 %v2047, %v2211
      %v2262 = vadd.f32 %v2048, %v2216
      %v2263 = vadd.f32 %v2049, %v2221
      %v2264 = vadd.f32 %v2050, %v2226
      %v2265 = vadd.f32 %v2051, %v2231
      %v2266 = vadd.f32 %v2052, %v2236
      %v2267 = vadd.f32 %v2053, %v2241
      %v2268 = vadd.f32 %v2054, %v2246
      %v2269 = vadd.f32 %v2055, %v2251
      %2270 = vst.msk [vmem:[#allocation3] sm:$0xff] %vm1535, %v2254
      %2271 = vst.msk [vmem:[#allocation3 + $0x8] sm:$0xff] %vm1535, %v2255
      %2272 = vst.msk [vmem:[#allocation3 + $0x10] sm:$0xff] %vm1535, %v2256
      %2273 = vst.msk [vmem:[#allocation3 + $0x18] sm:$0xff] %vm1535, %v2257
      %2274 = vst.msk [vmem:[#allocation3 + $0x20] sm:$0xff] %vm1535, %v2258
      %2275 = vst.msk [vmem:[#allocation3 + $0x28] sm:$0xff] %vm1535, %v2259
      %2276 = vst.msk [vmem:[#allocation3 + $0x30] sm:$0xff] %vm1535, %v2260
      %2277 = vst.msk [vmem:[#allocation3 + $0x38] sm:$0xff] %vm1535, %v2261
      %2278 = vst.msk [vmem:[#allocation3 + $0x40] sm:$0xff] %vm1535, %v2262
      %2279 = vst.msk [vmem:[#allocation3 + $0x48] sm:$0xff] %vm1535, %v2263
      %2280 = vst.msk [vmem:[#allocation3 + $0x50] sm:$0xff] %vm1535, %v2264
      %2281 = vst.msk [vmem:[#allocation3 + $0x58] sm:$0xff] %vm1535, %v2265
      %2282 = vst.msk [vmem:[#allocation3 + $0x60] sm:$0xff] %vm1535, %v2266
      %2283 = vst.msk [vmem:[#allocation3 + $0x68] sm:$0xff] %vm1535, %v2267
      %2284 = vst.msk [vmem:[#allocation3 + $0x70] sm:$0xff] %vm1535, %v2268
      %2285 = vst.msk [vmem:[#allocation3 + $0x78] sm:$0xff] %vm1535, %v2269
      %2286 = vst.msk [vmem:[#allocation2 + $0x2] sm:$0xff] %vm1263, %v2008
      %2287 = vst.msk [vmem:[#allocation2 + $0xa] sm:$0xff] %vm1263, %v2009
      %2288 = vst.msk [vmem:[#allocation2 + $0x1a] sm:$0xff] %vm1263, %v2010
      %2289 = vst.msk [vmem:[#allocation2 + $0x22] sm:$0xff] %vm1263, %v2011
      %2290 = vst.msk [vmem:[#allocation2 + $0x32] sm:$0xff] %vm1263, %v2012
      %2291 = vst.msk [vmem:[#allocation2 + $0x3a] sm:$0xff] %vm1263, %v2013
      %2292 = vst.msk [vmem:[#allocation2 + $0x4a] sm:$0xff] %vm1263, %v2014
      %2293 = vst.msk [vmem:[#allocation2 + $0x52] sm:$0xff] %vm1263, %v2015
      %2294 = vst.msk [vmem:[#allocation2 + $0x62] sm:$0xff] %vm1263, %v2016
      %2295 = vst.msk [vmem:[#allocation2 + $0x6a] sm:$0xff] %vm1263, %v2017
      %2296 = vst.msk [vmem:[#allocation2 + $0x7a] sm:$0xff] %vm1263, %v2018
      %2297 = vst.msk [vmem:[#allocation2 + $0x82] sm:$0xff] %vm1263, %v2019
      %2298 = vst.msk [vmem:[#allocation2 + $0x92] sm:$0xff] %vm1263, %v2020
      %2299 = vst.msk [vmem:[#allocation2 + $0x9a] sm:$0xff] %vm1263, %v2021
      %2300 = vst.msk [vmem:[#allocation2 + $0xaa] sm:$0xff] %vm1263, %v2022
      %2301 = vst.msk [vmem:[#allocation2 + $0xb2] sm:$0xff] %vm1263, %v2023
      %2302 = vst.msk [vmem:[#allocation2 + $0xc2] sm:$0xff] %vm1263, %v2024
      %2303 = vst.msk [vmem:[#allocation2 + $0xca] sm:$0xff] %vm1263, %v2025
      %2304 = vst.msk [vmem:[#allocation2 + $0xda] sm:$0xff] %vm1263, %v2026
      %2305 = vst.msk [vmem:[#allocation2 + $0xe2] sm:$0xff] %vm1263, %v2027
      %2306 = vst.msk [vmem:[#allocation2 + $0xf2] sm:$0xff] %vm1263, %v2028
      %2307 = vst.msk [vmem:[#allocation2 + $0xfa] sm:$0xff] %vm1263, %v2029
      %2308 = vst.msk [vmem:[#allocation2 + $0x10a] sm:$0xff] %vm1263, %v2030
      %2309 = vst.msk [vmem:[#allocation2 + $0x112] sm:$0xff] %vm1263, %v2031
      %2310 = vst.msk [vmem:[#allocation2 + $0x122] sm:$0xff] %vm1263, %v2032
      %2311 = vst.msk [vmem:[#allocation2 + $0x12a] sm:$0xff] %vm1263, %v2033
      %2312 = vst.msk [vmem:[#allocation2 + $0x13a] sm:$0xff] %vm1263, %v2034
      %2313 = vst.msk [vmem:[#allocation2 + $0x142] sm:$0xff] %vm1263, %v2035
      %2314 = vst.msk [vmem:[#allocation2 + $0x152] sm:$0xff] %vm1263, %v2036
      %2315 = vst.msk [vmem:[#allocation2 + $0x15a] sm:$0xff] %vm1263, %v2037
      %2316 = vst.msk [vmem:[#allocation2 + $0x16a] sm:$0xff] %vm1263, %v2038
      %2317 = vst.msk [vmem:[#allocation2 + $0x172] sm:$0xff] %vm1263, %v2039
      %v2318 = vld [vmem:[#allocation2] sm:$0xff]
      %v2319 = vld [vmem:[#allocation2 + $0x8] sm:$0xff]
      %v2320 = vld [vmem:[#allocation2 + $0x18] sm:$0xff]
      %v2321 = vld [vmem:[#allocation2 + $0x20] sm:$0xff]
      %v2322 = vld [vmem:[#allocation2 + $0x30] sm:$0xff]
      %v2323 = vld [vmem:[#allocation2 + $0x38] sm:$0xff]
      %v2324 = vld [vmem:[#allocation2 + $0x48] sm:$0xff]
      %v2325 = vld [vmem:[#allocation2 + $0x50] sm:$0xff]
      %v2326 = vld [vmem:[#allocation2 + $0x60] sm:$0xff]
      %v2327 = vld [vmem:[#allocation2 + $0x68] sm:$0xff]
      %v2328 = vld [vmem:[#allocation2 + $0x78] sm:$0xff]
      %v2329 = vld [vmem:[#allocation2 + $0x80] sm:$0xff]
      %v2330 = vld [vmem:[#allocation2 + $0x90] sm:$0xff]
      %v2331 = vld [vmem:[#allocation2 + $0x98] sm:$0xff]
      %v2332 = vld [vmem:[#allocation2 + $0xa8] sm:$0xff]
      %v2333 = vld [vmem:[#allocation2 + $0xb0] sm:$0xff]
      %v2334 = vld [vmem:[#allocation2 + $0xc0] sm:$0xff]
      %v2335 = vld [vmem:[#allocation2 + $0xc8] sm:$0xff]
      %v2336 = vld [vmem:[#allocation2 + $0xd8] sm:$0xff]
      %v2337 = vld [vmem:[#allocation2 + $0xe0] sm:$0xff]
      %v2338 = vld [vmem:[#allocation2 + $0xf0] sm:$0xff]
      %v2339 = vld [vmem:[#allocation2 + $0xf8] sm:$0xff]
      %v2340 = vld [vmem:[#allocation2 + $0x108] sm:$0xff]
      %v2341 = vld [vmem:[#allocation2 + $0x110] sm:$0xff]
      %v2342 = vld [vmem:[#allocation2 + $0x120] sm:$0xff]
      %v2343 = vld [vmem:[#allocation2 + $0x128] sm:$0xff]
      %v2344 = vld [vmem:[#allocation2 + $0x138] sm:$0xff]
      %v2345 = vld [vmem:[#allocation2 + $0x140] sm:$0xff]
      %v2346 = vld [vmem:[#allocation2 + $0x150] sm:$0xff]
      %v2347 = vld [vmem:[#allocation2 + $0x158] sm:$0xff]
      %v2348 = vld [vmem:[#allocation2 + $0x168] sm:$0xff]
      %v2349 = vld [vmem:[#allocation2 + $0x170] sm:$0xff]
      %v2350 = vld [vmem:[#allocation2 + $0x1] sm:$0xff]
      %v2351 = vld [vmem:[#allocation2 + $0x9] sm:$0xff]
      %v2352 = vld [vmem:[#allocation2 + $0x19] sm:$0xff]
      %v2353 = vld [vmem:[#allocation2 + $0x21] sm:$0xff]
      %v2354 = vld [vmem:[#allocation2 + $0x31] sm:$0xff]
      %v2355 = vld [vmem:[#allocation2 + $0x39] sm:$0xff]
      %v2356 = vld [vmem:[#allocation2 + $0x49] sm:$0xff]
      %v2357 = vld [vmem:[#allocation2 + $0x51] sm:$0xff]
      %v2358 = vld [vmem:[#allocation2 + $0x61] sm:$0xff]
      %v2359 = vld [vmem:[#allocation2 + $0x69] sm:$0xff]
      %v2360 = vld [vmem:[#allocation2 + $0x79] sm:$0xff]
      %v2361 = vld [vmem:[#allocation2 + $0x81] sm:$0xff]
      %v2362 = vld [vmem:[#allocation2 + $0x91] sm:$0xff]
      %v2363 = vld [vmem:[#allocation2 + $0x99] sm:$0xff]
      %v2364 = vld [vmem:[#allocation2 + $0xa9] sm:$0xff]
      %v2365 = vld [vmem:[#allocation2 + $0xb1] sm:$0xff]
      %v2366 = vld [vmem:[#allocation2 + $0xc1] sm:$0xff]
      %v2367 = vld [vmem:[#allocation2 + $0xc9] sm:$0xff]
      %v2368 = vld [vmem:[#allocation2 + $0xd9] sm:$0xff]
      %v2369 = vld [vmem:[#allocation2 + $0xe1] sm:$0xff]
      %v2370 = vld [vmem:[#allocation2 + $0xf1] sm:$0xff]
      %v2371 = vld [vmem:[#allocation2 + $0xf9] sm:$0xff]
      %v2372 = vld [vmem:[#allocation2 + $0x109] sm:$0xff]
      %v2373 = vld [vmem:[#allocation2 + $0x111] sm:$0xff]
      %v2374 = vld [vmem:[#allocation2 + $0x121] sm:$0xff]
      %v2375 = vld [vmem:[#allocation2 + $0x129] sm:$0xff]
      %v2376 = vld [vmem:[#allocation2 + $0x139] sm:$0xff]
      %v2377 = vld [vmem:[#allocation2 + $0x141] sm:$0xff]
      %v2378 = vld [vmem:[#allocation2 + $0x151] sm:$0xff]
      %v2379 = vld [vmem:[#allocation2 + $0x159] sm:$0xff]
      %v2380 = vld [vmem:[#allocation2 + $0x169] sm:$0xff]
      %v2381 = vld [vmem:[#allocation2 + $0x171] sm:$0xff]
      %v2382 = vmax.f32 %v2318, %v2350
      %v2383 = vmax.f32 %v2319, %v2351
      %v2384 = vmax.f32 %v2320, %v2352
      %v2385 = vmax.f32 %v2321, %v2353
      %v2386 = vmax.f32 %v2322, %v2354
      %v2387 = vmax.f32 %v2323, %v2355
      %v2388 = vmax.f32 %v2324, %v2356
      %v2389 = vmax.f32 %v2325, %v2357
      %v2390 = vmax.f32 %v2326, %v2358
      %v2391 = vmax.f32 %v2327, %v2359
      %v2392 = vmax.f32 %v2328, %v2360
      %v2393 = vmax.f32 %v2329, %v2361
      %v2394 = vmax.f32 %v2330, %v2362
      %v2395 = vmax.f32 %v2331, %v2363
      %v2396 = vmax.f32 %v2332, %v2364
      %v2397 = vmax.f32 %v2333, %v2365
      %v2398 = vmax.f32 %v2334, %v2366
      %v2399 = vmax.f32 %v2335, %v2367
      %v2400 = vmax.f32 %v2336, %v2368
      %v2401 = vmax.f32 %v2337, %v2369
      %v2402 = vmax.f32 %v2338, %v2370
      %v2403 = vmax.f32 %v2339, %v2371
      %v2404 = vmax.f32 %v2340, %v2372
      %v2405 = vmax.f32 %v2341, %v2373
      %v2406 = vmax.f32 %v2342, %v2374
      %v2407 = vmax.f32 %v2343, %v2375
      %v2408 = vmax.f32 %v2344, %v2376
      %v2409 = vmax.f32 %v2345, %v2377
      %v2410 = vmax.f32 %v2346, %v2378
      %v2411 = vmax.f32 %v2347, %v2379
      %v2412 = vmax.f32 %v2348, %v2380
      %v2413 = vmax.f32 %v2349, %v2381
      %v2414 = vld [vmem:[#allocation2 + $0x2] sm:$0xff]
      %v2415 = vld [vmem:[#allocation2 + $0xa] sm:$0xff]
      %v2416 = vld [vmem:[#allocation2 + $0x1a] sm:$0xff]
      %v2417 = vld [vmem:[#allocation2 + $0x22] sm:$0xff]
      %v2418 = vld [vmem:[#allocation2 + $0x32] sm:$0xff]
      %v2419 = vld [vmem:[#allocation2 + $0x3a] sm:$0xff]
      %v2420 = vld [vmem:[#allocation2 + $0x4a] sm:$0xff]
      %v2421 = vld [vmem:[#allocation2 + $0x52] sm:$0xff]
      %v2422 = vld [vmem:[#allocation2 + $0x62] sm:$0xff]
      %v2423 = vld [vmem:[#allocation2 + $0x6a] sm:$0xff]
      %v2424 = vld [vmem:[#allocation2 + $0x7a] sm:$0xff]
      %v2425 = vld [vmem:[#allocation2 + $0x82] sm:$0xff]
      %v2426 = vld [vmem:[#allocation2 + $0x92] sm:$0xff]
      %v2427 = vld [vmem:[#allocation2 + $0x9a] sm:$0xff]
      %v2428 = vld [vmem:[#allocation2 + $0xaa] sm:$0xff]
      %v2429 = vld [vmem:[#allocation2 + $0xb2] sm:$0xff]
      %v2430 = vld [vmem:[#allocation2 + $0xc2] sm:$0xff]
      %v2431 = vld [vmem:[#allocation2 + $0xca] sm:$0xff]
      %v2432 = vld [vmem:[#allocation2 + $0xda] sm:$0xff]
      %v2433 = vld [vmem:[#allocation2 + $0xe2] sm:$0xff]
      %v2434 = vld [vmem:[#allocation2 + $0xf2] sm:$0xff]
      %v2435 = vld [vmem:[#allocation2 + $0xfa] sm:$0xff]
      %v2436 = vld [vmem:[#allocation2 + $0x10a] sm:$0xff]
      %v2437 = vld [vmem:[#allocation2 + $0x112] sm:$0xff]
      %v2438 = vld [vmem:[#allocation2 + $0x122] sm:$0xff]
      %v2439 = vld [vmem:[#allocation2 + $0x12a] sm:$0xff]
      %v2440 = vld [vmem:[#allocation2 + $0x13a] sm:$0xff]
      %v2441 = vld [vmem:[#allocation2 + $0x142] sm:$0xff]
      %v2442 = vld [vmem:[#allocation2 + $0x152] sm:$0xff]
      %v2443 = vld [vmem:[#allocation2 + $0x15a] sm:$0xff]
      %v2444 = vld [vmem:[#allocation2 + $0x16a] sm:$0xff]
      %v2445 = vld [vmem:[#allocation2 + $0x172] sm:$0xff]
      %v2446 = vmax.f32 %v2382, %v2414
      %v2447 = vmax.f32 %v2383, %v2415
      %v2448 = vmax.f32 %v2384, %v2416
      %v2449 = vmax.f32 %v2385, %v2417
      %v2450 = vmax.f32 %v2386, %v2418
      %v2451 = vmax.f32 %v2387, %v2419
      %v2452 = vmax.f32 %v2388, %v2420
      %v2453 = vmax.f32 %v2389, %v2421
      %v2454 = vmax.f32 %v2390, %v2422
      %v2455 = vmax.f32 %v2391, %v2423
      %v2456 = vmax.f32 %v2392, %v2424
      %v2457 = vmax.f32 %v2393, %v2425
      %v2458 = vmax.f32 %v2394, %v2426
      %v2459 = vmax.f32 %v2395, %v2427
      %v2460 = vmax.f32 %v2396, %v2428
      %v2461 = vmax.f32 %v2397, %v2429
      %v2462 = vmax.f32 %v2398, %v2430
      %v2463 = vmax.f32 %v2399, %v2431
      %v2464 = vmax.f32 %v2400, %v2432
      %v2465 = vmax.f32 %v2401, %v2433
      %v2466 = vmax.f32 %v2402, %v2434
      %v2467 = vmax.f32 %v2403, %v2435
      %v2468 = vmax.f32 %v2404, %v2436
      %v2469 = vmax.f32 %v2405, %v2437
      %v2470 = vmax.f32 %v2406, %v2438
      %v2471 = vmax.f32 %v2407, %v2439
      %v2472 = vmax.f32 %v2408, %v2440
      %v2473 = vmax.f32 %v2409, %v2441
      %v2474 = vmax.f32 %v2410, %v2442
      %v2475 = vmax.f32 %v2411, %v2443
      %v2476 = vmax.f32 %v2412, %v2444
      %v2477 = vmax.f32 %v2413, %v2445
      %v2478 = vld [vmem:[#allocation2 + $0x3] sm:$0xff]
      %v2479 = vld [vmem:[#allocation2 + $0xb] sm:$0xff]
      %v2480 = vld [vmem:[#allocation2 + $0x1b] sm:$0xff]
      %v2481 = vld [vmem:[#allocation2 + $0x23] sm:$0xff]
      %v2482 = vld [vmem:[#allocation2 + $0x33] sm:$0xff]
      %v2483 = vld [vmem:[#allocation2 + $0x3b] sm:$0xff]
      %v2484 = vld [vmem:[#allocation2 + $0x4b] sm:$0xff]
      %v2485 = vld [vmem:[#allocation2 + $0x53] sm:$0xff]
      %v2486 = vld [vmem:[#allocation2 + $0x63] sm:$0xff]
      %v2487 = vld [vmem:[#allocation2 + $0x6b] sm:$0xff]
      %v2488 = vld [vmem:[#allocation2 + $0x7b] sm:$0xff]
      %v2489 = vld [vmem:[#allocation2 + $0x83] sm:$0xff]
      %v2490 = vld [vmem:[#allocation2 + $0x93] sm:$0xff]
      %v2491 = vld [vmem:[#allocation2 + $0x9b] sm:$0xff]
      %v2492 = vld [vmem:[#allocation2 + $0xab] sm:$0xff]
      %v2493 = vld [vmem:[#allocation2 + $0xb3] sm:$0xff]
      %v2494 = vld [vmem:[#allocation2 + $0xc3] sm:$0xff]
      %v2495 = vld [vmem:[#allocation2 + $0xcb] sm:$0xff]
      %v2496 = vld [vmem:[#allocation2 + $0xdb] sm:$0xff]
      %v2497 = vld [vmem:[#allocation2 + $0xe3] sm:$0xff]
      %v2498 = vld [vmem:[#allocation2 + $0xf3] sm:$0xff]
      %v2499 = vld [vmem:[#allocation2 + $0xfb] sm:$0xff]
      %v2500 = vld [vmem:[#allocation2 + $0x10b] sm:$0xff]
      %v2501 = vld [vmem:[#allocation2 + $0x113] sm:$0xff]
      %v2502 = vld [vmem:[#allocation2 + $0x123] sm:$0xff]
      %v2503 = vld [vmem:[#allocation2 + $0x12b] sm:$0xff]
      %v2504 = vld [vmem:[#allocation2 + $0x13b] sm:$0xff]
      %v2505 = vld [vmem:[#allocation2 + $0x143] sm:$0xff]
      %v2506 = vld [vmem:[#allocation2 + $0x153] sm:$0xff]
      %v2507 = vld [vmem:[#allocation2 + $0x15b] sm:$0xff]
      %v2508 = vld [vmem:[#allocation2 + $0x16b] sm:$0xff]
      %v2509 = vld [vmem:[#allocation2 + $0x173] sm:$0xff]
      %v2510 = vmax.f32 %v2446, %v2478
      %v2511 = vmax.f32 %v2447, %v2479
      %v2512 = vmax.f32 %v2448, %v2480
      %v2513 = vmax.f32 %v2449, %v2481
      %v2514 = vmax.f32 %v2450, %v2482
      %v2515 = vmax.f32 %v2451, %v2483
      %v2516 = vmax.f32 %v2452, %v2484
      %v2517 = vmax.f32 %v2453, %v2485
      %v2518 = vmax.f32 %v2454, %v2486
      %v2519 = vmax.f32 %v2455, %v2487
      %v2520 = vmax.f32 %v2456, %v2488
      %v2521 = vmax.f32 %v2457, %v2489
      %v2522 = vmax.f32 %v2458, %v2490
      %v2523 = vmax.f32 %v2459, %v2491
      %v2524 = vmax.f32 %v2460, %v2492
      %v2525 = vmax.f32 %v2461, %v2493
      %v2526 = vmax.f32 %v2462, %v2494
      %v2527 = vmax.f32 %v2463, %v2495
      %v2528 = vmax.f32 %v2464, %v2496
      %v2529 = vmax.f32 %v2465, %v2497
      %v2530 = vmax.f32 %v2466, %v2498
      %v2531 = vmax.f32 %v2467, %v2499
      %v2532 = vmax.f32 %v2468, %v2500
      %v2533 = vmax.f32 %v2469, %v2501
      %v2534 = vmax.f32 %v2470, %v2502
      %v2535 = vmax.f32 %v2471, %v2503
      %v2536 = vmax.f32 %v2472, %v2504
      %v2537 = vmax.f32 %v2473, %v2505
      %v2538 = vmax.f32 %v2474, %v2506
      %v2539 = vmax.f32 %v2475, %v2507
      %v2540 = vmax.f32 %v2476, %v2508
      %v2541 = vmax.f32 %v2477, %v2509
      %v2542 = vld [vmem:[#allocation2 + $0x4] sm:$0xff]
      %v2543 = vld [vmem:[#allocation2 + $0xc] sm:$0xff]
      %v2544 = vld [vmem:[#allocation2 + $0x1c] sm:$0xff]
      %v2545 = vld [vmem:[#allocation2 + $0x24] sm:$0xff]
      %v2546 = vld [vmem:[#allocation2 + $0x34] sm:$0xff]
      %v2547 = vld [vmem:[#allocation2 + $0x3c] sm:$0xff]
      %v2548 = vld [vmem:[#allocation2 + $0x4c] sm:$0xff]
      %v2549 = vld [vmem:[#allocation2 + $0x54] sm:$0xff]
      %v2550 = vld [vmem:[#allocation2 + $0x64] sm:$0xff]
      %v2551 = vld [vmem:[#allocation2 + $0x6c] sm:$0xff]
      %v2552 = vld [vmem:[#allocation2 + $0x7c] sm:$0xff]
      %v2553 = vld [vmem:[#allocation2 + $0x84] sm:$0xff]
      %v2554 = vld [vmem:[#allocation2 + $0x94] sm:$0xff]
      %v2555 = vld [vmem:[#allocation2 + $0x9c] sm:$0xff]
      %v2556 = vld [vmem:[#allocation2 + $0xac] sm:$0xff]
      %v2557 = vld [vmem:[#allocation2 + $0xb4] sm:$0xff]
      %v2558 = vld [vmem:[#allocation2 + $0xc4] sm:$0xff]
      %v2559 = vld [vmem:[#allocation2 + $0xcc] sm:$0xff]
      %v2560 = vld [vmem:[#allocation2 + $0xdc] sm:$0xff]
      %v2561 = vld [vmem:[#allocation2 + $0xe4] sm:$0xff]
      %v2562 = vld [vmem:[#allocation2 + $0xf4] sm:$0xff]
      %v2563 = vld [vmem:[#allocation2 + $0xfc] sm:$0xff]
      %v2564 = vld [vmem:[#allocation2 + $0x10c] sm:$0xff]
      %v2565 = vld [vmem:[#allocation2 + $0x114] sm:$0xff]
      %v2566 = vld [vmem:[#allocation2 + $0x124] sm:$0xff]
      %v2567 = vld [vmem:[#allocation2 + $0x12c] sm:$0xff]
      %v2568 = vld [vmem:[#allocation2 + $0x13c] sm:$0xff]
      %v2569 = vld [vmem:[#allocation2 + $0x144] sm:$0xff]
      %v2570 = vld [vmem:[#allocation2 + $0x154] sm:$0xff]
      %v2571 = vld [vmem:[#allocation2 + $0x15c] sm:$0xff]
      %v2572 = vld [vmem:[#allocation2 + $0x16c] sm:$0xff]
      %v2573 = vld [vmem:[#allocation2 + $0x174] sm:$0xff]
      %v2574 = vmax.f32 %v2510, %v2542
      %v2575 = vmax.f32 %v2511, %v2543
      %v2576 = vmax.f32 %v2512, %v2544
      %v2577 = vmax.f32 %v2513, %v2545
      %v2578 = vmax.f32 %v2514, %v2546
      %v2579 = vmax.f32 %v2515, %v2547
      %v2580 = vmax.f32 %v2516, %v2548
      %v2581 = vmax.f32 %v2517, %v2549
      %v2582 = vmax.f32 %v2518, %v2550
      %v2583 = vmax.f32 %v2519, %v2551
      %v2584 = vmax.f32 %v2520, %v2552
      %v2585 = vmax.f32 %v2521, %v2553
      %v2586 = vmax.f32 %v2522, %v2554
      %v2587 = vmax.f32 %v2523, %v2555
      %v2588 = vmax.f32 %v2524, %v2556
      %v2589 = vmax.f32 %v2525, %v2557
      %v2590 = vmax.f32 %v2526, %v2558
      %v2591 = vmax.f32 %v2527, %v2559
      %v2592 = vmax.f32 %v2528, %v2560
      %v2593 = vmax.f32 %v2529, %v2561
      %v2594 = vmax.f32 %v2530, %v2562
      %v2595 = vmax.f32 %v2531, %v2563
      %v2596 = vmax.f32 %v2532, %v2564
      %v2597 = vmax.f32 %v2533, %v2565
      %v2598 = vmax.f32 %v2534, %v2566
      %v2599 = vmax.f32 %v2535, %v2567
      %v2600 = vmax.f32 %v2536, %v2568
      %v2601 = vmax.f32 %v2537, %v2569
      %v2602 = vmax.f32 %v2538, %v2570
      %v2603 = vmax.f32 %v2539, %v2571
      %v2604 = vmax.f32 %v2540, %v2572
      %v2605 = vmax.f32 %v2541, %v2573
      %v2606 = vmax.f32 %v2574, %v2576
      %v2607 = vmax.f32 %v2575, %v2577
      %v2608 = vmax.f32 %v2576, %v2578
      %v2609 = vmax.f32 %v2577, %v2579
      %v2610 = vmax.f32 %v2578, %v2580
      %v2611 = vmax.f32 %v2579, %v2581
      %v2612 = vmax.f32 %v2580, %v2582
      %v2613 = vmax.f32 %v2581, %v2583
      %v2614 = vmax.f32 %v2582, %v2584
      %v2615 = vmax.f32 %v2583, %v2585
      %v2616 = vmax.f32 %v2584, %v2586
      %v2617 = vmax.f32 %v2585, %v2587
      %v2618 = vmax.f32 %v2586, %v2588
      %v2619 = vmax.f32 %v2587, %v2589
      %v2620 = vmax.f32 %v2588, %v2590
      %v2621 = vmax.f32 %v2589, %v2591
      %v2622 = vmax.f32 %v2590, %v2592
      %v2623 = vmax.f32 %v2591, %v2593
      %v2624 = vmax.f32 %v2592, %v2594
      %v2625 = vmax.f32 %v2593, %v2595
      %v2626 = vmax.f32 %v2594, %v2596
      %v2627 = vmax.f32 %v2595, %v2597
      %v2628 = vmax.f32 %v2596, %v2598
      %v2629 = vmax.f32 %v2597, %v2599
      %v2630 = vmax.f32 %v2606, %v2578
      %v2631 = vmax.f32 %v2607, %v2579
      %v2632 = vmax.f32 %v2608, %v2580
      %v2633 = vmax.f32 %v2609, %v2581
      %v2634 = vmax.f32 %v2610, %v2582
      %v2635 = vmax.f32 %v2611, %v2583
      %v2636 = vmax.f32 %v2612, %v2584
      %v2637 = vmax.f32 %v2613, %v2585
      %v2638 = vmax.f32 %v2614, %v2586
      %v2639 = vmax.f32 %v2615, %v2587
      %v2640 = vmax.f32 %v2616, %v2588
      %v2641 = vmax.f32 %v2617, %v2589
      %v2642 = vmax.f32 %v2618, %v2590
      %v2643 = vmax.f32 %v2619, %v2591
      %v2644 = vmax.f32 %v2620, %v2592
      %v2645 = vmax.f32 %v2621, %v2593
      %v2646 = vmax.f32 %v2622, %v2594
      %v2647 = vmax.f32 %v2623, %v2595
      %v2648 = vmax.f32 %v2624, %v2596
      %v2649 = vmax.f32 %v2625, %v2597
      %v2650 = vmax.f32 %v2626, %v2598
      %v2651 = vmax.f32 %v2627, %v2599
      %v2652 = vmax.f32 %v2628, %v2600
      %v2653 = vmax.f32 %v2629, %v2601
      %v2654 = vmax.f32 %v2630, %v2580
      %v2655 = vmax.f32 %v2631, %v2581
      %v2656 = vmax.f32 %v2632, %v2582
      %v2657 = vmax.f32 %v2633, %v2583
      %v2658 = vmax.f32 %v2634, %v2584
      %v2659 = vmax.f32 %v2635, %v2585
      %v2660 = vmax.f32 %v2636, %v2586
      %v2661 = vmax.f32 %v2637, %v2587
      %v2662 = vmax.f32 %v2638, %v2588
      %v2663 = vmax.f32 %v2639, %v2589
      %v2664 = vmax.f32 %v2640, %v2590
      %v2665 = vmax.f32 %v2641, %v2591
      %v2666 = vmax.f32 %v2642, %v2592
      %v2667 = vmax.f32 %v2643, %v2593
      %v2668 = vmax.f32 %v2644, %v2594
      %v2669 = vmax.f32 %v2645, %v2595
      %v2670 = vmax.f32 %v2646, %v2596
      %v2671 = vmax.f32 %v2647, %v2597
      %v2672 = vmax.f32 %v2648, %v2598
      %v2673 = vmax.f32 %v2649, %v2599
      %v2674 = vmax.f32 %v2650, %v2600
      %v2675 = vmax.f32 %v2651, %v2601
      %v2676 = vmax.f32 %v2652, %v2602
      %v2677 = vmax.f32 %v2653, %v2603
      %v2678 = vmax.f32 %v2654, %v2582
      %v2679 = vmax.f32 %v2655, %v2583
      %v2680 = vmax.f32 %v2656, %v2584
      %v2681 = vmax.f32 %v2657, %v2585
      %v2682 = vmax.f32 %v2658, %v2586
      %v2683 = vmax.f32 %v2659, %v2587
      %v2684 = vmax.f32 %v2660, %v2588
      %v2685 = vmax.f32 %v2661, %v2589
      %v2686 = vmax.f32 %v2662, %v2590
      %v2687 = vmax.f32 %v2663, %v2591
      %v2688 = vmax.f32 %v2664, %v2592
      %v2689 = vmax.f32 %v2665, %v2593
      %v2690 = vmax.f32 %v2666, %v2594
      %v2691 = vmax.f32 %v2667, %v2595
      %v2692 = vmax.f32 %v2668, %v2596
      %v2693 = vmax.f32 %v2669, %v2597
      %v2694 = vmax.f32 %v2670, %v2598
      %v2695 = vmax.f32 %v2671, %v2599
      %v2696 = vmax.f32 %v2672, %v2600
      %v2697 = vmax.f32 %v2673, %v2601
      %v2698 = vmax.f32 %v2674, %v2602
      %v2699 = vmax.f32 %v2675, %v2603
      %v2700 = vmax.f32 %v2676, %v2604
      %v2701 = vmax.f32 %v2677, %v2605
      %v2702 = vld [vmem:[#allocation3] sm:$0xff]
      %v2703 = vld [vmem:[#allocation3 + $0x8] sm:$0xff]
      %v2704 = vld [vmem:[#allocation3 + $0x10] sm:$0xff]
      %v2705 = vld [vmem:[#allocation3 + $0x18] sm:$0xff]
      %v2706 = vld [vmem:[#allocation3 + $0x20] sm:$0xff]
      %v2707 = vld [vmem:[#allocation3 + $0x28] sm:$0xff]
      %v2708 = vld [vmem:[#allocation3 + $0x30] sm:$0xff]
      %v2709 = vld [vmem:[#allocation3 + $0x38] sm:$0xff]
      %v2710 = vld [vmem:[#allocation3 + $0x40] sm:$0xff]
      %v2711 = vld [vmem:[#allocation3 + $0x48] sm:$0xff]
      %v2712 = vld [vmem:[#allocation3 + $0x50] sm:$0xff]
      %v2713 = vld [vmem:[#allocation3 + $0x58] sm:$0xff]
      %v2714 = vld [vmem:[#allocation3 + $0x60] sm:$0xff]
      %v2715 = vld [vmem:[#allocation3 + $0x68] sm:$0xff]
      %v2716 = vld [vmem:[#allocation3 + $0x70] sm:$0xff]
      %v2717 = vld [vmem:[#allocation3 + $0x78] sm:$0xff]
      %s2718 = scalar_lea.vmem %s6, 4
      %v2719 = vld [vmem:[%s2718] sm:$0x3]
      %v2721 = vsel %vm1263, %v2682, 0
      %v2724 = vsel %vm1263, %v2683, 0
      %v2727 = vsel %vm1263, %v2684, 0
      %v2730 = vsel %vm1263, %v2685, 0
      %v2733 = vsel %vm1263, %v2686, 0
      %v2736 = vsel %vm1263, %v2687, 0
      %v2739 = vsel %vm1263, %v2688, 0
      %v2742 = vsel %vm1263, %v2689, 0
      %v2745 = vsel %vm1263, %v2690, 0
      %v2748 = vsel %vm1263, %v2691, 0
      %v2751 = vsel %vm1263, %v2692, 0
      %v2754 = vsel %vm1263, %v2693, 0
      %v2757 = vsel %vm1263, %v2694, 0
      %v2760 = vsel %vm1263, %v2695, 0
      %v2763 = vsel %vm1263, %v2696, 0
      %v2766 = vsel %vm1263, %v2697, 0
      %v2769 = vsel %vm1386, %v2719, 0
      %2771 = vmatprep.subr.mxu0 0.0
      %2772 = vmatpush1.msra.mxu0 %v2769
      %2773 = vmatprep.subr.mxu0 0.0
      %2774 = vmatpush1.msra.mxu0 0.0
      %2775 = vmatprep.subr.mxu0 0.0
      %2776 = vmatpush1.msra.mxu0 0.0
      %2777 = vmatprep.subr.mxu0 0.0
      %2778 = vmatpush1.msra.mxu0 0.0
      %2779 = vmatprep.subr.mxu0 0.0
      %2780 = vmatpush1.msra.mxu0 0.0
      %2781 = vmatprep.subr.mxu0 0.0
      %2782 = vmatpush1.msra.mxu0 0.0
      %2783 = vmatprep.subr.mxu0 0.0
      %2784 = vmatpush1.msra.mxu0 0.0
      %2785 = vmatprep.subr.mxu0 0.0
      %2786 = vmatpush1.msra.mxu0 0.0
      %2787 = vmatprep.subr.mxu0 0.0
      %2788 = vmatpush1.msra.mxu0 0.0
      %2789 = vmatprep.subr.mxu0 0.0
      %2790 = vmatpush1.msra.mxu0 0.0
      %2791 = vmatprep.subr.mxu0 0.0
      %2792 = vmatpush1.msra.mxu0 0.0
      %2793 = vmatprep.subr.mxu0 0.0
      %2794 = vmatpush1.msra.mxu0 0.0
      %2795 = vmatprep.subr.mxu0 0.0
      %2796 = vmatpush1.msra.mxu0 0.0
      %2797 = vmatprep.subr.mxu0 0.0
      %2798 = vmatpush1.msra.mxu0 0.0
      %2799 = vmatprep.subr.mxu0 0.0
      %2800 = vmatpush1.msra.mxu0 0.0
      %2801 = vmatprep.subr.mxu0 0.0
      %2802 = vmatpush1.msra.mxu0 0.0
      %2803 = vmatprep.subr.mxu0 0.0
      %2804 = vmatpush1.msra.mxu0 0.0
      %2805 = vmatprep.subr.mxu0 0.0
      %2806 = vmatpush1.msra.mxu0 0.0
      %2807 = vmatprep.subr.mxu0 0.0
      %2808 = vmatpush1.msra.mxu0 0.0
      %2809 = vmatprep.subr.mxu0 0.0
      %2810 = vmatpush1.msra.mxu0 0.0
      %2811 = vmatprep.subr.mxu0 0.0
      %2812 = vmatpush1.msra.mxu0 0.0
      %2813 = vmatprep.subr.mxu0 0.0
      %2814 = vmatpush1.msra.mxu0 0.0
      %2815 = vmatprep.subr.mxu0 0.0
      %2816 = vmatpush1.msra.mxu0 0.0
      %2817 = vmatprep.subr.mxu0 0.0
      %2818 = vmatpush1.msra.mxu0 0.0
      %2819 = vmatprep.subr.mxu0 0.0
      %2820 = vmatpush1.msra.mxu0 0.0
      %2821 = vmatprep.subr.mxu0 0.0
      %2822 = vmatpush1.msra.mxu0 0.0
      %2823 = vmatprep.subr.mxu0 0.0
      %2824 = vmatpush1.msra.mxu0 0.0
      %2825 = vmatprep.subr.mxu0 0.0
      %2826 = vmatpush1.msra.mxu0 0.0
      %2827 = vmatprep.subr.mxu0 0.0
      %2828 = vmatpush1.msra.mxu0 0.0
      %2829 = vmatprep.subr.mxu0 0.0
      %2830 = vmatpush1.msra.mxu0 0.0
      %2831 = vmatprep.subr.mxu0 0.0
      %2832 = vmatpush1.msra.mxu0 0.0
      %2833 = vmatprep.subr.mxu0 0.0
      %2834 = vmatpush1.msra.mxu0 0.0
      %2835 = vmatprep.mubr.f32.mxu0 0.0
      %2836 = vmatmul.mubr.f32.gmra.mrb[0].mxu0 %v2721
      %v2837 = vpop.f32.mrb[0].mxu0
      %v2838 = vadd.f32 0.0, %v2837
      %v2839 = vpop.f32.mrb[0].mxu0
      %2840 = vmatprep.mubr.f32.mxu0 0.0
      %2841 = vmatmul.mubr.f32.gmra.mrb[0].mxu0 %v2724
      %v2842 = vpop.f32.mrb[0].mxu0
      %v2843 = vadd.f32 0.0, %v2842
      %v2844 = vpop.f32.mrb[0].mxu0
      %2845 = vmatprep.mubr.f32.mxu0 0.0
      %2846 = vmatmul.mubr.f32.gmra.mrb[0].mxu0 %v2727
      %v2847 = vpop.f32.mrb[0].mxu0
      %v2848 = vadd.f32 0.0, %v2847
      %v2849 = vpop.f32.mrb[0].mxu0
      %2850 = vmatprep.mubr.f32.mxu0 0.0
      %2851 = vmatmul.mubr.f32.gmra.mrb[0].mxu0 %v2730
      %v2852 = vpop.f32.mrb[0].mxu0
      %v2853 = vadd.f32 0.0, %v2852
      %v2854 = vpop.f32.mrb[0].mxu0
      %2855 = vmatprep.mubr.f32.mxu0 0.0
      %2856 = vmatmul.mubr.f32.gmra.mrb[0].mxu0 %v2733
      %v2857 = vpop.f32.mrb[0].mxu0
      %v2858 = vadd.f32 0.0, %v2857
      %v2859 = vpop.f32.mrb[0].mxu0
      %2860 = vmatprep.mubr.f32.mxu0 0.0
      %2861 = vmatmul.mubr.f32.gmra.mrb[0].mxu0 %v2736
      %v2862 = vpop.f32.mrb[0].mxu0
      %v2863 = vadd.f32 0.0, %v2862
      %v2864 = vpop.f32.mrb[0].mxu0
      %2865 = vmatprep.mubr.f32.mxu0 0.0
      %2866 = vmatmul.mubr.f32.gmra.mrb[0].mxu0 %v2739
      %v2867 = vpop.f32.mrb[0].mxu0
      %v2868 = vadd.f32 0.0, %v2867
      %v2869 = vpop.f32.mrb[0].mxu0
      %2870 = vmatprep.mubr.f32.mxu0 0.0
      %2871 = vmatmul.mubr.f32.gmra.mrb[0].mxu0 %v2742
      %v2872 = vpop.f32.mrb[0].mxu0
      %v2873 = vadd.f32 0.0, %v2872
      %v2874 = vpop.f32.mrb[0].mxu0
      %2875 = vmatprep.mubr.f32.mxu0 0.0
      %2876 = vmatmul.mubr.f32.gmra.mrb[0].mxu0 %v2745
      %v2877 = vpop.f32.mrb[0].mxu0
      %v2878 = vadd.f32 0.0, %v2877
      %v2879 = vpop.f32.mrb[0].mxu0
      %2880 = vmatprep.mubr.f32.mxu0 0.0
      %2881 = vmatmul.mubr.f32.gmra.mrb[0].mxu0 %v2748
      %v2882 = vpop.f32.mrb[0].mxu0
      %v2883 = vadd.f32 0.0, %v2882
      %v2884 = vpop.f32.mrb[0].mxu0
      %2885 = vmatprep.mubr.f32.mxu0 0.0
      %2886 = vmatmul.mubr.f32.gmra.mrb[0].mxu0 %v2751
      %v2887 = vpop.f32.mrb[0].mxu0
      %v2888 = vadd.f32 0.0, %v2887
      %v2889 = vpop.f32.mrb[0].mxu0
      %2890 = vmatprep.mubr.f32.mxu0 0.0
      %2891 = vmatmul.mubr.f32.gmra.mrb[0].mxu0 %v2754
      %v2892 = vpop.f32.mrb[0].mxu0
      %v2893 = vadd.f32 0.0, %v2892
      %v2894 = vpop.f32.mrb[0].mxu0
      %2895 = vmatprep.mubr.f32.mxu0 0.0
      %2896 = vmatmul.mubr.f32.gmra.mrb[0].mxu0 %v2757
      %v2897 = vpop.f32.mrb[0].mxu0
      %v2898 = vadd.f32 0.0, %v2897
      %v2899 = vpop.f32.mrb[0].mxu0
      %2900 = vmatprep.mubr.f32.mxu0 0.0
      %2901 = vmatmul.mubr.f32.gmra.mrb[0].mxu0 %v2760
      %v2902 = vpop.f32.mrb[0].mxu0
      %v2903 = vadd.f32 0.0, %v2902
      %v2904 = vpop.f32.mrb[0].mxu0
      %2905 = vmatprep.mubr.f32.mxu0 0.0
      %2906 = vmatmul.mubr.f32.gmra.mrb[0].mxu0 %v2763
      %v2907 = vpop.f32.mrb[0].mxu0
      %v2908 = vadd.f32 0.0, %v2907
      %v2909 = vpop.f32.mrb[0].mxu0
      %2910 = vmatprep.mubr.f32.mxu0 0.0
      %2911 = vmatmul.mubr.f32.gmra.mrb[0].mxu0 %v2766
      %v2912 = vpop.f32.mrb[0].mxu0
      %v2913 = vadd.f32 0.0, %v2912
      %v2914 = vpop.f32.mrb[0].mxu0
      %2915 = vdwg.mxu0
      %v2916 = vadd.f32 %v2702, %v2838
      %v2917 = vadd.f32 %v2703, %v2843
      %v2918 = vadd.f32 %v2704, %v2848
      %v2919 = vadd.f32 %v2705, %v2853
      %v2920 = vadd.f32 %v2706, %v2858
      %v2921 = vadd.f32 %v2707, %v2863
      %v2922 = vadd.f32 %v2708, %v2868
      %v2923 = vadd.f32 %v2709, %v2873
      %v2924 = vadd.f32 %v2710, %v2878
      %v2925 = vadd.f32 %v2711, %v2883
      %v2926 = vadd.f32 %v2712, %v2888
      %v2927 = vadd.f32 %v2713, %v2893
      %v2928 = vadd.f32 %v2714, %v2898
      %v2929 = vadd.f32 %v2715, %v2903
      %v2930 = vadd.f32 %v2716, %v2908
      %v2931 = vadd.f32 %v2717, %v2913
      %2932 = vst.msk [vmem:[#allocation3] sm:$0xff] %vm1535, %v2916
      %2933 = vst.msk [vmem:[#allocation3 + $0x8] sm:$0xff] %vm1535, %v2917
      %2934 = vst.msk [vmem:[#allocation3 + $0x10] sm:$0xff] %vm1535, %v2918
      %2935 = vst.msk [vmem:[#allocation3 + $0x18] sm:$0xff] %vm1535, %v2919
      %2936 = vst.msk [vmem:[#allocation3 + $0x20] sm:$0xff] %vm1535, %v2920
      %2937 = vst.msk [vmem:[#allocation3 + $0x28] sm:$0xff] %vm1535, %v2921
      %2938 = vst.msk [vmem:[#allocation3 + $0x30] sm:$0xff] %vm1535, %v2922
      %2939 = vst.msk [vmem:[#allocation3 + $0x38] sm:$0xff] %vm1535, %v2923
      %2940 = vst.msk [vmem:[#allocation3 + $0x40] sm:$0xff] %vm1535, %v2924
      %2941 = vst.msk [vmem:[#allocation3 + $0x48] sm:$0xff] %vm1535, %v2925
      %2942 = vst.msk [vmem:[#allocation3 + $0x50] sm:$0xff] %vm1535, %v2926
      %2943 = vst.msk [vmem:[#allocation3 + $0x58] sm:$0xff] %vm1535, %v2927
      %2944 = vst.msk [vmem:[#allocation3 + $0x60] sm:$0xff] %vm1535, %v2928
      %2945 = vst.msk [vmem:[#allocation3 + $0x68] sm:$0xff] %vm1535, %v2929
      %2946 = vst.msk [vmem:[#allocation3 + $0x70] sm:$0xff] %vm1535, %v2930
      %2947 = vst.msk [vmem:[#allocation3 + $0x78] sm:$0xff] %vm1535, %v2931
      %2948 = vst.msk [vmem:[#allocation2 + $0x2] sm:$0xff] %vm1263, %v2678
      %2949 = vst.msk [vmem:[#allocation2 + $0xa] sm:$0xff] %vm1263, %v2679
      %2950 = vst.msk [vmem:[#allocation2 + $0x1a] sm:$0xff] %vm1263, %v2680
      %2951 = vst.msk [vmem:[#allocation2 + $0x22] sm:$0xff] %vm1263, %v2681
      %2952 = vst.msk [vmem:[#allocation2 + $0x32] sm:$0xff] %vm1263, %v2682
      %2953 = vst.msk [vmem:[#allocation2 + $0x3a] sm:$0xff] %vm1263, %v2683
      %2954 = vst.msk [vmem:[#allocation2 + $0x4a] sm:$0xff] %vm1263, %v2684
      %2955 = vst.msk [vmem:[#allocation2 + $0x52] sm:$0xff] %vm1263, %v2685
      %2956 = vst.msk [vmem:[#allocation2 + $0x62] sm:$0xff] %vm1263, %v2686
      %2957 = vst.msk [vmem:[#allocation2 + $0x6a] sm:$0xff] %vm1263, %v2687
      %2958 = vst.msk [vmem:[#allocation2 + $0x7a] sm:$0xff] %vm1263, %v2688
      %2959 = vst.msk [vmem:[#allocation2 + $0x82] sm:$0xff] %vm1263, %v2689
      %2960 = vst.msk [vmem:[#allocation2 + $0x92] sm:$0xff] %vm1263, %v2690
      %2961 = vst.msk [vmem:[#allocation2 + $0x9a] sm:$0xff] %vm1263, %v2691
      %2962 = vst.msk [vmem:[#allocation2 + $0xaa] sm:$0xff] %vm1263, %v2692
      %2963 = vst.msk [vmem:[#allocation2 + $0xb2] sm:$0xff] %vm1263, %v2693
      %2964 = vst.msk [vmem:[#allocation2 + $0xc2] sm:$0xff] %vm1263, %v2694
      %2965 = vst.msk [vmem:[#allocation2 + $0xca] sm:$0xff] %vm1263, %v2695
      %2966 = vst.msk [vmem:[#allocation2 + $0xda] sm:$0xff] %vm1263, %v2696
      %2967 = vst.msk [vmem:[#allocation2 + $0xe2] sm:$0xff] %vm1263, %v2697
      %2968 = vst.msk [vmem:[#allocation2 + $0xf2] sm:$0xff] %vm1263, %v2698
      %2969 = vst.msk [vmem:[#allocation2 + $0xfa] sm:$0xff] %vm1263, %v2699
      %2970 = vst.msk [vmem:[#allocation2 + $0x10a] sm:$0xff] %vm1263, %v2700
      %2971 = vst.msk [vmem:[#allocation2 + $0x112] sm:$0xff] %vm1263, %v2701
      %v2972 = vld [vmem:[#allocation2] sm:$0xff]
      %v2973 = vld [vmem:[#allocation2 + $0x8] sm:$0xff]
      %v2974 = vld [vmem:[#allocation2 + $0x18] sm:$0xff]
      %v2975 = vld [vmem:[#allocation2 + $0x20] sm:$0xff]
      %v2976 = vld [vmem:[#allocation2 + $0x30] sm:$0xff]
      %v2977 = vld [vmem:[#allocation2 + $0x38] sm:$0xff]
      %v2978 = vld [vmem:[#allocation2 + $0x48] sm:$0xff]
      %v2979 = vld [vmem:[#allocation2 + $0x50] sm:$0xff]
      %v2980 = vld [vmem:[#allocation2 + $0x60] sm:$0xff]
      %v2981 = vld [vmem:[#allocation2 + $0x68] sm:$0xff]
      %v2982 = vld [vmem:[#allocation2 + $0x78] sm:$0xff]
      %v2983 = vld [vmem:[#allocation2 + $0x80] sm:$0xff]
      %v2984 = vld [vmem:[#allocation2 + $0x90] sm:$0xff]
      %v2985 = vld [vmem:[#allocation2 + $0x98] sm:$0xff]
      %v2986 = vld [vmem:[#allocation2 + $0xa8] sm:$0xff]
      %v2987 = vld [vmem:[#allocation2 + $0xb0] sm:$0xff]
      %v2988 = vld [vmem:[#allocation2 + $0xc0] sm:$0xff]
      %v2989 = vld [vmem:[#allocation2 + $0xc8] sm:$0xff]
      %v2990 = vld [vmem:[#allocation2 + $0xd8] sm:$0xff]
      %v2991 = vld [vmem:[#allocation2 + $0xe0] sm:$0xff]
      %v2992 = vld [vmem:[#allocation2 + $0xf0] sm:$0xff]
      %v2993 = vld [vmem:[#allocation2 + $0xf8] sm:$0xff]
      %v2994 = vld [vmem:[#allocation2 + $0x108] sm:$0xff]
      %v2995 = vld [vmem:[#allocation2 + $0x110] sm:$0xff]
      %v2996 = vld [vmem:[#allocation2 + $0x1] sm:$0xff]
      %v2997 = vld [vmem:[#allocation2 + $0x9] sm:$0xff]
      %v2998 = vld [vmem:[#allocation2 + $0x19] sm:$0xff]
      %v2999 = vld [vmem:[#allocation2 + $0x21] sm:$0xff]
      %v3000 = vld [vmem:[#allocation2 + $0x31] sm:$0xff]
      %v3001 = vld [vmem:[#allocation2 + $0x39] sm:$0xff]
      %v3002 = vld [vmem:[#allocation2 + $0x49] sm:$0xff]
      %v3003 = vld [vmem:[#allocation2 + $0x51] sm:$0xff]
      %v3004 = vld [vmem:[#allocation2 + $0x61] sm:$0xff]
      %v3005 = vld [vmem:[#allocation2 + $0x69] sm:$0xff]
      %v3006 = vld [vmem:[#allocation2 + $0x79] sm:$0xff]
      %v3007 = vld [vmem:[#allocation2 + $0x81] sm:$0xff]
      %v3008 = vld [vmem:[#allocation2 + $0x91] sm:$0xff]
      %v3009 = vld [vmem:[#allocation2 + $0x99] sm:$0xff]
      %v3010 = vld [vmem:[#allocation2 + $0xa9] sm:$0xff]
      %v3011 = vld [vmem:[#allocation2 + $0xb1] sm:$0xff]
      %v3012 = vld [vmem:[#allocation2 + $0xc1] sm:$0xff]
      %v3013 = vld [vmem:[#allocation2 + $0xc9] sm:$0xff]
      %v3014 = vld [vmem:[#allocation2 + $0xd9] sm:$0xff]
      %v3015 = vld [vmem:[#allocation2 + $0xe1] sm:$0xff]
      %v3016 = vld [vmem:[#allocation2 + $0xf1] sm:$0xff]
      %v3017 = vld [vmem:[#allocation2 + $0xf9] sm:$0xff]
      %v3018 = vld [vmem:[#allocation2 + $0x109] sm:$0xff]
      %v3019 = vld [vmem:[#allocation2 + $0x111] sm:$0xff]
      %v3020 = vmax.f32 %v2972, %v2996
      %v3021 = vmax.f32 %v2973, %v2997
      %v3022 = vmax.f32 %v2974, %v2998
      %v3023 = vmax.f32 %v2975, %v2999
      %v3024 = vmax.f32 %v2976, %v3000
      %v3025 = vmax.f32 %v2977, %v3001
      %v3026 = vmax.f32 %v2978, %v3002
      %v3027 = vmax.f32 %v2979, %v3003
      %v3028 = vmax.f32 %v2980, %v3004
      %v3029 = vmax.f32 %v2981, %v3005
      %v3030 = vmax.f32 %v2982, %v3006
      %v3031 = vmax.f32 %v2983, %v3007
      %v3032 = vmax.f32 %v2984, %v3008
      %v3033 = vmax.f32 %v2985, %v3009
      %v3034 = vmax.f32 %v2986, %v3010
      %v3035 = vmax.f32 %v2987, %v3011
      %v3036 = vmax.f32 %v2988, %v3012
      %v3037 = vmax.f32 %v2989, %v3013
      %v3038 = vmax.f32 %v2990, %v3014
      %v3039 = vmax.f32 %v2991, %v3015
      %v3040 = vmax.f32 %v2992, %v3016
      %v3041 = vmax.f32 %v2993, %v3017
      %v3042 = vmax.f32 %v2994, %v3018
      %v3043 = vmax.f32 %v2995, %v3019
      %v3044 = vld [vmem:[#allocation2 + $0x2] sm:$0xff]
      %v3045 = vld [vmem:[#allocation2 + $0xa] sm:$0xff]
      %v3046 = vld [vmem:[#allocation2 + $0x1a] sm:$0xff]
      %v3047 = vld [vmem:[#allocation2 + $0x22] sm:$0xff]
      %v3048 = vld [vmem:[#allocation2 + $0x32] sm:$0xff]
      %v3049 = vld [vmem:[#allocation2 + $0x3a] sm:$0xff]
      %v3050 = vld [vmem:[#allocation2 + $0x4a] sm:$0xff]
      %v3051 = vld [vmem:[#allocation2 + $0x52] sm:$0xff]
      %v3052 = vld [vmem:[#allocation2 + $0x62] sm:$0xff]
      %v3053 = vld [vmem:[#allocation2 + $0x6a] sm:$0xff]
      %v3054 = vld [vmem:[#allocation2 + $0x7a] sm:$0xff]
      %v3055 = vld [vmem:[#allocation2 + $0x82] sm:$0xff]
      %v3056 = vld [vmem:[#allocation2 + $0x92] sm:$0xff]
      %v3057 = vld [vmem:[#allocation2 + $0x9a] sm:$0xff]
      %v3058 = vld [vmem:[#allocation2 + $0xaa] sm:$0xff]
      %v3059 = vld [vmem:[#allocation2 + $0xb2] sm:$0xff]
      %v3060 = vld [vmem:[#allocation2 + $0xc2] sm:$0xff]
      %v3061 = vld [vmem:[#allocation2 + $0xca] sm:$0xff]
      %v3062 = vld [vmem:[#allocation2 + $0xda] sm:$0xff]
      %v3063 = vld [vmem:[#allocation2 + $0xe2] sm:$0xff]
      %v3064 = vld [vmem:[#allocation2 + $0xf2] sm:$0xff]
      %v3065 = vld [vmem:[#allocation2 + $0xfa] sm:$0xff]
      %v3066 = vld [vmem:[#allocation2 + $0x10a] sm:$0xff]
      %v3067 = vld [vmem:[#allocation2 + $0x112] sm:$0xff]
      %v3068 = vmax.f32 %v3020, %v3044
      %v3069 = vmax.f32 %v3021, %v3045
      %v3070 = vmax.f32 %v3022, %v3046
      %v3071 = vmax.f32 %v3023, %v3047
      %v3072 = vmax.f32 %v3024, %v3048
      %v3073 = vmax.f32 %v3025, %v3049
      %v3074 = vmax.f32 %v3026, %v3050
      %v3075 = vmax.f32 %v3027, %v3051
      %v3076 = vmax.f32 %v3028, %v3052
      %v3077 = vmax.f32 %v3029, %v3053
      %v3078 = vmax.f32 %v3030, %v3054
      %v3079 = vmax.f32 %v3031, %v3055
      %v3080 = vmax.f32 %v3032, %v3056
      %v3081 = vmax.f32 %v3033, %v3057
      %v3082 = vmax.f32 %v3034, %v3058
      %v3083 = vmax.f32 %v3035, %v3059
      %v3084 = vmax.f32 %v3036, %v3060
      %v3085 = vmax.f32 %v3037, %v3061
      %v3086 = vmax.f32 %v3038, %v3062
      %v3087 = vmax.f32 %v3039, %v3063
      %v3088 = vmax.f32 %v3040, %v3064
      %v3089 = vmax.f32 %v3041, %v3065
      %v3090 = vmax.f32 %v3042, %v3066
      %v3091 = vmax.f32 %v3043, %v3067
      %v3092 = vld [vmem:[#allocation2 + $0x3] sm:$0xff]
      %v3093 = vld [vmem:[#allocation2 + $0xb] sm:$0xff]
      %v3094 = vld [vmem:[#allocation2 + $0x1b] sm:$0xff]
      %v3095 = vld [vmem:[#allocation2 + $0x23] sm:$0xff]
      %v3096 = vld [vmem:[#allocation2 + $0x33] sm:$0xff]
      %v3097 = vld [vmem:[#allocation2 + $0x3b] sm:$0xff]
      %v3098 = vld [vmem:[#allocation2 + $0x4b] sm:$0xff]
      %v3099 = vld [vmem:[#allocation2 + $0x53] sm:$0xff]
      %v3100 = vld [vmem:[#allocation2 + $0x63] sm:$0xff]
      %v3101 = vld [vmem:[#allocation2 + $0x6b] sm:$0xff]
      %v3102 = vld [vmem:[#allocation2 + $0x7b] sm:$0xff]
      %v3103 = vld [vmem:[#allocation2 + $0x83] sm:$0xff]
      %v3104 = vld [vmem:[#allocation2 + $0x93] sm:$0xff]
      %v3105 = vld [vmem:[#allocation2 + $0x9b] sm:$0xff]
      %v3106 = vld [vmem:[#allocation2 + $0xab] sm:$0xff]
      %v3107 = vld [vmem:[#allocation2 + $0xb3] sm:$0xff]
      %v3108 = vld [vmem:[#allocation2 + $0xc3] sm:$0xff]
      %v3109 = vld [vmem:[#allocation2 + $0xcb] sm:$0xff]
      %v3110 = vld [vmem:[#allocation2 + $0xdb] sm:$0xff]
      %v3111 = vld [vmem:[#allocation2 + $0xe3] sm:$0xff]
      %v3112 = vld [vmem:[#allocation2 + $0xf3] sm:$0xff]
      %v3113 = vld [vmem:[#allocation2 + $0xfb] sm:$0xff]
      %v3114 = vld [vmem:[#allocation2 + $0x10b] sm:$0xff]
      %v3115 = vld [vmem:[#allocation2 + $0x113] sm:$0xff]
      %v3116 = vmax.f32 %v3068, %v3092
      %v3117 = vmax.f32 %v3069, %v3093
      %v3118 = vmax.f32 %v3070, %v3094
      %v3119 = vmax.f32 %v3071, %v3095
      %v3120 = vmax.f32 %v3072, %v3096
      %v3121 = vmax.f32 %v3073, %v3097
      %v3122 = vmax.f32 %v3074, %v3098
      %v3123 = vmax.f32 %v3075, %v3099
      %v3124 = vmax.f32 %v3076, %v3100
      %v3125 = vmax.f32 %v3077, %v3101
      %v3126 = vmax.f32 %v3078, %v3102
      %v3127 = vmax.f32 %v3079, %v3103
      %v3128 = vmax.f32 %v3080, %v3104
      %v3129 = vmax.f32 %v3081, %v3105
      %v3130 = vmax.f32 %v3082, %v3106
      %v3131 = vmax.f32 %v3083, %v3107
      %v3132 = vmax.f32 %v3084, %v3108
      %v3133 = vmax.f32 %v3085, %v3109
      %v3134 = vmax.f32 %v3086, %v3110
      %v3135 = vmax.f32 %v3087, %v3111
      %v3136 = vmax.f32 %v3088, %v3112
      %v3137 = vmax.f32 %v3089, %v3113
      %v3138 = vmax.f32 %v3090, %v3114
      %v3139 = vmax.f32 %v3091, %v3115
      %v3140 = vld [vmem:[#allocation2 + $0x4] sm:$0xff]
      %v3141 = vld [vmem:[#allocation2 + $0xc] sm:$0xff]
      %v3142 = vld [vmem:[#allocation2 + $0x1c] sm:$0xff]
      %v3143 = vld [vmem:[#allocation2 + $0x24] sm:$0xff]
      %v3144 = vld [vmem:[#allocation2 + $0x34] sm:$0xff]
      %v3145 = vld [vmem:[#allocation2 + $0x3c] sm:$0xff]
      %v3146 = vld [vmem:[#allocation2 + $0x4c] sm:$0xff]
      %v3147 = vld [vmem:[#allocation2 + $0x54] sm:$0xff]
      %v3148 = vld [vmem:[#allocation2 + $0x64] sm:$0xff]
      %v3149 = vld [vmem:[#allocation2 + $0x6c] sm:$0xff]
      %v3150 = vld [vmem:[#allocation2 + $0x7c] sm:$0xff]
      %v3151 = vld [vmem:[#allocation2 + $0x84] sm:$0xff]
      %v3152 = vld [vmem:[#allocation2 + $0x94] sm:$0xff]
      %v3153 = vld [vmem:[#allocation2 + $0x9c] sm:$0xff]
      %v3154 = vld [vmem:[#allocation2 + $0xac] sm:$0xff]
      %v3155 = vld [vmem:[#allocation2 + $0xb4] sm:$0xff]
      %v3156 = vld [vmem:[#allocation2 + $0xc4] sm:$0xff]
      %v3157 = vld [vmem:[#allocation2 + $0xcc] sm:$0xff]
      %v3158 = vld [vmem:[#allocation2 + $0xdc] sm:$0xff]
      %v3159 = vld [vmem:[#allocation2 + $0xe4] sm:$0xff]
      %v3160 = vld [vmem:[#allocation2 + $0xf4] sm:$0xff]
      %v3161 = vld [vmem:[#allocation2 + $0xfc] sm:$0xff]
      %v3162 = vld [vmem:[#allocation2 + $0x10c] sm:$0xff]
      %v3163 = vld [vmem:[#allocation2 + $0x114] sm:$0xff]
      %v3164 = vmax.f32 %v3116, %v3140
      %v3165 = vmax.f32 %v3117, %v3141
      %v3166 = vmax.f32 %v3118, %v3142
      %v3167 = vmax.f32 %v3119, %v3143
      %v3168 = vmax.f32 %v3120, %v3144
      %v3169 = vmax.f32 %v3121, %v3145
      %v3170 = vmax.f32 %v3122, %v3146
      %v3171 = vmax.f32 %v3123, %v3147
      %v3172 = vmax.f32 %v3124, %v3148
      %v3173 = vmax.f32 %v3125, %v3149
      %v3174 = vmax.f32 %v3126, %v3150
      %v3175 = vmax.f32 %v3127, %v3151
      %v3176 = vmax.f32 %v3128, %v3152
      %v3177 = vmax.f32 %v3129, %v3153
      %v3178 = vmax.f32 %v3130, %v3154
      %v3179 = vmax.f32 %v3131, %v3155
      %v3180 = vmax.f32 %v3132, %v3156
      %v3181 = vmax.f32 %v3133, %v3157
      %v3182 = vmax.f32 %v3134, %v3158
      %v3183 = vmax.f32 %v3135, %v3159
      %v3184 = vmax.f32 %v3136, %v3160
      %v3185 = vmax.f32 %v3137, %v3161
      %v3186 = vmax.f32 %v3138, %v3162
      %v3187 = vmax.f32 %v3139, %v3163
      %v3188 = vmax.f32 %v3164, %v3166
      %v3189 = vmax.f32 %v3165, %v3167
      %v3190 = vmax.f32 %v3166, %v3168
      %v3191 = vmax.f32 %v3167, %v3169
      %v3192 = vmax.f32 %v3168, %v3170
      %v3193 = vmax.f32 %v3169, %v3171
      %v3194 = vmax.f32 %v3170, %v3172
      %v3195 = vmax.f32 %v3171, %v3173
      %v3196 = vmax.f32 %v3172, %v3174
      %v3197 = vmax.f32 %v3173, %v3175
      %v3198 = vmax.f32 %v3174, %v3176
      %v3199 = vmax.f32 %v3175, %v3177
      %v3200 = vmax.f32 %v3176, %v3178
      %v3201 = vmax.f32 %v3177, %v3179
      %v3202 = vmax.f32 %v3178, %v3180
      %v3203 = vmax.f32 %v3179, %v3181
      %v3204 = vmax.f32 %v3188, %v3168
      %v3205 = vmax.f32 %v3189, %v3169
      %v3206 = vmax.f32 %v3190, %v3170
      %v3207 = vmax.f32 %v3191, %v3171
      %v3208 = vmax.f32 %v3192, %v3172
      %v3209 = vmax.f32 %v3193, %v3173
      %v3210 = vmax.f32 %v3194, %v3174
      %v3211 = vmax.f32 %v3195, %v3175
      %v3212 = vmax.f32 %v3196, %v3176
      %v3213 = vmax.f32 %v3197, %v3177
      %v3214 = vmax.f32 %v3198, %v3178
      %v3215 = vmax.f32 %v3199, %v3179
      %v3216 = vmax.f32 %v3200, %v3180
      %v3217 = vmax.f32 %v3201, %v3181
      %v3218 = vmax.f32 %v3202, %v3182
      %v3219 = vmax.f32 %v3203, %v3183
      %v3220 = vmax.f32 %v3204, %v3170
      %v3221 = vmax.f32 %v3205, %v3171
      %v3222 = vmax.f32 %v3206, %v3172
      %v3223 = vmax.f32 %v3207, %v3173
      %v3224 = vmax.f32 %v3208, %v3174
      %v3225 = vmax.f32 %v3209, %v3175
      %v3226 = vmax.f32 %v3210, %v3176
      %v3227 = vmax.f32 %v3211, %v3177
      %v3228 = vmax.f32 %v3212, %v3178
      %v3229 = vmax.f32 %v3213, %v3179
      %v3230 = vmax.f32 %v3214, %v3180
      %v3231 = vmax.f32 %v3215, %v3181
      %v3232 = vmax.f32 %v3216, %v3182
      %v3233 = vmax.f32 %v3217, %v3183
      %v3234 = vmax.f32 %v3218, %v3184
      %v3235 = vmax.f32 %v3219, %v3185
      %v3236 = vmax.f32 %v3220, %v3172
      %v3237 = vmax.f32 %v3221, %v3173
      %v3238 = vmax.f32 %v3222, %v3174
      %v3239 = vmax.f32 %v3223, %v3175
      %v3240 = vmax.f32 %v3224, %v3176
      %v3241 = vmax.f32 %v3225, %v3177
      %v3242 = vmax.f32 %v3226, %v3178
      %v3243 = vmax.f32 %v3227, %v3179
      %v3244 = vmax.f32 %v3228, %v3180
      %v3245 = vmax.f32 %v3229, %v3181
      %v3246 = vmax.f32 %v3230, %v3182
      %v3247 = vmax.f32 %v3231, %v3183
      %v3248 = vmax.f32 %v3232, %v3184
      %v3249 = vmax.f32 %v3233, %v3185
      %v3250 = vmax.f32 %v3234, %v3186
      %v3251 = vmax.f32 %v3235, %v3187
      %v3252 = vld [vmem:[#allocation3] sm:$0xff]
      %v3253 = vld [vmem:[#allocation3 + $0x8] sm:$0xff]
      %v3254 = vld [vmem:[#allocation3 + $0x10] sm:$0xff]
      %v3255 = vld [vmem:[#allocation3 + $0x18] sm:$0xff]
      %v3256 = vld [vmem:[#allocation3 + $0x20] sm:$0xff]
      %v3257 = vld [vmem:[#allocation3 + $0x28] sm:$0xff]
      %v3258 = vld [vmem:[#allocation3 + $0x30] sm:$0xff]
      %v3259 = vld [vmem:[#allocation3 + $0x38] sm:$0xff]
      %v3260 = vld [vmem:[#allocation3 + $0x40] sm:$0xff]
      %v3261 = vld [vmem:[#allocation3 + $0x48] sm:$0xff]
      %v3262 = vld [vmem:[#allocation3 + $0x50] sm:$0xff]
      %v3263 = vld [vmem:[#allocation3 + $0x58] sm:$0xff]
      %v3264 = vld [vmem:[#allocation3 + $0x60] sm:$0xff]
      %v3265 = vld [vmem:[#allocation3 + $0x68] sm:$0xff]
      %v3266 = vld [vmem:[#allocation3 + $0x70] sm:$0xff]
      %v3267 = vld [vmem:[#allocation3 + $0x78] sm:$0xff]
      %s3268 = scalar_lea.vmem %s6, 6
      %v3269 = vld [vmem:[%s3268] sm:$0x3]
      %v3271 = vsel %vm1263, %v3236, 0
      %v3274 = vsel %vm1263, %v3237, 0
      %v3277 = vsel %vm1263, %v3238, 0
      %v3280 = vsel %vm1263, %v3239, 0
      %v3283 = vsel %vm1263, %v3240, 0
      %v3286 = vsel %vm1263, %v3241, 0
      %v3289 = vsel %vm1263, %v3242, 0
      %v3292 = vsel %vm1263, %v3243, 0
      %v3295 = vsel %vm1263, %v3244, 0
      %v3298 = vsel %vm1263, %v3245, 0
      %v3301 = vsel %vm1263, %v3246, 0
      %v3304 = vsel %vm1263, %v3247, 0
      %v3307 = vsel %vm1263, %v3248, 0
      %v3310 = vsel %vm1263, %v3249, 0
      %v3313 = vsel %vm1263, %v3250, 0
      %v3316 = vsel %vm1263, %v3251, 0
      %v3319 = vsel %vm1386, %v3269, 0
      %3321 = vmatprep.subr.mxu0 0.0
      %3322 = vmatpush1.msra.mxu0 %v3319
      %3323 = vmatprep.subr.mxu0 0.0
      %3324 = vmatpush1.msra.mxu0 0.0
      %3325 = vmatprep.subr.mxu0 0.0
      %3326 = vmatpush1.msra.mxu0 0.0
      %3327 = vmatprep.subr.mxu0 0.0
      %3328 = vmatpush1.msra.mxu0 0.0
      %3329 = vmatprep.subr.mxu0 0.0
      %3330 = vmatpush1.msra.mxu0 0.0
      %3331 = vmatprep.subr.mxu0 0.0
      %3332 = vmatpush1.msra.mxu0 0.0
      %3333 = vmatprep.subr.mxu0 0.0
      %3334 = vmatpush1.msra.mxu0 0.0
      %3335 = vmatprep.subr.mxu0 0.0
      %3336 = vmatpush1.msra.mxu0 0.0
      %3337 = vmatprep.subr.mxu0 0.0
      %3338 = vmatpush1.msra.mxu0 0.0
      %3339 = vmatprep.subr.mxu0 0.0
      %3340 = vmatpush1.msra.mxu0 0.0
      %3341 = vmatprep.subr.mxu0 0.0
      %3342 = vmatpush1.msra.mxu0 0.0
      %3343 = vmatprep.subr.mxu0 0.0
      %3344 = vmatpush1.msra.mxu0 0.0
      %3345 = vmatprep.subr.mxu0 0.0
      %3346 = vmatpush1.msra.mxu0 0.0
      %3347 = vmatprep.subr.mxu0 0.0
      %3348 = vmatpush1.msra.mxu0 0.0
      %3349 = vmatprep.subr.mxu0 0.0
      %3350 = vmatpush1.msra.mxu0 0.0
      %3351 = vmatprep.subr.mxu0 0.0
      %3352 = vmatpush1.msra.mxu0 0.0
      %3353 = vmatprep.subr.mxu0 0.0
      %3354 = vmatpush1.msra.mxu0 0.0
      %3355 = vmatprep.subr.mxu0 0.0
      %3356 = vmatpush1.msra.mxu0 0.0
      %3357 = vmatprep.subr.mxu0 0.0
      %3358 = vmatpush1.msra.mxu0 0.0
      %3359 = vmatprep.subr.mxu0 0.0
      %3360 = vmatpush1.msra.mxu0 0.0
      %3361 = vmatprep.subr.mxu0 0.0
      %3362 = vmatpush1.msra.mxu0 0.0
      %3363 = vmatprep.subr.mxu0 0.0
      %3364 = vmatpush1.msra.mxu0 0.0
      %3365 = vmatprep.subr.mxu0 0.0
      %3366 = vmatpush1.msra.mxu0 0.0
      %3367 = vmatprep.subr.mxu0 0.0
      %3368 = vmatpush1.msra.mxu0 0.0
      %3369 = vmatprep.subr.mxu0 0.0
      %3370 = vmatpush1.msra.mxu0 0.0
      %3371 = vmatprep.subr.mxu0 0.0
      %3372 = vmatpush1.msra.mxu0 0.0
      %3373 = vmatprep.subr.mxu0 0.0
      %3374 = vmatpush1.msra.mxu0 0.0
      %3375 = vmatprep.subr.mxu0 0.0
      %3376 = vmatpush1.msra.mxu0 0.0
      %3377 = vmatprep.subr.mxu0 0.0
      %3378 = vmatpush1.msra.mxu0 0.0
      %3379 = vmatprep.subr.mxu0 0.0
      %3380 = vmatpush1.msra.mxu0 0.0
      %3381 = vmatprep.subr.mxu0 0.0
      %3382 = vmatpush1.msra.mxu0 0.0
      %3383 = vmatprep.subr.mxu0 0.0
      %3384 = vmatpush1.msra.mxu0 0.0
      %3385 = vmatprep.mubr.f32.mxu0 0.0
      %3386 = vmatmul.mubr.f32.gmra.mrb[0].mxu0 %v3271
      %v3387 = vpop.f32.mrb[0].mxu0
      %v3388 = vadd.f32 0.0, %v3387
      %v3389 = vpop.f32.mrb[0].mxu0
      %3390 = vmatprep.mubr.f32.mxu0 0.0
      %3391 = vmatmul.mubr.f32.gmra.mrb[0].mxu0 %v3274
      %v3392 = vpop.f32.mrb[0].mxu0
      %v3393 = vadd.f32 0.0, %v3392
      %v3394 = vpop.f32.mrb[0].mxu0
      %3395 = vmatprep.mubr.f32.mxu0 0.0
      %3396 = vmatmul.mubr.f32.gmra.mrb[0].mxu0 %v3277
      %v3397 = vpop.f32.mrb[0].mxu0
      %v3398 = vadd.f32 0.0, %v3397
      %v3399 = vpop.f32.mrb[0].mxu0
      %3400 = vmatprep.mubr.f32.mxu0 0.0
      %3401 = vmatmul.mubr.f32.gmra.mrb[0].mxu0 %v3280
      %v3402 = vpop.f32.mrb[0].mxu0
      %v3403 = vadd.f32 0.0, %v3402
      %v3404 = vpop.f32.mrb[0].mxu0
      %3405 = vmatprep.mubr.f32.mxu0 0.0
      %3406 = vmatmul.mubr.f32.gmra.mrb[0].mxu0 %v3283
      %v3407 = vpop.f32.mrb[0].mxu0
      %v3408 = vadd.f32 0.0, %v3407
      %v3409 = vpop.f32.mrb[0].mxu0
      %3410 = vmatprep.mubr.f32.mxu0 0.0
      %3411 = vmatmul.mubr.f32.gmra.mrb[0].mxu0 %v3286
      %v3412 = vpop.f32.mrb[0].mxu0
      %v3413 = vadd.f32 0.0, %v3412
      %v3414 = vpop.f32.mrb[0].mxu0
      %3415 = vmatprep.mubr.f32.mxu0 0.0
      %3416 = vmatmul.mubr.f32.gmra.mrb[0].mxu0 %v3289
      %v3417 = vpop.f32.mrb[0].mxu0
      %v3418 = vadd.f32 0.0, %v3417
      %v3419 = vpop.f32.mrb[0].mxu0
      %3420 = vmatprep.mubr.f32.mxu0 0.0
      %3421 = vmatmul.mubr.f32.gmra.mrb[0].mxu0 %v3292
      %v3422 = vpop.f32.mrb[0].mxu0
      %v3423 = vadd.f32 0.0, %v3422
      %v3424 = vpop.f32.mrb[0].mxu0
      %3425 = vmatprep.mubr.f32.mxu0 0.0
      %3426 = vmatmul.mubr.f32.gmra.mrb[0].mxu0 %v3295
      %v3427 = vpop.f32.mrb[0].mxu0
      %v3428 = vadd.f32 0.0, %v3427
      %v3429 = vpop.f32.mrb[0].mxu0
      %3430 = vmatprep.mubr.f32.mxu0 0.0
      %3431 = vmatmul.mubr.f32.gmra.mrb[0].mxu0 %v3298
      %v3432 = vpop.f32.mrb[0].mxu0
      %v3433 = vadd.f32 0.0, %v3432
      %v3434 = vpop.f32.mrb[0].mxu0
      %3435 = vmatprep.mubr.f32.mxu0 0.0
      %3436 = vmatmul.mubr.f32.gmra.mrb[0].mxu0 %v3301
      %v3437 = vpop.f32.mrb[0].mxu0
      %v3438 = vadd.f32 0.0, %v3437
      %v3439 = vpop.f32.mrb[0].mxu0
      %3440 = vmatprep.mubr.f32.mxu0 0.0
      %3441 = vmatmul.mubr.f32.gmra.mrb[0].mxu0 %v3304
      %v3442 = vpop.f32.mrb[0].mxu0
      %v3443 = vadd.f32 0.0, %v3442
      %v3444 = vpop.f32.mrb[0].mxu0
      %3445 = vmatprep.mubr.f32.mxu0 0.0
      %3446 = vmatmul.mubr.f32.gmra.mrb[0].mxu0 %v3307
      %v3447 = vpop.f32.mrb[0].mxu0
      %v3448 = vadd.f32 0.0, %v3447
      %v3449 = vpop.f32.mrb[0].mxu0
      %3450 = vmatprep.mubr.f32.mxu0 0.0
      %3451 = vmatmul.mubr.f32.gmra.mrb[0].mxu0 %v3310
      %v3452 = vpop.f32.mrb[0].mxu0
      %v3453 = vadd.f32 0.0, %v3452
      %v3454 = vpop.f32.mrb[0].mxu0
      %3455 = vmatprep.mubr.f32.mxu0 0.0
      %3456 = vmatmul.mubr.f32.gmra.mrb[0].mxu0 %v3313
      %v3457 = vpop.f32.mrb[0].mxu0
      %v3458 = vadd.f32 0.0, %v3457
      %v3459 = vpop.f32.mrb[0].mxu0
      %3460 = vmatprep.mubr.f32.mxu0 0.0
      %3461 = vmatmul.mubr.f32.gmra.mrb[0].mxu0 %v3316
      %v3462 = vpop.f32.mrb[0].mxu0
      %v3463 = vadd.f32 0.0, %v3462
      %v3464 = vpop.f32.mrb[0].mxu0
      %3465 = vdwg.mxu0
      %v3466 = vadd.f32 %v3252, %v3388
      %v3467 = vadd.f32 %v3253, %v3393
      %v3468 = vadd.f32 %v3254, %v3398
      %v3469 = vadd.f32 %v3255, %v3403
      %v3470 = vadd.f32 %v3256, %v3408
      %v3471 = vadd.f32 %v3257, %v3413
      %v3472 = vadd.f32 %v3258, %v3418
      %v3473 = vadd.f32 %v3259, %v3423
      %v3474 = vadd.f32 %v3260, %v3428
      %v3475 = vadd.f32 %v3261, %v3433
      %v3476 = vadd.f32 %v3262, %v3438
      %v3477 = vadd.f32 %v3263, %v3443
      %v3478 = vadd.f32 %v3264, %v3448
      %v3479 = vadd.f32 %v3265, %v3453
      %v3480 = vadd.f32 %v3266, %v3458
      %v3481 = vadd.f32 %v3267, %v3463
      %3482 = vst.msk [vmem:[#allocation3] sm:$0xff] %vm1535, %v3466
      %3483 = vst.msk [vmem:[#allocation3 + $0x8] sm:$0xff] %vm1535, %v3467
      %3484 = vst.msk [vmem:[#allocation3 + $0x10] sm:$0xff] %vm1535, %v3468
      %3485 = vst.msk [vmem:[#allocation3 + $0x18] sm:$0xff] %vm1535, %v3469
      %3486 = vst.msk [vmem:[#allocation3 + $0x20] sm:$0xff] %vm1535, %v3470
      %3487 = vst.msk [vmem:[#allocation3 + $0x28] sm:$0xff] %vm1535, %v3471
      %3488 = vst.msk [vmem:[#allocation3 + $0x30] sm:$0xff] %vm1535, %v3472
      %3489 = vst.msk [vmem:[#allocation3 + $0x38] sm:$0xff] %vm1535, %v3473
      %3490 = vst.msk [vmem:[#allocation3 + $0x40] sm:$0xff] %vm1535, %v3474
      %3491 = vst.msk [vmem:[#allocation3 + $0x48] sm:$0xff] %vm1535, %v3475
      %3492 = vst.msk [vmem:[#allocation3 + $0x50] sm:$0xff] %vm1535, %v3476
      %3493 = vst.msk [vmem:[#allocation3 + $0x58] sm:$0xff] %vm1535, %v3477
      %3494 = vst.msk [vmem:[#allocation3 + $0x60] sm:$0xff] %vm1535, %v3478
      %3495 = vst.msk [vmem:[#allocation3 + $0x68] sm:$0xff] %vm1535, %v3479
      %3496 = vst.msk [vmem:[#allocation3 + $0x70] sm:$0xff] %vm1535, %v3480
      %3497 = vst.msk [vmem:[#allocation3 + $0x78] sm:$0xff] %vm1535, %v3481
      %v3498 = vld [vmem:[#allocation3] sm:$0xff]
      %v3499 = vld [vmem:[#allocation3 + $0x8] sm:$0xff]
      %v3500 = vld [vmem:[#allocation3 + $0x10] sm:$0xff]
      %v3501 = vld [vmem:[#allocation3 + $0x18] sm:$0xff]
      %v3502 = vld [vmem:[#allocation3 + $0x20] sm:$0xff]
      %v3503 = vld [vmem:[#allocation3 + $0x28] sm:$0xff]
      %v3504 = vld [vmem:[#allocation3 + $0x30] sm:$0xff]
      %v3505 = vld [vmem:[#allocation3 + $0x38] sm:$0xff]
      %v3506 = vld [vmem:[#allocation3 + $0x40] sm:$0xff]
      %v3507 = vld [vmem:[#allocation3 + $0x48] sm:$0xff]
      %v3508 = vld [vmem:[#allocation3 + $0x50] sm:$0xff]
      %v3509 = vld [vmem:[#allocation3 + $0x58] sm:$0xff]
      %v3510 = vld [vmem:[#allocation3 + $0x60] sm:$0xff]
      %v3511 = vld [vmem:[#allocation3 + $0x68] sm:$0xff]
      %v3512 = vld [vmem:[#allocation3 + $0x70] sm:$0xff]
      %v3513 = vld [vmem:[#allocation3 + $0x78] sm:$0xff]
      %v3514 = vld [vmem:[%s7] sm:$0x1]
      %v3516 = vlaneseq
      %v3517 = vshrl.u32 %v3516, 7
      %v3518 = vsub.s32 0, %v3517
      %v3519 = vrot.slane %v3514, %v3518
      %v3521 = vmul.f32 %v3498, %v3519
      %v3522 = vmul.f32 %v3499, %v3519
      %v3523 = vmul.f32 %v3500, %v3519
      %v3524 = vmul.f32 %v3501, %v3519
      %v3525 = vmul.f32 %v3502, %v3519
      %v3526 = vmul.f32 %v3503, %v3519
      %v3527 = vmul.f32 %v3504, %v3519
      %v3528 = vmul.f32 %v3505, %v3519
      %v3529 = vmul.f32 %v3506, %v3519
      %v3530 = vmul.f32 %v3507, %v3519
      %v3531 = vmul.f32 %v3508, %v3519
      %v3532 = vmul.f32 %v3509, %v3519
      %v3533 = vmul.f32 %v3510, %v3519
      %v3534 = vmul.f32 %v3511, %v3519
      %v3535 = vmul.f32 %v3512, %v3519
      %v3536 = vmul.f32 %v3513, %v3519
      %v3537 = vld [vmem:[%s8] sm:$0x1]
      %v3539 = vlaneseq
      %v3540 = vshrl.u32 %v3539, 7
      %v3541 = vsub.s32 0, %v3540
      %v3542 = vrot.slane %v3537, %v3541
      %v3544 = vadd.f32 %v3521, %v3542
      %v3545 = vadd.f32 %v3522, %v3542
      %v3546 = vadd.f32 %v3523, %v3542
      %v3547 = vadd.f32 %v3524, %v3542
      %v3548 = vadd.f32 %v3525, %v3542
      %v3549 = vadd.f32 %v3526, %v3542
      %v3550 = vadd.f32 %v3527, %v3542
      %v3551 = vadd.f32 %v3528, %v3542
      %v3552 = vadd.f32 %v3529, %v3542
      %v3553 = vadd.f32 %v3530, %v3542
      %v3554 = vadd.f32 %v3531, %v3542
      %v3555 = vadd.f32 %v3532, %v3542
      %v3556 = vadd.f32 %v3533, %v3542
      %v3557 = vadd.f32 %v3534, %v3542
      %v3558 = vadd.f32 %v3535, %v3542
      %v3559 = vadd.f32 %v3536, %v3542
      %v3560 = vmul.f32 %v3544, 0.5
      %v3561 = vmul.f32 %v3545, 0.5
      %v3562 = vmul.f32 %v3546, 0.5
      %v3563 = vmul.f32 %v3547, 0.5
      %v3564 = vmul.f32 %v3548, 0.5
      %v3565 = vmul.f32 %v3549, 0.5
      %v3566 = vmul.f32 %v3550, 0.5
      %v3567 = vmul.f32 %v3551, 0.5
      %v3568 = vmul.f32 %v3552, 0.5
      %v3569 = vmul.f32 %v3553, 0.5
      %v3570 = vmul.f32 %v3554, 0.5
      %v3571 = vmul.f32 %v3555, 0.5
      %v3572 = vmul.f32 %v3556, 0.5
      %v3573 = vmul.f32 %v3557, 0.5
      %v3574 = vmul.f32 %v3558, 0.5
      %v3575 = vmul.f32 %v3559, 0.5
      %v3576 = vtanh.pop %v3560
      %v3577 = vtanh.pop %v3561
      %v3578 = vtanh.pop %v3562
      %v3579 = vtanh.pop %v3563
      %v3580 = vtanh.pop %v3564
      %v3581 = vtanh.pop %v3565
      %v3582 = vtanh.pop %v3566
      %v3583 = vtanh.pop %v3567
      %v3584 = vtanh.pop %v3568
      %v3585 = vtanh.pop %v3569
      %v3586 = vtanh.pop %v3570
      %v3587 = vtanh.pop %v3571
      %v3588 = vtanh.pop %v3572
      %v3589 = vtanh.pop %v3573
      %v3590 = vtanh.pop %v3574
      %v3591 = vtanh.pop %v3575
      %v3592 = vadd.f32 %v3576, 1.0
      %v3593 = vadd.f32 %v3577, 1.0
      %v3594 = vadd.f32 %v3578, 1.0
      %v3595 = vadd.f32 %v3579, 1.0
      %v3596 = vadd.f32 %v3580, 1.0
      %v3597 = vadd.f32 %v3581, 1.0
      %v3598 = vadd.f32 %v3582, 1.0
      %v3599 = vadd.f32 %v3583, 1.0
      %v3600 = vadd.f32 %v3584, 1.0
      %v3601 = vadd.f32 %v3585, 1.0
      %v3602 = vadd.f32 %v3586, 1.0
      %v3603 = vadd.f32 %v3587, 1.0
      %v3604 = vadd.f32 %v3588, 1.0
      %v3605 = vadd.f32 %v3589, 1.0
      %v3606 = vadd.f32 %v3590, 1.0
      %v3607 = vadd.f32 %v3591, 1.0
      %v3608 = vmul.f32 %v3592, 0.5
      %v3609 = vmul.f32 %v3593, 0.5
      %v3610 = vmul.f32 %v3594, 0.5
      %v3611 = vmul.f32 %v3595, 0.5
      %v3612 = vmul.f32 %v3596, 0.5
      %v3613 = vmul.f32 %v3597, 0.5
      %v3614 = vmul.f32 %v3598, 0.5
      %v3615 = vmul.f32 %v3599, 0.5
      %v3616 = vmul.f32 %v3600, 0.5
      %v3617 = vmul.f32 %v3601, 0.5
      %v3618 = vmul.f32 %v3602, 0.5
      %v3619 = vmul.f32 %v3603, 0.5
      %v3620 = vmul.f32 %v3604, 0.5
      %v3621 = vmul.f32 %v3605, 0.5
      %v3622 = vmul.f32 %v3606, 0.5
      %v3623 = vmul.f32 %v3607, 0.5
      %v3624 = vmul.f32 %v3544, %v3608
      %v3625 = vmul.f32 %v3545, %v3609
      %v3626 = vmul.f32 %v3546, %v3610
      %v3627 = vmul.f32 %v3547, %v3611
      %v3628 = vmul.f32 %v3548, %v3612
      %v3629 = vmul.f32 %v3549, %v3613
      %v3630 = vmul.f32 %v3550, %v3614
      %v3631 = vmul.f32 %v3551, %v3615
      %v3632 = vmul.f32 %v3552, %v3616
      %v3633 = vmul.f32 %v3553, %v3617
      %v3634 = vmul.f32 %v3554, %v3618
      %v3635 = vmul.f32 %v3555, %v3619
      %v3636 = vmul.f32 %v3556, %v3620
      %v3637 = vmul.f32 %v3557, %v3621
      %v3638 = vmul.f32 %v3558, %v3622
      %v3639 = vmul.f32 %v3559, %v3623
      %3640 = vst.msk [vmem:[%s495] sm:$0xff] %vm1535, %v3624
      %3641 = vst.msk [vmem:[%s495 + $0x8] sm:$0xff] %vm1535, %v3625
      %3642 = vst.msk [vmem:[%s495 + $0x10] sm:$0xff] %vm1535, %v3626
      %3643 = vst.msk [vmem:[%s495 + $0x18] sm:$0xff] %vm1535, %v3627
      %3644 = vst.msk [vmem:[%s495 + $0x20] sm:$0xff] %vm1535, %v3628
      %3645 = vst.msk [vmem:[%s495 + $0x28] sm:$0xff] %vm1535, %v3629
      %3646 = vst.msk [vmem:[%s495 + $0x30] sm:$0xff] %vm1535, %v3630
      %3647 = vst.msk [vmem:[%s495 + $0x38] sm:$0xff] %vm1535, %v3631
      %3648 = vst.msk [vmem:[%s495 + $0x40] sm:$0xff] %vm1535, %v3632
      %3649 = vst.msk [vmem:[%s495 + $0x48] sm:$0xff] %vm1535, %v3633
      %3650 = vst.msk [vmem:[%s495 + $0x50] sm:$0xff] %vm1535, %v3634
      %3651 = vst.msk [vmem:[%s495 + $0x58] sm:$0xff] %vm1535, %v3635
      %3652 = vst.msk [vmem:[%s495 + $0x60] sm:$0xff] %vm1535, %v3636
      %3653 = vst.msk [vmem:[%s495 + $0x68] sm:$0xff] %vm1535, %v3637
      %3654 = vst.msk [vmem:[%s495 + $0x70] sm:$0xff] %vm1535, %v3638
      %3655 = vst.msk [vmem:[%s495 + $0x78] sm:$0xff] %vm1535, %v3639
      %s3656 = smul.u32 8, %s25
      %p3657 = scmp.lt.s32.totalorder %s24, 1
      %s3658 = scalar_select %p3657, %s24, 1
      %p3659 = scmp.lt.s32.totalorder %s3656, 15
      %s3660 = scalar_select %p3659, %s3656, 15
      %s3661 = smul.addr %s3660, 2
      %s3662 = smul.addr %s3658, 32
      %s3663 = sadd.s32 %s3661, %s3662
      %s3664 = smul.addr %s3663, 8
      %s3665 = scalar_lea.vmem %s9, %s3664
      // Predicated region
      $region65: #{tpu_custom_call.1} parent=55 // pred_check
        %p3666 = pneg %p274
      $region66: #{tpu_custom_call.1} parent=55 // pred_check_branch
        %3668 = sbr.rel (%p3666) target = $region68
      $region67: #{tpu_custom_call.1} parent=55 // pred_region
        %s3669 = smul.u32 8, %s25
      $region68: #{tpu_custom_call.1} parent=55 // pred_fallthru
        _
    $region56: #{tpu_custom_call.1} parent=5 // pred_fallthru
      _
    %p3670 = scmp.le.s32.totalorder 2, %s15
    // Predicated region
    $region69: #{tpu_custom_call.1} parent=5 // pred_check
      %p3671 = pneg %p3670
    $region70: #{tpu_custom_call.1} parent=5 // pred_check_branch
      %3673 = sbr.rel (%p3671) target = $region72
    $region71: #{tpu_custom_call.1} parent=5 // pred_region
      %s3674 = ssub.s32 %s15, 2
      // Predicated region
      $region73: #{tpu_custom_call.1} parent=71 // pred_check
        %p3675 = pneg %p280
      $region74: #{tpu_custom_call.1} parent=71 // pred_check_branch
        %3677 = sbr.rel (%p3675) target = $region76
      $region75: #{tpu_custom_call.1} parent=71 // pred_region
        %s3678 = smul.u32 8, %s27
        %p3679 = scmp.lt.s32.totalorder %s26, 1
        %s3680 = scalar_select %p3679, %s26, 1
        %p3681 = scmp.lt.s32.totalorder %s3678, 15
        %s3682 = scalar_select %p3681, %s3678, 15
        %s3683 = smul.addr %s3682, 2
        %s3684 = smul.addr %s3680, 32
        %s3685 = sadd.s32 %s3683, %s3684
        %s3686 = smul.addr %s3685, 8
        %s3687 = scalar_lea.vmem %s9, %s3686
      $region76: #{tpu_custom_call.1} parent=71 // pred_fallthru
        _
    $region72: #{tpu_custom_call.1} parent=5 // pred_fallthru
      _
  $region6: #{tpu_custom_call.1} parent=0 // loop_footer
    %s19 = sadd.s32 1, %s15
  $region7: #{tpu_custom_call.1} parent=0 // loop_footer_branch
    %14 = sbr.rel target = $region3
  $region8: #{tpu_custom_call.1} parent=0 // loop_exit
    _

</llo_original>
